<compile_context>
chip_gen: v7x
topology: tpu7x:2x2x1
jax: 0.10.0
libtpu: 0.0.40
codegen_flags: <defaults>
</compile_context>

<pallas_src>
import functools
import math

import jax
import jax.numpy as jnp
from jax.experimental import pallas as pl
from jax.experimental.pallas import tpu as pltpu


# ------------------------------ Pallas kernel ------------------------------ #

def _fused_cheb_gconv_kernel(w_ref, b_ref, L_ref, x_ref, out_ref, *, K, Cin, Cout):
    """Fused Chebyshev recurrence + linear projection for one feature tile.

    w_ref  : (Cout*Cin*K,) SMEM  -- flattened torch weight, idx co*Cin*K+ci*K+k
    b_ref  : (Cout,)       SMEM  -- bias (zeros when the module has no bias)
    L_ref  : (N, N)        VMEM  -- dense Laplacian, resident across the grid
    x_ref  : (Cin, N, TF)  VMEM  -- input tile, channel-major layout
    out_ref: (Cout, N, TF) VMEM  -- output tile, channel-major (lane-dense TF)
    """
    L = L_ref[...]
    n_rows, tf = x_ref.shape[1], x_ref.shape[2]

    # Per-output-channel accumulators, initialized with the bias.
    acc = [jnp.zeros((n_rows, tf), jnp.float32) + b_ref[co] for co in range(Cout)]

    def accumulate(term, ci, k):
        # acc[co] += W[co, ci*K + k] * T_k  -- VPU scalar*tile multiply-add.
        for co in range(Cout):
            acc[co] = acc[co] + w_ref[co * Cin * K + ci * K + k] * term

    # Chebyshev chain per input channel; K / Cin are small & static -> unrolled.
    for ci in range(Cin):
        t_prev = x_ref[ci]                                                  # T_0
        accumulate(t_prev, ci, 0)
        t_curr = jnp.dot(L, t_prev, preferred_element_type=jnp.float32)     # T_1
        accumulate(t_curr, ci, 1)
        for k in range(2, K):
            t_next = (2.0 * jnp.dot(L, t_curr,
                                    preferred_element_type=jnp.float32)
                      - t_prev)                                             # T_k
            accumulate(t_next, ci, k)
            t_prev, t_curr = t_curr, t_next

    for co in range(Cout):
        out_ref[co] = acc[co]


# --------------------------------- wrapper --------------------------------- #

def sparse_chebyshev_gconv2d(x, L, weight, bias, receptive_field_k, f_tile=128):
    """Pallas implementation of SparseChebyshevGConv2d.forward.

    x      : (N, Nf, Cin) float32
    L      : (N, N)       float32 (dense Laplacian)
    weight : (Cout, Cin * K) float32
    bias   : (Cout,) float32 or None
    """
    K = receptive_field_k
    assert K >= 2, "PyTorch reference requires receptive_field_k >= 2"
    N, Nf, Cin = x.shape
    Cout = weight.shape[0]
    assert weight.shape == (Cout, Cin * K)
    assert L.shape == (N, N)

    # Feature tile: 128-lane multiple when possible (lane-dense loads/stores),
    # otherwise the whole (small) feature axis.
    tf = f_tile if Nf >= f_tile else Nf
    nf_pad = ((Nf + tf - 1) // tf) * tf
    n_tiles = nf_pad // tf

    # (N, Nf, Cin) -> (Cin, N, Nf): graph-node axis on sublanes, features on
    # lanes for every input channel (matmul-friendly; replaces the original
    # permute(0,2,1) glue).  Zero-pad the feature axis to a tile multiple.
    xT = jnp.transpose(x.astype(jnp.float32), (2, 0, 1))
    if nf_pad != Nf:
        xT = jnp.pad(xT, ((0, 0), (0, 0), (0, nf_pad - Nf)))

    w_flat = weight.astype(jnp.float32).reshape(-1)            # (Cout*Cin*K,)
    if bias is None:
        b_vec = jnp.zeros((Cout,), jnp.float32)
    else:
        b_vec = bias.astype(jnp.float32).reshape(Cout)

    # VMEM budget: resident L + double-buffered in/out tiles + live temporaries.
    est_bytes = 4 * (N * N
                     + 2 * Cin * N * tf        # input tile, double-buffered
                     + 2 * Cout * N * tf       # output tile, double-buffered
                     + (Cout + 4) * N * tf)    # accumulators + recurrence temps
    vmem_limit = int(min(64 * 2**20, max(16 * 2**20, est_bytes + 4 * 2**20)))

    out3 = pl.pallas_call(
        functools.partial(_fused_cheb_gconv_kernel, K=K, Cin=Cin, Cout=Cout),
        grid=(n_tiles,),
        in_specs=[
            # Tiny weight / bias tables live in SMEM (scalar reads in-kernel).
            pl.BlockSpec(memory_space=pltpu.MemorySpace.SMEM),
            pl.BlockSpec(memory_space=pltpu.MemorySpace.SMEM),
            # L stays VMEM-resident across all grid steps.
            pl.BlockSpec((N, N), lambda j: (0, 0)),
            # Stream feature tiles of the (channel-major) input.
            pl.BlockSpec((Cin, N, tf), lambda j: (0, 0, j)),
        ],
        out_specs=pl.BlockSpec((Cout, N, tf), lambda j: (0, 0, j)),
        out_shape=jax.ShapeDtypeStruct((Cout, N, nf_pad), jnp.float32),
        compiler_params=pltpu.CompilerParams(
            dimension_semantics=("parallel",),
            vmem_limit_bytes=vmem_limit),
    )(w_flat, b_vec, L.astype(jnp.float32), xT)

    # (Cout, N, Nf) -> (N, Nf, Cout); drop feature padding.
    return jnp.transpose(out3[:, :, :Nf], (1, 2, 0))


# ---------------------------- pure-JAX reference ---------------------------- #

def _reference(x, L, weight, bias, K):
    N, Nf, Cin = x.shape
    Cout = weight.shape[0]
    x0 = jnp.transpose(x, (0, 2, 1)).reshape(N, Cin * Nf)
    terms = [x0, L @ x0]
    for _ in range(2, K):
        terms.append(2.0 * (L @ terms[-1]) - terms[-2])
    xt = jnp.stack(terms, 0)
    z = xt.reshape(K, N, Cin, Nf).transpose(1, 3, 2, 0).reshape(N * Nf, Cin * K)
    out = z @ weight.T
    if bias is not None:
        out = out + bias
    return out.reshape(N, Nf, Cout)


# ----------------------------------- main ----------------------------------- #

if __name__ == "__main__":
    # Small but TPU-friendly problem: 128 graph nodes, 256 features, K=3.
    N = 128       # n_batch (graph-node axis that L multiplies)
    Nf = 256      # n_features  -> 2 feature tiles of 128 => grid=(2,)
    Cin = 4       # gconv_filters_in
    Cout = 8      # gconv_filters_out
    K = 3         # receptive_field_k

    key = jax.random.PRNGKey(0)
    kx, kl, kw, kb = jax.random.split(key, 4)

    x = jax.random.normal(kx, (N, Nf, Cin), dtype=jnp.float32)

    # Deterministic symmetric "scaled Laplacian"-like matrix, well-normalized.
    A = jax.random.uniform(kl, (N, N), dtype=jnp.float32)
    A = 0.5 * (A + A.T)
    L = A - jnp.diag(jnp.sum(A, axis=1))
    L = L / (jnp.max(jnp.abs(L)) + 1e-6)

    # Parameter init mirroring nn.init.kaiming_uniform_(a=sqrt(5)) + bias bound.
    fan_in = Cin * K
    w_bound = math.sqrt(6.0 / ((1.0 + 5.0) * fan_in))
    weight = jax.random.uniform(kw, (Cout, Cin * K), dtype=jnp.float32,
                                minval=-w_bound, maxval=w_bound)
    b_bound = 1.0 / math.sqrt(fan_in)
    bias = jax.random.uniform(kb, (Cout,), dtype=jnp.float32,
                              minval=-b_bound, maxval=b_bound)

    fwd = jax.jit(functools.partial(sparse_chebyshev_gconv2d,
                                    receptive_field_k=K))
    out = jax.block_until_ready(fwd(x, L, weight, bias))

    ref = _reference(x, L, weight, bias, K)
    assert out.shape == (N, Nf, Cout)
    # Tolerance accounts for default (single-pass bf16) MXU precision in the
    # kernel vs. whatever precision XLA picks for the reference matmuls.
    assert jnp.allclose(out, ref, rtol=2e-2, atol=2e-2), "mismatch vs reference"

    print("KERNEL_OK")
</pallas_src>

<mosaic_0001>
module attributes {stable_mosaic.version = 11 : i64} {
  func.func @_fused_cheb_gconv_kernel(%arg0: i32, %arg1: memref<96xf32, #tpu.memory_space<smem>>, %arg2: memref<8xf32, #tpu.memory_space<smem>>, %arg3: memref<128x128xf32, #tpu.memory_space<vmem>>, %arg4: memref<4x128x128xf32, #tpu.memory_space<vmem>>, %arg5: memref<8x128x128xf32, #tpu.memory_space<vmem>>) attributes {dimension_semantics = [#tpu.dimension_semantics<parallel>], iteration_bounds = array<i64: 2>, scalar_prefetch = 0 : i64, scratch_operands = 0 : i64, tpu.core_type = #tpu.core_type<tc>, window_params = [{transform_indices = @transform_0, window_bounds = array<i64: 96>}, {transform_indices = @transform_1, window_bounds = array<i64: 8>}, {pipeline_mode = #tpu.pipeline_mode<synchronous>, transform_indices = @transform_2, window_bounds = array<i64: 128, 128>}, {transform_indices = @transform_3, window_bounds = array<i64: 4, 128, 128>}, {transform_indices = @transform_4, window_bounds = array<i64: 8, 128, 128>}]} {
    %c0 = arith.constant 0 : index
    %c0_0 = arith.constant 0 : index
    %0 = vector.load %arg3[%c0, %c0_0] : memref<128x128xf32, #tpu.memory_space<vmem>>, vector<128x128xf32>
    %cst = arith.constant 0.000000e+00 : f32
    %1 = vector.broadcast %cst : f32 to vector<128x128xf32>
    %c0_1 = arith.constant 0 : index
    %2 = memref.load %arg2[%c0_1] : memref<8xf32, #tpu.memory_space<smem>>
    %3 = vector.broadcast %2 : f32 to vector<128x128xf32>
    %4 = arith.addf %1, %3 : vector<128x128xf32>
    %cst_2 = arith.constant 0.000000e+00 : f32
    %5 = vector.broadcast %cst_2 : f32 to vector<128x128xf32>
    %c1 = arith.constant 1 : index
    %6 = memref.load %arg2[%c1] : memref<8xf32, #tpu.memory_space<smem>>
    %7 = vector.broadcast %6 : f32 to vector<128x128xf32>
    %8 = arith.addf %5, %7 : vector<128x128xf32>
    %cst_3 = arith.constant 0.000000e+00 : f32
    %9 = vector.broadcast %cst_3 : f32 to vector<128x128xf32>
    %c2 = arith.constant 2 : index
    %10 = memref.load %arg2[%c2] : memref<8xf32, #tpu.memory_space<smem>>
    %11 = vector.broadcast %10 : f32 to vector<128x128xf32>
    %12 = arith.addf %9, %11 : vector<128x128xf32>
    %cst_4 = arith.constant 0.000000e+00 : f32
    %13 = vector.broadcast %cst_4 : f32 to vector<128x128xf32>
    %c3 = arith.constant 3 : index
    %14 = memref.load %arg2[%c3] : memref<8xf32, #tpu.memory_space<smem>>
    %15 = vector.broadcast %14 : f32 to vector<128x128xf32>
    %16 = arith.addf %13, %15 : vector<128x128xf32>
    %cst_5 = arith.constant 0.000000e+00 : f32
    %17 = vector.broadcast %cst_5 : f32 to vector<128x128xf32>
    %c4 = arith.constant 4 : index
    %18 = memref.load %arg2[%c4] : memref<8xf32, #tpu.memory_space<smem>>
    %19 = vector.broadcast %18 : f32 to vector<128x128xf32>
    %20 = arith.addf %17, %19 : vector<128x128xf32>
    %cst_6 = arith.constant 0.000000e+00 : f32
    %21 = vector.broadcast %cst_6 : f32 to vector<128x128xf32>
    %c5 = arith.constant 5 : index
    %22 = memref.load %arg2[%c5] : memref<8xf32, #tpu.memory_space<smem>>
    %23 = vector.broadcast %22 : f32 to vector<128x128xf32>
    %24 = arith.addf %21, %23 : vector<128x128xf32>
    %cst_7 = arith.constant 0.000000e+00 : f32
    %25 = vector.broadcast %cst_7 : f32 to vector<128x128xf32>
    %c6 = arith.constant 6 : index
    %26 = memref.load %arg2[%c6] : memref<8xf32, #tpu.memory_space<smem>>
    %27 = vector.broadcast %26 : f32 to vector<128x128xf32>
    %28 = arith.addf %25, %27 : vector<128x128xf32>
    %cst_8 = arith.constant 0.000000e+00 : f32
    %29 = vector.broadcast %cst_8 : f32 to vector<128x128xf32>
    %c7 = arith.constant 7 : index
    %30 = memref.load %arg2[%c7] : memref<8xf32, #tpu.memory_space<smem>>
    %31 = vector.broadcast %30 : f32 to vector<128x128xf32>
    %32 = arith.addf %29, %31 : vector<128x128xf32>
    %c0_9 = arith.constant 0 : index
    %c0_10 = arith.constant 0 : index
    %c0_11 = arith.constant 0 : index
    %33 = vector.load %arg4[%c0_9, %c0_10, %c0_11] : memref<4x128x128xf32, #tpu.memory_space<vmem>>, vector<1x128x128xf32>
    %34 = vector.shape_cast %33 : vector<1x128x128xf32> to vector<128x128xf32>
    %c0_12 = arith.constant 0 : index
    %35 = memref.load %arg1[%c0_12] : memref<96xf32, #tpu.memory_space<smem>>
    %36 = vector.broadcast %35 : f32 to vector<128x128xf32>
    %37 = arith.mulf %36, %34 : vector<128x128xf32>
    %38 = arith.addf %4, %37 : vector<128x128xf32>
    %c12 = arith.constant 12 : index
    %39 = memref.load %arg1[%c12] : memref<96xf32, #tpu.memory_space<smem>>
    %40 = vector.broadcast %39 : f32 to vector<128x128xf32>
    %41 = arith.mulf %40, %34 : vector<128x128xf32>
    %42 = arith.addf %8, %41 : vector<128x128xf32>
    %c24 = arith.constant 24 : index
    %43 = memref.load %arg1[%c24] : memref<96xf32, #tpu.memory_space<smem>>
    %44 = vector.broadcast %43 : f32 to vector<128x128xf32>
    %45 = arith.mulf %44, %34 : vector<128x128xf32>
    %46 = arith.addf %12, %45 : vector<128x128xf32>
    %c36 = arith.constant 36 : index
    %47 = memref.load %arg1[%c36] : memref<96xf32, #tpu.memory_space<smem>>
    %48 = vector.broadcast %47 : f32 to vector<128x128xf32>
    %49 = arith.mulf %48, %34 : vector<128x128xf32>
    %50 = arith.addf %16, %49 : vector<128x128xf32>
    %c48 = arith.constant 48 : index
    %51 = memref.load %arg1[%c48] : memref<96xf32, #tpu.memory_space<smem>>
    %52 = vector.broadcast %51 : f32 to vector<128x128xf32>
    %53 = arith.mulf %52, %34 : vector<128x128xf32>
    %54 = arith.addf %20, %53 : vector<128x128xf32>
    %c60 = arith.constant 60 : index
    %55 = memref.load %arg1[%c60] : memref<96xf32, #tpu.memory_space<smem>>
    %56 = vector.broadcast %55 : f32 to vector<128x128xf32>
    %57 = arith.mulf %56, %34 : vector<128x128xf32>
    %58 = arith.addf %24, %57 : vector<128x128xf32>
    %c72 = arith.constant 72 : index
    %59 = memref.load %arg1[%c72] : memref<96xf32, #tpu.memory_space<smem>>
    %60 = vector.broadcast %59 : f32 to vector<128x128xf32>
    %61 = arith.mulf %60, %34 : vector<128x128xf32>
    %62 = arith.addf %28, %61 : vector<128x128xf32>
    %c84 = arith.constant 84 : index
    %63 = memref.load %arg1[%c84] : memref<96xf32, #tpu.memory_space<smem>>
    %64 = vector.broadcast %63 : f32 to vector<128x128xf32>
    %65 = arith.mulf %64, %34 : vector<128x128xf32>
    %66 = arith.addf %32, %65 : vector<128x128xf32>
    %cst_13 = arith.constant dense<0.000000e+00> : vector<128x128xf32>
    %67 = tpu.matmul %0, %34, %cst_13 {dimension_numbers = #tpu.dot_dimension_numbers<[1], [0], [0], [1], [0, 0, 1, 1], [], []>} : vector<128x128xf32>, vector<128x128xf32>, vector<128x128xf32> -> vector<128x128xf32>
    %c1_14 = arith.constant 1 : index
    %68 = memref.load %arg1[%c1_14] : memref<96xf32, #tpu.memory_space<smem>>
    %69 = vector.broadcast %68 : f32 to vector<128x128xf32>
    %70 = arith.mulf %69, %67 : vector<128x128xf32>
    %71 = arith.addf %38, %70 : vector<128x128xf32>
    %c13 = arith.constant 13 : index
    %72 = memref.load %arg1[%c13] : memref<96xf32, #tpu.memory_space<smem>>
    %73 = vector.broadcast %72 : f32 to vector<128x128xf32>
    %74 = arith.mulf %73, %67 : vector<128x128xf32>
    %75 = arith.addf %42, %74 : vector<128x128xf32>
    %c25 = arith.constant 25 : index
    %76 = memref.load %arg1[%c25] : memref<96xf32, #tpu.memory_space<smem>>
    %77 = vector.broadcast %76 : f32 to vector<128x128xf32>
    %78 = arith.mulf %77, %67 : vector<128x128xf32>
    %79 = arith.addf %46, %78 : vector<128x128xf32>
    %c37 = arith.constant 37 : index
    %80 = memref.load %arg1[%c37] : memref<96xf32, #tpu.memory_space<smem>>
    %81 = vector.broadcast %80 : f32 to vector<128x128xf32>
    %82 = arith.mulf %81, %67 : vector<128x128xf32>
    %83 = arith.addf %50, %82 : vector<128x128xf32>
    %c49 = arith.constant 49 : index
    %84 = memref.load %arg1[%c49] : memref<96xf32, #tpu.memory_space<smem>>
    %85 = vector.broadcast %84 : f32 to vector<128x128xf32>
    %86 = arith.mulf %85, %67 : vector<128x128xf32>
    %87 = arith.addf %54, %86 : vector<128x128xf32>
    %c61 = arith.constant 61 : index
    %88 = memref.load %arg1[%c61] : memref<96xf32, #tpu.memory_space<smem>>
    %89 = vector.broadcast %88 : f32 to vector<128x128xf32>
    %90 = arith.mulf %89, %67 : vector<128x128xf32>
    %91 = arith.addf %58, %90 : vector<128x128xf32>
    %c73 = arith.constant 73 : index
    %92 = memref.load %arg1[%c73] : memref<96xf32, #tpu.memory_space<smem>>
    %93 = vector.broadcast %92 : f32 to vector<128x128xf32>
    %94 = arith.mulf %93, %67 : vector<128x128xf32>
    %95 = arith.addf %62, %94 : vector<128x128xf32>
    %c85 = arith.constant 85 : index
    %96 = memref.load %arg1[%c85] : memref<96xf32, #tpu.memory_space<smem>>
    %97 = vector.broadcast %96 : f32 to vector<128x128xf32>
    %98 = arith.mulf %97, %67 : vector<128x128xf32>
    %99 = arith.addf %66, %98 : vector<128x128xf32>
    %cst_15 = arith.constant dense<0.000000e+00> : vector<128x128xf32>
    %100 = tpu.matmul %0, %67, %cst_15 {dimension_numbers = #tpu.dot_dimension_numbers<[1], [0], [0], [1], [0, 0, 1, 1], [], []>} : vector<128x128xf32>, vector<128x128xf32>, vector<128x128xf32> -> vector<128x128xf32>
    %cst_16 = arith.constant 2.000000e+00 : f32
    %101 = vector.broadcast %cst_16 : f32 to vector<128x128xf32>
    %102 = arith.mulf %101, %100 : vector<128x128xf32>
    %103 = arith.subf %102, %34 : vector<128x128xf32>
    %c2_17 = arith.constant 2 : index
    %104 = memref.load %arg1[%c2_17] : memref<96xf32, #tpu.memory_space<smem>>
    %105 = vector.broadcast %104 : f32 to vector<128x128xf32>
    %106 = arith.mulf %105, %103 : vector<128x128xf32>
    %107 = arith.addf %71, %106 : vector<128x128xf32>
    %c14 = arith.constant 14 : index
    %108 = memref.load %arg1[%c14] : memref<96xf32, #tpu.memory_space<smem>>
    %109 = vector.broadcast %108 : f32 to vector<128x128xf32>
    %110 = arith.mulf %109, %103 : vector<128x128xf32>
    %111 = arith.addf %75, %110 : vector<128x128xf32>
    %c26 = arith.constant 26 : index
    %112 = memref.load %arg1[%c26] : memref<96xf32, #tpu.memory_space<smem>>
    %113 = vector.broadcast %112 : f32 to vector<128x128xf32>
    %114 = arith.mulf %113, %103 : vector<128x128xf32>
    %115 = arith.addf %79, %114 : vector<128x128xf32>
    %c38 = arith.constant 38 : index
    %116 = memref.load %arg1[%c38] : memref<96xf32, #tpu.memory_space<smem>>
    %117 = vector.broadcast %116 : f32 to vector<128x128xf32>
    %118 = arith.mulf %117, %103 : vector<128x128xf32>
    %119 = arith.addf %83, %118 : vector<128x128xf32>
    %c50 = arith.constant 50 : index
    %120 = memref.load %arg1[%c50] : memref<96xf32, #tpu.memory_space<smem>>
    %121 = vector.broadcast %120 : f32 to vector<128x128xf32>
    %122 = arith.mulf %121, %103 : vector<128x128xf32>
    %123 = arith.addf %87, %122 : vector<128x128xf32>
    %c62 = arith.constant 62 : index
    %124 = memref.load %arg1[%c62] : memref<96xf32, #tpu.memory_space<smem>>
    %125 = vector.broadcast %124 : f32 to vector<128x128xf32>
    %126 = arith.mulf %125, %103 : vector<128x128xf32>
    %127 = arith.addf %91, %126 : vector<128x128xf32>
    %c74 = arith.constant 74 : index
    %128 = memref.load %arg1[%c74] : memref<96xf32, #tpu.memory_space<smem>>
    %129 = vector.broadcast %128 : f32 to vector<128x128xf32>
    %130 = arith.mulf %129, %103 : vector<128x128xf32>
    %131 = arith.addf %95, %130 : vector<128x128xf32>
    %c86 = arith.constant 86 : index
    %132 = memref.load %arg1[%c86] : memref<96xf32, #tpu.memory_space<smem>>
    %133 = vector.broadcast %132 : f32 to vector<128x128xf32>
    %134 = arith.mulf %133, %103 : vector<128x128xf32>
    %135 = arith.addf %99, %134 : vector<128x128xf32>
    %c1_18 = arith.constant 1 : index
    %c0_19 = arith.constant 0 : index
    %c0_20 = arith.constant 0 : index
    %136 = vector.load %arg4[%c1_18, %c0_19, %c0_20] : memref<4x128x128xf32, #tpu.memory_space<vmem>>, vector<1x128x128xf32>
    %137 = vector.shape_cast %136 : vector<1x128x128xf32> to vector<128x128xf32>
    %c3_21 = arith.constant 3 : index
    %138 = memref.load %arg1[%c3_21] : memref<96xf32, #tpu.memory_space<smem>>
    %139 = vector.broadcast %138 : f32 to vector<128x128xf32>
    %140 = arith.mulf %139, %137 : vector<128x128xf32>
    %141 = arith.addf %107, %140 : vector<128x128xf32>
    %c15 = arith.constant 15 : index
    %142 = memref.load %arg1[%c15] : memref<96xf32, #tpu.memory_space<smem>>
    %143 = vector.broadcast %142 : f32 to vector<128x128xf32>
    %144 = arith.mulf %143, %137 : vector<128x128xf32>
    %145 = arith.addf %111, %144 : vector<128x128xf32>
    %c27 = arith.constant 27 : index
    %146 = memref.load %arg1[%c27] : memref<96xf32, #tpu.memory_space<smem>>
    %147 = vector.broadcast %146 : f32 to vector<128x128xf32>
    %148 = arith.mulf %147, %137 : vector<128x128xf32>
    %149 = arith.addf %115, %148 : vector<128x128xf32>
    %c39 = arith.constant 39 : index
    %150 = memref.load %arg1[%c39] : memref<96xf32, #tpu.memory_space<smem>>
    %151 = vector.broadcast %150 : f32 to vector<128x128xf32>
    %152 = arith.mulf %151, %137 : vector<128x128xf32>
    %153 = arith.addf %119, %152 : vector<128x128xf32>
    %c51 = arith.constant 51 : index
    %154 = memref.load %arg1[%c51] : memref<96xf32, #tpu.memory_space<smem>>
    %155 = vector.broadcast %154 : f32 to vector<128x128xf32>
    %156 = arith.mulf %155, %137 : vector<128x128xf32>
    %157 = arith.addf %123, %156 : vector<128x128xf32>
    %c63 = arith.constant 63 : index
    %158 = memref.load %arg1[%c63] : memref<96xf32, #tpu.memory_space<smem>>
    %159 = vector.broadcast %158 : f32 to vector<128x128xf32>
    %160 = arith.mulf %159, %137 : vector<128x128xf32>
    %161 = arith.addf %127, %160 : vector<128x128xf32>
    %c75 = arith.constant 75 : index
    %162 = memref.load %arg1[%c75] : memref<96xf32, #tpu.memory_space<smem>>
    %163 = vector.broadcast %162 : f32 to vector<128x128xf32>
    %164 = arith.mulf %163, %137 : vector<128x128xf32>
    %165 = arith.addf %131, %164 : vector<128x128xf32>
    %c87 = arith.constant 87 : index
    %166 = memref.load %arg1[%c87] : memref<96xf32, #tpu.memory_space<smem>>
    %167 = vector.broadcast %166 : f32 to vector<128x128xf32>
    %168 = arith.mulf %167, %137 : vector<128x128xf32>
    %169 = arith.addf %135, %168 : vector<128x128xf32>
    %cst_22 = arith.constant dense<0.000000e+00> : vector<128x128xf32>
    %170 = tpu.matmul %0, %137, %cst_22 {dimension_numbers = #tpu.dot_dimension_numbers<[1], [0], [0], [1], [0, 0, 1, 1], [], []>} : vector<128x128xf32>, vector<128x128xf32>, vector<128x128xf32> -> vector<128x128xf32>
    %c4_23 = arith.constant 4 : index
    %171 = memref.load %arg1[%c4_23] : memref<96xf32, #tpu.memory_space<smem>>
    %172 = vector.broadcast %171 : f32 to vector<128x128xf32>
    %173 = arith.mulf %172, %170 : vector<128x128xf32>
    %174 = arith.addf %141, %173 : vector<128x128xf32>
    %c16 = arith.constant 16 : index
    %175 = memref.load %arg1[%c16] : memref<96xf32, #tpu.memory_space<smem>>
    %176 = vector.broadcast %175 : f32 to vector<128x128xf32>
    %177 = arith.mulf %176, %170 : vector<128x128xf32>
    %178 = arith.addf %145, %177 : vector<128x128xf32>
    %c28 = arith.constant 28 : index
    %179 = memref.load %arg1[%c28] : memref<96xf32, #tpu.memory_space<smem>>
    %180 = vector.broadcast %179 : f32 to vector<128x128xf32>
    %181 = arith.mulf %180, %170 : vector<128x128xf32>
    %182 = arith.addf %149, %181 : vector<128x128xf32>
    %c40 = arith.constant 40 : index
    %183 = memref.load %arg1[%c40] : memref<96xf32, #tpu.memory_space<smem>>
    %184 = vector.broadcast %183 : f32 to vector<128x128xf32>
    %185 = arith.mulf %184, %170 : vector<128x128xf32>
    %186 = arith.addf %153, %185 : vector<128x128xf32>
    %c52 = arith.constant 52 : index
    %187 = memref.load %arg1[%c52] : memref<96xf32, #tpu.memory_space<smem>>
    %188 = vector.broadcast %187 : f32 to vector<128x128xf32>
    %189 = arith.mulf %188, %170 : vector<128x128xf32>
    %190 = arith.addf %157, %189 : vector<128x128xf32>
    %c64 = arith.constant 64 : index
    %191 = memref.load %arg1[%c64] : memref<96xf32, #tpu.memory_space<smem>>
    %192 = vector.broadcast %191 : f32 to vector<128x128xf32>
    %193 = arith.mulf %192, %170 : vector<128x128xf32>
    %194 = arith.addf %161, %193 : vector<128x128xf32>
    %c76 = arith.constant 76 : index
    %195 = memref.load %arg1[%c76] : memref<96xf32, #tpu.memory_space<smem>>
    %196 = vector.broadcast %195 : f32 to vector<128x128xf32>
    %197 = arith.mulf %196, %170 : vector<128x128xf32>
    %198 = arith.addf %165, %197 : vector<128x128xf32>
    %c88 = arith.constant 88 : index
    %199 = memref.load %arg1[%c88] : memref<96xf32, #tpu.memory_space<smem>>
    %200 = vector.broadcast %199 : f32 to vector<128x128xf32>
    %201 = arith.mulf %200, %170 : vector<128x128xf32>
    %202 = arith.addf %169, %201 : vector<128x128xf32>
    %cst_24 = arith.constant dense<0.000000e+00> : vector<128x128xf32>
    %203 = tpu.matmul %0, %170, %cst_24 {dimension_numbers = #tpu.dot_dimension_numbers<[1], [0], [0], [1], [0, 0, 1, 1], [], []>} : vector<128x128xf32>, vector<128x128xf32>, vector<128x128xf32> -> vector<128x128xf32>
    %cst_25 = arith.constant 2.000000e+00 : f32
    %204 = vector.broadcast %cst_25 : f32 to vector<128x128xf32>
    %205 = arith.mulf %204, %203 : vector<128x128xf32>
    %206 = arith.subf %205, %137 : vector<128x128xf32>
    %c5_26 = arith.constant 5 : index
    %207 = memref.load %arg1[%c5_26] : memref<96xf32, #tpu.memory_space<smem>>
    %208 = vector.broadcast %207 : f32 to vector<128x128xf32>
    %209 = arith.mulf %208, %206 : vector<128x128xf32>
    %210 = arith.addf %174, %209 : vector<128x128xf32>
    %c17 = arith.constant 17 : index
    %211 = memref.load %arg1[%c17] : memref<96xf32, #tpu.memory_space<smem>>
    %212 = vector.broadcast %211 : f32 to vector<128x128xf32>
    %213 = arith.mulf %212, %206 : vector<128x128xf32>
    %214 = arith.addf %178, %213 : vector<128x128xf32>
    %c29 = arith.constant 29 : index
    %215 = memref.load %arg1[%c29] : memref<96xf32, #tpu.memory_space<smem>>
    %216 = vector.broadcast %215 : f32 to vector<128x128xf32>
    %217 = arith.mulf %216, %206 : vector<128x128xf32>
    %218 = arith.addf %182, %217 : vector<128x128xf32>
    %c41 = arith.constant 41 : index
    %219 = memref.load %arg1[%c41] : memref<96xf32, #tpu.memory_space<smem>>
    %220 = vector.broadcast %219 : f32 to vector<128x128xf32>
    %221 = arith.mulf %220, %206 : vector<128x128xf32>
    %222 = arith.addf %186, %221 : vector<128x128xf32>
    %c53 = arith.constant 53 : index
    %223 = memref.load %arg1[%c53] : memref<96xf32, #tpu.memory_space<smem>>
    %224 = vector.broadcast %223 : f32 to vector<128x128xf32>
    %225 = arith.mulf %224, %206 : vector<128x128xf32>
    %226 = arith.addf %190, %225 : vector<128x128xf32>
    %c65 = arith.constant 65 : index
    %227 = memref.load %arg1[%c65] : memref<96xf32, #tpu.memory_space<smem>>
    %228 = vector.broadcast %227 : f32 to vector<128x128xf32>
    %229 = arith.mulf %228, %206 : vector<128x128xf32>
    %230 = arith.addf %194, %229 : vector<128x128xf32>
    %c77 = arith.constant 77 : index
    %231 = memref.load %arg1[%c77] : memref<96xf32, #tpu.memory_space<smem>>
    %232 = vector.broadcast %231 : f32 to vector<128x128xf32>
    %233 = arith.mulf %232, %206 : vector<128x128xf32>
    %234 = arith.addf %198, %233 : vector<128x128xf32>
    %c89 = arith.constant 89 : index
    %235 = memref.load %arg1[%c89] : memref<96xf32, #tpu.memory_space<smem>>
    %236 = vector.broadcast %235 : f32 to vector<128x128xf32>
    %237 = arith.mulf %236, %206 : vector<128x128xf32>
    %238 = arith.addf %202, %237 : vector<128x128xf32>
    %c2_27 = arith.constant 2 : index
    %c0_28 = arith.constant 0 : index
    %c0_29 = arith.constant 0 : index
    %239 = vector.load %arg4[%c2_27, %c0_28, %c0_29] : memref<4x128x128xf32, #tpu.memory_space<vmem>>, vector<1x128x128xf32>
    %240 = vector.shape_cast %239 : vector<1x128x128xf32> to vector<128x128xf32>
    %c6_30 = arith.constant 6 : index
    %241 = memref.load %arg1[%c6_30] : memref<96xf32, #tpu.memory_space<smem>>
    %242 = vector.broadcast %241 : f32 to vector<128x128xf32>
    %243 = arith.mulf %242, %240 : vector<128x128xf32>
    %244 = arith.addf %210, %243 : vector<128x128xf32>
    %c18 = arith.constant 18 : index
    %245 = memref.load %arg1[%c18] : memref<96xf32, #tpu.memory_space<smem>>
    %246 = vector.broadcast %245 : f32 to vector<128x128xf32>
    %247 = arith.mulf %246, %240 : vector<128x128xf32>
    %248 = arith.addf %214, %247 : vector<128x128xf32>
    %c30 = arith.constant 30 : index
    %249 = memref.load %arg1[%c30] : memref<96xf32, #tpu.memory_space<smem>>
    %250 = vector.broadcast %249 : f32 to vector<128x128xf32>
    %251 = arith.mulf %250, %240 : vector<128x128xf32>
    %252 = arith.addf %218, %251 : vector<128x128xf32>
    %c42 = arith.constant 42 : index
    %253 = memref.load %arg1[%c42] : memref<96xf32, #tpu.memory_space<smem>>
    %254 = vector.broadcast %253 : f32 to vector<128x128xf32>
    %255 = arith.mulf %254, %240 : vector<128x128xf32>
    %256 = arith.addf %222, %255 : vector<128x128xf32>
    %c54 = arith.constant 54 : index
    %257 = memref.load %arg1[%c54] : memref<96xf32, #tpu.memory_space<smem>>
    %258 = vector.broadcast %257 : f32 to vector<128x128xf32>
    %259 = arith.mulf %258, %240 : vector<128x128xf32>
    %260 = arith.addf %226, %259 : vector<128x128xf32>
    %c66 = arith.constant 66 : index
    %261 = memref.load %arg1[%c66] : memref<96xf32, #tpu.memory_space<smem>>
    %262 = vector.broadcast %261 : f32 to vector<128x128xf32>
    %263 = arith.mulf %262, %240 : vector<128x128xf32>
    %264 = arith.addf %230, %263 : vector<128x128xf32>
    %c78 = arith.constant 78 : index
    %265 = memref.load %arg1[%c78] : memref<96xf32, #tpu.memory_space<smem>>
    %266 = vector.broadcast %265 : f32 to vector<128x128xf32>
    %267 = arith.mulf %266, %240 : vector<128x128xf32>
    %268 = arith.addf %234, %267 : vector<128x128xf32>
    %c90 = arith.constant 90 : index
    %269 = memref.load %arg1[%c90] : memref<96xf32, #tpu.memory_space<smem>>
    %270 = vector.broadcast %269 : f32 to vector<128x128xf32>
    %271 = arith.mulf %270, %240 : vector<128x128xf32>
    %272 = arith.addf %238, %271 : vector<128x128xf32>
    %cst_31 = arith.constant dense<0.000000e+00> : vector<128x128xf32>
    %273 = tpu.matmul %0, %240, %cst_31 {dimension_numbers = #tpu.dot_dimension_numbers<[1], [0], [0], [1], [0, 0, 1, 1], [], []>} : vector<128x128xf32>, vector<128x128xf32>, vector<128x128xf32> -> vector<128x128xf32>
    %c7_32 = arith.constant 7 : index
    %274 = memref.load %arg1[%c7_32] : memref<96xf32, #tpu.memory_space<smem>>
    %275 = vector.broadcast %274 : f32 to vector<128x128xf32>
    %276 = arith.mulf %275, %273 : vector<128x128xf32>
    %277 = arith.addf %244, %276 : vector<128x128xf32>
    %c19 = arith.constant 19 : index
    %278 = memref.load %arg1[%c19] : memref<96xf32, #tpu.memory_space<smem>>
    %279 = vector.broadcast %278 : f32 to vector<128x128xf32>
    %280 = arith.mulf %279, %273 : vector<128x128xf32>
    %281 = arith.addf %248, %280 : vector<128x128xf32>
    %c31 = arith.constant 31 : index
    %282 = memref.load %arg1[%c31] : memref<96xf32, #tpu.memory_space<smem>>
    %283 = vector.broadcast %282 : f32 to vector<128x128xf32>
    %284 = arith.mulf %283, %273 : vector<128x128xf32>
    %285 = arith.addf %252, %284 : vector<128x128xf32>
    %c43 = arith.constant 43 : index
    %286 = memref.load %arg1[%c43] : memref<96xf32, #tpu.memory_space<smem>>
    %287 = vector.broadcast %286 : f32 to vector<128x128xf32>
    %288 = arith.mulf %287, %273 : vector<128x128xf32>
    %289 = arith.addf %256, %288 : vector<128x128xf32>
    %c55 = arith.constant 55 : index
    %290 = memref.load %arg1[%c55] : memref<96xf32, #tpu.memory_space<smem>>
    %291 = vector.broadcast %290 : f32 to vector<128x128xf32>
    %292 = arith.mulf %291, %273 : vector<128x128xf32>
    %293 = arith.addf %260, %292 : vector<128x128xf32>
    %c67 = arith.constant 67 : index
    %294 = memref.load %arg1[%c67] : memref<96xf32, #tpu.memory_space<smem>>
    %295 = vector.broadcast %294 : f32 to vector<128x128xf32>
    %296 = arith.mulf %295, %273 : vector<128x128xf32>
    %297 = arith.addf %264, %296 : vector<128x128xf32>
    %c79 = arith.constant 79 : index
    %298 = memref.load %arg1[%c79] : memref<96xf32, #tpu.memory_space<smem>>
    %299 = vector.broadcast %298 : f32 to vector<128x128xf32>
    %300 = arith.mulf %299, %273 : vector<128x128xf32>
    %301 = arith.addf %268, %300 : vector<128x128xf32>
    %c91 = arith.constant 91 : index
    %302 = memref.load %arg1[%c91] : memref<96xf32, #tpu.memory_space<smem>>
    %303 = vector.broadcast %302 : f32 to vector<128x128xf32>
    %304 = arith.mulf %303, %273 : vector<128x128xf32>
    %305 = arith.addf %272, %304 : vector<128x128xf32>
    %cst_33 = arith.constant dense<0.000000e+00> : vector<128x128xf32>
    %306 = tpu.matmul %0, %273, %cst_33 {dimension_numbers = #tpu.dot_dimension_numbers<[1], [0], [0], [1], [0, 0, 1, 1], [], []>} : vector<128x128xf32>, vector<128x128xf32>, vector<128x128xf32> -> vector<128x128xf32>
    %cst_34 = arith.constant 2.000000e+00 : f32
    %307 = vector.broadcast %cst_34 : f32 to vector<128x128xf32>
    %308 = arith.mulf %307, %306 : vector<128x128xf32>
    %309 = arith.subf %308, %240 : vector<128x128xf32>
    %c8 = arith.constant 8 : index
    %310 = memref.load %arg1[%c8] : memref<96xf32, #tpu.memory_space<smem>>
    %311 = vector.broadcast %310 : f32 to vector<128x128xf32>
    %312 = arith.mulf %311, %309 : vector<128x128xf32>
    %313 = arith.addf %277, %312 : vector<128x128xf32>
    %c20 = arith.constant 20 : index
    %314 = memref.load %arg1[%c20] : memref<96xf32, #tpu.memory_space<smem>>
    %315 = vector.broadcast %314 : f32 to vector<128x128xf32>
    %316 = arith.mulf %315, %309 : vector<128x128xf32>
    %317 = arith.addf %281, %316 : vector<128x128xf32>
    %c32 = arith.constant 32 : index
    %318 = memref.load %arg1[%c32] : memref<96xf32, #tpu.memory_space<smem>>
    %319 = vector.broadcast %318 : f32 to vector<128x128xf32>
    %320 = arith.mulf %319, %309 : vector<128x128xf32>
    %321 = arith.addf %285, %320 : vector<128x128xf32>
    %c44 = arith.constant 44 : index
    %322 = memref.load %arg1[%c44] : memref<96xf32, #tpu.memory_space<smem>>
    %323 = vector.broadcast %322 : f32 to vector<128x128xf32>
    %324 = arith.mulf %323, %309 : vector<128x128xf32>
    %325 = arith.addf %289, %324 : vector<128x128xf32>
    %c56 = arith.constant 56 : index
    %326 = memref.load %arg1[%c56] : memref<96xf32, #tpu.memory_space<smem>>
    %327 = vector.broadcast %326 : f32 to vector<128x128xf32>
    %328 = arith.mulf %327, %309 : vector<128x128xf32>
    %329 = arith.addf %293, %328 : vector<128x128xf32>
    %c68 = arith.constant 68 : index
    %330 = memref.load %arg1[%c68] : memref<96xf32, #tpu.memory_space<smem>>
    %331 = vector.broadcast %330 : f32 to vector<128x128xf32>
    %332 = arith.mulf %331, %309 : vector<128x128xf32>
    %333 = arith.addf %297, %332 : vector<128x128xf32>
    %c80 = arith.constant 80 : index
    %334 = memref.load %arg1[%c80] : memref<96xf32, #tpu.memory_space<smem>>
    %335 = vector.broadcast %334 : f32 to vector<128x128xf32>
    %336 = arith.mulf %335, %309 : vector<128x128xf32>
    %337 = arith.addf %301, %336 : vector<128x128xf32>
    %c92 = arith.constant 92 : index
    %338 = memref.load %arg1[%c92] : memref<96xf32, #tpu.memory_space<smem>>
    %339 = vector.broadcast %338 : f32 to vector<128x128xf32>
    %340 = arith.mulf %339, %309 : vector<128x128xf32>
    %341 = arith.addf %305, %340 : vector<128x128xf32>
    %c3_35 = arith.constant 3 : index
    %c0_36 = arith.constant 0 : index
    %c0_37 = arith.constant 0 : index
    %342 = vector.load %arg4[%c3_35, %c0_36, %c0_37] : memref<4x128x128xf32, #tpu.memory_space<vmem>>, vector<1x128x128xf32>
    %343 = vector.shape_cast %342 : vector<1x128x128xf32> to vector<128x128xf32>
    %c9 = arith.constant 9 : index
    %344 = memref.load %arg1[%c9] : memref<96xf32, #tpu.memory_space<smem>>
    %345 = vector.broadcast %344 : f32 to vector<128x128xf32>
    %346 = arith.mulf %345, %343 : vector<128x128xf32>
    %347 = arith.addf %313, %346 : vector<128x128xf32>
    %c21 = arith.constant 21 : index
    %348 = memref.load %arg1[%c21] : memref<96xf32, #tpu.memory_space<smem>>
    %349 = vector.broadcast %348 : f32 to vector<128x128xf32>
    %350 = arith.mulf %349, %343 : vector<128x128xf32>
    %351 = arith.addf %317, %350 : vector<128x128xf32>
    %c33 = arith.constant 33 : index
    %352 = memref.load %arg1[%c33] : memref<96xf32, #tpu.memory_space<smem>>
    %353 = vector.broadcast %352 : f32 to vector<128x128xf32>
    %354 = arith.mulf %353, %343 : vector<128x128xf32>
    %355 = arith.addf %321, %354 : vector<128x128xf32>
    %c45 = arith.constant 45 : index
    %356 = memref.load %arg1[%c45] : memref<96xf32, #tpu.memory_space<smem>>
    %357 = vector.broadcast %356 : f32 to vector<128x128xf32>
    %358 = arith.mulf %357, %343 : vector<128x128xf32>
    %359 = arith.addf %325, %358 : vector<128x128xf32>
    %c57 = arith.constant 57 : index
    %360 = memref.load %arg1[%c57] : memref<96xf32, #tpu.memory_space<smem>>
    %361 = vector.broadcast %360 : f32 to vector<128x128xf32>
    %362 = arith.mulf %361, %343 : vector<128x128xf32>
    %363 = arith.addf %329, %362 : vector<128x128xf32>
    %c69 = arith.constant 69 : index
    %364 = memref.load %arg1[%c69] : memref<96xf32, #tpu.memory_space<smem>>
    %365 = vector.broadcast %364 : f32 to vector<128x128xf32>
    %366 = arith.mulf %365, %343 : vector<128x128xf32>
    %367 = arith.addf %333, %366 : vector<128x128xf32>
    %c81 = arith.constant 81 : index
    %368 = memref.load %arg1[%c81] : memref<96xf32, #tpu.memory_space<smem>>
    %369 = vector.broadcast %368 : f32 to vector<128x128xf32>
    %370 = arith.mulf %369, %343 : vector<128x128xf32>
    %371 = arith.addf %337, %370 : vector<128x128xf32>
    %c93 = arith.constant 93 : index
    %372 = memref.load %arg1[%c93] : memref<96xf32, #tpu.memory_space<smem>>
    %373 = vector.broadcast %372 : f32 to vector<128x128xf32>
    %374 = arith.mulf %373, %343 : vector<128x128xf32>
    %375 = arith.addf %341, %374 : vector<128x128xf32>
    %cst_38 = arith.constant dense<0.000000e+00> : vector<128x128xf32>
    %376 = tpu.matmul %0, %343, %cst_38 {dimension_numbers = #tpu.dot_dimension_numbers<[1], [0], [0], [1], [0, 0, 1, 1], [], []>} : vector<128x128xf32>, vector<128x128xf32>, vector<128x128xf32> -> vector<128x128xf32>
    %c10 = arith.constant 10 : index
    %377 = memref.load %arg1[%c10] : memref<96xf32, #tpu.memory_space<smem>>
    %378 = vector.broadcast %377 : f32 to vector<128x128xf32>
    %379 = arith.mulf %378, %376 : vector<128x128xf32>
    %380 = arith.addf %347, %379 : vector<128x128xf32>
    %c22 = arith.constant 22 : index
    %381 = memref.load %arg1[%c22] : memref<96xf32, #tpu.memory_space<smem>>
    %382 = vector.broadcast %381 : f32 to vector<128x128xf32>
    %383 = arith.mulf %382, %376 : vector<128x128xf32>
    %384 = arith.addf %351, %383 : vector<128x128xf32>
    %c34 = arith.constant 34 : index
    %385 = memref.load %arg1[%c34] : memref<96xf32, #tpu.memory_space<smem>>
    %386 = vector.broadcast %385 : f32 to vector<128x128xf32>
    %387 = arith.mulf %386, %376 : vector<128x128xf32>
    %388 = arith.addf %355, %387 : vector<128x128xf32>
    %c46 = arith.constant 46 : index
    %389 = memref.load %arg1[%c46] : memref<96xf32, #tpu.memory_space<smem>>
    %390 = vector.broadcast %389 : f32 to vector<128x128xf32>
    %391 = arith.mulf %390, %376 : vector<128x128xf32>
    %392 = arith.addf %359, %391 : vector<128x128xf32>
    %c58 = arith.constant 58 : index
    %393 = memref.load %arg1[%c58] : memref<96xf32, #tpu.memory_space<smem>>
    %394 = vector.broadcast %393 : f32 to vector<128x128xf32>
    %395 = arith.mulf %394, %376 : vector<128x128xf32>
    %396 = arith.addf %363, %395 : vector<128x128xf32>
    %c70 = arith.constant 70 : index
    %397 = memref.load %arg1[%c70] : memref<96xf32, #tpu.memory_space<smem>>
    %398 = vector.broadcast %397 : f32 to vector<128x128xf32>
    %399 = arith.mulf %398, %376 : vector<128x128xf32>
    %400 = arith.addf %367, %399 : vector<128x128xf32>
    %c82 = arith.constant 82 : index
    %401 = memref.load %arg1[%c82] : memref<96xf32, #tpu.memory_space<smem>>
    %402 = vector.broadcast %401 : f32 to vector<128x128xf32>
    %403 = arith.mulf %402, %376 : vector<128x128xf32>
    %404 = arith.addf %371, %403 : vector<128x128xf32>
    %c94 = arith.constant 94 : index
    %405 = memref.load %arg1[%c94] : memref<96xf32, #tpu.memory_space<smem>>
    %406 = vector.broadcast %405 : f32 to vector<128x128xf32>
    %407 = arith.mulf %406, %376 : vector<128x128xf32>
    %408 = arith.addf %375, %407 : vector<128x128xf32>
    %cst_39 = arith.constant dense<0.000000e+00> : vector<128x128xf32>
    %409 = tpu.matmul %0, %376, %cst_39 {dimension_numbers = #tpu.dot_dimension_numbers<[1], [0], [0], [1], [0, 0, 1, 1], [], []>} : vector<128x128xf32>, vector<128x128xf32>, vector<128x128xf32> -> vector<128x128xf32>
    %cst_40 = arith.constant 2.000000e+00 : f32
    %410 = vector.broadcast %cst_40 : f32 to vector<128x128xf32>
    %411 = arith.mulf %410, %409 : vector<128x128xf32>
    %412 = arith.subf %411, %343 : vector<128x128xf32>
    %c11 = arith.constant 11 : index
    %413 = memref.load %arg1[%c11] : memref<96xf32, #tpu.memory_space<smem>>
    %414 = vector.broadcast %413 : f32 to vector<128x128xf32>
    %415 = arith.mulf %414, %412 : vector<128x128xf32>
    %416 = arith.addf %380, %415 : vector<128x128xf32>
    %c23 = arith.constant 23 : index
    %417 = memref.load %arg1[%c23] : memref<96xf32, #tpu.memory_space<smem>>
    %418 = vector.broadcast %417 : f32 to vector<128x128xf32>
    %419 = arith.mulf %418, %412 : vector<128x128xf32>
    %420 = arith.addf %384, %419 : vector<128x128xf32>
    %c35 = arith.constant 35 : index
    %421 = memref.load %arg1[%c35] : memref<96xf32, #tpu.memory_space<smem>>
    %422 = vector.broadcast %421 : f32 to vector<128x128xf32>
    %423 = arith.mulf %422, %412 : vector<128x128xf32>
    %424 = arith.addf %388, %423 : vector<128x128xf32>
    %c47 = arith.constant 47 : index
    %425 = memref.load %arg1[%c47] : memref<96xf32, #tpu.memory_space<smem>>
    %426 = vector.broadcast %425 : f32 to vector<128x128xf32>
    %427 = arith.mulf %426, %412 : vector<128x128xf32>
    %428 = arith.addf %392, %427 : vector<128x128xf32>
    %c59 = arith.constant 59 : index
    %429 = memref.load %arg1[%c59] : memref<96xf32, #tpu.memory_space<smem>>
    %430 = vector.broadcast %429 : f32 to vector<128x128xf32>
    %431 = arith.mulf %430, %412 : vector<128x128xf32>
    %432 = arith.addf %396, %431 : vector<128x128xf32>
    %c71 = arith.constant 71 : index
    %433 = memref.load %arg1[%c71] : memref<96xf32, #tpu.memory_space<smem>>
    %434 = vector.broadcast %433 : f32 to vector<128x128xf32>
    %435 = arith.mulf %434, %412 : vector<128x128xf32>
    %436 = arith.addf %400, %435 : vector<128x128xf32>
    %c83 = arith.constant 83 : index
    %437 = memref.load %arg1[%c83] : memref<96xf32, #tpu.memory_space<smem>>
    %438 = vector.broadcast %437 : f32 to vector<128x128xf32>
    %439 = arith.mulf %438, %412 : vector<128x128xf32>
    %440 = arith.addf %404, %439 : vector<128x128xf32>
    %c95 = arith.constant 95 : index
    %441 = memref.load %arg1[%c95] : memref<96xf32, #tpu.memory_space<smem>>
    %442 = vector.broadcast %441 : f32 to vector<128x128xf32>
    %443 = arith.mulf %442, %412 : vector<128x128xf32>
    %444 = arith.addf %408, %443 : vector<128x128xf32>
    %c0_41 = arith.constant 0 : index
    %c0_42 = arith.constant 0 : index
    %c0_43 = arith.constant 0 : index
    %445 = vector.load %arg5[%c0_41, %c0_42, %c0_43] : memref<8x128x128xf32, #tpu.memory_space<vmem>>, vector<1x128x128xf32>
    %446 = vector.shape_cast %445 : vector<1x128x128xf32> to vector<128x128xf32>
    %447 = vector.shape_cast %416 : vector<128x128xf32> to vector<1x128x128xf32>
    tpu.vector_store %arg5[%c0_41, %c0_42, %c0_43], %447 {strides = array<i32>} : memref<8x128x128xf32, #tpu.memory_space<vmem>>, vector<1x128x128xf32>,
    %c1_44 = arith.constant 1 : index
    %c0_45 = arith.constant 0 : index
    %c0_46 = arith.constant 0 : index
    %448 = vector.load %arg5[%c1_44, %c0_45, %c0_46] : memref<8x128x128xf32, #tpu.memory_space<vmem>>, vector<1x128x128xf32>
    %449 = vector.shape_cast %448 : vector<1x128x128xf32> to vector<128x128xf32>
    %450 = vector.shape_cast %420 : vector<128x128xf32> to vector<1x128x128xf32>
    tpu.vector_store %arg5[%c1_44, %c0_45, %c0_46], %450 {strides = array<i32>} : memref<8x128x128xf32, #tpu.memory_space<vmem>>, vector<1x128x128xf32>,
    %c2_47 = arith.constant 2 : index
    %c0_48 = arith.constant 0 : index
    %c0_49 = arith.constant 0 : index
    %451 = vector.load %arg5[%c2_47, %c0_48, %c0_49] : memref<8x128x128xf32, #tpu.memory_space<vmem>>, vector<1x128x128xf32>
    %452 = vector.shape_cast %451 : vector<1x128x128xf32> to vector<128x128xf32>
    %453 = vector.shape_cast %424 : vector<128x128xf32> to vector<1x128x128xf32>
    tpu.vector_store %arg5[%c2_47, %c0_48, %c0_49], %453 {strides = array<i32>} : memref<8x128x128xf32, #tpu.memory_space<vmem>>, vector<1x128x128xf32>,
    %c3_50 = arith.constant 3 : index
    %c0_51 = arith.constant 0 : index
    %c0_52 = arith.constant 0 : index
    %454 = vector.load %arg5[%c3_50, %c0_51, %c0_52] : memref<8x128x128xf32, #tpu.memory_space<vmem>>, vector<1x128x128xf32>
    %455 = vector.shape_cast %454 : vector<1x128x128xf32> to vector<128x128xf32>
    %456 = vector.shape_cast %428 : vector<128x128xf32> to vector<1x128x128xf32>
    tpu.vector_store %arg5[%c3_50, %c0_51, %c0_52], %456 {strides = array<i32>} : memref<8x128x128xf32, #tpu.memory_space<vmem>>, vector<1x128x128xf32>,
    %c4_53 = arith.constant 4 : index
    %c0_54 = arith.constant 0 : index
    %c0_55 = arith.constant 0 : index
    %457 = vector.load %arg5[%c4_53, %c0_54, %c0_55] : memref<8x128x128xf32, #tpu.memory_space<vmem>>, vector<1x128x128xf32>
    %458 = vector.shape_cast %457 : vector<1x128x128xf32> to vector<128x128xf32>
    %459 = vector.shape_cast %432 : vector<128x128xf32> to vector<1x128x128xf32>
    tpu.vector_store %arg5[%c4_53, %c0_54, %c0_55], %459 {strides = array<i32>} : memref<8x128x128xf32, #tpu.memory_space<vmem>>, vector<1x128x128xf32>,
    %c5_56 = arith.constant 5 : index
    %c0_57 = arith.constant 0 : index
    %c0_58 = arith.constant 0 : index
    %460 = vector.load %arg5[%c5_56, %c0_57, %c0_58] : memref<8x128x128xf32, #tpu.memory_space<vmem>>, vector<1x128x128xf32>
    %461 = vector.shape_cast %460 : vector<1x128x128xf32> to vector<128x128xf32>
    %462 = vector.shape_cast %436 : vector<128x128xf32> to vector<1x128x128xf32>
    tpu.vector_store %arg5[%c5_56, %c0_57, %c0_58], %462 {strides = array<i32>} : memref<8x128x128xf32, #tpu.memory_space<vmem>>, vector<1x128x128xf32>,
    %c6_59 = arith.constant 6 : index
    %c0_60 = arith.constant 0 : index
    %c0_61 = arith.constant 0 : index
    %463 = vector.load %arg5[%c6_59, %c0_60, %c0_61] : memref<8x128x128xf32, #tpu.memory_space<vmem>>, vector<1x128x128xf32>
    %464 = vector.shape_cast %463 : vector<1x128x128xf32> to vector<128x128xf32>
    %465 = vector.shape_cast %440 : vector<128x128xf32> to vector<1x128x128xf32>
    tpu.vector_store %arg5[%c6_59, %c0_60, %c0_61], %465 {strides = array<i32>} : memref<8x128x128xf32, #tpu.memory_space<vmem>>, vector<1x128x128xf32>,
    %c7_62 = arith.constant 7 : index
    %c0_63 = arith.constant 0 : index
    %c0_64 = arith.constant 0 : index
    %466 = vector.load %arg5[%c7_62, %c0_63, %c0_64] : memref<8x128x128xf32, #tpu.memory_space<vmem>>, vector<1x128x128xf32>
    %467 = vector.shape_cast %466 : vector<1x128x128xf32> to vector<128x128xf32>
    %468 = vector.shape_cast %444 : vector<128x128xf32> to vector<1x128x128xf32>
    tpu.vector_store %arg5[%c7_62, %c0_63, %c0_64], %468 {strides = array<i32>} : memref<8x128x128xf32, #tpu.memory_space<vmem>>, vector<1x128x128xf32>,
    return
  }
  func.func @transform_0(%arg0: i32) -> i32 {
    %c0_i32 = arith.constant 0 : i32
    %c0_i32_0 = arith.constant 0 : i32
    return %c0_i32 : i32
  }
  func.func @transform_1(%arg0: i32) -> i32 {
    %c0_i32 = arith.constant 0 : i32
    %c0_i32_0 = arith.constant 0 : i32
    return %c0_i32 : i32
  }
  func.func @transform_2(%arg0: i32) -> (i32, i32) {
    %c0_i32 = arith.constant 0 : i32
    %c0_i32_0 = arith.constant 0 : i32
    %c0_i32_1 = arith.constant 0 : i32
    return %c0_i32, %c0_i32_0 : i32, i32
  }
  func.func @transform_3(%arg0: i32) -> (i32, i32, i32) {
    %c0_i32 = arith.constant 0 : i32
    %c0_i32_0 = arith.constant 0 : i32
    %c0_i32_1 = arith.constant 0 : i32
    return %c0_i32, %c0_i32_0, %arg0 : i32, i32, i32
  }
  func.func @transform_4(%arg0: i32) -> (i32, i32, i32) {
    %c0_i32 = arith.constant 0 : i32
    %c0_i32_0 = arith.constant 0 : i32
    %c0_i32_1 = arith.constant 0 : i32
    return %c0_i32, %c0_i32_0, %arg0 : i32, i32, i32
  }
}

</mosaic_0001>

<llo_original>
// kernel: sparse_chebyshev_gconv2d.1
$region0: #{sparse_chebyshev_gconv2d.1}
  #allocation0 [shape = 'u32[]', space=smem, size = 0x4, offset = 0x4, fixed_abs, tag = 'smem constant byte address 0x4 - core index']
  #allocation1 [shape = 'u32[144,128]{1,0:T(1,128)}', space=vmem, size = 0x12000, scoped, tag = 'internal scratch']
  %s0 = inlined_call_operand.vmem [shape: f32[96], index: 0, kind: input, shape index: {}]
  %s1 = inlined_call_operand.vmem [shape: f32[8], index: 1, kind: input, shape index: {}]
  %s2 = inlined_call_operand.vmem [shape: f32[128,128], index: 2, kind: input, shape index: {}]
  %s3 = inlined_call_operand.vmem [shape: f32[4,128,256], index: 3, kind: input, shape index: {}]
  %s4 = inlined_call_operand.vmem [shape: f32[8,128,256], index: 4, kind: output, shape index: {}]
  %s5 = sld [smem:[#allocation0]]
  $region129: #{sparse_chebyshev_gconv2d.1} parent=0
    _
  %s7 = ssub.s32 1, %s5
  %s8 = scalar_select 0, %s7, %s5
  $region1: #{sparse_chebyshev_gconv2d.1} parent=0
    #allocation2 [shape = 'u8[512]{0}', space=smem, size = 0x200, scoped, tag = 'input window, operand 0, single buffered']
    #allocation3 [shape = 's32[2]{0}', space=sflag, size = 0x8, scoped, tag = 'scoped memory for sparse_chebyshev_gconv2d.1']
    #allocation4 [shape = 'u8[512]{0}', space=smem, size = 0x200, scoped, tag = 'input window, operand 1, single buffered']
    #allocation5 [shape = 's32[1]{0}', space=sflag, size = 0x4, scoped, tag = 'scoped memory for sparse_chebyshev_gconv2d.1']
    #allocation6 [shape = 'u8[524288]{0}', space=vmem, size = 0x80000, scoped, tag = 'input window, operand 3']
    #allocation7 [shape = 'u8[1048576]{0}', space=vmem, size = 0x100000, scoped, tag = 'output window, operand 0']
    %9 = vsyncpa [#allocation3], 0
    %10 = vsyncpa [#allocation5], 0
    loop: start=0, step=1, limit=4
    $region2: #{sparse_chebyshev_gconv2d.1} parent=1 // loop_pre_header
      _
    $region3: #{sparse_chebyshev_gconv2d.1} parent=1 // loop_header
      %s12 = sphi 0, %s16
      %p13 = scmp.ge.s32.totalorder %s12, 4
      %s20 = sphi 0, %s20
      %s22 = sphi 0, %s20
      %s23 = sphi 0, %s22
      %s37 = sphi 0, %s23
      %s41 = sphi 0, %s41
      %s43 = sphi 0, %s41
      %s44 = sphi 0, %s43
      %s58 = sphi 0, %s44
      %s62 = sphi 0, %s62
      %s64 = sphi 0, %s62
      %s65 = sphi 0, %s64
      %s79 = sphi 0, %s65
      %s85 = sphi 0, %s87
      %s88 = sphi 0, %s85
      %s89 = sphi 0, %s88
      %s105 = sphi 0, %s89
      %s111 = sphi 0, %s113
      %s114 = sphi 0, %s111
      %s115 = sphi 0, %s114
      %s131 = sphi 0, %s115
    $region4: #{sparse_chebyshev_gconv2d.1} parent=1 // loop_header_branch
      %15 = sbr.rel (%p13) target = $region8
    $region5: #{sparse_chebyshev_gconv2d.1} parent=1 // loop_body
      %s17 = ssub.s32 %s12, 1
      %s18 = ssub.s32 %s12, 2
      %s19 = sadd.s32 %s12, 1
      %s21 = sadd.s32 %s20, 1
      %p24 = scmp.eq.s32.totalorder %s12, 1
      %p25 = scmp.ne.s32.totalorder %s20, %s22
      %p26 = scmp.eq.s32.totalorder %s12, 0
      %p27 = por %p25, %p26
      %p28 = scmp.ne.s32.totalorder %s20, %s22
      %p29 = scmp.eq.s32.totalorder %s17, 1
      %p30 = por %p28, %p29
      %p31 = scmp.ne.s32.totalorder %s22, %s23
      %p32 = scmp.eq.s32.totalorder %s17, 0
      %p33 = por %p31, %p32
      %p34 = scmp.ne.s32.totalorder %s22, %s23
      %p35 = scmp.eq.s32.totalorder %s18, 1
      %p36 = por %p34, %p35
      %p38 = scmp.ne.s32.totalorder %s23, %s37
      %p39 = scmp.eq.s32.totalorder %s18, 0
      %p40 = por %p38, %p39
      %s42 = sadd.s32 %s41, 1
      %p45 = scmp.eq.s32.totalorder %s12, 1
      %p46 = scmp.ne.s32.totalorder %s41, %s43
      %p47 = scmp.eq.s32.totalorder %s12, 0
      %p48 = por %p46, %p47
      %p49 = scmp.ne.s32.totalorder %s41, %s43
      %p50 = scmp.eq.s32.totalorder %s17, 1
      %p51 = por %p49, %p50
      %p52 = scmp.ne.s32.totalorder %s43, %s44
      %p53 = scmp.eq.s32.totalorder %s17, 0
      %p54 = por %p52, %p53
      %p55 = scmp.ne.s32.totalorder %s43, %s44
      %p56 = scmp.eq.s32.totalorder %s18, 1
      %p57 = por %p55, %p56
      %p59 = scmp.ne.s32.totalorder %s44, %s58
      %p60 = scmp.eq.s32.totalorder %s18, 0
      %p61 = por %p59, %p60
      %s63 = sadd.s32 %s62, 1
      %p66 = scmp.eq.s32.totalorder %s12, 1
      %p67 = scmp.ne.s32.totalorder %s62, %s64
      %p68 = scmp.eq.s32.totalorder %s12, 0
      %p69 = por %p67, %p68
      %p70 = scmp.ne.s32.totalorder %s62, %s64
      %p71 = scmp.eq.s32.totalorder %s17, 1
      %p72 = por %p70, %p71
      %p73 = scmp.ne.s32.totalorder %s64, %s65
      %p74 = scmp.eq.s32.totalorder %s17, 0
      %p75 = por %p73, %p74
      %p76 = scmp.ne.s32.totalorder %s64, %s65
      %p77 = scmp.eq.s32.totalorder %s18, 1
      %p78 = por %p76, %p77
      %p80 = scmp.ne.s32.totalorder %s65, %s79
      %p81 = scmp.eq.s32.totalorder %s18, 0
      %p82 = por %p80, %p81
      %s83 = ssub.s32 %s12, %s19
      %p84 = scmp.eq.s32.totalorder %s83, 0
      %s86 = sadd.s32 %s85, 1
      %s87 = scalar_select %p84, %s85, %s86
      %p90 = pneg %p84
      %p91 = scmp.eq.s32.totalorder %s12, 1
      %p92 = por %p90, %p91
      %p93 = scmp.ne.s32.totalorder %s85, %s88
      %p94 = scmp.eq.s32.totalorder %s12, 0
      %p95 = por %p93, %p94
      %p96 = scmp.ne.s32.totalorder %s85, %s88
      %p97 = scmp.eq.s32.totalorder %s17, 1
      %p98 = por %p96, %p97
      %p99 = scmp.ne.s32.totalorder %s88, %s89
      %p100 = scmp.eq.s32.totalorder %s17, 0
      %p101 = por %p99, %p100
      %p102 = scmp.ne.s32.totalorder %s88, %s89
      %p103 = scmp.eq.s32.totalorder %s18, 1
      %p104 = por %p102, %p103
      %p106 = scmp.ne.s32.totalorder %s89, %s105
      %p107 = scmp.eq.s32.totalorder %s18, 0
      %p108 = por %p106, %p107
      %s109 = ssub.s32 %s12, %s19
      %p110 = scmp.eq.s32.totalorder %s109, 0
      %s112 = sadd.s32 %s111, 1
      %s113 = scalar_select %p110, %s111, %s112
      %p116 = pneg %p110
      %p117 = scmp.eq.s32.totalorder %s12, 1
      %p118 = por %p116, %p117
      %p119 = scmp.ne.s32.totalorder %s111, %s114
      %p120 = scmp.eq.s32.totalorder %s12, 0
      %p121 = por %p119, %p120
      %p122 = scmp.ne.s32.totalorder %s111, %s114
      %p123 = scmp.eq.s32.totalorder %s17, 1
      %p124 = por %p122, %p123
      %p125 = scmp.ne.s32.totalorder %s114, %s115
      %p126 = scmp.eq.s32.totalorder %s17, 0
      %p127 = por %p125, %p126
      %p128 = scmp.ne.s32.totalorder %s114, %s115
      %p129 = scmp.eq.s32.totalorder %s18, 1
      %p130 = por %p128, %p129
      %p132 = scmp.ne.s32.totalorder %s115, %s131
      %p133 = scmp.eq.s32.totalorder %s18, 0
      %p134 = por %p132, %p133
      %p135 = scmp.le.s32.totalorder 1, %s12
      %p136 = scmp.lt.s32.totalorder %s12, 3
      %p137 = pnand %p135, %p136
      %p138 = pneg %p137
      // Predicated region
      $region9: #{sparse_chebyshev_gconv2d.1} parent=5 // pred_check
        _
      $region10: #{sparse_chebyshev_gconv2d.1} parent=5 // pred_check_branch
        %140 = sbr.rel (%p137) target = $region12
      $region11: #{sparse_chebyshev_gconv2d.1} parent=5 // pred_region
        %s141 = ssub.s32 %s12, 1
        // Predicated region
        $region13: #{sparse_chebyshev_gconv2d.1} parent=11 // pred_check
          %p142 = pneg %p33
        $region14: #{sparse_chebyshev_gconv2d.1} parent=11 // pred_check_branch
          %144 = sbr.rel (%p142) target = $region16
        $region15: #{sparse_chebyshev_gconv2d.1} parent=11 // pred_region
          %s146 = ssub.s32 16, 16
          %147 = vsyncadd [#allocation3], %s146
          %s149 = sshll.u32 %s0, 4
          %s150 = int_to_ptr.vmem [resolvable:$true] %s149
          %152 = dma.vmem_to_smem %s150, 16, [#allocation2], [#allocation3]
        $region16: #{sparse_chebyshev_gconv2d.1} parent=11 // pred_fallthru
          _
        // Predicated region
        $region17: #{sparse_chebyshev_gconv2d.1} parent=11 // pred_check
          %p153 = pneg %p54
        $region18: #{sparse_chebyshev_gconv2d.1} parent=11 // pred_check_branch
          %155 = sbr.rel (%p153) target = $region20
        $region19: #{sparse_chebyshev_gconv2d.1} parent=11 // pred_region
          %s157 = ssub.s32 16, 16
          %158 = vsyncadd [#allocation5], %s157
          %s160 = sshll.u32 %s1, 4
          %s161 = int_to_ptr.vmem [resolvable:$true] %s160
          %163 = dma.vmem_to_smem %s161, 16, [#allocation4], [#allocation5]
        $region20: #{sparse_chebyshev_gconv2d.1} parent=11 // pred_fallthru
          _
        // Predicated region
        $region21: #{sparse_chebyshev_gconv2d.1} parent=11 // pred_check
          %p164 = pneg %p75
        $region22: #{sparse_chebyshev_gconv2d.1} parent=11 // pred_check_branch
          %166 = sbr.rel (%p164) target = $region24
        $region23: #{sparse_chebyshev_gconv2d.1} parent=11 // pred_region
          _
        $region24: #{sparse_chebyshev_gconv2d.1} parent=11 // pred_fallthru
          _
      $region12: #{sparse_chebyshev_gconv2d.1} parent=5 // pred_fallthru
        _
      %p167 = scmp.lt.s32.totalorder %s12, 2
      // Predicated region
      $region25: #{sparse_chebyshev_gconv2d.1} parent=5 // pred_check
        %p168 = pneg %p167
      $region26: #{sparse_chebyshev_gconv2d.1} parent=5 // pred_check_branch
        %170 = sbr.rel (%p168) target = $region28
      $region27: #{sparse_chebyshev_gconv2d.1} parent=5 // pred_region
        // Predicated region
        $region29: #{sparse_chebyshev_gconv2d.1} parent=27 // pred_check
          %p171 = pneg %p95
        $region30: #{sparse_chebyshev_gconv2d.1} parent=27 // pred_check_branch
          %173 = sbr.rel (%p171) target = $region32
        $region31: #{sparse_chebyshev_gconv2d.1} parent=27 // pred_region
          %s174 = sand.u32 %s85, 1
          %s175 = sand.u32 %s85, 1
          %s176 = smul.addr %s175, 512
          %s177 = scalar_lea.vmem [#allocation6], %s176
          %s178 = smul.addr %s12, 8
          %s179 = scalar_lea.vmem %s3, %s178
          // Predicated region
          $region33: #{sparse_chebyshev_gconv2d.1} parent=31 // pred_check
            _
          $region34: #{sparse_chebyshev_gconv2d.1} parent=31 // pred_check_branch
            %181 = sbr.rel (0) target = $region36
          $region35: #{sparse_chebyshev_gconv2d.1} parent=31 // pred_region
            // Predicated region
            $region37: #{sparse_chebyshev_gconv2d.1} parent=35 // pred_check
              _
            $region38: #{sparse_chebyshev_gconv2d.1} parent=35 // pred_check_branch
              %183 = sbr.rel (0) target = $region40
            $region39: #{sparse_chebyshev_gconv2d.1} parent=35 // pred_region
              // Predicated region
              $region52: #{sparse_chebyshev_gconv2d.1} parent=39 // pred_check
                _
              $region53: #{sparse_chebyshev_gconv2d.1} parent=39 // pred_check_branch
                %324 = sbr.rel (0) target = $region55
              $region54: #{sparse_chebyshev_gconv2d.1} parent=39 // pred_region
                loop: start=0, step=1, limit=1
                $region56: #{sparse_chebyshev_gconv2d.1} parent=54 // loop_pre_header
                  _
                $region57: #{sparse_chebyshev_gconv2d.1} parent=54 // loop_header
                  %s326 = sphi 0, %s330
                  %p327 = scmp.ge.s32.totalorder %s326, 1
                  %s331 = sphi %s179, %s179
                  %s332 = sphi %s177, %s177
                $region58: #{sparse_chebyshev_gconv2d.1} parent=54 // loop_header_branch
                  %329 = sbr.rel (%p327) target = $region62
                $region59: #{sparse_chebyshev_gconv2d.1} parent=54 // loop_body
                  %v333 = vld [vmem:[%s331] sm:$0xff]
                  %334 = vst [vmem:[%s332] sm:$0xff] %v333
                  %v335 = vld [vmem:[%s331 + $0x10] sm:$0xff]
                  %336 = vst [vmem:[%s332 + $0x8] sm:$0xff] %v335
                  %v337 = vld [vmem:[%s331 + $0x20] sm:$0xff]
                  %338 = vst [vmem:[%s332 + $0x10] sm:$0xff] %v337
                  %v339 = vld [vmem:[%s331 + $0x30] sm:$0xff]
                  %340 = vst [vmem:[%s332 + $0x18] sm:$0xff] %v339
                  %v341 = vld [vmem:[%s331 + $0x40] sm:$0xff]
                  %342 = vst [vmem:[%s332 + $0x20] sm:$0xff] %v341
                  %v343 = vld [vmem:[%s331 + $0x50] sm:$0xff]
                  %344 = vst [vmem:[%s332 + $0x28] sm:$0xff] %v343
                  %v345 = vld [vmem:[%s331 + $0x60] sm:$0xff]
                  %346 = vst [vmem:[%s332 + $0x30] sm:$0xff] %v345
                  %v347 = vld [vmem:[%s331 + $0x70] sm:$0xff]
                  %348 = vst [vmem:[%s332 + $0x38] sm:$0xff] %v347
                  %v349 = vld [vmem:[%s331 + $0x80] sm:$0xff]
                  %350 = vst [vmem:[%s332 + $0x40] sm:$0xff] %v349
                  %v351 = vld [vmem:[%s331 + $0x90] sm:$0xff]
                  %352 = vst [vmem:[%s332 + $0x48] sm:$0xff] %v351
                  %v353 = vld [vmem:[%s331 + $0xa0] sm:$0xff]
                  %354 = vst [vmem:[%s332 + $0x50] sm:$0xff] %v353
                  %v355 = vld [vmem:[%s331 + $0xb0] sm:$0xff]
                  %356 = vst [vmem:[%s332 + $0x58] sm:$0xff] %v355
                  %v357 = vld [vmem:[%s331 + $0xc0] sm:$0xff]
                  %358 = vst [vmem:[%s332 + $0x60] sm:$0xff] %v357
                  %v359 = vld [vmem:[%s331 + $0xd0] sm:$0xff]
                  %360 = vst [vmem:[%s332 + $0x68] sm:$0xff] %v359
                  %v361 = vld [vmem:[%s331 + $0xe0] sm:$0xff]
                  %362 = vst [vmem:[%s332 + $0x70] sm:$0xff] %v361
                  %v363 = vld [vmem:[%s331 + $0xf0] sm:$0xff]
                  %364 = vst [vmem:[%s332 + $0x78] sm:$0xff] %v363
                  %v365 = vld [vmem:[%s331 + $0x100] sm:$0xff]
                  %366 = vst [vmem:[%s332 + $0x80] sm:$0xff] %v365
                  %v367 = vld [vmem:[%s331 + $0x110] sm:$0xff]
                  %368 = vst [vmem:[%s332 + $0x88] sm:$0xff] %v367
                  %v369 = vld [vmem:[%s331 + $0x120] sm:$0xff]
                  %370 = vst [vmem:[%s332 + $0x90] sm:$0xff] %v369
                  %v371 = vld [vmem:[%s331 + $0x130] sm:$0xff]
                  %372 = vst [vmem:[%s332 + $0x98] sm:$0xff] %v371
                  %v373 = vld [vmem:[%s331 + $0x140] sm:$0xff]
                  %374 = vst [vmem:[%s332 + $0xa0] sm:$0xff] %v373
                  %v375 = vld [vmem:[%s331 + $0x150] sm:$0xff]
                  %376 = vst [vmem:[%s332 + $0xa8] sm:$0xff] %v375
                  %v377 = vld [vmem:[%s331 + $0x160] sm:$0xff]
                  %378 = vst [vmem:[%s332 + $0xb0] sm:$0xff] %v377
                  %v379 = vld [vmem:[%s331 + $0x170] sm:$0xff]
                  %380 = vst [vmem:[%s332 + $0xb8] sm:$0xff] %v379
                  %v381 = vld [vmem:[%s331 + $0x180] sm:$0xff]
                  %382 = vst [vmem:[%s332 + $0xc0] sm:$0xff] %v381
                  %v383 = vld [vmem:[%s331 + $0x190] sm:$0xff]
                  %384 = vst [vmem:[%s332 + $0xc8] sm:$0xff] %v383
                  %v385 = vld [vmem:[%s331 + $0x1a0] sm:$0xff]
                  %386 = vst [vmem:[%s332 + $0xd0] sm:$0xff] %v385
                  %v387 = vld [vmem:[%s331 + $0x1b0] sm:$0xff]
                  %388 = vst [vmem:[%s332 + $0xd8] sm:$0xff] %v387
                  %v389 = vld [vmem:[%s331 + $0x1c0] sm:$0xff]
                  %390 = vst [vmem:[%s332 + $0xe0] sm:$0xff] %v389
                  %v391 = vld [vmem:[%s331 + $0x1d0] sm:$0xff]
                  %392 = vst [vmem:[%s332 + $0xe8] sm:$0xff] %v391
                  %v393 = vld [vmem:[%s331 + $0x1e0] sm:$0xff]
                  %394 = vst [vmem:[%s332 + $0xf0] sm:$0xff] %v393
                  %v395 = vld [vmem:[%s331 + $0x1f0] sm:$0xff]
                  %396 = vst [vmem:[%s332 + $0xf8] sm:$0xff] %v395
                  %v397 = vld [vmem:[%s331 + $0x200] sm:$0xff]
                  %398 = vst [vmem:[%s332 + $0x100] sm:$0xff] %v397
                  %v399 = vld [vmem:[%s331 + $0x210] sm:$0xff]
                  %400 = vst [vmem:[%s332 + $0x108] sm:$0xff] %v399
                  %v401 = vld [vmem:[%s331 + $0x220] sm:$0xff]
                  %402 = vst [vmem:[%s332 + $0x110] sm:$0xff] %v401
                  %v403 = vld [vmem:[%s331 + $0x230] sm:$0xff]
                  %404 = vst [vmem:[%s332 + $0x118] sm:$0xff] %v403
                  %v405 = vld [vmem:[%s331 + $0x240] sm:$0xff]
                  %406 = vst [vmem:[%s332 + $0x120] sm:$0xff] %v405
                  %v407 = vld [vmem:[%s331 + $0x250] sm:$0xff]
                  %408 = vst [vmem:[%s332 + $0x128] sm:$0xff] %v407
                  %v409 = vld [vmem:[%s331 + $0x260] sm:$0xff]
                  %410 = vst [vmem:[%s332 + $0x130] sm:$0xff] %v409
                  %v411 = vld [vmem:[%s331 + $0x270] sm:$0xff]
                  %412 = vst [vmem:[%s332 + $0x138] sm:$0xff] %v411
                  %v413 = vld [vmem:[%s331 + $0x280] sm:$0xff]
                  %414 = vst [vmem:[%s332 + $0x140] sm:$0xff] %v413
                  %v415 = vld [vmem:[%s331 + $0x290] sm:$0xff]
                  %416 = vst [vmem:[%s332 + $0x148] sm:$0xff] %v415
                  %v417 = vld [vmem:[%s331 + $0x2a0] sm:$0xff]
                  %418 = vst [vmem:[%s332 + $0x150] sm:$0xff] %v417
                  %v419 = vld [vmem:[%s331 + $0x2b0] sm:$0xff]
                  %420 = vst [vmem:[%s332 + $0x158] sm:$0xff] %v419
                  %v421 = vld [vmem:[%s331 + $0x2c0] sm:$0xff]
                  %422 = vst [vmem:[%s332 + $0x160] sm:$0xff] %v421
                  %v423 = vld [vmem:[%s331 + $0x2d0] sm:$0xff]
                  %424 = vst [vmem:[%s332 + $0x168] sm:$0xff] %v423
                  %v425 = vld [vmem:[%s331 + $0x2e0] sm:$0xff]
                  %426 = vst [vmem:[%s332 + $0x170] sm:$0xff] %v425
                  %v427 = vld [vmem:[%s331 + $0x2f0] sm:$0xff]
                  %428 = vst [vmem:[%s332 + $0x178] sm:$0xff] %v427
                  %v429 = vld [vmem:[%s331 + $0x300] sm:$0xff]
                  %430 = vst [vmem:[%s332 + $0x180] sm:$0xff] %v429
                  %v431 = vld [vmem:[%s331 + $0x310] sm:$0xff]
                  %432 = vst [vmem:[%s332 + $0x188] sm:$0xff] %v431
                  %v433 = vld [vmem:[%s331 + $0x320] sm:$0xff]
                  %434 = vst [vmem:[%s332 + $0x190] sm:$0xff] %v433
                  %v435 = vld [vmem:[%s331 + $0x330] sm:$0xff]
                  %436 = vst [vmem:[%s332 + $0x198] sm:$0xff] %v435
                  %v437 = vld [vmem:[%s331 + $0x340] sm:$0xff]
                  %438 = vst [vmem:[%s332 + $0x1a0] sm:$0xff] %v437
                  %v439 = vld [vmem:[%s331 + $0x350] sm:$0xff]
                  %440 = vst [vmem:[%s332 + $0x1a8] sm:$0xff] %v439
                  %v441 = vld [vmem:[%s331 + $0x360] sm:$0xff]
                  %442 = vst [vmem:[%s332 + $0x1b0] sm:$0xff] %v441
                  %v443 = vld [vmem:[%s331 + $0x370] sm:$0xff]
                  %444 = vst [vmem:[%s332 + $0x1b8] sm:$0xff] %v443
                  %v445 = vld [vmem:[%s331 + $0x380] sm:$0xff]
                  %446 = vst [vmem:[%s332 + $0x1c0] sm:$0xff] %v445
                  %v447 = vld [vmem:[%s331 + $0x390] sm:$0xff]
                  %448 = vst [vmem:[%s332 + $0x1c8] sm:$0xff] %v447
                  %v449 = vld [vmem:[%s331 + $0x3a0] sm:$0xff]
                  %450 = vst [vmem:[%s332 + $0x1d0] sm:$0xff] %v449
                  %v451 = vld [vmem:[%s331 + $0x3b0] sm:$0xff]
                  %452 = vst [vmem:[%s332 + $0x1d8] sm:$0xff] %v451
                  %v453 = vld [vmem:[%s331 + $0x3c0] sm:$0xff]
                  %454 = vst [vmem:[%s332 + $0x1e0] sm:$0xff] %v453
                  %v455 = vld [vmem:[%s331 + $0x3d0] sm:$0xff]
                  %456 = vst [vmem:[%s332 + $0x1e8] sm:$0xff] %v455
                  %v457 = vld [vmem:[%s331 + $0x3e0] sm:$0xff]
                  %458 = vst [vmem:[%s332 + $0x1f0] sm:$0xff] %v457
                  %v459 = vld [vmem:[%s331 + $0x3f0] sm:$0xff]
                  %460 = vst [vmem:[%s332 + $0x1f8] sm:$0xff] %v459
                $region60: #{sparse_chebyshev_gconv2d.1} parent=54 // loop_footer
                  %s330 = sadd.s32 1, %s326
                $region61: #{sparse_chebyshev_gconv2d.1} parent=54 // loop_footer_branch
                  %325 = sbr.rel target = $region57
                $region62: #{sparse_chebyshev_gconv2d.1} parent=54 // loop_exit
                  _
              $region55: #{sparse_chebyshev_gconv2d.1} parent=39 // pred_fallthru
                _
              // Predicated region
              $region63: #{sparse_chebyshev_gconv2d.1} parent=39 // pred_check
                _
              $region64: #{sparse_chebyshev_gconv2d.1} parent=39 // pred_check_branch
                %462 = sbr.rel target = $region66
              $region65: #{sparse_chebyshev_gconv2d.1} parent=39 // pred_region
                _
              $region66: #{sparse_chebyshev_gconv2d.1} parent=39 // pred_fallthru
                _
            $region40: #{sparse_chebyshev_gconv2d.1} parent=35 // pred_fallthru
              _
            // Predicated region
            $region41: #{sparse_chebyshev_gconv2d.1} parent=35 // pred_check
              _
            $region42: #{sparse_chebyshev_gconv2d.1} parent=35 // pred_check_branch
              %185 = sbr.rel target = $region44
            $region43: #{sparse_chebyshev_gconv2d.1} parent=35 // pred_region
              loop: start=0, step=1, limit=1
              $region45: #{sparse_chebyshev_gconv2d.1} parent=43 // loop_pre_header
                _
              $region46: #{sparse_chebyshev_gconv2d.1} parent=43 // loop_header
                %s188 = sphi 0, %s192
                %p189 = scmp.ge.s32.totalorder %s188, 1
                %s193 = sphi %s179, %s179
                %s194 = sphi %s177, %s177
              $region47: #{sparse_chebyshev_gconv2d.1} parent=43 // loop_header_branch
                %191 = sbr.rel (%p189) target = $region51
              $region48: #{sparse_chebyshev_gconv2d.1} parent=43 // loop_body
                %v195 = vld [vmem:[%s193] sm:$0xff]
                %196 = vst [vmem:[%s194] sm:$0xff] %v195
                %v197 = vld [vmem:[%s193 + $0x10] sm:$0xff]
                %198 = vst [vmem:[%s194 + $0x8] sm:$0xff] %v197
                %v199 = vld [vmem:[%s193 + $0x20] sm:$0xff]
                %200 = vst [vmem:[%s194 + $0x10] sm:$0xff] %v199
                %v201 = vld [vmem:[%s193 + $0x30] sm:$0xff]
                %202 = vst [vmem:[%s194 + $0x18] sm:$0xff] %v201
                %v203 = vld [vmem:[%s193 + $0x40] sm:$0xff]
                %204 = vst [vmem:[%s194 + $0x20] sm:$0xff] %v203
                %v205 = vld [vmem:[%s193 + $0x50] sm:$0xff]
                %206 = vst [vmem:[%s194 + $0x28] sm:$0xff] %v205
                %v207 = vld [vmem:[%s193 + $0x60] sm:$0xff]
                %208 = vst [vmem:[%s194 + $0x30] sm:$0xff] %v207
                %v209 = vld [vmem:[%s193 + $0x70] sm:$0xff]
                %210 = vst [vmem:[%s194 + $0x38] sm:$0xff] %v209
                %v211 = vld [vmem:[%s193 + $0x80] sm:$0xff]
                %212 = vst [vmem:[%s194 + $0x40] sm:$0xff] %v211
                %v213 = vld [vmem:[%s193 + $0x90] sm:$0xff]
                %214 = vst [vmem:[%s194 + $0x48] sm:$0xff] %v213
                %v215 = vld [vmem:[%s193 + $0xa0] sm:$0xff]
                %216 = vst [vmem:[%s194 + $0x50] sm:$0xff] %v215
                %v217 = vld [vmem:[%s193 + $0xb0] sm:$0xff]
                %218 = vst [vmem:[%s194 + $0x58] sm:$0xff] %v217
                %v219 = vld [vmem:[%s193 + $0xc0] sm:$0xff]
                %220 = vst [vmem:[%s194 + $0x60] sm:$0xff] %v219
                %v221 = vld [vmem:[%s193 + $0xd0] sm:$0xff]
                %222 = vst [vmem:[%s194 + $0x68] sm:$0xff] %v221
                %v223 = vld [vmem:[%s193 + $0xe0] sm:$0xff]
                %224 = vst [vmem:[%s194 + $0x70] sm:$0xff] %v223
                %v225 = vld [vmem:[%s193 + $0xf0] sm:$0xff]
                %226 = vst [vmem:[%s194 + $0x78] sm:$0xff] %v225
                %v227 = vld [vmem:[%s193 + $0x100] sm:$0xff]
                %228 = vst [vmem:[%s194 + $0x80] sm:$0xff] %v227
                %v229 = vld [vmem:[%s193 + $0x110] sm:$0xff]
                %230 = vst [vmem:[%s194 + $0x88] sm:$0xff] %v229
                %v231 = vld [vmem:[%s193 + $0x120] sm:$0xff]
                %232 = vst [vmem:[%s194 + $0x90] sm:$0xff] %v231
                %v233 = vld [vmem:[%s193 + $0x130] sm:$0xff]
                %234 = vst [vmem:[%s194 + $0x98] sm:$0xff] %v233
                %v235 = vld [vmem:[%s193 + $0x140] sm:$0xff]
                %236 = vst [vmem:[%s194 + $0xa0] sm:$0xff] %v235
                %v237 = vld [vmem:[%s193 + $0x150] sm:$0xff]
                %238 = vst [vmem:[%s194 + $0xa8] sm:$0xff] %v237
                %v239 = vld [vmem:[%s193 + $0x160] sm:$0xff]
                %240 = vst [vmem:[%s194 + $0xb0] sm:$0xff] %v239
                %v241 = vld [vmem:[%s193 + $0x170] sm:$0xff]
                %242 = vst [vmem:[%s194 + $0xb8] sm:$0xff] %v241
                %v243 = vld [vmem:[%s193 + $0x180] sm:$0xff]
                %244 = vst [vmem:[%s194 + $0xc0] sm:$0xff] %v243
                %v245 = vld [vmem:[%s193 + $0x190] sm:$0xff]
                %246 = vst [vmem:[%s194 + $0xc8] sm:$0xff] %v245
                %v247 = vld [vmem:[%s193 + $0x1a0] sm:$0xff]
                %248 = vst [vmem:[%s194 + $0xd0] sm:$0xff] %v247
                %v249 = vld [vmem:[%s193 + $0x1b0] sm:$0xff]
                %250 = vst [vmem:[%s194 + $0xd8] sm:$0xff] %v249
                %v251 = vld [vmem:[%s193 + $0x1c0] sm:$0xff]
                %252 = vst [vmem:[%s194 + $0xe0] sm:$0xff] %v251
                %v253 = vld [vmem:[%s193 + $0x1d0] sm:$0xff]
                %254 = vst [vmem:[%s194 + $0xe8] sm:$0xff] %v253
                %v255 = vld [vmem:[%s193 + $0x1e0] sm:$0xff]
                %256 = vst [vmem:[%s194 + $0xf0] sm:$0xff] %v255
                %v257 = vld [vmem:[%s193 + $0x1f0] sm:$0xff]
                %258 = vst [vmem:[%s194 + $0xf8] sm:$0xff] %v257
                %v259 = vld [vmem:[%s193 + $0x200] sm:$0xff]
                %260 = vst [vmem:[%s194 + $0x100] sm:$0xff] %v259
                %v261 = vld [vmem:[%s193 + $0x210] sm:$0xff]
                %262 = vst [vmem:[%s194 + $0x108] sm:$0xff] %v261
                %v263 = vld [vmem:[%s193 + $0x220] sm:$0xff]
                %264 = vst [vmem:[%s194 + $0x110] sm:$0xff] %v263
                %v265 = vld [vmem:[%s193 + $0x230] sm:$0xff]
                %266 = vst [vmem:[%s194 + $0x118] sm:$0xff] %v265
                %v267 = vld [vmem:[%s193 + $0x240] sm:$0xff]
                %268 = vst [vmem:[%s194 + $0x120] sm:$0xff] %v267
                %v269 = vld [vmem:[%s193 + $0x250] sm:$0xff]
                %270 = vst [vmem:[%s194 + $0x128] sm:$0xff] %v269
                %v271 = vld [vmem:[%s193 + $0x260] sm:$0xff]
                %272 = vst [vmem:[%s194 + $0x130] sm:$0xff] %v271
                %v273 = vld [vmem:[%s193 + $0x270] sm:$0xff]
                %274 = vst [vmem:[%s194 + $0x138] sm:$0xff] %v273
                %v275 = vld [vmem:[%s193 + $0x280] sm:$0xff]
                %276 = vst [vmem:[%s194 + $0x140] sm:$0xff] %v275
                %v277 = vld [vmem:[%s193 + $0x290] sm:$0xff]
                %278 = vst [vmem:[%s194 + $0x148] sm:$0xff] %v277
                %v279 = vld [vmem:[%s193 + $0x2a0] sm:$0xff]
                %280 = vst [vmem:[%s194 + $0x150] sm:$0xff] %v279
                %v281 = vld [vmem:[%s193 + $0x2b0] sm:$0xff]
                %282 = vst [vmem:[%s194 + $0x158] sm:$0xff] %v281
                %v283 = vld [vmem:[%s193 + $0x2c0] sm:$0xff]
                %284 = vst [vmem:[%s194 + $0x160] sm:$0xff] %v283
                %v285 = vld [vmem:[%s193 + $0x2d0] sm:$0xff]
                %286 = vst [vmem:[%s194 + $0x168] sm:$0xff] %v285
                %v287 = vld [vmem:[%s193 + $0x2e0] sm:$0xff]
                %288 = vst [vmem:[%s194 + $0x170] sm:$0xff] %v287
                %v289 = vld [vmem:[%s193 + $0x2f0] sm:$0xff]
                %290 = vst [vmem:[%s194 + $0x178] sm:$0xff] %v289
                %v291 = vld [vmem:[%s193 + $0x300] sm:$0xff]
                %292 = vst [vmem:[%s194 + $0x180] sm:$0xff] %v291
                %v293 = vld [vmem:[%s193 + $0x310] sm:$0xff]
                %294 = vst [vmem:[%s194 + $0x188] sm:$0xff] %v293
                %v295 = vld [vmem:[%s193 + $0x320] sm:$0xff]
                %296 = vst [vmem:[%s194 + $0x190] sm:$0xff] %v295
                %v297 = vld [vmem:[%s193 + $0x330] sm:$0xff]
                %298 = vst [vmem:[%s194 + $0x198] sm:$0xff] %v297
                %v299 = vld [vmem:[%s193 + $0x340] sm:$0xff]
                %300 = vst [vmem:[%s194 + $0x1a0] sm:$0xff] %v299
                %v301 = vld [vmem:[%s193 + $0x350] sm:$0xff]
                %302 = vst [vmem:[%s194 + $0x1a8] sm:$0xff] %v301
                %v303 = vld [vmem:[%s193 + $0x360] sm:$0xff]
                %304 = vst [vmem:[%s194 + $0x1b0] sm:$0xff] %v303
                %v305 = vld [vmem:[%s193 + $0x370] sm:$0xff]
                %306 = vst [vmem:[%s194 + $0x1b8] sm:$0xff] %v305
                %v307 = vld [vmem:[%s193 + $0x380] sm:$0xff]
                %308 = vst [vmem:[%s194 + $0x1c0] sm:$0xff] %v307
                %v309 = vld [vmem:[%s193 + $0x390] sm:$0xff]
                %310 = vst [vmem:[%s194 + $0x1c8] sm:$0xff] %v309
                %v311 = vld [vmem:[%s193 + $0x3a0] sm:$0xff]
                %312 = vst [vmem:[%s194 + $0x1d0] sm:$0xff] %v311
                %v313 = vld [vmem:[%s193 + $0x3b0] sm:$0xff]
                %314 = vst [vmem:[%s194 + $0x1d8] sm:$0xff] %v313
                %v315 = vld [vmem:[%s193 + $0x3c0] sm:$0xff]
                %316 = vst [vmem:[%s194 + $0x1e0] sm:$0xff] %v315
                %v317 = vld [vmem:[%s193 + $0x3d0] sm:$0xff]
                %318 = vst [vmem:[%s194 + $0x1e8] sm:$0xff] %v317
                %v319 = vld [vmem:[%s193 + $0x3e0] sm:$0xff]
                %320 = vst [vmem:[%s194 + $0x1f0] sm:$0xff] %v319
                %v321 = vld [vmem:[%s193 + $0x3f0] sm:$0xff]
                %322 = vst [vmem:[%s194 + $0x1f8] sm:$0xff] %v321
              $region49: #{sparse_chebyshev_gconv2d.1} parent=43 // loop_footer
                %s192 = sadd.s32 1, %s188
              $region50: #{sparse_chebyshev_gconv2d.1} parent=43 // loop_footer_branch
                %187 = sbr.rel target = $region46
              $region51: #{sparse_chebyshev_gconv2d.1} parent=43 // loop_exit
                _
            $region44: #{sparse_chebyshev_gconv2d.1} parent=35 // pred_fallthru
              _
          $region36: #{sparse_chebyshev_gconv2d.1} parent=31 // pred_fallthru
            _
          %463 = vnop
        $region32: #{sparse_chebyshev_gconv2d.1} parent=27 // pred_fallthru
          _
      $region28: #{sparse_chebyshev_gconv2d.1} parent=5 // pred_fallthru
        _
      %p464 = scmp.le.s32.totalorder 1, %s12
      %p465 = scmp.lt.s32.totalorder %s12, 3
      %p466 = pnand %p464, %p465
      %p467 = pneg %p466
      // Predicated region
      $region67: #{sparse_chebyshev_gconv2d.1} parent=5 // pred_check
        _
      $region68: #{sparse_chebyshev_gconv2d.1} parent=5 // pred_check_branch
        %469 = sbr.rel (%p466) target = $region70
      $region69: #{sparse_chebyshev_gconv2d.1} parent=5 // pred_region
        %s470 = ssub.s32 %s12, 1
        // Predicated region
        $region71: #{sparse_chebyshev_gconv2d.1} parent=69 // pred_check
          %p471 = pneg %p33
        $region72: #{sparse_chebyshev_gconv2d.1} parent=69 // pred_check_branch
          %473 = sbr.rel (%p471) target = $region74
        $region73: #{sparse_chebyshev_gconv2d.1} parent=69 // pred_region
          %474 = dma.done [#allocation3], 16
        $region74: #{sparse_chebyshev_gconv2d.1} parent=69 // pred_fallthru
          _
        // Predicated region
        $region75: #{sparse_chebyshev_gconv2d.1} parent=69 // pred_check
          %p475 = pneg %p54
        $region76: #{sparse_chebyshev_gconv2d.1} parent=69 // pred_check_branch
          %477 = sbr.rel (%p475) target = $region78
        $region77: #{sparse_chebyshev_gconv2d.1} parent=69 // pred_region
          %478 = dma.done [#allocation5], 16
        $region78: #{sparse_chebyshev_gconv2d.1} parent=69 // pred_fallthru
          _
        %s479 = sand.u32 %s88, 1
        %s480 = sand.u32 %s88, 1
        %s481 = smul.addr %s480, 512
        %s482 = scalar_lea.vmem [#allocation6], %s481
        // Predicated region
        $region79: #{sparse_chebyshev_gconv2d.1} parent=69 // pred_check
          %p483 = pneg %p101
        $region80: #{sparse_chebyshev_gconv2d.1} parent=69 // pred_check_branch
          %485 = sbr.rel (%p483) target = $region82
        $region81: #{sparse_chebyshev_gconv2d.1} parent=69 // pred_region
          _
        $region82: #{sparse_chebyshev_gconv2d.1} parent=69 // pred_fallthru
          _
        %486 = sfence
        %p487 = pneg %p33
        %p488 = pneg %p30
        %p489 = pneg %p54
        %p490 = pneg %p51
        %p491 = pneg %p75
        %p492 = pneg %p72
        %s493 = sand.u32 %s88, 1
        %s494 = sand.u32 %s88, 1
        %s495 = smul.addr %s494, 512
        %s496 = scalar_lea.vmem [#allocation6], %s495
        %p497 = pneg %p101
        %p498 = pneg %p98
        %p499 = pneg %p127
        %p500 = pneg %p124
        %s501 = sand.u32 %s114, 1
        %s502 = sand.u32 %s114, 1
        %s503 = smul.addr %s502, 1024
        %s504 = scalar_lea.vmem [#allocation7], %s503
        %v505 = vld [vmem:[%s2] sm:$0xff]
        %v506 = vld [vmem:[%s2 + $0x8] sm:$0xff]
        %v507 = vld [vmem:[%s2 + $0x10] sm:$0xff]
        %v508 = vld [vmem:[%s2 + $0x18] sm:$0xff]
        %v509 = vld [vmem:[%s2 + $0x20] sm:$0xff]
        %v510 = vld [vmem:[%s2 + $0x28] sm:$0xff]
        %v511 = vld [vmem:[%s2 + $0x30] sm:$0xff]
        %v512 = vld [vmem:[%s2 + $0x38] sm:$0xff]
        %v513 = vld [vmem:[%s2 + $0x40] sm:$0xff]
        %v514 = vld [vmem:[%s2 + $0x48] sm:$0xff]
        %v515 = vld [vmem:[%s2 + $0x50] sm:$0xff]
        %v516 = vld [vmem:[%s2 + $0x58] sm:$0xff]
        %v517 = vld [vmem:[%s2 + $0x60] sm:$0xff]
        %v518 = vld [vmem:[%s2 + $0x68] sm:$0xff]
        %v519 = vld [vmem:[%s2 + $0x70] sm:$0xff]
        %v520 = vld [vmem:[%s2 + $0x78] sm:$0xff]
        %s521 = sld [smem:[#allocation4]]
        %v522 = vstv %s521
        %v523 = vadd.f32 %v522, 0.0
        %s524 = sld [smem:[#allocation4 + $0x1]]
        %v525 = vstv %s524
        %v526 = vadd.f32 %v525, 0.0
        %s527 = sld [smem:[#allocation4 + $0x2]]
        %v528 = vstv %s527
        %v529 = vadd.f32 %v528, 0.0
        %s530 = sld [smem:[#allocation4 + $0x3]]
        %v531 = vstv %s530
        %v532 = vadd.f32 %v531, 0.0
        %s533 = sld [smem:[#allocation4 + $0x4]]
        %v534 = vstv %s533
        %v535 = vadd.f32 %v534, 0.0
        %s536 = sld [smem:[#allocation4 + $0x5]]
        %v537 = vstv %s536
        %v538 = vadd.f32 %v537, 0.0
        %s539 = sld [smem:[#allocation4 + $0x6]]
        %v540 = vstv %s539
        %v541 = vadd.f32 %v540, 0.0
        %s542 = sld [smem:[#allocation4 + $0x7]]
        %v543 = vstv %s542
        %v544 = vadd.f32 %v543, 0.0
        %v545 = vld [vmem:[%s482] sm:$0xff]
        %v546 = vld [vmem:[%s482 + $0x8] sm:$0xff]
        %v547 = vld [vmem:[%s482 + $0x10] sm:$0xff]
        %v548 = vld [vmem:[%s482 + $0x18] sm:$0xff]
        %v549 = vld [vmem:[%s482 + $0x20] sm:$0xff]
        %v550 = vld [vmem:[%s482 + $0x28] sm:$0xff]
        %v551 = vld [vmem:[%s482 + $0x30] sm:$0xff]
        %v552 = vld [vmem:[%s482 + $0x38] sm:$0xff]
        %v553 = vld [vmem:[%s482 + $0x40] sm:$0xff]
        %v554 = vld [vmem:[%s482 + $0x48] sm:$0xff]
        %v555 = vld [vmem:[%s482 + $0x50] sm:$0xff]
        %v556 = vld [vmem:[%s482 + $0x58] sm:$0xff]
        %v557 = vld [vmem:[%s482 + $0x60] sm:$0xff]
        %v558 = vld [vmem:[%s482 + $0x68] sm:$0xff]
        %v559 = vld [vmem:[%s482 + $0x70] sm:$0xff]
        %v560 = vld [vmem:[%s482 + $0x78] sm:$0xff]
        %s561 = sld [smem:[#allocation2]]
        %v562 = vstv %s561
        %v563 = vmul.f32 %v562, %v545
        %v564 = vmul.f32 %v562, %v546
        %v565 = vmul.f32 %v562, %v547
        %v566 = vmul.f32 %v562, %v548
        %v567 = vmul.f32 %v562, %v549
        %v568 = vmul.f32 %v562, %v550
        %v569 = vmul.f32 %v562, %v551
        %v570 = vmul.f32 %v562, %v552
        %v571 = vmul.f32 %v562, %v553
        %v572 = vmul.f32 %v562, %v554
        %v573 = vmul.f32 %v562, %v555
        %v574 = vmul.f32 %v562, %v556
        %v575 = vmul.f32 %v562, %v557
        %v576 = vmul.f32 %v562, %v558
        %v577 = vmul.f32 %v562, %v559
        %v578 = vmul.f32 %v562, %v560
        %v579 = vadd.f32 %v523, %v563
        %v580 = vadd.f32 %v523, %v564
        %v581 = vadd.f32 %v523, %v565
        %v582 = vadd.f32 %v523, %v566
        %v583 = vadd.f32 %v523, %v567
        %v584 = vadd.f32 %v523, %v568
        %v585 = vadd.f32 %v523, %v569
        %v586 = vadd.f32 %v523, %v570
        %v587 = vadd.f32 %v523, %v571
        %v588 = vadd.f32 %v523, %v572
        %v589 = vadd.f32 %v523, %v573
        %v590 = vadd.f32 %v523, %v574
        %v591 = vadd.f32 %v523, %v575
        %v592 = vadd.f32 %v523, %v576
        %v593 = vadd.f32 %v523, %v577
        %v594 = vadd.f32 %v523, %v578
        %s595 = sld [smem:[#allocation2 + $0xc]]
        %v596 = vstv %s595
        %v597 = vmul.f32 %v596, %v545
        %v598 = vmul.f32 %v596, %v546
        %v599 = vmul.f32 %v596, %v547
        %v600 = vmul.f32 %v596, %v548
        %v601 = vmul.f32 %v596, %v549
        %v602 = vmul.f32 %v596, %v550
        %v603 = vmul.f32 %v596, %v551
        %v604 = vmul.f32 %v596, %v552
        %v605 = vmul.f32 %v596, %v553
        %v606 = vmul.f32 %v596, %v554
        %v607 = vmul.f32 %v596, %v555
        %v608 = vmul.f32 %v596, %v556
        %v609 = vmul.f32 %v596, %v557
        %v610 = vmul.f32 %v596, %v558
        %v611 = vmul.f32 %v596, %v559
        %v612 = vmul.f32 %v596, %v560
        %v613 = vadd.f32 %v526, %v597
        %v614 = vadd.f32 %v526, %v598
        %v615 = vadd.f32 %v526, %v599
        %v616 = vadd.f32 %v526, %v600
        %v617 = vadd.f32 %v526, %v601
        %v618 = vadd.f32 %v526, %v602
        %v619 = vadd.f32 %v526, %v603
        %v620 = vadd.f32 %v526, %v604
        %v621 = vadd.f32 %v526, %v605
        %v622 = vadd.f32 %v526, %v606
        %v623 = vadd.f32 %v526, %v607
        %v624 = vadd.f32 %v526, %v608
        %v625 = vadd.f32 %v526, %v609
        %v626 = vadd.f32 %v526, %v610
        %v627 = vadd.f32 %v526, %v611
        %v628 = vadd.f32 %v526, %v612
        %s629 = sld [smem:[#allocation2 + $0x18]]
        %v630 = vstv %s629
        %v631 = vmul.f32 %v630, %v545
        %v632 = vmul.f32 %v630, %v546
        %v633 = vmul.f32 %v630, %v547
        %v634 = vmul.f32 %v630, %v548
        %v635 = vmul.f32 %v630, %v549
        %v636 = vmul.f32 %v630, %v550
        %v637 = vmul.f32 %v630, %v551
        %v638 = vmul.f32 %v630, %v552
        %v639 = vmul.f32 %v630, %v553
        %v640 = vmul.f32 %v630, %v554
        %v641 = vmul.f32 %v630, %v555
        %v642 = vmul.f32 %v630, %v556
        %v643 = vmul.f32 %v630, %v557
        %v644 = vmul.f32 %v630, %v558
        %v645 = vmul.f32 %v630, %v559
        %v646 = vmul.f32 %v630, %v560
        %v647 = vadd.f32 %v529, %v631
        %v648 = vadd.f32 %v529, %v632
        %v649 = vadd.f32 %v529, %v633
        %v650 = vadd.f32 %v529, %v634
        %v651 = vadd.f32 %v529, %v635
        %v652 = vadd.f32 %v529, %v636
        %v653 = vadd.f32 %v529, %v637
        %v654 = vadd.f32 %v529, %v638
        %v655 = vadd.f32 %v529, %v639
        %v656 = vadd.f32 %v529, %v640
        %v657 = vadd.f32 %v529, %v641
        %v658 = vadd.f32 %v529, %v642
        %v659 = vadd.f32 %v529, %v643
        %v660 = vadd.f32 %v529, %v644
        %v661 = vadd.f32 %v529, %v645
        %v662 = vadd.f32 %v529, %v646
        %s663 = sld [smem:[#allocation2 + $0x24]]
        %v664 = vstv %s663
        %v665 = vmul.f32 %v664, %v545
        %v666 = vmul.f32 %v664, %v546
        %v667 = vmul.f32 %v664, %v547
        %v668 = vmul.f32 %v664, %v548
        %v669 = vmul.f32 %v664, %v549
        %v670 = vmul.f32 %v664, %v550
        %v671 = vmul.f32 %v664, %v551
        %v672 = vmul.f32 %v664, %v552
        %v673 = vmul.f32 %v664, %v553
        %v674 = vmul.f32 %v664, %v554
        %v675 = vmul.f32 %v664, %v555
        %v676 = vmul.f32 %v664, %v556
        %v677 = vmul.f32 %v664, %v557
        %v678 = vmul.f32 %v664, %v558
        %v679 = vmul.f32 %v664, %v559
        %v680 = vmul.f32 %v664, %v560
        %v681 = vadd.f32 %v532, %v665
        %v682 = vadd.f32 %v532, %v666
        %v683 = vadd.f32 %v532, %v667
        %v684 = vadd.f32 %v532, %v668
        %v685 = vadd.f32 %v532, %v669
        %v686 = vadd.f32 %v532, %v670
        %v687 = vadd.f32 %v532, %v671
        %v688 = vadd.f32 %v532, %v672
        %v689 = vadd.f32 %v532, %v673
        %v690 = vadd.f32 %v532, %v674
        %v691 = vadd.f32 %v532, %v675
        %v692 = vadd.f32 %v532, %v676
        %v693 = vadd.f32 %v532, %v677
        %v694 = vadd.f32 %v532, %v678
        %v695 = vadd.f32 %v532, %v679
        %v696 = vadd.f32 %v532, %v680
        %s697 = sld [smem:[#allocation2 + $0x30]]
        %v698 = vstv %s697
        %v699 = vmul.f32 %v698, %v545
        %v700 = vmul.f32 %v698, %v546
        %v701 = vmul.f32 %v698, %v547
        %v702 = vmul.f32 %v698, %v548
        %v703 = vmul.f32 %v698, %v549
        %v704 = vmul.f32 %v698, %v550
        %v705 = vmul.f32 %v698, %v551
        %v706 = vmul.f32 %v698, %v552
        %v707 = vmul.f32 %v698, %v553
        %v708 = vmul.f32 %v698, %v554
        %v709 = vmul.f32 %v698, %v555
        %v710 = vmul.f32 %v698, %v556
        %v711 = vmul.f32 %v698, %v557
        %v712 = vmul.f32 %v698, %v558
        %v713 = vmul.f32 %v698, %v559
        %v714 = vmul.f32 %v698, %v560
        %v715 = vadd.f32 %v535, %v699
        %v716 = vadd.f32 %v535, %v700
        %v717 = vadd.f32 %v535, %v701
        %v718 = vadd.f32 %v535, %v702
        %v719 = vadd.f32 %v535, %v703
        %v720 = vadd.f32 %v535, %v704
        %v721 = vadd.f32 %v535, %v705
        %v722 = vadd.f32 %v535, %v706
        %v723 = vadd.f32 %v535, %v707
        %v724 = vadd.f32 %v535, %v708
        %v725 = vadd.f32 %v535, %v709
        %v726 = vadd.f32 %v535, %v710
        %v727 = vadd.f32 %v535, %v711
        %v728 = vadd.f32 %v535, %v712
        %v729 = vadd.f32 %v535, %v713
        %v730 = vadd.f32 %v535, %v714
        %s731 = sld [smem:[#allocation2 + $0x3c]]
        %v732 = vstv %s731
        %v733 = vmul.f32 %v732, %v545
        %v734 = vmul.f32 %v732, %v546
        %v735 = vmul.f32 %v732, %v547
        %v736 = vmul.f32 %v732, %v548
        %v737 = vmul.f32 %v732, %v549
        %v738 = vmul.f32 %v732, %v550
        %v739 = vmul.f32 %v732, %v551
        %v740 = vmul.f32 %v732, %v552
        %v741 = vmul.f32 %v732, %v553
        %v742 = vmul.f32 %v732, %v554
        %v743 = vmul.f32 %v732, %v555
        %v744 = vmul.f32 %v732, %v556
        %v745 = vmul.f32 %v732, %v557
        %v746 = vmul.f32 %v732, %v558
        %v747 = vmul.f32 %v732, %v559
        %v748 = vmul.f32 %v732, %v560
        %v749 = vadd.f32 %v538, %v733
        %v750 = vadd.f32 %v538, %v734
        %v751 = vadd.f32 %v538, %v735
        %v752 = vadd.f32 %v538, %v736
        %v753 = vadd.f32 %v538, %v737
        %v754 = vadd.f32 %v538, %v738
        %v755 = vadd.f32 %v538, %v739
        %v756 = vadd.f32 %v538, %v740
        %v757 = vadd.f32 %v538, %v741
        %v758 = vadd.f32 %v538, %v742
        %v759 = vadd.f32 %v538, %v743
        %v760 = vadd.f32 %v538, %v744
        %v761 = vadd.f32 %v538, %v745
        %v762 = vadd.f32 %v538, %v746
        %v763 = vadd.f32 %v538, %v747
        %v764 = vadd.f32 %v538, %v748
        %s765 = sld [smem:[#allocation2 + $0x48]]
        %v766 = vstv %s765
        %v767 = vmul.f32 %v766, %v545
        %v768 = vmul.f32 %v766, %v546
        %v769 = vmul.f32 %v766, %v547
        %v770 = vmul.f32 %v766, %v548
        %v771 = vmul.f32 %v766, %v549
        %v772 = vmul.f32 %v766, %v550
        %v773 = vmul.f32 %v766, %v551
        %v774 = vmul.f32 %v766, %v552
        %v775 = vmul.f32 %v766, %v553
        %v776 = vmul.f32 %v766, %v554
        %v777 = vmul.f32 %v766, %v555
        %v778 = vmul.f32 %v766, %v556
        %v779 = vmul.f32 %v766, %v557
        %v780 = vmul.f32 %v766, %v558
        %v781 = vmul.f32 %v766, %v559
        %v782 = vmul.f32 %v766, %v560
        %v783 = vadd.f32 %v541, %v767
        %v784 = vadd.f32 %v541, %v768
        %v785 = vadd.f32 %v541, %v769
        %v786 = vadd.f32 %v541, %v770
        %v787 = vadd.f32 %v541, %v771
        %v788 = vadd.f32 %v541, %v772
        %v789 = vadd.f32 %v541, %v773
        %v790 = vadd.f32 %v541, %v774
        %v791 = vadd.f32 %v541, %v775
        %v792 = vadd.f32 %v541, %v776
        %v793 = vadd.f32 %v541, %v777
        %v794 = vadd.f32 %v541, %v778
        %v795 = vadd.f32 %v541, %v779
        %v796 = vadd.f32 %v541, %v780
        %v797 = vadd.f32 %v541, %v781
        %v798 = vadd.f32 %v541, %v782
        %s799 = sld [smem:[#allocation2 + $0x54]]
        %v800 = vstv %s799
        %v801 = vmul.f32 %v800, %v545
        %v802 = vmul.f32 %v800, %v546
        %v803 = vmul.f32 %v800, %v547
        %v804 = vmul.f32 %v800, %v548
        %v805 = vmul.f32 %v800, %v549
        %v806 = vmul.f32 %v800, %v550
        %v807 = vmul.f32 %v800, %v551
        %v808 = vmul.f32 %v800, %v552
        %v809 = vmul.f32 %v800, %v553
        %v810 = vmul.f32 %v800, %v554
        %v811 = vmul.f32 %v800, %v555
        %v812 = vmul.f32 %v800, %v556
        %v813 = vmul.f32 %v800, %v557
        %v814 = vmul.f32 %v800, %v558
        %v815 = vmul.f32 %v800, %v559
        %v816 = vmul.f32 %v800, %v560
        %v817 = vadd.f32 %v544, %v801
        %v818 = vadd.f32 %v544, %v802
        %v819 = vadd.f32 %v544, %v803
        %v820 = vadd.f32 %v544, %v804
        %v821 = vadd.f32 %v544, %v805
        %v822 = vadd.f32 %v544, %v806
        %v823 = vadd.f32 %v544, %v807
        %v824 = vadd.f32 %v544, %v808
        %v825 = vadd.f32 %v544, %v809
        %v826 = vadd.f32 %v544, %v810
        %v827 = vadd.f32 %v544, %v811
        %v828 = vadd.f32 %v544, %v812
        %v829 = vadd.f32 %v544, %v813
        %v830 = vadd.f32 %v544, %v814
        %v831 = vadd.f32 %v544, %v815
        %v832 = vadd.f32 %v544, %v816
        %833 = vmatprep.subr.mxu0 0.0
        %834 = vmatpush1.msra.mxu0 %v545
        %835 = vmatprep.subr.mxu0 0.0
        %836 = vmatpush1.msra.mxu0 %v546
        %837 = vmatprep.subr.mxu0 0.0
        %838 = vmatpush1.msra.mxu0 %v547
        %839 = vmatprep.subr.mxu0 0.0
        %840 = vmatpush1.msra.mxu0 %v548
        %841 = vmatprep.subr.mxu0 0.0
        %842 = vmatpush1.msra.mxu0 %v549
        %843 = vmatprep.subr.mxu0 0.0
        %844 = vmatpush1.msra.mxu0 %v550
        %845 = vmatprep.subr.mxu0 0.0
        %846 = vmatpush1.msra.mxu0 %v551
        %847 = vmatprep.subr.mxu0 0.0
        %848 = vmatpush1.msra.mxu0 %v552
        %849 = vmatprep.subr.mxu0 0.0
        %850 = vmatpush1.msra.mxu0 %v553
        %851 = vmatprep.subr.mxu0 0.0
        %852 = vmatpush1.msra.mxu0 %v554
        %853 = vmatprep.subr.mxu0 0.0
        %854 = vmatpush1.msra.mxu0 %v555
        %855 = vmatprep.subr.mxu0 0.0
        %856 = vmatpush1.msra.mxu0 %v556
        %857 = vmatprep.subr.mxu0 0.0
        %858 = vmatpush1.msra.mxu0 %v557
        %859 = vmatprep.subr.mxu0 0.0
        %860 = vmatpush1.msra.mxu0 %v558
        %861 = vmatprep.subr.mxu0 0.0
        %862 = vmatpush1.msra.mxu0 %v559
        %863 = vmatprep.subr.mxu0 0.0
        %864 = vmatpush1.msra.mxu0 %v560
        %865 = vmatprep.subr.mxu0 0.0
        %866 = vmatpush1.msra.mxu0 0.0
        %867 = vmatprep.subr.mxu0 0.0
        %868 = vmatpush1.msra.mxu0 0.0
        %869 = vmatprep.subr.mxu0 0.0
        %870 = vmatpush1.msra.mxu0 0.0
        %871 = vmatprep.subr.mxu0 0.0
        %872 = vmatpush1.msra.mxu0 0.0
        %873 = vmatprep.subr.mxu0 0.0
        %874 = vmatpush1.msra.mxu0 0.0
        %875 = vmatprep.subr.mxu0 0.0
        %876 = vmatpush1.msra.mxu0 0.0
        %877 = vmatprep.subr.mxu0 0.0
        %878 = vmatpush1.msra.mxu0 0.0
        %879 = vmatprep.subr.mxu0 0.0
        %880 = vmatpush1.msra.mxu0 0.0
        %881 = vmatprep.subr.mxu0 0.0
        %882 = vmatpush1.msra.mxu0 0.0
        %883 = vmatprep.subr.mxu0 0.0
        %884 = vmatpush1.msra.mxu0 0.0
        %885 = vmatprep.subr.mxu0 0.0
        %886 = vmatpush1.msra.mxu0 0.0
        %887 = vmatprep.subr.mxu0 0.0
        %888 = vmatpush1.msra.mxu0 0.0
        %889 = vmatprep.subr.mxu0 0.0
        %890 = vmatpush1.msra.mxu0 0.0
        %891 = vmatprep.subr.mxu0 0.0
        %892 = vmatpush1.msra.mxu0 0.0
        %893 = vmatprep.subr.mxu0 0.0
        %894 = vmatpush1.msra.mxu0 0.0
        %895 = vmatprep.subr.mxu0 0.0
        %896 = vmatpush1.msra.mxu0 0.0
        %897 = vmatprep.mubr.f32.mxu0 0.0
        %898 = vmatmul.mubr.f32.gmra.mrb[0].mxu0 %v505
        %v899 = vpop.f32.mrb[0].mxu0
        %v900 = vadd.f32 0.0, %v899
        %v901 = vpop.f32.mrb[0].mxu0
        %902 = vmatprep.mubr.f32.mxu0 0.0
        %903 = vmatmul.mubr.f32.gmra.mrb[0].mxu0 %v506
        %v904 = vpop.f32.mrb[0].mxu0
        %v905 = vadd.f32 0.0, %v904
        %v906 = vpop.f32.mrb[0].mxu0
        %907 = vmatprep.mubr.f32.mxu0 0.0
        %908 = vmatmul.mubr.f32.gmra.mrb[0].mxu0 %v507
        %v909 = vpop.f32.mrb[0].mxu0
        %v910 = vadd.f32 0.0, %v909
        %v911 = vpop.f32.mrb[0].mxu0
        %912 = vmatprep.mubr.f32.mxu0 0.0
        %913 = vmatmul.mubr.f32.gmra.mrb[0].mxu0 %v508
        %v914 = vpop.f32.mrb[0].mxu0
        %v915 = vadd.f32 0.0, %v914
        %v916 = vpop.f32.mrb[0].mxu0
        %917 = vmatprep.mubr.f32.mxu0 0.0
        %918 = vmatmul.mubr.f32.gmra.mrb[0].mxu0 %v509
        %v919 = vpop.f32.mrb[0].mxu0
        %v920 = vadd.f32 0.0, %v919
        %v921 = vpop.f32.mrb[0].mxu0
        %922 = vmatprep.mubr.f32.mxu0 0.0
        %923 = vmatmul.mubr.f32.gmra.mrb[0].mxu0 %v510
        %v924 = vpop.f32.mrb[0].mxu0
        %v925 = vadd.f32 0.0, %v924
        %v926 = vpop.f32.mrb[0].mxu0
        %927 = vmatprep.mubr.f32.mxu0 0.0
        %928 = vmatmul.mubr.f32.gmra.mrb[0].mxu0 %v511
        %v929 = vpop.f32.mrb[0].mxu0
        %v930 = vadd.f32 0.0, %v929
        %v931 = vpop.f32.mrb[0].mxu0
        %932 = vmatprep.mubr.f32.mxu0 0.0
        %933 = vmatmul.mubr.f32.gmra.mrb[0].mxu0 %v512
        %v934 = vpop.f32.mrb[0].mxu0
        %v935 = vadd.f32 0.0, %v934
        %v936 = vpop.f32.mrb[0].mxu0
        %937 = vmatprep.mubr.f32.mxu0 0.0
        %938 = vmatmul.mubr.f32.gmra.mrb[0].mxu0 %v513
        %v939 = vpop.f32.mrb[0].mxu0
        %v940 = vadd.f32 0.0, %v939
        %v941 = vpop.f32.mrb[0].mxu0
        %942 = vmatprep.mubr.f32.mxu0 0.0
        %943 = vmatmul.mubr.f32.gmra.mrb[0].mxu0 %v514
        %v944 = vpop.f32.mrb[0].mxu0
        %v945 = vadd.f32 0.0, %v944
        %v946 = vpop.f32.mrb[0].mxu0
        %947 = vmatprep.mubr.f32.mxu0 0.0
        %948 = vmatmul.mubr.f32.gmra.mrb[0].mxu0 %v515
        %v949 = vpop.f32.mrb[0].mxu0
        %v950 = vadd.f32 0.0, %v949
        %v951 = vpop.f32.mrb[0].mxu0
        %952 = vmatprep.mubr.f32.mxu0 0.0
        %953 = vmatmul.mubr.f32.gmra.mrb[0].mxu0 %v516
        %v954 = vpop.f32.mrb[0].mxu0
        %v955 = vadd.f32 0.0, %v954
        %v956 = vpop.f32.mrb[0].mxu0
        %957 = vmatprep.mubr.f32.mxu0 0.0
        %958 = vmatmul.mubr.f32.gmra.mrb[0].mxu0 %v517
        %v959 = vpop.f32.mrb[0].mxu0
        %v960 = vadd.f32 0.0, %v959
        %v961 = vpop.f32.mrb[0].mxu0
        %962 = vmatprep.mubr.f32.mxu0 0.0
        %963 = vmatmul.mubr.f32.gmra.mrb[0].mxu0 %v518
        %v964 = vpop.f32.mrb[0].mxu0
        %v965 = vadd.f32 0.0, %v964
        %v966 = vpop.f32.mrb[0].mxu0
        %967 = vmatprep.mubr.f32.mxu0 0.0
        %968 = vmatmul.mubr.f32.gmra.mrb[0].mxu0 %v519
        %v969 = vpop.f32.mrb[0].mxu0
        %v970 = vadd.f32 0.0, %v969
        %v971 = vpop.f32.mrb[0].mxu0
        %972 = vmatprep.mubr.f32.mxu0 0.0
        %973 = vmatmul.mubr.f32.gmra.mrb[0].mxu0 %v520
        %v974 = vpop.f32.mrb[0].mxu0
        %v975 = vadd.f32 0.0, %v974
        %v976 = vpop.f32.mrb[0].mxu0
        %977 = vdwg.mxu0
        %s978 = sld [smem:[#allocation2 + $0x1]]
        %v979 = vstv %s978
        %v980 = vmul.f32 %v979, %v900
        %v981 = vmul.f32 %v979, %v905
        %v982 = vmul.f32 %v979, %v910
        %v983 = vmul.f32 %v979, %v915
        %v984 = vmul.f32 %v979, %v920
        %v985 = vmul.f32 %v979, %v925
        %v986 = vmul.f32 %v979, %v930
        %v987 = vmul.f32 %v979, %v935
        %v988 = vmul.f32 %v979, %v940
        %v989 = vmul.f32 %v979, %v945
        %v990 = vmul.f32 %v979, %v950
        %v991 = vmul.f32 %v979, %v955
        %v992 = vmul.f32 %v979, %v960
        %v993 = vmul.f32 %v979, %v965
        %v994 = vmul.f32 %v979, %v970
        %v995 = vmul.f32 %v979, %v975
        %v996 = vadd.f32 %v579, %v980
        %v997 = vadd.f32 %v580, %v981
        %v998 = vadd.f32 %v581, %v982
        %v999 = vadd.f32 %v582, %v983
        %v1000 = vadd.f32 %v583, %v984
        %v1001 = vadd.f32 %v584, %v985
        %v1002 = vadd.f32 %v585, %v986
        %v1003 = vadd.f32 %v586, %v987
        %v1004 = vadd.f32 %v587, %v988
        %v1005 = vadd.f32 %v588, %v989
        %v1006 = vadd.f32 %v589, %v990
        %v1007 = vadd.f32 %v590, %v991
        %v1008 = vadd.f32 %v591, %v992
        %v1009 = vadd.f32 %v592, %v993
        %v1010 = vadd.f32 %v593, %v994
        %v1011 = vadd.f32 %v594, %v995
        %s1012 = sld [smem:[#allocation2 + $0xd]]
        %v1013 = vstv %s1012
        %v1014 = vmul.f32 %v1013, %v900
        %v1015 = vmul.f32 %v1013, %v905
        %v1016 = vmul.f32 %v1013, %v910
        %v1017 = vmul.f32 %v1013, %v915
        %v1018 = vmul.f32 %v1013, %v920
        %v1019 = vmul.f32 %v1013, %v925
        %v1020 = vmul.f32 %v1013, %v930
        %v1021 = vmul.f32 %v1013, %v935
        %v1022 = vmul.f32 %v1013, %v940
        %v1023 = vmul.f32 %v1013, %v945
        %v1024 = vmul.f32 %v1013, %v950
        %v1025 = vmul.f32 %v1013, %v955
        %v1026 = vmul.f32 %v1013, %v960
        %v1027 = vmul.f32 %v1013, %v965
        %v1028 = vmul.f32 %v1013, %v970
        %v1029 = vmul.f32 %v1013, %v975
        %v1030 = vadd.f32 %v613, %v1014
        %v1031 = vadd.f32 %v614, %v1015
        %v1032 = vadd.f32 %v615, %v1016
        %v1033 = vadd.f32 %v616, %v1017
        %v1034 = vadd.f32 %v617, %v1018
        %v1035 = vadd.f32 %v618, %v1019
        %v1036 = vadd.f32 %v619, %v1020
        %v1037 = vadd.f32 %v620, %v1021
        %v1038 = vadd.f32 %v621, %v1022
        %v1039 = vadd.f32 %v622, %v1023
        %v1040 = vadd.f32 %v623, %v1024
        %v1041 = vadd.f32 %v624, %v1025
        %v1042 = vadd.f32 %v625, %v1026
        %v1043 = vadd.f32 %v626, %v1027
        %v1044 = vadd.f32 %v627, %v1028
        %v1045 = vadd.f32 %v628, %v1029
        %s1046 = sld [smem:[#allocation2 + $0x19]]
        %v1047 = vstv %s1046
        %v1048 = vmul.f32 %v1047, %v900
        %v1049 = vmul.f32 %v1047, %v905
        %v1050 = vmul.f32 %v1047, %v910
        %v1051 = vmul.f32 %v1047, %v915
        %v1052 = vmul.f32 %v1047, %v920
        %v1053 = vmul.f32 %v1047, %v925
        %v1054 = vmul.f32 %v1047, %v930
        %v1055 = vmul.f32 %v1047, %v935
        %v1056 = vmul.f32 %v1047, %v940
        %v1057 = vmul.f32 %v1047, %v945
        %v1058 = vmul.f32 %v1047, %v950
        %v1059 = vmul.f32 %v1047, %v955
        %v1060 = vmul.f32 %v1047, %v960
        %v1061 = vmul.f32 %v1047, %v965
        %v1062 = vmul.f32 %v1047, %v970
        %v1063 = vmul.f32 %v1047, %v975
        %v1064 = vadd.f32 %v647, %v1048
        %v1065 = vadd.f32 %v648, %v1049
        %v1066 = vadd.f32 %v649, %v1050
        %v1067 = vadd.f32 %v650, %v1051
        %v1068 = vadd.f32 %v651, %v1052
        %v1069 = vadd.f32 %v652, %v1053
        %v1070 = vadd.f32 %v653, %v1054
        %v1071 = vadd.f32 %v654, %v1055
        %v1072 = vadd.f32 %v655, %v1056
        %v1073 = vadd.f32 %v656, %v1057
        %v1074 = vadd.f32 %v657, %v1058
        %v1075 = vadd.f32 %v658, %v1059
        %v1076 = vadd.f32 %v659, %v1060
        %v1077 = vadd.f32 %v660, %v1061
        %v1078 = vadd.f32 %v661, %v1062
        %v1079 = vadd.f32 %v662, %v1063
        %s1080 = sld [smem:[#allocation2 + $0x25]]
        %v1081 = vstv %s1080
        %v1082 = vmul.f32 %v1081, %v900
        %v1083 = vmul.f32 %v1081, %v905
        %v1084 = vmul.f32 %v1081, %v910
        %v1085 = vmul.f32 %v1081, %v915
        %v1086 = vmul.f32 %v1081, %v920
        %v1087 = vmul.f32 %v1081, %v925
        %v1088 = vmul.f32 %v1081, %v930
        %v1089 = vmul.f32 %v1081, %v935
        %v1090 = vmul.f32 %v1081, %v940
        %v1091 = vmul.f32 %v1081, %v945
        %v1092 = vmul.f32 %v1081, %v950
        %v1093 = vmul.f32 %v1081, %v955
        %v1094 = vmul.f32 %v1081, %v960
        %v1095 = vmul.f32 %v1081, %v965
        %v1096 = vmul.f32 %v1081, %v970
        %v1097 = vmul.f32 %v1081, %v975
        %v1098 = vadd.f32 %v681, %v1082
        %v1099 = vadd.f32 %v682, %v1083
        %v1100 = vadd.f32 %v683, %v1084
        %v1101 = vadd.f32 %v684, %v1085
        %v1102 = vadd.f32 %v685, %v1086
        %v1103 = vadd.f32 %v686, %v1087
        %v1104 = vadd.f32 %v687, %v1088
        %v1105 = vadd.f32 %v688, %v1089
        %v1106 = vadd.f32 %v689, %v1090
        %v1107 = vadd.f32 %v690, %v1091
        %v1108 = vadd.f32 %v691, %v1092
        %v1109 = vadd.f32 %v692, %v1093
        %v1110 = vadd.f32 %v693, %v1094
        %v1111 = vadd.f32 %v694, %v1095
        %v1112 = vadd.f32 %v695, %v1096
        %v1113 = vadd.f32 %v696, %v1097
        %s1114 = sld [smem:[#allocation2 + $0x31]]
        %v1115 = vstv %s1114
        %v1116 = vmul.f32 %v1115, %v900
        %v1117 = vmul.f32 %v1115, %v905
        %v1118 = vmul.f32 %v1115, %v910
        %v1119 = vmul.f32 %v1115, %v915
        %v1120 = vmul.f32 %v1115, %v920
        %v1121 = vmul.f32 %v1115, %v925
        %v1122 = vmul.f32 %v1115, %v930
        %v1123 = vmul.f32 %v1115, %v935
        %v1124 = vmul.f32 %v1115, %v940
        %v1125 = vmul.f32 %v1115, %v945
        %v1126 = vmul.f32 %v1115, %v950
        %v1127 = vmul.f32 %v1115, %v955
        %v1128 = vmul.f32 %v1115, %v960
        %v1129 = vmul.f32 %v1115, %v965
        %v1130 = vmul.f32 %v1115, %v970
        %v1131 = vmul.f32 %v1115, %v975
        %v1132 = vadd.f32 %v715, %v1116
        %v1133 = vadd.f32 %v716, %v1117
        %v1134 = vadd.f32 %v717, %v1118
        %v1135 = vadd.f32 %v718, %v1119
        %v1136 = vadd.f32 %v719, %v1120
        %v1137 = vadd.f32 %v720, %v1121
        %v1138 = vadd.f32 %v721, %v1122
        %v1139 = vadd.f32 %v722, %v1123
        %v1140 = vadd.f32 %v723, %v1124
        %v1141 = vadd.f32 %v724, %v1125
        %v1142 = vadd.f32 %v725, %v1126
        %v1143 = vadd.f32 %v726, %v1127
        %v1144 = vadd.f32 %v727, %v1128
        %v1145 = vadd.f32 %v728, %v1129
        %v1146 = vadd.f32 %v729, %v1130
        %v1147 = vadd.f32 %v730, %v1131
        %s1148 = sld [smem:[#allocation2 + $0x3d]]
        %v1149 = vstv %s1148
        %v1150 = vmul.f32 %v1149, %v900
        %v1151 = vmul.f32 %v1149, %v905
        %v1152 = vmul.f32 %v1149, %v910
        %v1153 = vmul.f32 %v1149, %v915
        %v1154 = vmul.f32 %v1149, %v920
        %v1155 = vmul.f32 %v1149, %v925
        %v1156 = vmul.f32 %v1149, %v930
        %v1157 = vmul.f32 %v1149, %v935
        %v1158 = vmul.f32 %v1149, %v940
        %v1159 = vmul.f32 %v1149, %v945
        %v1160 = vmul.f32 %v1149, %v950
        %v1161 = vmul.f32 %v1149, %v955
        %v1162 = vmul.f32 %v1149, %v960
        %v1163 = vmul.f32 %v1149, %v965
        %v1164 = vmul.f32 %v1149, %v970
        %v1165 = vmul.f32 %v1149, %v975
        %v1166 = vadd.f32 %v749, %v1150
        %v1167 = vadd.f32 %v750, %v1151
        %v1168 = vadd.f32 %v751, %v1152
        %v1169 = vadd.f32 %v752, %v1153
        %v1170 = vadd.f32 %v753, %v1154
        %v1171 = vadd.f32 %v754, %v1155
        %v1172 = vadd.f32 %v755, %v1156
        %v1173 = vadd.f32 %v756, %v1157
        %v1174 = vadd.f32 %v757, %v1158
        %v1175 = vadd.f32 %v758, %v1159
        %v1176 = vadd.f32 %v759, %v1160
        %v1177 = vadd.f32 %v760, %v1161
        %v1178 = vadd.f32 %v761, %v1162
        %v1179 = vadd.f32 %v762, %v1163
        %v1180 = vadd.f32 %v763, %v1164
        %v1181 = vadd.f32 %v764, %v1165
        %s1182 = sld [smem:[#allocation2 + $0x49]]
        %v1183 = vstv %s1182
        %v1184 = vmul.f32 %v1183, %v900
        %v1185 = vmul.f32 %v1183, %v905
        %v1186 = vmul.f32 %v1183, %v910
        %v1187 = vmul.f32 %v1183, %v915
        %v1188 = vmul.f32 %v1183, %v920
        %v1189 = vmul.f32 %v1183, %v925
        %v1190 = vmul.f32 %v1183, %v930
        %v1191 = vmul.f32 %v1183, %v935
        %v1192 = vmul.f32 %v1183, %v940
        %v1193 = vmul.f32 %v1183, %v945
        %v1194 = vmul.f32 %v1183, %v950
        %v1195 = vmul.f32 %v1183, %v955
        %v1196 = vmul.f32 %v1183, %v960
        %v1197 = vmul.f32 %v1183, %v965
        %v1198 = vmul.f32 %v1183, %v970
        %v1199 = vmul.f32 %v1183, %v975
        %v1200 = vadd.f32 %v783, %v1184
        %v1201 = vadd.f32 %v784, %v1185
        %v1202 = vadd.f32 %v785, %v1186
        %v1203 = vadd.f32 %v786, %v1187
        %v1204 = vadd.f32 %v787, %v1188
        %v1205 = vadd.f32 %v788, %v1189
        %v1206 = vadd.f32 %v789, %v1190
        %v1207 = vadd.f32 %v790, %v1191
        %v1208 = vadd.f32 %v791, %v1192
        %v1209 = vadd.f32 %v792, %v1193
        %v1210 = vadd.f32 %v793, %v1194
        %v1211 = vadd.f32 %v794, %v1195
        %v1212 = vadd.f32 %v795, %v1196
        %v1213 = vadd.f32 %v796, %v1197
        %v1214 = vadd.f32 %v797, %v1198
        %v1215 = vadd.f32 %v798, %v1199
        %s1216 = sld [smem:[#allocation2 + $0x55]]
        %v1217 = vstv %s1216
        %v1218 = vmul.f32 %v1217, %v900
        %v1219 = vmul.f32 %v1217, %v905
        %v1220 = vmul.f32 %v1217, %v910
        %v1221 = vmul.f32 %v1217, %v915
        %v1222 = vmul.f32 %v1217, %v920
        %v1223 = vmul.f32 %v1217, %v925
        %v1224 = vmul.f32 %v1217, %v930
        %v1225 = vmul.f32 %v1217, %v935
        %v1226 = vmul.f32 %v1217, %v940
        %v1227 = vmul.f32 %v1217, %v945
        %v1228 = vmul.f32 %v1217, %v950
        %v1229 = vmul.f32 %v1217, %v955
        %v1230 = vmul.f32 %v1217, %v960
        %v1231 = vmul.f32 %v1217, %v965
        %v1232 = vmul.f32 %v1217, %v970
        %v1233 = vmul.f32 %v1217, %v975
        %v1234 = vadd.f32 %v817, %v1218
        %v1235 = vadd.f32 %v818, %v1219
        %v1236 = vadd.f32 %v819, %v1220
        %v1237 = vadd.f32 %v820, %v1221
        %v1238 = vadd.f32 %v821, %v1222
        %v1239 = vadd.f32 %v822, %v1223
        %v1240 = vadd.f32 %v823, %v1224
        %v1241 = vadd.f32 %v824, %v1225
        %v1242 = vadd.f32 %v825, %v1226
        %v1243 = vadd.f32 %v826, %v1227
        %v1244 = vadd.f32 %v827, %v1228
        %v1245 = vadd.f32 %v828, %v1229
        %v1246 = vadd.f32 %v829, %v1230
        %v1247 = vadd.f32 %v830, %v1231
        %v1248 = vadd.f32 %v831, %v1232
        %v1249 = vadd.f32 %v832, %v1233
        %1250 = vmatprep.subr.mxu0 0.0
        %1251 = vmatpush1.msra.mxu0 %v900
        %1252 = vmatprep.subr.mxu0 0.0
        %1253 = vmatpush1.msra.mxu0 %v905
        %1254 = vmatprep.subr.mxu0 0.0
        %1255 = vmatpush1.msra.mxu0 %v910
        %1256 = vmatprep.subr.mxu0 0.0
        %1257 = vmatpush1.msra.mxu0 %v915
        %1258 = vmatprep.subr.mxu0 0.0
        %1259 = vmatpush1.msra.mxu0 %v920
        %1260 = vmatprep.subr.mxu0 0.0
        %1261 = vmatpush1.msra.mxu0 %v925
        %1262 = vmatprep.subr.mxu0 0.0
        %1263 = vmatpush1.msra.mxu0 %v930
        %1264 = vmatprep.subr.mxu0 0.0
        %1265 = vmatpush1.msra.mxu0 %v935
        %1266 = vmatprep.subr.mxu0 0.0
        %1267 = vmatpush1.msra.mxu0 %v940
        %1268 = vmatprep.subr.mxu0 0.0
        %1269 = vmatpush1.msra.mxu0 %v945
        %1270 = vmatprep.subr.mxu0 0.0
        %1271 = vmatpush1.msra.mxu0 %v950
        %1272 = vmatprep.subr.mxu0 0.0
        %1273 = vmatpush1.msra.mxu0 %v955
        %1274 = vmatprep.subr.mxu0 0.0
        %1275 = vmatpush1.msra.mxu0 %v960
        %1276 = vmatprep.subr.mxu0 0.0
        %1277 = vmatpush1.msra.mxu0 %v965
        %1278 = vmatprep.subr.mxu0 0.0
        %1279 = vmatpush1.msra.mxu0 %v970
        %1280 = vmatprep.subr.mxu0 0.0
        %1281 = vmatpush1.msra.mxu0 %v975
        %1282 = vmatprep.subr.mxu0 0.0
        %1283 = vmatpush1.msra.mxu0 0.0
        %1284 = vmatprep.subr.mxu0 0.0
        %1285 = vmatpush1.msra.mxu0 0.0
        %1286 = vmatprep.subr.mxu0 0.0
        %1287 = vmatpush1.msra.mxu0 0.0
        %1288 = vmatprep.subr.mxu0 0.0
        %1289 = vmatpush1.msra.mxu0 0.0
        %1290 = vmatprep.subr.mxu0 0.0
        %1291 = vmatpush1.msra.mxu0 0.0
        %1292 = vmatprep.subr.mxu0 0.0
        %1293 = vmatpush1.msra.mxu0 0.0
        %1294 = vmatprep.subr.mxu0 0.0
        %1295 = vmatpush1.msra.mxu0 0.0
        %1296 = vmatprep.subr.mxu0 0.0
        %1297 = vmatpush1.msra.mxu0 0.0
        %1298 = vmatprep.subr.mxu0 0.0
        %1299 = vmatpush1.msra.mxu0 0.0
        %1300 = vmatprep.subr.mxu0 0.0
        %1301 = vmatpush1.msra.mxu0 0.0
        %1302 = vmatprep.subr.mxu0 0.0
        %1303 = vmatpush1.msra.mxu0 0.0
        %1304 = vmatprep.subr.mxu0 0.0
        %1305 = vmatpush1.msra.mxu0 0.0
        %1306 = vmatprep.subr.mxu0 0.0
        %1307 = vmatpush1.msra.mxu0 0.0
        %1308 = vmatprep.subr.mxu0 0.0
        %1309 = vmatpush1.msra.mxu0 0.0
        %1310 = vmatprep.subr.mxu0 0.0
        %1311 = vmatpush1.msra.mxu0 0.0
        %1312 = vmatprep.subr.mxu0 0.0
        %1313 = vmatpush1.msra.mxu0 0.0
        %1314 = vmatprep.mubr.f32.mxu0 0.0
        %1315 = vmatmul.mubr.f32.gmra.mrb[0].mxu0 %v505
        %v1316 = vpop.f32.mrb[0].mxu0
        %v1317 = vadd.f32 0.0, %v1316
        %v1318 = vpop.f32.mrb[0].mxu0
        %1319 = vmatprep.mubr.f32.mxu0 0.0
        %1320 = vmatmul.mubr.f32.gmra.mrb[0].mxu0 %v506
        %v1321 = vpop.f32.mrb[0].mxu0
        %v1322 = vadd.f32 0.0, %v1321
        %v1323 = vpop.f32.mrb[0].mxu0
        %1324 = vmatprep.mubr.f32.mxu0 0.0
        %1325 = vmatmul.mubr.f32.gmra.mrb[0].mxu0 %v507
        %v1326 = vpop.f32.mrb[0].mxu0
        %v1327 = vadd.f32 0.0, %v1326
        %v1328 = vpop.f32.mrb[0].mxu0
        %1329 = vmatprep.mubr.f32.mxu0 0.0
        %1330 = vmatmul.mubr.f32.gmra.mrb[0].mxu0 %v508
        %v1331 = vpop.f32.mrb[0].mxu0
        %v1332 = vadd.f32 0.0, %v1331
        %v1333 = vpop.f32.mrb[0].mxu0
        %1334 = vmatprep.mubr.f32.mxu0 0.0
        %1335 = vmatmul.mubr.f32.gmra.mrb[0].mxu0 %v509
        %v1336 = vpop.f32.mrb[0].mxu0
        %v1337 = vadd.f32 0.0, %v1336
        %v1338 = vpop.f32.mrb[0].mxu0
        %1339 = vmatprep.mubr.f32.mxu0 0.0
        %1340 = vmatmul.mubr.f32.gmra.mrb[0].mxu0 %v510
        %v1341 = vpop.f32.mrb[0].mxu0
        %v1342 = vadd.f32 0.0, %v1341
        %v1343 = vpop.f32.mrb[0].mxu0
        %1344 = vmatprep.mubr.f32.mxu0 0.0
        %1345 = vmatmul.mubr.f32.gmra.mrb[0].mxu0 %v511
        %v1346 = vpop.f32.mrb[0].mxu0
        %v1347 = vadd.f32 0.0, %v1346
        %v1348 = vpop.f32.mrb[0].mxu0
        %1349 = vmatprep.mubr.f32.mxu0 0.0
        %1350 = vmatmul.mubr.f32.gmra.mrb[0].mxu0 %v512
        %v1351 = vpop.f32.mrb[0].mxu0
        %v1352 = vadd.f32 0.0, %v1351
        %v1353 = vpop.f32.mrb[0].mxu0
        %1354 = vmatprep.mubr.f32.mxu0 0.0
        %1355 = vmatmul.mubr.f32.gmra.mrb[0].mxu0 %v513
        %v1356 = vpop.f32.mrb[0].mxu0
        %v1357 = vadd.f32 0.0, %v1356
        %v1358 = vpop.f32.mrb[0].mxu0
        %1359 = vmatprep.mubr.f32.mxu0 0.0
        %1360 = vmatmul.mubr.f32.gmra.mrb[0].mxu0 %v514
        %v1361 = vpop.f32.mrb[0].mxu0
        %v1362 = vadd.f32 0.0, %v1361
        %v1363 = vpop.f32.mrb[0].mxu0
        %1364 = vmatprep.mubr.f32.mxu0 0.0
        %1365 = vmatmul.mubr.f32.gmra.mrb[0].mxu0 %v515
        %v1366 = vpop.f32.mrb[0].mxu0
        %v1367 = vadd.f32 0.0, %v1366
        %v1368 = vpop.f32.mrb[0].mxu0
        %1369 = vmatprep.mubr.f32.mxu0 0.0
        %1370 = vmatmul.mubr.f32.gmra.mrb[0].mxu0 %v516
        %v1371 = vpop.f32.mrb[0].mxu0
        %v1372 = vadd.f32 0.0, %v1371
        %v1373 = vpop.f32.mrb[0].mxu0
        %1374 = vmatprep.mubr.f32.mxu0 0.0
        %1375 = vmatmul.mubr.f32.gmra.mrb[0].mxu0 %v517
        %v1376 = vpop.f32.mrb[0].mxu0
        %v1377 = vadd.f32 0.0, %v1376
        %v1378 = vpop.f32.mrb[0].mxu0
        %1379 = vmatprep.mubr.f32.mxu0 0.0
        %1380 = vmatmul.mubr.f32.gmra.mrb[0].mxu0 %v518
        %v1381 = vpop.f32.mrb[0].mxu0
        %v1382 = vadd.f32 0.0, %v1381
        %v1383 = vpop.f32.mrb[0].mxu0
        %1384 = vmatprep.mubr.f32.mxu0 0.0
        %1385 = vmatmul.mubr.f32.gmra.mrb[0].mxu0 %v519
        %v1386 = vpop.f32.mrb[0].mxu0
        %v1387 = vadd.f32 0.0, %v1386
        %v1388 = vpop.f32.mrb[0].mxu0
        %1389 = vmatprep.mubr.f32.mxu0 0.0
        %1390 = vmatmul.mubr.f32.gmra.mrb[0].mxu0 %v520
        %v1391 = vpop.f32.mrb[0].mxu0
        %v1392 = vadd.f32 0.0, %v1391
        %v1393 = vpop.f32.mrb[0].mxu0
        %1394 = vdwg.mxu0
        %v1395 = vmul.f32 %v1317, 2.0
        %v1396 = vmul.f32 %v1322, 2.0
        %v1397 = vmul.f32 %v1327, 2.0
        %v1398 = vmul.f32 %v1332, 2.0
        %v1399 = vmul.f32 %v1337, 2.0
        %v1400 = vmul.f32 %v1342, 2.0
        %v1401 = vmul.f32 %v1347, 2.0
        %v1402 = vmul.f32 %v1352, 2.0
        %v1403 = vmul.f32 %v1357, 2.0
        %v1404 = vmul.f32 %v1362, 2.0
        %v1405 = vmul.f32 %v1367, 2.0
        %v1406 = vmul.f32 %v1372, 2.0
        %v1407 = vmul.f32 %v1377, 2.0
        %v1408 = vmul.f32 %v1382, 2.0
        %v1409 = vmul.f32 %v1387, 2.0
        %v1410 = vmul.f32 %v1392, 2.0
        %v1411 = vsub.f32 %v1395, %v545
        %v1412 = vsub.f32 %v1396, %v546
        %v1413 = vsub.f32 %v1397, %v547
        %v1414 = vsub.f32 %v1398, %v548
        %v1415 = vsub.f32 %v1399, %v549
        %v1416 = vsub.f32 %v1400, %v550
        %v1417 = vsub.f32 %v1401, %v551
        %v1418 = vsub.f32 %v1402, %v552
        %v1419 = vsub.f32 %v1403, %v553
        %v1420 = vsub.f32 %v1404, %v554
        %v1421 = vsub.f32 %v1405, %v555
        %v1422 = vsub.f32 %v1406, %v556
        %v1423 = vsub.f32 %v1407, %v557
        %v1424 = vsub.f32 %v1408, %v558
        %v1425 = vsub.f32 %v1409, %v559
        %v1426 = vsub.f32 %v1410, %v560
        %s1427 = sld [smem:[#allocation2 + $0x2]]
        %v1428 = vstv %s1427
        %v1429 = vmul.f32 %v1428, %v1411
        %v1430 = vmul.f32 %v1428, %v1412
        %v1431 = vmul.f32 %v1428, %v1413
        %v1432 = vmul.f32 %v1428, %v1414
        %v1433 = vmul.f32 %v1428, %v1415
        %v1434 = vmul.f32 %v1428, %v1416
        %v1435 = vmul.f32 %v1428, %v1417
        %v1436 = vmul.f32 %v1428, %v1418
        %v1437 = vmul.f32 %v1428, %v1419
        %v1438 = vmul.f32 %v1428, %v1420
        %v1439 = vmul.f32 %v1428, %v1421
        %v1440 = vmul.f32 %v1428, %v1422
        %v1441 = vmul.f32 %v1428, %v1423
        %v1442 = vmul.f32 %v1428, %v1424
        %v1443 = vmul.f32 %v1428, %v1425
        %v1444 = vmul.f32 %v1428, %v1426
        %v1445 = vadd.f32 %v996, %v1429
        %v1446 = vadd.f32 %v997, %v1430
        %v1447 = vadd.f32 %v998, %v1431
        %v1448 = vadd.f32 %v999, %v1432
        %v1449 = vadd.f32 %v1000, %v1433
        %v1450 = vadd.f32 %v1001, %v1434
        %v1451 = vadd.f32 %v1002, %v1435
        %v1452 = vadd.f32 %v1003, %v1436
        %v1453 = vadd.f32 %v1004, %v1437
        %v1454 = vadd.f32 %v1005, %v1438
        %v1455 = vadd.f32 %v1006, %v1439
        %v1456 = vadd.f32 %v1007, %v1440
        %v1457 = vadd.f32 %v1008, %v1441
        %v1458 = vadd.f32 %v1009, %v1442
        %v1459 = vadd.f32 %v1010, %v1443
        %v1460 = vadd.f32 %v1011, %v1444
        %s1461 = sld [smem:[#allocation2 + $0xe]]
        %v1462 = vstv %s1461
        %v1463 = vmul.f32 %v1462, %v1411
        %v1464 = vmul.f32 %v1462, %v1412
        %v1465 = vmul.f32 %v1462, %v1413
        %v1466 = vmul.f32 %v1462, %v1414
        %v1467 = vmul.f32 %v1462, %v1415
        %v1468 = vmul.f32 %v1462, %v1416
        %v1469 = vmul.f32 %v1462, %v1417
        %v1470 = vmul.f32 %v1462, %v1418
        %v1471 = vmul.f32 %v1462, %v1419
        %v1472 = vmul.f32 %v1462, %v1420
        %v1473 = vmul.f32 %v1462, %v1421
        %v1474 = vmul.f32 %v1462, %v1422
        %v1475 = vmul.f32 %v1462, %v1423
        %v1476 = vmul.f32 %v1462, %v1424
        %v1477 = vmul.f32 %v1462, %v1425
        %v1478 = vmul.f32 %v1462, %v1426
        %v1479 = vadd.f32 %v1030, %v1463
        %v1480 = vadd.f32 %v1031, %v1464
        %v1481 = vadd.f32 %v1032, %v1465
        %v1482 = vadd.f32 %v1033, %v1466
        %v1483 = vadd.f32 %v1034, %v1467
        %v1484 = vadd.f32 %v1035, %v1468
        %v1485 = vadd.f32 %v1036, %v1469
        %v1486 = vadd.f32 %v1037, %v1470
        %v1487 = vadd.f32 %v1038, %v1471
        %v1488 = vadd.f32 %v1039, %v1472
        %v1489 = vadd.f32 %v1040, %v1473
        %v1490 = vadd.f32 %v1041, %v1474
        %v1491 = vadd.f32 %v1042, %v1475
        %v1492 = vadd.f32 %v1043, %v1476
        %v1493 = vadd.f32 %v1044, %v1477
        %v1494 = vadd.f32 %v1045, %v1478
        %s1495 = sld [smem:[#allocation2 + $0x1a]]
        %v1496 = vstv %s1495
        %v1497 = vmul.f32 %v1496, %v1411
        %v1498 = vmul.f32 %v1496, %v1412
        %v1499 = vmul.f32 %v1496, %v1413
        %v1500 = vmul.f32 %v1496, %v1414
        %v1501 = vmul.f32 %v1496, %v1415
        %v1502 = vmul.f32 %v1496, %v1416
        %v1503 = vmul.f32 %v1496, %v1417
        %v1504 = vmul.f32 %v1496, %v1418
        %v1505 = vmul.f32 %v1496, %v1419
        %v1506 = vmul.f32 %v1496, %v1420
        %v1507 = vmul.f32 %v1496, %v1421
        %v1508 = vmul.f32 %v1496, %v1422
        %v1509 = vmul.f32 %v1496, %v1423
        %v1510 = vmul.f32 %v1496, %v1424
        %v1511 = vmul.f32 %v1496, %v1425
        %v1512 = vmul.f32 %v1496, %v1426
        %v1513 = vadd.f32 %v1064, %v1497
        %v1514 = vadd.f32 %v1065, %v1498
        %v1515 = vadd.f32 %v1066, %v1499
        %v1516 = vadd.f32 %v1067, %v1500
        %v1517 = vadd.f32 %v1068, %v1501
        %v1518 = vadd.f32 %v1069, %v1502
        %v1519 = vadd.f32 %v1070, %v1503
        %v1520 = vadd.f32 %v1071, %v1504
        %v1521 = vadd.f32 %v1072, %v1505
        %v1522 = vadd.f32 %v1073, %v1506
        %v1523 = vadd.f32 %v1074, %v1507
        %v1524 = vadd.f32 %v1075, %v1508
        %v1525 = vadd.f32 %v1076, %v1509
        %v1526 = vadd.f32 %v1077, %v1510
        %v1527 = vadd.f32 %v1078, %v1511
        %v1528 = vadd.f32 %v1079, %v1512
        %s1529 = sld [smem:[#allocation2 + $0x26]]
        %v1530 = vstv %s1529
        %v1531 = vmul.f32 %v1530, %v1411
        %v1532 = vmul.f32 %v1530, %v1412
        %v1533 = vmul.f32 %v1530, %v1413
        %v1534 = vmul.f32 %v1530, %v1414
        %v1535 = vmul.f32 %v1530, %v1415
        %v1536 = vmul.f32 %v1530, %v1416
        %v1537 = vmul.f32 %v1530, %v1417
        %v1538 = vmul.f32 %v1530, %v1418
        %v1539 = vmul.f32 %v1530, %v1419
        %v1540 = vmul.f32 %v1530, %v1420
        %v1541 = vmul.f32 %v1530, %v1421
        %v1542 = vmul.f32 %v1530, %v1422
        %v1543 = vmul.f32 %v1530, %v1423
        %v1544 = vmul.f32 %v1530, %v1424
        %v1545 = vmul.f32 %v1530, %v1425
        %v1546 = vmul.f32 %v1530, %v1426
        %v1547 = vadd.f32 %v1098, %v1531
        %v1548 = vadd.f32 %v1099, %v1532
        %v1549 = vadd.f32 %v1100, %v1533
        %v1550 = vadd.f32 %v1101, %v1534
        %v1551 = vadd.f32 %v1102, %v1535
        %v1552 = vadd.f32 %v1103, %v1536
        %v1553 = vadd.f32 %v1104, %v1537
        %v1554 = vadd.f32 %v1105, %v1538
        %v1555 = vadd.f32 %v1106, %v1539
        %v1556 = vadd.f32 %v1107, %v1540
        %v1557 = vadd.f32 %v1108, %v1541
        %v1558 = vadd.f32 %v1109, %v1542
        %v1559 = vadd.f32 %v1110, %v1543
        %v1560 = vadd.f32 %v1111, %v1544
        %v1561 = vadd.f32 %v1112, %v1545
        %v1562 = vadd.f32 %v1113, %v1546
        %s1563 = sld [smem:[#allocation2 + $0x32]]
        %v1564 = vstv %s1563
        %v1565 = vmul.f32 %v1564, %v1411
        %v1566 = vmul.f32 %v1564, %v1412
        %v1567 = vmul.f32 %v1564, %v1413
        %v1568 = vmul.f32 %v1564, %v1414
        %v1569 = vmul.f32 %v1564, %v1415
        %v1570 = vmul.f32 %v1564, %v1416
        %v1571 = vmul.f32 %v1564, %v1417
        %v1572 = vmul.f32 %v1564, %v1418
        %v1573 = vmul.f32 %v1564, %v1419
        %v1574 = vmul.f32 %v1564, %v1420
        %v1575 = vmul.f32 %v1564, %v1421
        %v1576 = vmul.f32 %v1564, %v1422
        %v1577 = vmul.f32 %v1564, %v1423
        %v1578 = vmul.f32 %v1564, %v1424
        %v1579 = vmul.f32 %v1564, %v1425
        %v1580 = vmul.f32 %v1564, %v1426
        %v1581 = vadd.f32 %v1132, %v1565
        %v1582 = vadd.f32 %v1133, %v1566
        %v1583 = vadd.f32 %v1134, %v1567
        %v1584 = vadd.f32 %v1135, %v1568
        %v1585 = vadd.f32 %v1136, %v1569
        %v1586 = vadd.f32 %v1137, %v1570
        %v1587 = vadd.f32 %v1138, %v1571
        %v1588 = vadd.f32 %v1139, %v1572
        %v1589 = vadd.f32 %v1140, %v1573
        %v1590 = vadd.f32 %v1141, %v1574
        %v1591 = vadd.f32 %v1142, %v1575
        %v1592 = vadd.f32 %v1143, %v1576
        %v1593 = vadd.f32 %v1144, %v1577
        %v1594 = vadd.f32 %v1145, %v1578
        %v1595 = vadd.f32 %v1146, %v1579
        %v1596 = vadd.f32 %v1147, %v1580
        %s1597 = sld [smem:[#allocation2 + $0x3e]]
        %v1598 = vstv %s1597
        %v1599 = vmul.f32 %v1598, %v1411
        %v1600 = vmul.f32 %v1598, %v1412
        %v1601 = vmul.f32 %v1598, %v1413
        %v1602 = vmul.f32 %v1598, %v1414
        %v1603 = vmul.f32 %v1598, %v1415
        %v1604 = vmul.f32 %v1598, %v1416
        %v1605 = vmul.f32 %v1598, %v1417
        %v1606 = vmul.f32 %v1598, %v1418
        %v1607 = vmul.f32 %v1598, %v1419
        %v1608 = vmul.f32 %v1598, %v1420
        %v1609 = vmul.f32 %v1598, %v1421
        %v1610 = vmul.f32 %v1598, %v1422
        %v1611 = vmul.f32 %v1598, %v1423
        %v1612 = vmul.f32 %v1598, %v1424
        %v1613 = vmul.f32 %v1598, %v1425
        %v1614 = vmul.f32 %v1598, %v1426
        %v1615 = vadd.f32 %v1166, %v1599
        %v1616 = vadd.f32 %v1167, %v1600
        %v1617 = vadd.f32 %v1168, %v1601
        %v1618 = vadd.f32 %v1169, %v1602
        %v1619 = vadd.f32 %v1170, %v1603
        %v1620 = vadd.f32 %v1171, %v1604
        %v1621 = vadd.f32 %v1172, %v1605
        %v1622 = vadd.f32 %v1173, %v1606
        %v1623 = vadd.f32 %v1174, %v1607
        %v1624 = vadd.f32 %v1175, %v1608
        %v1625 = vadd.f32 %v1176, %v1609
        %v1626 = vadd.f32 %v1177, %v1610
        %v1627 = vadd.f32 %v1178, %v1611
        %v1628 = vadd.f32 %v1179, %v1612
        %v1629 = vadd.f32 %v1180, %v1613
        %v1630 = vadd.f32 %v1181, %v1614
        %s1631 = sld [smem:[#allocation2 + $0x4a]]
        %v1632 = vstv %s1631
        %v1633 = vmul.f32 %v1632, %v1411
        %v1634 = vmul.f32 %v1632, %v1412
        %v1635 = vmul.f32 %v1632, %v1413
        %v1636 = vmul.f32 %v1632, %v1414
        %v1637 = vmul.f32 %v1632, %v1415
        %v1638 = vmul.f32 %v1632, %v1416
        %v1639 = vmul.f32 %v1632, %v1417
        %v1640 = vmul.f32 %v1632, %v1418
        %v1641 = vmul.f32 %v1632, %v1419
        %v1642 = vmul.f32 %v1632, %v1420
        %v1643 = vmul.f32 %v1632, %v1421
        %v1644 = vmul.f32 %v1632, %v1422
        %v1645 = vmul.f32 %v1632, %v1423
        %v1646 = vmul.f32 %v1632, %v1424
        %v1647 = vmul.f32 %v1632, %v1425
        %v1648 = vmul.f32 %v1632, %v1426
        %v1649 = vadd.f32 %v1200, %v1633
        %v1650 = vadd.f32 %v1201, %v1634
        %v1651 = vadd.f32 %v1202, %v1635
        %v1652 = vadd.f32 %v1203, %v1636
        %v1653 = vadd.f32 %v1204, %v1637
        %v1654 = vadd.f32 %v1205, %v1638
        %v1655 = vadd.f32 %v1206, %v1639
        %v1656 = vadd.f32 %v1207, %v1640
        %v1657 = vadd.f32 %v1208, %v1641
        %v1658 = vadd.f32 %v1209, %v1642
        %v1659 = vadd.f32 %v1210, %v1643
        %v1660 = vadd.f32 %v1211, %v1644
        %v1661 = vadd.f32 %v1212, %v1645
        %v1662 = vadd.f32 %v1213, %v1646
        %v1663 = vadd.f32 %v1214, %v1647
        %v1664 = vadd.f32 %v1215, %v1648
        %s1665 = sld [smem:[#allocation2 + $0x56]]
        %v1666 = vstv %s1665
        %v1667 = vmul.f32 %v1666, %v1411
        %v1668 = vmul.f32 %v1666, %v1412
        %v1669 = vmul.f32 %v1666, %v1413
        %v1670 = vmul.f32 %v1666, %v1414
        %v1671 = vmul.f32 %v1666, %v1415
        %v1672 = vmul.f32 %v1666, %v1416
        %v1673 = vmul.f32 %v1666, %v1417
        %v1674 = vmul.f32 %v1666, %v1418
        %v1675 = vmul.f32 %v1666, %v1419
        %v1676 = vmul.f32 %v1666, %v1420
        %v1677 = vmul.f32 %v1666, %v1421
        %v1678 = vmul.f32 %v1666, %v1422
        %v1679 = vmul.f32 %v1666, %v1423
        %v1680 = vmul.f32 %v1666, %v1424
        %v1681 = vmul.f32 %v1666, %v1425
        %v1682 = vmul.f32 %v1666, %v1426
        %v1683 = vadd.f32 %v1234, %v1667
        %v1684 = vadd.f32 %v1235, %v1668
        %v1685 = vadd.f32 %v1236, %v1669
        %v1686 = vadd.f32 %v1237, %v1670
        %v1687 = vadd.f32 %v1238, %v1671
        %v1688 = vadd.f32 %v1239, %v1672
        %v1689 = vadd.f32 %v1240, %v1673
        %v1690 = vadd.f32 %v1241, %v1674
        %v1691 = vadd.f32 %v1242, %v1675
        %v1692 = vadd.f32 %v1243, %v1676
        %v1693 = vadd.f32 %v1244, %v1677
        %v1694 = vadd.f32 %v1245, %v1678
        %v1695 = vadd.f32 %v1246, %v1679
        %v1696 = vadd.f32 %v1247, %v1680
        %v1697 = vadd.f32 %v1248, %v1681
        %v1698 = vadd.f32 %v1249, %v1682
        %s1699 = scalar_lea.vmem %s482, 128 [#allocation6]
        %v1700 = vld [vmem:[%s1699] sm:$0xff]
        %v1701 = vld [vmem:[%s1699 + $0x8] sm:$0xff]
        %v1702 = vld [vmem:[%s1699 + $0x10] sm:$0xff]
        %v1703 = vld [vmem:[%s1699 + $0x18] sm:$0xff]
        %v1704 = vld [vmem:[%s1699 + $0x20] sm:$0xff]
        %v1705 = vld [vmem:[%s1699 + $0x28] sm:$0xff]
        %v1706 = vld [vmem:[%s1699 + $0x30] sm:$0xff]
        %v1707 = vld [vmem:[%s1699 + $0x38] sm:$0xff]
        %v1708 = vld [vmem:[%s1699 + $0x40] sm:$0xff]
        %v1709 = vld [vmem:[%s1699 + $0x48] sm:$0xff]
        %v1710 = vld [vmem:[%s1699 + $0x50] sm:$0xff]
        %v1711 = vld [vmem:[%s1699 + $0x58] sm:$0xff]
        %v1712 = vld [vmem:[%s1699 + $0x60] sm:$0xff]
        %v1713 = vld [vmem:[%s1699 + $0x68] sm:$0xff]
        %v1714 = vld [vmem:[%s1699 + $0x70] sm:$0xff]
        %v1715 = vld [vmem:[%s1699 + $0x78] sm:$0xff]
        %s1716 = sld [smem:[#allocation2 + $0x3]]
        %v1717 = vstv %s1716
        %v1718 = vmul.f32 %v1717, %v1700
        %v1719 = vmul.f32 %v1717, %v1701
        %v1720 = vmul.f32 %v1717, %v1702
        %v1721 = vmul.f32 %v1717, %v1703
        %v1722 = vmul.f32 %v1717, %v1704
        %v1723 = vmul.f32 %v1717, %v1705
        %v1724 = vmul.f32 %v1717, %v1706
        %v1725 = vmul.f32 %v1717, %v1707
        %v1726 = vmul.f32 %v1717, %v1708
        %v1727 = vmul.f32 %v1717, %v1709
        %v1728 = vmul.f32 %v1717, %v1710
        %v1729 = vmul.f32 %v1717, %v1711
        %v1730 = vmul.f32 %v1717, %v1712
        %v1731 = vmul.f32 %v1717, %v1713
        %v1732 = vmul.f32 %v1717, %v1714
        %v1733 = vmul.f32 %v1717, %v1715
        %v1734 = vadd.f32 %v1445, %v1718
        %v1735 = vadd.f32 %v1446, %v1719
        %v1736 = vadd.f32 %v1447, %v1720
        %v1737 = vadd.f32 %v1448, %v1721
        %v1738 = vadd.f32 %v1449, %v1722
        %v1739 = vadd.f32 %v1450, %v1723
        %v1740 = vadd.f32 %v1451, %v1724
        %v1741 = vadd.f32 %v1452, %v1725
        %v1742 = vadd.f32 %v1453, %v1726
        %v1743 = vadd.f32 %v1454, %v1727
        %v1744 = vadd.f32 %v1455, %v1728
        %v1745 = vadd.f32 %v1456, %v1729
        %v1746 = vadd.f32 %v1457, %v1730
        %v1747 = vadd.f32 %v1458, %v1731
        %v1748 = vadd.f32 %v1459, %v1732
        %v1749 = vadd.f32 %v1460, %v1733
        %s1750 = sld [smem:[#allocation2 + $0xf]]
        %v1751 = vstv %s1750
        %v1752 = vmul.f32 %v1751, %v1700
        %v1753 = vmul.f32 %v1751, %v1701
        %v1754 = vmul.f32 %v1751, %v1702
        %v1755 = vmul.f32 %v1751, %v1703
        %v1756 = vmul.f32 %v1751, %v1704
        %v1757 = vmul.f32 %v1751, %v1705
        %v1758 = vmul.f32 %v1751, %v1706
        %v1759 = vmul.f32 %v1751, %v1707
        %v1760 = vmul.f32 %v1751, %v1708
        %v1761 = vmul.f32 %v1751, %v1709
        %v1762 = vmul.f32 %v1751, %v1710
        %v1763 = vmul.f32 %v1751, %v1711
        %v1764 = vmul.f32 %v1751, %v1712
        %v1765 = vmul.f32 %v1751, %v1713
        %v1766 = vmul.f32 %v1751, %v1714
        %v1767 = vmul.f32 %v1751, %v1715
        %v1768 = vadd.f32 %v1479, %v1752
        %v1769 = vadd.f32 %v1480, %v1753
        %v1770 = vadd.f32 %v1481, %v1754
        %v1771 = vadd.f32 %v1482, %v1755
        %v1772 = vadd.f32 %v1483, %v1756
        %v1773 = vadd.f32 %v1484, %v1757
        %v1774 = vadd.f32 %v1485, %v1758
        %v1775 = vadd.f32 %v1486, %v1759
        %v1776 = vadd.f32 %v1487, %v1760
        %v1777 = vadd.f32 %v1488, %v1761
        %v1778 = vadd.f32 %v1489, %v1762
        %v1779 = vadd.f32 %v1490, %v1763
        %v1780 = vadd.f32 %v1491, %v1764
        %v1781 = vadd.f32 %v1492, %v1765
        %v1782 = vadd.f32 %v1493, %v1766
        %v1783 = vadd.f32 %v1494, %v1767
        %s1784 = sld [smem:[#allocation2 + $0x1b]]
        %v1785 = vstv %s1784
        %v1786 = vmul.f32 %v1785, %v1700
        %v1787 = vmul.f32 %v1785, %v1701
        %v1788 = vmul.f32 %v1785, %v1702
        %v1789 = vmul.f32 %v1785, %v1703
        %v1790 = vmul.f32 %v1785, %v1704
        %v1791 = vmul.f32 %v1785, %v1705
        %v1792 = vmul.f32 %v1785, %v1706
        %v1793 = vmul.f32 %v1785, %v1707
        %v1794 = vmul.f32 %v1785, %v1708
        %v1795 = vmul.f32 %v1785, %v1709
        %v1796 = vmul.f32 %v1785, %v1710
        %v1797 = vmul.f32 %v1785, %v1711
        %v1798 = vmul.f32 %v1785, %v1712
        %v1799 = vmul.f32 %v1785, %v1713
        %v1800 = vmul.f32 %v1785, %v1714
        %v1801 = vmul.f32 %v1785, %v1715
        %v1802 = vadd.f32 %v1513, %v1786
        %v1803 = vadd.f32 %v1514, %v1787
        %v1804 = vadd.f32 %v1515, %v1788
        %v1805 = vadd.f32 %v1516, %v1789
        %v1806 = vadd.f32 %v1517, %v1790
        %v1807 = vadd.f32 %v1518, %v1791
        %v1808 = vadd.f32 %v1519, %v1792
        %v1809 = vadd.f32 %v1520, %v1793
        %v1810 = vadd.f32 %v1521, %v1794
        %v1811 = vadd.f32 %v1522, %v1795
        %v1812 = vadd.f32 %v1523, %v1796
        %v1813 = vadd.f32 %v1524, %v1797
        %v1814 = vadd.f32 %v1525, %v1798
        %v1815 = vadd.f32 %v1526, %v1799
        %v1816 = vadd.f32 %v1527, %v1800
        %v1817 = vadd.f32 %v1528, %v1801
        %s1818 = sld [smem:[#allocation2 + $0x27]]
        %v1819 = vstv %s1818
        %v1820 = vmul.f32 %v1819, %v1700
        %v1821 = vmul.f32 %v1819, %v1701
        %v1822 = vmul.f32 %v1819, %v1702
        %v1823 = vmul.f32 %v1819, %v1703
        %v1824 = vmul.f32 %v1819, %v1704
        %v1825 = vmul.f32 %v1819, %v1705
        %v1826 = vmul.f32 %v1819, %v1706
        %v1827 = vmul.f32 %v1819, %v1707
        %v1828 = vmul.f32 %v1819, %v1708
        %v1829 = vmul.f32 %v1819, %v1709
        %v1830 = vmul.f32 %v1819, %v1710
        %v1831 = vmul.f32 %v1819, %v1711
        %v1832 = vmul.f32 %v1819, %v1712
        %v1833 = vmul.f32 %v1819, %v1713
        %v1834 = vmul.f32 %v1819, %v1714
        %v1835 = vmul.f32 %v1819, %v1715
        %v1836 = vadd.f32 %v1547, %v1820
        %v1837 = vadd.f32 %v1548, %v1821
        %v1838 = vadd.f32 %v1549, %v1822
        %v1839 = vadd.f32 %v1550, %v1823
        %v1840 = vadd.f32 %v1551, %v1824
        %v1841 = vadd.f32 %v1552, %v1825
        %v1842 = vadd.f32 %v1553, %v1826
        %v1843 = vadd.f32 %v1554, %v1827
        %v1844 = vadd.f32 %v1555, %v1828
        %v1845 = vadd.f32 %v1556, %v1829
        %v1846 = vadd.f32 %v1557, %v1830
        %v1847 = vadd.f32 %v1558, %v1831
        %v1848 = vadd.f32 %v1559, %v1832
        %v1849 = vadd.f32 %v1560, %v1833
        %v1850 = vadd.f32 %v1561, %v1834
        %v1851 = vadd.f32 %v1562, %v1835
        %s1852 = sld [smem:[#allocation2 + $0x33]]
        %v1853 = vstv %s1852
        %v1854 = vmul.f32 %v1853, %v1700
        %v1855 = vmul.f32 %v1853, %v1701
        %v1856 = vmul.f32 %v1853, %v1702
        %v1857 = vmul.f32 %v1853, %v1703
        %v1858 = vmul.f32 %v1853, %v1704
        %v1859 = vmul.f32 %v1853, %v1705
        %v1860 = vmul.f32 %v1853, %v1706
        %v1861 = vmul.f32 %v1853, %v1707
        %v1862 = vmul.f32 %v1853, %v1708
        %v1863 = vmul.f32 %v1853, %v1709
        %v1864 = vmul.f32 %v1853, %v1710
        %v1865 = vmul.f32 %v1853, %v1711
        %v1866 = vmul.f32 %v1853, %v1712
        %v1867 = vmul.f32 %v1853, %v1713
        %v1868 = vmul.f32 %v1853, %v1714
        %v1869 = vmul.f32 %v1853, %v1715
        %v1870 = vadd.f32 %v1581, %v1854
        %v1871 = vadd.f32 %v1582, %v1855
        %v1872 = vadd.f32 %v1583, %v1856
        %v1873 = vadd.f32 %v1584, %v1857
        %v1874 = vadd.f32 %v1585, %v1858
        %v1875 = vadd.f32 %v1586, %v1859
        %v1876 = vadd.f32 %v1587, %v1860
        %v1877 = vadd.f32 %v1588, %v1861
        %v1878 = vadd.f32 %v1589, %v1862
        %v1879 = vadd.f32 %v1590, %v1863
        %v1880 = vadd.f32 %v1591, %v1864
        %v1881 = vadd.f32 %v1592, %v1865
        %v1882 = vadd.f32 %v1593, %v1866
        %v1883 = vadd.f32 %v1594, %v1867
        %v1884 = vadd.f32 %v1595, %v1868
        %v1885 = vadd.f32 %v1596, %v1869
        %s1886 = sld [smem:[#allocation2 + $0x3f]]
        %v1887 = vstv %s1886
        %v1888 = vmul.f32 %v1887, %v1700
        %v1889 = vmul.f32 %v1887, %v1701
        %v1890 = vmul.f32 %v1887, %v1702
        %v1891 = vmul.f32 %v1887, %v1703
        %v1892 = vmul.f32 %v1887, %v1704
        %v1893 = vmul.f32 %v1887, %v1705
        %v1894 = vmul.f32 %v1887, %v1706
        %v1895 = vmul.f32 %v1887, %v1707
        %v1896 = vmul.f32 %v1887, %v1708
        %v1897 = vmul.f32 %v1887, %v1709
        %v1898 = vmul.f32 %v1887, %v1710
        %v1899 = vmul.f32 %v1887, %v1711
        %v1900 = vmul.f32 %v1887, %v1712
        %v1901 = vmul.f32 %v1887, %v1713
        %v1902 = vmul.f32 %v1887, %v1714
        %v1903 = vmul.f32 %v1887, %v1715
        %v1904 = vadd.f32 %v1615, %v1888
        %v1905 = vadd.f32 %v1616, %v1889
        %v1906 = vadd.f32 %v1617, %v1890
        %v1907 = vadd.f32 %v1618, %v1891
        %v1908 = vadd.f32 %v1619, %v1892
        %v1909 = vadd.f32 %v1620, %v1893
        %v1910 = vadd.f32 %v1621, %v1894
        %v1911 = vadd.f32 %v1622, %v1895
        %v1912 = vadd.f32 %v1623, %v1896
        %v1913 = vadd.f32 %v1624, %v1897
        %v1914 = vadd.f32 %v1625, %v1898
        %v1915 = vadd.f32 %v1626, %v1899
        %v1916 = vadd.f32 %v1627, %v1900
        %v1917 = vadd.f32 %v1628, %v1901
        %v1918 = vadd.f32 %v1629, %v1902
        %v1919 = vadd.f32 %v1630, %v1903
        %s1920 = sld [smem:[#allocation2 + $0x4b]]
        %v1921 = vstv %s1920
        %v1922 = vmul.f32 %v1921, %v1700
        %v1923 = vmul.f32 %v1921, %v1701
        %v1924 = vmul.f32 %v1921, %v1702
        %v1925 = vmul.f32 %v1921, %v1703
        %v1926 = vmul.f32 %v1921, %v1704
        %v1927 = vmul.f32 %v1921, %v1705
        %v1928 = vmul.f32 %v1921, %v1706
        %v1929 = vmul.f32 %v1921, %v1707
        %v1930 = vmul.f32 %v1921, %v1708
        %v1931 = vmul.f32 %v1921, %v1709
        %v1932 = vmul.f32 %v1921, %v1710
        %v1933 = vmul.f32 %v1921, %v1711
        %v1934 = vmul.f32 %v1921, %v1712
        %v1935 = vmul.f32 %v1921, %v1713
        %v1936 = vmul.f32 %v1921, %v1714
        %v1937 = vmul.f32 %v1921, %v1715
        %v1938 = vadd.f32 %v1649, %v1922
        %v1939 = vadd.f32 %v1650, %v1923
        %v1940 = vadd.f32 %v1651, %v1924
        %v1941 = vadd.f32 %v1652, %v1925
        %v1942 = vadd.f32 %v1653, %v1926
        %v1943 = vadd.f32 %v1654, %v1927
        %v1944 = vadd.f32 %v1655, %v1928
        %v1945 = vadd.f32 %v1656, %v1929
        %v1946 = vadd.f32 %v1657, %v1930
        %v1947 = vadd.f32 %v1658, %v1931
        %v1948 = vadd.f32 %v1659, %v1932
        %v1949 = vadd.f32 %v1660, %v1933
        %v1950 = vadd.f32 %v1661, %v1934
        %v1951 = vadd.f32 %v1662, %v1935
        %v1952 = vadd.f32 %v1663, %v1936
        %v1953 = vadd.f32 %v1664, %v1937
        %s1954 = sld [smem:[#allocation2 + $0x57]]
        %v1955 = vstv %s1954
        %v1956 = vmul.f32 %v1955, %v1700
        %v1957 = vmul.f32 %v1955, %v1701
        %v1958 = vmul.f32 %v1955, %v1702
        %v1959 = vmul.f32 %v1955, %v1703
        %v1960 = vmul.f32 %v1955, %v1704
        %v1961 = vmul.f32 %v1955, %v1705
        %v1962 = vmul.f32 %v1955, %v1706
        %v1963 = vmul.f32 %v1955, %v1707
        %v1964 = vmul.f32 %v1955, %v1708
        %v1965 = vmul.f32 %v1955, %v1709
        %v1966 = vmul.f32 %v1955, %v1710
        %v1967 = vmul.f32 %v1955, %v1711
        %v1968 = vmul.f32 %v1955, %v1712
        %v1969 = vmul.f32 %v1955, %v1713
        %v1970 = vmul.f32 %v1955, %v1714
        %v1971 = vmul.f32 %v1955, %v1715
        %v1972 = vadd.f32 %v1683, %v1956
        %v1973 = vadd.f32 %v1684, %v1957
        %v1974 = vadd.f32 %v1685, %v1958
        %v1975 = vadd.f32 %v1686, %v1959
        %v1976 = vadd.f32 %v1687, %v1960
        %v1977 = vadd.f32 %v1688, %v1961
        %v1978 = vadd.f32 %v1689, %v1962
        %v1979 = vadd.f32 %v1690, %v1963
        %v1980 = vadd.f32 %v1691, %v1964
        %v1981 = vadd.f32 %v1692, %v1965
        %v1982 = vadd.f32 %v1693, %v1966
        %v1983 = vadd.f32 %v1694, %v1967
        %v1984 = vadd.f32 %v1695, %v1968
        %v1985 = vadd.f32 %v1696, %v1969
        %v1986 = vadd.f32 %v1697, %v1970
        %v1987 = vadd.f32 %v1698, %v1971
        %1988 = vmatprep.subr.mxu0 0.0
        %1989 = vmatpush1.msra.mxu0 %v1700
        %1990 = vmatprep.subr.mxu0 0.0
        %1991 = vmatpush1.msra.mxu0 %v1701
        %1992 = vmatprep.subr.mxu0 0.0
        %1993 = vmatpush1.msra.mxu0 %v1702
        %1994 = vmatprep.subr.mxu0 0.0
        %1995 = vmatpush1.msra.mxu0 %v1703
        %1996 = vmatprep.subr.mxu0 0.0
        %1997 = vmatpush1.msra.mxu0 %v1704
        %1998 = vmatprep.subr.mxu0 0.0
        %1999 = vmatpush1.msra.mxu0 %v1705
        %2000 = vmatprep.subr.mxu0 0.0
        %2001 = vmatpush1.msra.mxu0 %v1706
        %2002 = vmatprep.subr.mxu0 0.0
        %2003 = vmatpush1.msra.mxu0 %v1707
        %2004 = vmatprep.subr.mxu0 0.0
        %2005 = vmatpush1.msra.mxu0 %v1708
        %2006 = vmatprep.subr.mxu0 0.0
        %2007 = vmatpush1.msra.mxu0 %v1709
        %2008 = vmatprep.subr.mxu0 0.0
        %2009 = vmatpush1.msra.mxu0 %v1710
        %2010 = vmatprep.subr.mxu0 0.0
        %2011 = vmatpush1.msra.mxu0 %v1711
        %2012 = vmatprep.subr.mxu0 0.0
        %2013 = vmatpush1.msra.mxu0 %v1712
        %2014 = vmatprep.subr.mxu0 0.0
        %2015 = vmatpush1.msra.mxu0 %v1713
        %2016 = vmatprep.subr.mxu0 0.0
        %2017 = vmatpush1.msra.mxu0 %v1714
        %2018 = vmatprep.subr.mxu0 0.0
        %2019 = vmatpush1.msra.mxu0 %v1715
        %2020 = vmatprep.subr.mxu0 0.0
        %2021 = vmatpush1.msra.mxu0 0.0
        %2022 = vmatprep.subr.mxu0 0.0
        %2023 = vmatpush1.msra.mxu0 0.0
        %2024 = vmatprep.subr.mxu0 0.0
        %2025 = vmatpush1.msra.mxu0 0.0
        %2026 = vmatprep.subr.mxu0 0.0
        %2027 = vmatpush1.msra.mxu0 0.0
        %2028 = vmatprep.subr.mxu0 0.0
        %2029 = vmatpush1.msra.mxu0 0.0
        %2030 = vmatprep.subr.mxu0 0.0
        %2031 = vmatpush1.msra.mxu0 0.0
        %2032 = vmatprep.subr.mxu0 0.0
        %2033 = vmatpush1.msra.mxu0 0.0
        %2034 = vmatprep.subr.mxu0 0.0
        %2035 = vmatpush1.msra.mxu0 0.0
        %2036 = vmatprep.subr.mxu0 0.0
        %2037 = vmatpush1.msra.mxu0 0.0
        %2038 = vmatprep.subr.mxu0 0.0
        %2039 = vmatpush1.msra.mxu0 0.0
        %2040 = vmatprep.subr.mxu0 0.0
        %2041 = vmatpush1.msra.mxu0 0.0
        %2042 = vmatprep.subr.mxu0 0.0
        %2043 = vmatpush1.msra.mxu0 0.0
        %2044 = vmatprep.subr.mxu0 0.0
        %2045 = vmatpush1.msra.mxu0 0.0
        %2046 = vmatprep.subr.mxu0 0.0
        %2047 = vmatpush1.msra.mxu0 0.0
        %2048 = vmatprep.subr.mxu0 0.0
        %2049 = vmatpush1.msra.mxu0 0.0
        %2050 = vmatprep.subr.mxu0 0.0
        %2051 = vmatpush1.msra.mxu0 0.0
        %2052 = vmatprep.mubr.f32.mxu0 0.0
        %2053 = vmatmul.mubr.f32.gmra.mrb[0].mxu0 %v505
        %v2054 = vpop.f32.mrb[0].mxu0
        %v2055 = vadd.f32 0.0, %v2054
        %v2056 = vpop.f32.mrb[0].mxu0
        %2057 = vmatprep.mubr.f32.mxu0 0.0
        %2058 = vmatmul.mubr.f32.gmra.mrb[0].mxu0 %v506
        %v2059 = vpop.f32.mrb[0].mxu0
        %v2060 = vadd.f32 0.0, %v2059
        %v2061 = vpop.f32.mrb[0].mxu0
        %2062 = vmatprep.mubr.f32.mxu0 0.0
        %2063 = vmatmul.mubr.f32.gmra.mrb[0].mxu0 %v507
        %v2064 = vpop.f32.mrb[0].mxu0
        %v2065 = vadd.f32 0.0, %v2064
        %v2066 = vpop.f32.mrb[0].mxu0
        %2067 = vmatprep.mubr.f32.mxu0 0.0
        %2068 = vmatmul.mubr.f32.gmra.mrb[0].mxu0 %v508
        %v2069 = vpop.f32.mrb[0].mxu0
        %v2070 = vadd.f32 0.0, %v2069
        %v2071 = vpop.f32.mrb[0].mxu0
        %2072 = vmatprep.mubr.f32.mxu0 0.0
        %2073 = vmatmul.mubr.f32.gmra.mrb[0].mxu0 %v509
        %v2074 = vpop.f32.mrb[0].mxu0
        %v2075 = vadd.f32 0.0, %v2074
        %v2076 = vpop.f32.mrb[0].mxu0
        %2077 = vmatprep.mubr.f32.mxu0 0.0
        %2078 = vmatmul.mubr.f32.gmra.mrb[0].mxu0 %v510
        %v2079 = vpop.f32.mrb[0].mxu0
        %v2080 = vadd.f32 0.0, %v2079
        %v2081 = vpop.f32.mrb[0].mxu0
        %2082 = vmatprep.mubr.f32.mxu0 0.0
        %2083 = vmatmul.mubr.f32.gmra.mrb[0].mxu0 %v511
        %v2084 = vpop.f32.mrb[0].mxu0
        %v2085 = vadd.f32 0.0, %v2084
        %v2086 = vpop.f32.mrb[0].mxu0
        %2087 = vmatprep.mubr.f32.mxu0 0.0
        %2088 = vmatmul.mubr.f32.gmra.mrb[0].mxu0 %v512
        %v2089 = vpop.f32.mrb[0].mxu0
        %v2090 = vadd.f32 0.0, %v2089
        %v2091 = vpop.f32.mrb[0].mxu0
        %2092 = vmatprep.mubr.f32.mxu0 0.0
        %2093 = vmatmul.mubr.f32.gmra.mrb[0].mxu0 %v513
        %v2094 = vpop.f32.mrb[0].mxu0
        %v2095 = vadd.f32 0.0, %v2094
        %v2096 = vpop.f32.mrb[0].mxu0
        %2097 = vmatprep.mubr.f32.mxu0 0.0
        %2098 = vmatmul.mubr.f32.gmra.mrb[0].mxu0 %v514
        %v2099 = vpop.f32.mrb[0].mxu0
        %v2100 = vadd.f32 0.0, %v2099
        %v2101 = vpop.f32.mrb[0].mxu0
        %2102 = vmatprep.mubr.f32.mxu0 0.0
        %2103 = vmatmul.mubr.f32.gmra.mrb[0].mxu0 %v515
        %v2104 = vpop.f32.mrb[0].mxu0
        %v2105 = vadd.f32 0.0, %v2104
        %v2106 = vpop.f32.mrb[0].mxu0
        %2107 = vmatprep.mubr.f32.mxu0 0.0
        %2108 = vmatmul.mubr.f32.gmra.mrb[0].mxu0 %v516
        %v2109 = vpop.f32.mrb[0].mxu0
        %v2110 = vadd.f32 0.0, %v2109
        %v2111 = vpop.f32.mrb[0].mxu0
        %2112 = vmatprep.mubr.f32.mxu0 0.0
        %2113 = vmatmul.mubr.f32.gmra.mrb[0].mxu0 %v517
        %v2114 = vpop.f32.mrb[0].mxu0
        %v2115 = vadd.f32 0.0, %v2114
        %v2116 = vpop.f32.mrb[0].mxu0
        %2117 = vmatprep.mubr.f32.mxu0 0.0
        %2118 = vmatmul.mubr.f32.gmra.mrb[0].mxu0 %v518
        %v2119 = vpop.f32.mrb[0].mxu0
        %v2120 = vadd.f32 0.0, %v2119
        %v2121 = vpop.f32.mrb[0].mxu0
        %2122 = vmatprep.mubr.f32.mxu0 0.0
        %2123 = vmatmul.mubr.f32.gmra.mrb[0].mxu0 %v519
        %v2124 = vpop.f32.mrb[0].mxu0
        %v2125 = vadd.f32 0.0, %v2124
        %v2126 = vpop.f32.mrb[0].mxu0
        %2127 = vmatprep.mubr.f32.mxu0 0.0
        %2128 = vmatmul.mubr.f32.gmra.mrb[0].mxu0 %v520
        %v2129 = vpop.f32.mrb[0].mxu0
        %v2130 = vadd.f32 0.0, %v2129
        %v2131 = vpop.f32.mrb[0].mxu0
        %2132 = vdwg.mxu0
        %s2133 = sld [smem:[#allocation2 + $0x4]]
        %v2134 = vstv %s2133
        %v2135 = vmul.f32 %v2134, %v2055
        %v2136 = vmul.f32 %v2134, %v2060
        %v2137 = vmul.f32 %v2134, %v2065
        %v2138 = vmul.f32 %v2134, %v2070
        %v2139 = vmul.f32 %v2134, %v2075
        %v2140 = vmul.f32 %v2134, %v2080
        %v2141 = vmul.f32 %v2134, %v2085
        %v2142 = vmul.f32 %v2134, %v2090
        %v2143 = vmul.f32 %v2134, %v2095
        %v2144 = vmul.f32 %v2134, %v2100
        %v2145 = vmul.f32 %v2134, %v2105
        %v2146 = vmul.f32 %v2134, %v2110
        %v2147 = vmul.f32 %v2134, %v2115
        %v2148 = vmul.f32 %v2134, %v2120
        %v2149 = vmul.f32 %v2134, %v2125
        %v2150 = vmul.f32 %v2134, %v2130
        %v2151 = vadd.f32 %v1734, %v2135
        %v2152 = vadd.f32 %v1735, %v2136
        %v2153 = vadd.f32 %v1736, %v2137
        %v2154 = vadd.f32 %v1737, %v2138
        %v2155 = vadd.f32 %v1738, %v2139
        %v2156 = vadd.f32 %v1739, %v2140
        %v2157 = vadd.f32 %v1740, %v2141
        %v2158 = vadd.f32 %v1741, %v2142
        %v2159 = vadd.f32 %v1742, %v2143
        %v2160 = vadd.f32 %v1743, %v2144
        %v2161 = vadd.f32 %v1744, %v2145
        %v2162 = vadd.f32 %v1745, %v2146
        %v2163 = vadd.f32 %v1746, %v2147
        %v2164 = vadd.f32 %v1747, %v2148
        %v2165 = vadd.f32 %v1748, %v2149
        %v2166 = vadd.f32 %v1749, %v2150
        %s2167 = sld [smem:[#allocation2 + $0x10]]
        %v2168 = vstv %s2167
        %v2169 = vmul.f32 %v2168, %v2055
        %v2170 = vmul.f32 %v2168, %v2060
        %v2171 = vmul.f32 %v2168, %v2065
        %v2172 = vmul.f32 %v2168, %v2070
        %v2173 = vmul.f32 %v2168, %v2075
        %v2174 = vmul.f32 %v2168, %v2080
        %v2175 = vmul.f32 %v2168, %v2085
        %v2176 = vmul.f32 %v2168, %v2090
        %v2177 = vmul.f32 %v2168, %v2095
        %v2178 = vmul.f32 %v2168, %v2100
        %v2179 = vmul.f32 %v2168, %v2105
        %v2180 = vmul.f32 %v2168, %v2110
        %v2181 = vmul.f32 %v2168, %v2115
        %v2182 = vmul.f32 %v2168, %v2120
        %v2183 = vmul.f32 %v2168, %v2125
        %v2184 = vmul.f32 %v2168, %v2130
        %v2185 = vadd.f32 %v1768, %v2169
        %v2186 = vadd.f32 %v1769, %v2170
        %v2187 = vadd.f32 %v1770, %v2171
        %v2188 = vadd.f32 %v1771, %v2172
        %v2189 = vadd.f32 %v1772, %v2173
        %v2190 = vadd.f32 %v1773, %v2174
        %v2191 = vadd.f32 %v1774, %v2175
        %v2192 = vadd.f32 %v1775, %v2176
        %v2193 = vadd.f32 %v1776, %v2177
        %v2194 = vadd.f32 %v1777, %v2178
        %v2195 = vadd.f32 %v1778, %v2179
        %v2196 = vadd.f32 %v1779, %v2180
        %v2197 = vadd.f32 %v1780, %v2181
        %v2198 = vadd.f32 %v1781, %v2182
        %v2199 = vadd.f32 %v1782, %v2183
        %v2200 = vadd.f32 %v1783, %v2184
        %s2201 = sld [smem:[#allocation2 + $0x1c]]
        %v2202 = vstv %s2201
        %v2203 = vmul.f32 %v2202, %v2055
        %v2204 = vmul.f32 %v2202, %v2060
        %v2205 = vmul.f32 %v2202, %v2065
        %v2206 = vmul.f32 %v2202, %v2070
        %v2207 = vmul.f32 %v2202, %v2075
        %v2208 = vmul.f32 %v2202, %v2080
        %v2209 = vmul.f32 %v2202, %v2085
        %v2210 = vmul.f32 %v2202, %v2090
        %v2211 = vmul.f32 %v2202, %v2095
        %v2212 = vmul.f32 %v2202, %v2100
        %v2213 = vmul.f32 %v2202, %v2105
        %v2214 = vmul.f32 %v2202, %v2110
        %v2215 = vmul.f32 %v2202, %v2115
        %v2216 = vmul.f32 %v2202, %v2120
        %v2217 = vmul.f32 %v2202, %v2125
        %v2218 = vmul.f32 %v2202, %v2130
        %v2219 = vadd.f32 %v1802, %v2203
        %v2220 = vadd.f32 %v1803, %v2204
        %v2221 = vadd.f32 %v1804, %v2205
        %v2222 = vadd.f32 %v1805, %v2206
        %v2223 = vadd.f32 %v1806, %v2207
        %v2224 = vadd.f32 %v1807, %v2208
        %v2225 = vadd.f32 %v1808, %v2209
        %v2226 = vadd.f32 %v1809, %v2210
        %v2227 = vadd.f32 %v1810, %v2211
        %v2228 = vadd.f32 %v1811, %v2212
        %v2229 = vadd.f32 %v1812, %v2213
        %v2230 = vadd.f32 %v1813, %v2214
        %v2231 = vadd.f32 %v1814, %v2215
        %v2232 = vadd.f32 %v1815, %v2216
        %v2233 = vadd.f32 %v1816, %v2217
        %v2234 = vadd.f32 %v1817, %v2218
        %s2235 = sld [smem:[#allocation2 + $0x28]]
        %v2236 = vstv %s2235
        %v2237 = vmul.f32 %v2236, %v2055
        %v2238 = vmul.f32 %v2236, %v2060
        %v2239 = vmul.f32 %v2236, %v2065
        %v2240 = vmul.f32 %v2236, %v2070
        %v2241 = vmul.f32 %v2236, %v2075
        %v2242 = vmul.f32 %v2236, %v2080
        %v2243 = vmul.f32 %v2236, %v2085
        %v2244 = vmul.f32 %v2236, %v2090
        %v2245 = vmul.f32 %v2236, %v2095
        %v2246 = vmul.f32 %v2236, %v2100
        %v2247 = vmul.f32 %v2236, %v2105
        %v2248 = vmul.f32 %v2236, %v2110
        %v2249 = vmul.f32 %v2236, %v2115
        %v2250 = vmul.f32 %v2236, %v2120
        %v2251 = vmul.f32 %v2236, %v2125
        %v2252 = vmul.f32 %v2236, %v2130
        %v2253 = vadd.f32 %v1836, %v2237
        %v2254 = vadd.f32 %v1837, %v2238
        %v2255 = vadd.f32 %v1838, %v2239
        %v2256 = vadd.f32 %v1839, %v2240
        %v2257 = vadd.f32 %v1840, %v2241
        %v2258 = vadd.f32 %v1841, %v2242
        %v2259 = vadd.f32 %v1842, %v2243
        %v2260 = vadd.f32 %v1843, %v2244
        %v2261 = vadd.f32 %v1844, %v2245
        %v2262 = vadd.f32 %v1845, %v2246
        %v2263 = vadd.f32 %v1846, %v2247
        %v2264 = vadd.f32 %v1847, %v2248
        %v2265 = vadd.f32 %v1848, %v2249
        %v2266 = vadd.f32 %v1849, %v2250
        %v2267 = vadd.f32 %v1850, %v2251
        %v2268 = vadd.f32 %v1851, %v2252
        %s2269 = sld [smem:[#allocation2 + $0x34]]
        %v2270 = vstv %s2269
        %v2271 = vmul.f32 %v2270, %v2055
        %v2272 = vmul.f32 %v2270, %v2060
        %v2273 = vmul.f32 %v2270, %v2065
        %v2274 = vmul.f32 %v2270, %v2070
        %v2275 = vmul.f32 %v2270, %v2075
        %v2276 = vmul.f32 %v2270, %v2080
        %v2277 = vmul.f32 %v2270, %v2085
        %v2278 = vmul.f32 %v2270, %v2090
        %v2279 = vmul.f32 %v2270, %v2095
        %v2280 = vmul.f32 %v2270, %v2100
        %v2281 = vmul.f32 %v2270, %v2105
        %v2282 = vmul.f32 %v2270, %v2110
        %v2283 = vmul.f32 %v2270, %v2115
        %v2284 = vmul.f32 %v2270, %v2120
        %v2285 = vmul.f32 %v2270, %v2125
        %v2286 = vmul.f32 %v2270, %v2130
        %v2287 = vadd.f32 %v1870, %v2271
        %v2288 = vadd.f32 %v1871, %v2272
        %v2289 = vadd.f32 %v1872, %v2273
        %v2290 = vadd.f32 %v1873, %v2274
        %v2291 = vadd.f32 %v1874, %v2275
        %v2292 = vadd.f32 %v1875, %v2276
        %v2293 = vadd.f32 %v1876, %v2277
        %v2294 = vadd.f32 %v1877, %v2278
        %v2295 = vadd.f32 %v1878, %v2279
        %v2296 = vadd.f32 %v1879, %v2280
        %v2297 = vadd.f32 %v1880, %v2281
        %v2298 = vadd.f32 %v1881, %v2282
        %v2299 = vadd.f32 %v1882, %v2283
        %v2300 = vadd.f32 %v1883, %v2284
        %v2301 = vadd.f32 %v1884, %v2285
        %v2302 = vadd.f32 %v1885, %v2286
        %s2303 = sld [smem:[#allocation2 + $0x40]]
        %v2304 = vstv %s2303
        %v2305 = vmul.f32 %v2304, %v2055
        %v2306 = vmul.f32 %v2304, %v2060
        %v2307 = vmul.f32 %v2304, %v2065
        %v2308 = vmul.f32 %v2304, %v2070
        %v2309 = vmul.f32 %v2304, %v2075
        %v2310 = vmul.f32 %v2304, %v2080
        %v2311 = vmul.f32 %v2304, %v2085
        %v2312 = vmul.f32 %v2304, %v2090
        %v2313 = vmul.f32 %v2304, %v2095
        %v2314 = vmul.f32 %v2304, %v2100
        %v2315 = vmul.f32 %v2304, %v2105
        %v2316 = vmul.f32 %v2304, %v2110
        %v2317 = vmul.f32 %v2304, %v2115
        %v2318 = vmul.f32 %v2304, %v2120
        %v2319 = vmul.f32 %v2304, %v2125
        %v2320 = vmul.f32 %v2304, %v2130
        %v2321 = vadd.f32 %v1904, %v2305
        %v2322 = vadd.f32 %v1905, %v2306
        %v2323 = vadd.f32 %v1906, %v2307
        %v2324 = vadd.f32 %v1907, %v2308
        %v2325 = vadd.f32 %v1908, %v2309
        %v2326 = vadd.f32 %v1909, %v2310
        %v2327 = vadd.f32 %v1910, %v2311
        %v2328 = vadd.f32 %v1911, %v2312
        %v2329 = vadd.f32 %v1912, %v2313
        %v2330 = vadd.f32 %v1913, %v2314
        %v2331 = vadd.f32 %v1914, %v2315
        %v2332 = vadd.f32 %v1915, %v2316
        %v2333 = vadd.f32 %v1916, %v2317
        %v2334 = vadd.f32 %v1917, %v2318
        %v2335 = vadd.f32 %v1918, %v2319
        %v2336 = vadd.f32 %v1919, %v2320
        %s2337 = sld [smem:[#allocation2 + $0x4c]]
        %v2338 = vstv %s2337
        %v2339 = vmul.f32 %v2338, %v2055
        %v2340 = vmul.f32 %v2338, %v2060
        %v2341 = vmul.f32 %v2338, %v2065
        %v2342 = vmul.f32 %v2338, %v2070
        %v2343 = vmul.f32 %v2338, %v2075
        %v2344 = vmul.f32 %v2338, %v2080
        %v2345 = vmul.f32 %v2338, %v2085
        %v2346 = vmul.f32 %v2338, %v2090
        %v2347 = vmul.f32 %v2338, %v2095
        %v2348 = vmul.f32 %v2338, %v2100
        %v2349 = vmul.f32 %v2338, %v2105
        %v2350 = vmul.f32 %v2338, %v2110
        %v2351 = vmul.f32 %v2338, %v2115
        %v2352 = vmul.f32 %v2338, %v2120
        %v2353 = vmul.f32 %v2338, %v2125
        %v2354 = vmul.f32 %v2338, %v2130
        %v2355 = vadd.f32 %v1938, %v2339
        %v2356 = vadd.f32 %v1939, %v2340
        %v2357 = vadd.f32 %v1940, %v2341
        %v2358 = vadd.f32 %v1941, %v2342
        %v2359 = vadd.f32 %v1942, %v2343
        %v2360 = vadd.f32 %v1943, %v2344
        %v2361 = vadd.f32 %v1944, %v2345
        %v2362 = vadd.f32 %v1945, %v2346
        %v2363 = vadd.f32 %v1946, %v2347
        %v2364 = vadd.f32 %v1947, %v2348
        %v2365 = vadd.f32 %v1948, %v2349
        %v2366 = vadd.f32 %v1949, %v2350
        %v2367 = vadd.f32 %v1950, %v2351
        %v2368 = vadd.f32 %v1951, %v2352
        %v2369 = vadd.f32 %v1952, %v2353
        %v2370 = vadd.f32 %v1953, %v2354
        %s2371 = sld [smem:[#allocation2 + $0x58]]
        %v2372 = vstv %s2371
        %v2373 = vmul.f32 %v2372, %v2055
        %v2374 = vmul.f32 %v2372, %v2060
        %v2375 = vmul.f32 %v2372, %v2065
        %v2376 = vmul.f32 %v2372, %v2070
        %v2377 = vmul.f32 %v2372, %v2075
        %v2378 = vmul.f32 %v2372, %v2080
        %v2379 = vmul.f32 %v2372, %v2085
        %v2380 = vmul.f32 %v2372, %v2090
        %v2381 = vmul.f32 %v2372, %v2095
        %v2382 = vmul.f32 %v2372, %v2100
        %v2383 = vmul.f32 %v2372, %v2105
        %v2384 = vmul.f32 %v2372, %v2110
        %v2385 = vmul.f32 %v2372, %v2115
        %v2386 = vmul.f32 %v2372, %v2120
        %v2387 = vmul.f32 %v2372, %v2125
        %v2388 = vmul.f32 %v2372, %v2130
        %v2389 = vadd.f32 %v1972, %v2373
        %v2390 = vadd.f32 %v1973, %v2374
        %v2391 = vadd.f32 %v1974, %v2375
        %v2392 = vadd.f32 %v1975, %v2376
        %v2393 = vadd.f32 %v1976, %v2377
        %v2394 = vadd.f32 %v1977, %v2378
        %v2395 = vadd.f32 %v1978, %v2379
        %v2396 = vadd.f32 %v1979, %v2380
        %v2397 = vadd.f32 %v1980, %v2381
        %v2398 = vadd.f32 %v1981, %v2382
        %v2399 = vadd.f32 %v1982, %v2383
        %v2400 = vadd.f32 %v1983, %v2384
        %v2401 = vadd.f32 %v1984, %v2385
        %v2402 = vadd.f32 %v1985, %v2386
        %v2403 = vadd.f32 %v1986, %v2387
        %v2404 = vadd.f32 %v1987, %v2388
        %2405 = vmatprep.subr.mxu0 0.0
        %2406 = vmatpush1.msra.mxu0 %v2055
        %2407 = vmatprep.subr.mxu0 0.0
        %2408 = vmatpush1.msra.mxu0 %v2060
        %2409 = vmatprep.subr.mxu0 0.0
        %2410 = vmatpush1.msra.mxu0 %v2065
        %2411 = vmatprep.subr.mxu0 0.0
        %2412 = vmatpush1.msra.mxu0 %v2070
        %2413 = vmatprep.subr.mxu0 0.0
        %2414 = vmatpush1.msra.mxu0 %v2075
        %2415 = vmatprep.subr.mxu0 0.0
        %2416 = vmatpush1.msra.mxu0 %v2080
        %2417 = vmatprep.subr.mxu0 0.0
        %2418 = vmatpush1.msra.mxu0 %v2085
        %2419 = vmatprep.subr.mxu0 0.0
        %2420 = vmatpush1.msra.mxu0 %v2090
        %2421 = vmatprep.subr.mxu0 0.0
        %2422 = vmatpush1.msra.mxu0 %v2095
        %2423 = vmatprep.subr.mxu0 0.0
        %2424 = vmatpush1.msra.mxu0 %v2100
        %2425 = vmatprep.subr.mxu0 0.0
        %2426 = vmatpush1.msra.mxu0 %v2105
        %2427 = vmatprep.subr.mxu0 0.0
        %2428 = vmatpush1.msra.mxu0 %v2110
        %2429 = vmatprep.subr.mxu0 0.0
        %2430 = vmatpush1.msra.mxu0 %v2115
        %2431 = vmatprep.subr.mxu0 0.0
        %2432 = vmatpush1.msra.mxu0 %v2120
        %2433 = vmatprep.subr.mxu0 0.0
        %2434 = vmatpush1.msra.mxu0 %v2125
        %2435 = vmatprep.subr.mxu0 0.0
        %2436 = vmatpush1.msra.mxu0 %v2130
        %2437 = vmatprep.subr.mxu0 0.0
        %2438 = vmatpush1.msra.mxu0 0.0
        %2439 = vmatprep.subr.mxu0 0.0
        %2440 = vmatpush1.msra.mxu0 0.0
        %2441 = vmatprep.subr.mxu0 0.0
        %2442 = vmatpush1.msra.mxu0 0.0
        %2443 = vmatprep.subr.mxu0 0.0
        %2444 = vmatpush1.msra.mxu0 0.0
        %2445 = vmatprep.subr.mxu0 0.0
        %2446 = vmatpush1.msra.mxu0 0.0
        %2447 = vmatprep.subr.mxu0 0.0
        %2448 = vmatpush1.msra.mxu0 0.0
        %2449 = vmatprep.subr.mxu0 0.0
        %2450 = vmatpush1.msra.mxu0 0.0
        %2451 = vmatprep.subr.mxu0 0.0
        %2452 = vmatpush1.msra.mxu0 0.0
        %2453 = vmatprep.subr.mxu0 0.0
        %2454 = vmatpush1.msra.mxu0 0.0
        %2455 = vmatprep.subr.mxu0 0.0
        %2456 = vmatpush1.msra.mxu0 0.0
        %2457 = vmatprep.subr.mxu0 0.0
        %2458 = vmatpush1.msra.mxu0 0.0
        %2459 = vmatprep.subr.mxu0 0.0
        %2460 = vmatpush1.msra.mxu0 0.0
        %2461 = vmatprep.subr.mxu0 0.0
        %2462 = vmatpush1.msra.mxu0 0.0
        %2463 = vmatprep.subr.mxu0 0.0
        %2464 = vmatpush1.msra.mxu0 0.0
        %2465 = vmatprep.subr.mxu0 0.0
        %2466 = vmatpush1.msra.mxu0 0.0
        %2467 = vmatprep.subr.mxu0 0.0
        %2468 = vmatpush1.msra.mxu0 0.0
        %2469 = vmatprep.mubr.f32.mxu0 0.0
        %2470 = vmatmul.mubr.f32.gmra.mrb[0].mxu0 %v505
        %v2471 = vpop.f32.mrb[0].mxu0
        %v2472 = vadd.f32 0.0, %v2471
        %v2473 = vpop.f32.mrb[0].mxu0
        %2474 = vmatprep.mubr.f32.mxu0 0.0
        %2475 = vmatmul.mubr.f32.gmra.mrb[0].mxu0 %v506
        %v2476 = vpop.f32.mrb[0].mxu0
        %v2477 = vadd.f32 0.0, %v2476
        %v2478 = vpop.f32.mrb[0].mxu0
        %2479 = vmatprep.mubr.f32.mxu0 0.0
        %2480 = vmatmul.mubr.f32.gmra.mrb[0].mxu0 %v507
        %v2481 = vpop.f32.mrb[0].mxu0
        %v2482 = vadd.f32 0.0, %v2481
        %v2483 = vpop.f32.mrb[0].mxu0
        %2484 = vmatprep.mubr.f32.mxu0 0.0
        %2485 = vmatmul.mubr.f32.gmra.mrb[0].mxu0 %v508
        %v2486 = vpop.f32.mrb[0].mxu0
        %v2487 = vadd.f32 0.0, %v2486
        %v2488 = vpop.f32.mrb[0].mxu0
        %2489 = vmatprep.mubr.f32.mxu0 0.0
        %2490 = vmatmul.mubr.f32.gmra.mrb[0].mxu0 %v509
        %v2491 = vpop.f32.mrb[0].mxu0
        %v2492 = vadd.f32 0.0, %v2491
        %v2493 = vpop.f32.mrb[0].mxu0
        %2494 = vmatprep.mubr.f32.mxu0 0.0
        %2495 = vmatmul.mubr.f32.gmra.mrb[0].mxu0 %v510
        %v2496 = vpop.f32.mrb[0].mxu0
        %v2497 = vadd.f32 0.0, %v2496
        %v2498 = vpop.f32.mrb[0].mxu0
        %2499 = vmatprep.mubr.f32.mxu0 0.0
        %2500 = vmatmul.mubr.f32.gmra.mrb[0].mxu0 %v511
        %v2501 = vpop.f32.mrb[0].mxu0
        %v2502 = vadd.f32 0.0, %v2501
        %v2503 = vpop.f32.mrb[0].mxu0
        %2504 = vmatprep.mubr.f32.mxu0 0.0
        %2505 = vmatmul.mubr.f32.gmra.mrb[0].mxu0 %v512
        %v2506 = vpop.f32.mrb[0].mxu0
        %v2507 = vadd.f32 0.0, %v2506
        %v2508 = vpop.f32.mrb[0].mxu0
        %2509 = vmatprep.mubr.f32.mxu0 0.0
        %2510 = vmatmul.mubr.f32.gmra.mrb[0].mxu0 %v513
        %v2511 = vpop.f32.mrb[0].mxu0
        %v2512 = vadd.f32 0.0, %v2511
        %v2513 = vpop.f32.mrb[0].mxu0
        %2514 = vmatprep.mubr.f32.mxu0 0.0
        %2515 = vmatmul.mubr.f32.gmra.mrb[0].mxu0 %v514
        %v2516 = vpop.f32.mrb[0].mxu0
        %v2517 = vadd.f32 0.0, %v2516
        %v2518 = vpop.f32.mrb[0].mxu0
        %2519 = vmatprep.mubr.f32.mxu0 0.0
        %2520 = vmatmul.mubr.f32.gmra.mrb[0].mxu0 %v515
        %v2521 = vpop.f32.mrb[0].mxu0
        %v2522 = vadd.f32 0.0, %v2521
        %v2523 = vpop.f32.mrb[0].mxu0
        %2524 = vmatprep.mubr.f32.mxu0 0.0
        %2525 = vmatmul.mubr.f32.gmra.mrb[0].mxu0 %v516
        %v2526 = vpop.f32.mrb[0].mxu0
        %v2527 = vadd.f32 0.0, %v2526
        %v2528 = vpop.f32.mrb[0].mxu0
        %2529 = vmatprep.mubr.f32.mxu0 0.0
        %2530 = vmatmul.mubr.f32.gmra.mrb[0].mxu0 %v517
        %v2531 = vpop.f32.mrb[0].mxu0
        %v2532 = vadd.f32 0.0, %v2531
        %v2533 = vpop.f32.mrb[0].mxu0
        %2534 = vmatprep.mubr.f32.mxu0 0.0
        %2535 = vmatmul.mubr.f32.gmra.mrb[0].mxu0 %v518
        %v2536 = vpop.f32.mrb[0].mxu0
        %v2537 = vadd.f32 0.0, %v2536
        %v2538 = vpop.f32.mrb[0].mxu0
        %2539 = vmatprep.mubr.f32.mxu0 0.0
        %2540 = vmatmul.mubr.f32.gmra.mrb[0].mxu0 %v519
        %v2541 = vpop.f32.mrb[0].mxu0
        %v2542 = vadd.f32 0.0, %v2541
        %v2543 = vpop.f32.mrb[0].mxu0
        %2544 = vmatprep.mubr.f32.mxu0 0.0
        %2545 = vmatmul.mubr.f32.gmra.mrb[0].mxu0 %v520
        %v2546 = vpop.f32.mrb[0].mxu0
        %v2547 = vadd.f32 0.0, %v2546
        %v2548 = vpop.f32.mrb[0].mxu0
        %2549 = vdwg.mxu0
        %v2550 = vmul.f32 %v2472, 2.0
        %v2551 = vmul.f32 %v2477, 2.0
        %v2552 = vmul.f32 %v2482, 2.0
        %v2553 = vmul.f32 %v2487, 2.0
        %v2554 = vmul.f32 %v2492, 2.0
        %v2555 = vmul.f32 %v2497, 2.0
        %v2556 = vmul.f32 %v2502, 2.0
        %v2557 = vmul.f32 %v2507, 2.0
        %v2558 = vmul.f32 %v2512, 2.0
        %v2559 = vmul.f32 %v2517, 2.0
        %v2560 = vmul.f32 %v2522, 2.0
        %v2561 = vmul.f32 %v2527, 2.0
        %v2562 = vmul.f32 %v2532, 2.0
        %v2563 = vmul.f32 %v2537, 2.0
        %v2564 = vmul.f32 %v2542, 2.0
        %v2565 = vmul.f32 %v2547, 2.0
        %v2566 = vsub.f32 %v2550, %v1700
        %v2567 = vsub.f32 %v2551, %v1701
        %v2568 = vsub.f32 %v2552, %v1702
        %v2569 = vsub.f32 %v2553, %v1703
        %v2570 = vsub.f32 %v2554, %v1704
        %v2571 = vsub.f32 %v2555, %v1705
        %v2572 = vsub.f32 %v2556, %v1706
        %v2573 = vsub.f32 %v2557, %v1707
        %v2574 = vsub.f32 %v2558, %v1708
        %v2575 = vsub.f32 %v2559, %v1709
        %v2576 = vsub.f32 %v2560, %v1710
        %v2577 = vsub.f32 %v2561, %v1711
        %v2578 = vsub.f32 %v2562, %v1712
        %v2579 = vsub.f32 %v2563, %v1713
        %v2580 = vsub.f32 %v2564, %v1714
        %v2581 = vsub.f32 %v2565, %v1715
        %s2582 = sld [smem:[#allocation2 + $0x5]]
        %v2583 = vstv %s2582
        %v2584 = vmul.f32 %v2583, %v2566
        %v2585 = vmul.f32 %v2583, %v2567
        %v2586 = vmul.f32 %v2583, %v2568
        %v2587 = vmul.f32 %v2583, %v2569
        %v2588 = vmul.f32 %v2583, %v2570
        %v2589 = vmul.f32 %v2583, %v2571
        %v2590 = vmul.f32 %v2583, %v2572
        %v2591 = vmul.f32 %v2583, %v2573
        %v2592 = vmul.f32 %v2583, %v2574
        %v2593 = vmul.f32 %v2583, %v2575
        %v2594 = vmul.f32 %v2583, %v2576
        %v2595 = vmul.f32 %v2583, %v2577
        %v2596 = vmul.f32 %v2583, %v2578
        %v2597 = vmul.f32 %v2583, %v2579
        %v2598 = vmul.f32 %v2583, %v2580
        %v2599 = vmul.f32 %v2583, %v2581
        %v2600 = vadd.f32 %v2151, %v2584
        %v2601 = vadd.f32 %v2152, %v2585
        %v2602 = vadd.f32 %v2153, %v2586
        %v2603 = vadd.f32 %v2154, %v2587
        %v2604 = vadd.f32 %v2155, %v2588
        %v2605 = vadd.f32 %v2156, %v2589
        %v2606 = vadd.f32 %v2157, %v2590
        %v2607 = vadd.f32 %v2158, %v2591
        %v2608 = vadd.f32 %v2159, %v2592
        %v2609 = vadd.f32 %v2160, %v2593
        %v2610 = vadd.f32 %v2161, %v2594
        %v2611 = vadd.f32 %v2162, %v2595
        %v2612 = vadd.f32 %v2163, %v2596
        %v2613 = vadd.f32 %v2164, %v2597
        %v2614 = vadd.f32 %v2165, %v2598
        %v2615 = vadd.f32 %v2166, %v2599
        %s2616 = sld [smem:[#allocation2 + $0x11]]
        %v2617 = vstv %s2616
        %v2618 = vmul.f32 %v2617, %v2566
        %v2619 = vmul.f32 %v2617, %v2567
        %v2620 = vmul.f32 %v2617, %v2568
        %v2621 = vmul.f32 %v2617, %v2569
        %v2622 = vmul.f32 %v2617, %v2570
        %v2623 = vmul.f32 %v2617, %v2571
        %v2624 = vmul.f32 %v2617, %v2572
        %v2625 = vmul.f32 %v2617, %v2573
        %v2626 = vmul.f32 %v2617, %v2574
        %v2627 = vmul.f32 %v2617, %v2575
        %v2628 = vmul.f32 %v2617, %v2576
        %v2629 = vmul.f32 %v2617, %v2577
        %v2630 = vmul.f32 %v2617, %v2578
        %v2631 = vmul.f32 %v2617, %v2579
        %v2632 = vmul.f32 %v2617, %v2580
        %v2633 = vmul.f32 %v2617, %v2581
        %v2634 = vadd.f32 %v2185, %v2618
        %v2635 = vadd.f32 %v2186, %v2619
        %v2636 = vadd.f32 %v2187, %v2620
        %v2637 = vadd.f32 %v2188, %v2621
        %v2638 = vadd.f32 %v2189, %v2622
        %v2639 = vadd.f32 %v2190, %v2623
        %v2640 = vadd.f32 %v2191, %v2624
        %v2641 = vadd.f32 %v2192, %v2625
        %v2642 = vadd.f32 %v2193, %v2626
        %v2643 = vadd.f32 %v2194, %v2627
        %v2644 = vadd.f32 %v2195, %v2628
        %v2645 = vadd.f32 %v2196, %v2629
        %v2646 = vadd.f32 %v2197, %v2630
        %v2647 = vadd.f32 %v2198, %v2631
        %v2648 = vadd.f32 %v2199, %v2632
        %v2649 = vadd.f32 %v2200, %v2633
        %s2650 = sld [smem:[#allocation2 + $0x1d]]
        %v2651 = vstv %s2650
        %v2652 = vmul.f32 %v2651, %v2566
        %v2653 = vmul.f32 %v2651, %v2567
        %v2654 = vmul.f32 %v2651, %v2568
        %v2655 = vmul.f32 %v2651, %v2569
        %v2656 = vmul.f32 %v2651, %v2570
        %v2657 = vmul.f32 %v2651, %v2571
        %v2658 = vmul.f32 %v2651, %v2572
        %v2659 = vmul.f32 %v2651, %v2573
        %v2660 = vmul.f32 %v2651, %v2574
        %v2661 = vmul.f32 %v2651, %v2575
        %v2662 = vmul.f32 %v2651, %v2576
        %v2663 = vmul.f32 %v2651, %v2577
        %v2664 = vmul.f32 %v2651, %v2578
        %v2665 = vmul.f32 %v2651, %v2579
        %v2666 = vmul.f32 %v2651, %v2580
        %v2667 = vmul.f32 %v2651, %v2581
        %v2668 = vadd.f32 %v2219, %v2652
        %v2669 = vadd.f32 %v2220, %v2653
        %v2670 = vadd.f32 %v2221, %v2654
        %v2671 = vadd.f32 %v2222, %v2655
        %v2672 = vadd.f32 %v2223, %v2656
        %v2673 = vadd.f32 %v2224, %v2657
        %v2674 = vadd.f32 %v2225, %v2658
        %v2675 = vadd.f32 %v2226, %v2659
        %v2676 = vadd.f32 %v2227, %v2660
        %v2677 = vadd.f32 %v2228, %v2661
        %v2678 = vadd.f32 %v2229, %v2662
        %v2679 = vadd.f32 %v2230, %v2663
        %v2680 = vadd.f32 %v2231, %v2664
        %v2681 = vadd.f32 %v2232, %v2665
        %v2682 = vadd.f32 %v2233, %v2666
        %v2683 = vadd.f32 %v2234, %v2667
        %s2684 = sld [smem:[#allocation2 + $0x29]]
        %v2685 = vstv %s2684
        %v2686 = vmul.f32 %v2685, %v2566
        %v2687 = vmul.f32 %v2685, %v2567
        %v2688 = vmul.f32 %v2685, %v2568
        %v2689 = vmul.f32 %v2685, %v2569
        %v2690 = vmul.f32 %v2685, %v2570
        %v2691 = vmul.f32 %v2685, %v2571
        %v2692 = vmul.f32 %v2685, %v2572
        %v2693 = vmul.f32 %v2685, %v2573
        %v2694 = vmul.f32 %v2685, %v2574
        %v2695 = vmul.f32 %v2685, %v2575
        %v2696 = vmul.f32 %v2685, %v2576
        %v2697 = vmul.f32 %v2685, %v2577
        %v2698 = vmul.f32 %v2685, %v2578
        %v2699 = vmul.f32 %v2685, %v2579
        %v2700 = vmul.f32 %v2685, %v2580
        %v2701 = vmul.f32 %v2685, %v2581
        %v2702 = vadd.f32 %v2253, %v2686
        %v2703 = vadd.f32 %v2254, %v2687
        %v2704 = vadd.f32 %v2255, %v2688
        %v2705 = vadd.f32 %v2256, %v2689
        %v2706 = vadd.f32 %v2257, %v2690
        %v2707 = vadd.f32 %v2258, %v2691
        %v2708 = vadd.f32 %v2259, %v2692
        %v2709 = vadd.f32 %v2260, %v2693
        %v2710 = vadd.f32 %v2261, %v2694
        %v2711 = vadd.f32 %v2262, %v2695
        %v2712 = vadd.f32 %v2263, %v2696
        %v2713 = vadd.f32 %v2264, %v2697
        %v2714 = vadd.f32 %v2265, %v2698
        %v2715 = vadd.f32 %v2266, %v2699
        %v2716 = vadd.f32 %v2267, %v2700
        %v2717 = vadd.f32 %v2268, %v2701
        %s2718 = sld [smem:[#allocation2 + $0x35]]
        %v2719 = vstv %s2718
        %v2720 = vmul.f32 %v2719, %v2566
        %v2721 = vmul.f32 %v2719, %v2567
        %v2722 = vmul.f32 %v2719, %v2568
        %v2723 = vmul.f32 %v2719, %v2569
        %v2724 = vmul.f32 %v2719, %v2570
        %v2725 = vmul.f32 %v2719, %v2571
        %v2726 = vmul.f32 %v2719, %v2572
        %v2727 = vmul.f32 %v2719, %v2573
        %v2728 = vmul.f32 %v2719, %v2574
        %v2729 = vmul.f32 %v2719, %v2575
        %v2730 = vmul.f32 %v2719, %v2576
        %v2731 = vmul.f32 %v2719, %v2577
        %v2732 = vmul.f32 %v2719, %v2578
        %v2733 = vmul.f32 %v2719, %v2579
        %v2734 = vmul.f32 %v2719, %v2580
        %v2735 = vmul.f32 %v2719, %v2581
        %v2736 = vadd.f32 %v2287, %v2720
        %v2737 = vadd.f32 %v2288, %v2721
        %v2738 = vadd.f32 %v2289, %v2722
        %v2739 = vadd.f32 %v2290, %v2723
        %v2740 = vadd.f32 %v2291, %v2724
        %v2741 = vadd.f32 %v2292, %v2725
        %v2742 = vadd.f32 %v2293, %v2726
        %v2743 = vadd.f32 %v2294, %v2727
        %v2744 = vadd.f32 %v2295, %v2728
        %v2745 = vadd.f32 %v2296, %v2729
        %v2746 = vadd.f32 %v2297, %v2730
        %v2747 = vadd.f32 %v2298, %v2731
        %v2748 = vadd.f32 %v2299, %v2732
        %v2749 = vadd.f32 %v2300, %v2733
        %v2750 = vadd.f32 %v2301, %v2734
        %v2751 = vadd.f32 %v2302, %v2735
        %s2752 = sld [smem:[#allocation2 + $0x41]]
        %v2753 = vstv %s2752
        %v2754 = vmul.f32 %v2753, %v2566
        %v2755 = vmul.f32 %v2753, %v2567
        %v2756 = vmul.f32 %v2753, %v2568
        %v2757 = vmul.f32 %v2753, %v2569
        %v2758 = vmul.f32 %v2753, %v2570
        %v2759 = vmul.f32 %v2753, %v2571
        %v2760 = vmul.f32 %v2753, %v2572
        %v2761 = vmul.f32 %v2753, %v2573
        %v2762 = vmul.f32 %v2753, %v2574
        %v2763 = vmul.f32 %v2753, %v2575
        %v2764 = vmul.f32 %v2753, %v2576
        %v2765 = vmul.f32 %v2753, %v2577
        %v2766 = vmul.f32 %v2753, %v2578
        %v2767 = vmul.f32 %v2753, %v2579
        %v2768 = vmul.f32 %v2753, %v2580
        %v2769 = vmul.f32 %v2753, %v2581
        %v2770 = vadd.f32 %v2321, %v2754
        %v2771 = vadd.f32 %v2322, %v2755
        %v2772 = vadd.f32 %v2323, %v2756
        %v2773 = vadd.f32 %v2324, %v2757
        %v2774 = vadd.f32 %v2325, %v2758
        %v2775 = vadd.f32 %v2326, %v2759
        %v2776 = vadd.f32 %v2327, %v2760
        %v2777 = vadd.f32 %v2328, %v2761
        %v2778 = vadd.f32 %v2329, %v2762
        %v2779 = vadd.f32 %v2330, %v2763
        %v2780 = vadd.f32 %v2331, %v2764
        %v2781 = vadd.f32 %v2332, %v2765
        %v2782 = vadd.f32 %v2333, %v2766
        %v2783 = vadd.f32 %v2334, %v2767
        %v2784 = vadd.f32 %v2335, %v2768
        %v2785 = vadd.f32 %v2336, %v2769
        %s2786 = sld [smem:[#allocation2 + $0x4d]]
        %v2787 = vstv %s2786
        %v2788 = vmul.f32 %v2787, %v2566
        %v2789 = vmul.f32 %v2787, %v2567
        %v2790 = vmul.f32 %v2787, %v2568
        %v2791 = vmul.f32 %v2787, %v2569
        %v2792 = vmul.f32 %v2787, %v2570
        %v2793 = vmul.f32 %v2787, %v2571
        %v2794 = vmul.f32 %v2787, %v2572
        %v2795 = vmul.f32 %v2787, %v2573
        %v2796 = vmul.f32 %v2787, %v2574
        %v2797 = vmul.f32 %v2787, %v2575
        %v2798 = vmul.f32 %v2787, %v2576
        %v2799 = vmul.f32 %v2787, %v2577
        %v2800 = vmul.f32 %v2787, %v2578
        %v2801 = vmul.f32 %v2787, %v2579
        %v2802 = vmul.f32 %v2787, %v2580
        %v2803 = vmul.f32 %v2787, %v2581
        %v2804 = vadd.f32 %v2355, %v2788
        %v2805 = vadd.f32 %v2356, %v2789
        %v2806 = vadd.f32 %v2357, %v2790
        %v2807 = vadd.f32 %v2358, %v2791
        %v2808 = vadd.f32 %v2359, %v2792
        %v2809 = vadd.f32 %v2360, %v2793
        %v2810 = vadd.f32 %v2361, %v2794
        %v2811 = vadd.f32 %v2362, %v2795
        %v2812 = vadd.f32 %v2363, %v2796
        %v2813 = vadd.f32 %v2364, %v2797
        %v2814 = vadd.f32 %v2365, %v2798
        %v2815 = vadd.f32 %v2366, %v2799
        %v2816 = vadd.f32 %v2367, %v2800
        %v2817 = vadd.f32 %v2368, %v2801
        %v2818 = vadd.f32 %v2369, %v2802
        %v2819 = vadd.f32 %v2370, %v2803
        %s2820 = sld [smem:[#allocation2 + $0x59]]
        %v2821 = vstv %s2820
        %v2822 = vmul.f32 %v2821, %v2566
        %v2823 = vmul.f32 %v2821, %v2567
        %v2824 = vmul.f32 %v2821, %v2568
        %v2825 = vmul.f32 %v2821, %v2569
        %v2826 = vmul.f32 %v2821, %v2570
        %v2827 = vmul.f32 %v2821, %v2571
        %v2828 = vmul.f32 %v2821, %v2572
        %v2829 = vmul.f32 %v2821, %v2573
        %v2830 = vmul.f32 %v2821, %v2574
        %v2831 = vmul.f32 %v2821, %v2575
        %v2832 = vmul.f32 %v2821, %v2576
        %v2833 = vmul.f32 %v2821, %v2577
        %v2834 = vmul.f32 %v2821, %v2578
        %v2835 = vmul.f32 %v2821, %v2579
        %v2836 = vmul.f32 %v2821, %v2580
        %v2837 = vmul.f32 %v2821, %v2581
        %v2838 = vadd.f32 %v2389, %v2822
        %v2839 = vadd.f32 %v2390, %v2823
        %v2840 = vadd.f32 %v2391, %v2824
        %v2841 = vadd.f32 %v2392, %v2825
        %v2842 = vadd.f32 %v2393, %v2826
        %v2843 = vadd.f32 %v2394, %v2827
        %v2844 = vadd.f32 %v2395, %v2828
        %v2845 = vadd.f32 %v2396, %v2829
        %v2846 = vadd.f32 %v2397, %v2830
        %v2847 = vadd.f32 %v2398, %v2831
        %v2848 = vadd.f32 %v2399, %v2832
        %v2849 = vadd.f32 %v2400, %v2833
        %v2850 = vadd.f32 %v2401, %v2834
        %v2851 = vadd.f32 %v2402, %v2835
        %v2852 = vadd.f32 %v2403, %v2836
        %v2853 = vadd.f32 %v2404, %v2837
        %s2854 = scalar_lea.vmem %s482, 256 [#allocation6]
        %v2855 = vld [vmem:[%s2854] sm:$0xff]
        %v2856 = vld [vmem:[%s2854 + $0x8] sm:$0xff]
        %v2857 = vld [vmem:[%s2854 + $0x10] sm:$0xff]
        %v2858 = vld [vmem:[%s2854 + $0x18] sm:$0xff]
        %v2859 = vld [vmem:[%s2854 + $0x20] sm:$0xff]
        %v2860 = vld [vmem:[%s2854 + $0x28] sm:$0xff]
        %v2861 = vld [vmem:[%s2854 + $0x30] sm:$0xff]
        %v2862 = vld [vmem:[%s2854 + $0x38] sm:$0xff]
        %v2863 = vld [vmem:[%s2854 + $0x40] sm:$0xff]
        %v2864 = vld [vmem:[%s2854 + $0x48] sm:$0xff]
        %v2865 = vld [vmem:[%s2854 + $0x50] sm:$0xff]
        %v2866 = vld [vmem:[%s2854 + $0x58] sm:$0xff]
        %v2867 = vld [vmem:[%s2854 + $0x60] sm:$0xff]
        %v2868 = vld [vmem:[%s2854 + $0x68] sm:$0xff]
        %v2869 = vld [vmem:[%s2854 + $0x70] sm:$0xff]
        %v2870 = vld [vmem:[%s2854 + $0x78] sm:$0xff]
        %s2871 = sld [smem:[#allocation2 + $0x6]]
        %v2872 = vstv %s2871
        %v2873 = vmul.f32 %v2872, %v2855
        %v2874 = vmul.f32 %v2872, %v2856
        %v2875 = vmul.f32 %v2872, %v2857
        %v2876 = vmul.f32 %v2872, %v2858
        %v2877 = vmul.f32 %v2872, %v2859
        %v2878 = vmul.f32 %v2872, %v2860
        %v2879 = vmul.f32 %v2872, %v2861
        %v2880 = vmul.f32 %v2872, %v2862
        %v2881 = vmul.f32 %v2872, %v2863
        %v2882 = vmul.f32 %v2872, %v2864
        %v2883 = vmul.f32 %v2872, %v2865
        %v2884 = vmul.f32 %v2872, %v2866
        %v2885 = vmul.f32 %v2872, %v2867
        %v2886 = vmul.f32 %v2872, %v2868
        %v2887 = vmul.f32 %v2872, %v2869
        %v2888 = vmul.f32 %v2872, %v2870
        %v2889 = vadd.f32 %v2600, %v2873
        %v2890 = vadd.f32 %v2601, %v2874
        %v2891 = vadd.f32 %v2602, %v2875
        %v2892 = vadd.f32 %v2603, %v2876
        %v2893 = vadd.f32 %v2604, %v2877
        %v2894 = vadd.f32 %v2605, %v2878
        %v2895 = vadd.f32 %v2606, %v2879
        %v2896 = vadd.f32 %v2607, %v2880
        %v2897 = vadd.f32 %v2608, %v2881
        %v2898 = vadd.f32 %v2609, %v2882
        %v2899 = vadd.f32 %v2610, %v2883
        %v2900 = vadd.f32 %v2611, %v2884
        %v2901 = vadd.f32 %v2612, %v2885
        %v2902 = vadd.f32 %v2613, %v2886
        %v2903 = vadd.f32 %v2614, %v2887
        %v2904 = vadd.f32 %v2615, %v2888
        %s2905 = sld [smem:[#allocation2 + $0x12]]
        %v2906 = vstv %s2905
        %v2907 = vmul.f32 %v2906, %v2855
        %v2908 = vmul.f32 %v2906, %v2856
        %v2909 = vmul.f32 %v2906, %v2857
        %v2910 = vmul.f32 %v2906, %v2858
        %v2911 = vmul.f32 %v2906, %v2859
        %v2912 = vmul.f32 %v2906, %v2860
        %v2913 = vmul.f32 %v2906, %v2861
        %v2914 = vmul.f32 %v2906, %v2862
        %v2915 = vmul.f32 %v2906, %v2863
        %v2916 = vmul.f32 %v2906, %v2864
        %v2917 = vmul.f32 %v2906, %v2865
        %v2918 = vmul.f32 %v2906, %v2866
        %v2919 = vmul.f32 %v2906, %v2867
        %v2920 = vmul.f32 %v2906, %v2868
        %v2921 = vmul.f32 %v2906, %v2869
        %v2922 = vmul.f32 %v2906, %v2870
        %v2923 = vadd.f32 %v2634, %v2907
        %v2924 = vadd.f32 %v2635, %v2908
        %v2925 = vadd.f32 %v2636, %v2909
        %v2926 = vadd.f32 %v2637, %v2910
        %v2927 = vadd.f32 %v2638, %v2911
        %v2928 = vadd.f32 %v2639, %v2912
        %v2929 = vadd.f32 %v2640, %v2913
        %v2930 = vadd.f32 %v2641, %v2914
        %v2931 = vadd.f32 %v2642, %v2915
        %v2932 = vadd.f32 %v2643, %v2916
        %v2933 = vadd.f32 %v2644, %v2917
        %v2934 = vadd.f32 %v2645, %v2918
        %v2935 = vadd.f32 %v2646, %v2919
        %v2936 = vadd.f32 %v2647, %v2920
        %v2937 = vadd.f32 %v2648, %v2921
        %v2938 = vadd.f32 %v2649, %v2922
        %s2939 = sld [smem:[#allocation2 + $0x1e]]
        %v2940 = vstv %s2939
        %v2941 = vmul.f32 %v2940, %v2855
        %v2942 = vmul.f32 %v2940, %v2856
        %v2943 = vmul.f32 %v2940, %v2857
        %v2944 = vmul.f32 %v2940, %v2858
        %v2945 = vmul.f32 %v2940, %v2859
        %v2946 = vmul.f32 %v2940, %v2860
        %v2947 = vmul.f32 %v2940, %v2861
        %v2948 = vmul.f32 %v2940, %v2862
        %v2949 = vmul.f32 %v2940, %v2863
        %v2950 = vmul.f32 %v2940, %v2864
        %v2951 = vmul.f32 %v2940, %v2865
        %v2952 = vmul.f32 %v2940, %v2866
        %v2953 = vmul.f32 %v2940, %v2867
        %v2954 = vmul.f32 %v2940, %v2868
        %v2955 = vmul.f32 %v2940, %v2869
        %v2956 = vmul.f32 %v2940, %v2870
        %v2957 = vadd.f32 %v2668, %v2941
        %v2958 = vadd.f32 %v2669, %v2942
        %v2959 = vadd.f32 %v2670, %v2943
        %v2960 = vadd.f32 %v2671, %v2944
        %v2961 = vadd.f32 %v2672, %v2945
        %v2962 = vadd.f32 %v2673, %v2946
        %v2963 = vadd.f32 %v2674, %v2947
        %v2964 = vadd.f32 %v2675, %v2948
        %v2965 = vadd.f32 %v2676, %v2949
        %v2966 = vadd.f32 %v2677, %v2950
        %v2967 = vadd.f32 %v2678, %v2951
        %v2968 = vadd.f32 %v2679, %v2952
        %v2969 = vadd.f32 %v2680, %v2953
        %v2970 = vadd.f32 %v2681, %v2954
        %v2971 = vadd.f32 %v2682, %v2955
        %v2972 = vadd.f32 %v2683, %v2956
        %s2973 = sld [smem:[#allocation2 + $0x2a]]
        %v2974 = vstv %s2973
        %v2975 = vmul.f32 %v2974, %v2855
        %v2976 = vmul.f32 %v2974, %v2856
        %v2977 = vmul.f32 %v2974, %v2857
        %v2978 = vmul.f32 %v2974, %v2858
        %v2979 = vmul.f32 %v2974, %v2859
        %v2980 = vmul.f32 %v2974, %v2860
        %v2981 = vmul.f32 %v2974, %v2861
        %v2982 = vmul.f32 %v2974, %v2862
        %v2983 = vmul.f32 %v2974, %v2863
        %v2984 = vmul.f32 %v2974, %v2864
        %v2985 = vmul.f32 %v2974, %v2865
        %v2986 = vmul.f32 %v2974, %v2866
        %v2987 = vmul.f32 %v2974, %v2867
        %v2988 = vmul.f32 %v2974, %v2868
        %v2989 = vmul.f32 %v2974, %v2869
        %v2990 = vmul.f32 %v2974, %v2870
        %v2991 = vadd.f32 %v2702, %v2975
        %v2992 = vadd.f32 %v2703, %v2976
        %v2993 = vadd.f32 %v2704, %v2977
        %v2994 = vadd.f32 %v2705, %v2978
        %v2995 = vadd.f32 %v2706, %v2979
        %v2996 = vadd.f32 %v2707, %v2980
        %v2997 = vadd.f32 %v2708, %v2981
        %v2998 = vadd.f32 %v2709, %v2982
        %v2999 = vadd.f32 %v2710, %v2983
        %v3000 = vadd.f32 %v2711, %v2984
        %v3001 = vadd.f32 %v2712, %v2985
        %v3002 = vadd.f32 %v2713, %v2986
        %v3003 = vadd.f32 %v2714, %v2987
        %v3004 = vadd.f32 %v2715, %v2988
        %v3005 = vadd.f32 %v2716, %v2989
        %v3006 = vadd.f32 %v2717, %v2990
        %s3007 = sld [smem:[#allocation2 + $0x36]]
        %v3008 = vstv %s3007
        %v3009 = vmul.f32 %v3008, %v2855
        %v3010 = vmul.f32 %v3008, %v2856
        %v3011 = vmul.f32 %v3008, %v2857
        %v3012 = vmul.f32 %v3008, %v2858
        %v3013 = vmul.f32 %v3008, %v2859
        %v3014 = vmul.f32 %v3008, %v2860
        %v3015 = vmul.f32 %v3008, %v2861
        %v3016 = vmul.f32 %v3008, %v2862
        %v3017 = vmul.f32 %v3008, %v2863
        %v3018 = vmul.f32 %v3008, %v2864
        %v3019 = vmul.f32 %v3008, %v2865
        %v3020 = vmul.f32 %v3008, %v2866
        %v3021 = vmul.f32 %v3008, %v2867
        %v3022 = vmul.f32 %v3008, %v2868
        %v3023 = vmul.f32 %v3008, %v2869
        %v3024 = vmul.f32 %v3008, %v2870
        %v3025 = vadd.f32 %v2736, %v3009
        %v3026 = vadd.f32 %v2737, %v3010
        %v3027 = vadd.f32 %v2738, %v3011
        %v3028 = vadd.f32 %v2739, %v3012
        %v3029 = vadd.f32 %v2740, %v3013
        %v3030 = vadd.f32 %v2741, %v3014
        %v3031 = vadd.f32 %v2742, %v3015
        %v3032 = vadd.f32 %v2743, %v3016
        %v3033 = vadd.f32 %v2744, %v3017
        %v3034 = vadd.f32 %v2745, %v3018
        %v3035 = vadd.f32 %v2746, %v3019
        %v3036 = vadd.f32 %v2747, %v3020
        %v3037 = vadd.f32 %v2748, %v3021
        %v3038 = vadd.f32 %v2749, %v3022
        %v3039 = vadd.f32 %v2750, %v3023
        %v3040 = vadd.f32 %v2751, %v3024
        %s3041 = sld [smem:[#allocation2 + $0x42]]
        %v3042 = vstv %s3041
        %v3043 = vmul.f32 %v3042, %v2855
        %v3044 = vmul.f32 %v3042, %v2856
        %v3045 = vmul.f32 %v3042, %v2857
        %v3046 = vmul.f32 %v3042, %v2858
        %v3047 = vmul.f32 %v3042, %v2859
        %v3048 = vmul.f32 %v3042, %v2860
        %v3049 = vmul.f32 %v3042, %v2861
        %v3050 = vmul.f32 %v3042, %v2862
        %v3051 = vmul.f32 %v3042, %v2863
        %v3052 = vmul.f32 %v3042, %v2864
        %v3053 = vmul.f32 %v3042, %v2865
        %v3054 = vmul.f32 %v3042, %v2866
        %v3055 = vmul.f32 %v3042, %v2867
        %v3056 = vmul.f32 %v3042, %v2868
        %v3057 = vmul.f32 %v3042, %v2869
        %v3058 = vmul.f32 %v3042, %v2870
        %v3059 = vadd.f32 %v2770, %v3043
        %v3060 = vadd.f32 %v2771, %v3044
        %v3061 = vadd.f32 %v2772, %v3045
        %v3062 = vadd.f32 %v2773, %v3046
        %v3063 = vadd.f32 %v2774, %v3047
        %v3064 = vadd.f32 %v2775, %v3048
        %v3065 = vadd.f32 %v2776, %v3049
        %v3066 = vadd.f32 %v2777, %v3050
        %v3067 = vadd.f32 %v2778, %v3051
        %v3068 = vadd.f32 %v2779, %v3052
        %v3069 = vadd.f32 %v2780, %v3053
        %v3070 = vadd.f32 %v2781, %v3054
        %v3071 = vadd.f32 %v2782, %v3055
        %v3072 = vadd.f32 %v2783, %v3056
        %v3073 = vadd.f32 %v2784, %v3057
        %v3074 = vadd.f32 %v2785, %v3058
        %s3075 = sld [smem:[#allocation2 + $0x4e]]
        %v3076 = vstv %s3075
        %v3077 = vmul.f32 %v3076, %v2855
        %v3078 = vmul.f32 %v3076, %v2856
        %v3079 = vmul.f32 %v3076, %v2857
        %v3080 = vmul.f32 %v3076, %v2858
        %v3081 = vmul.f32 %v3076, %v2859
        %v3082 = vmul.f32 %v3076, %v2860
        %v3083 = vmul.f32 %v3076, %v2861
        %v3084 = vmul.f32 %v3076, %v2862
        %v3085 = vmul.f32 %v3076, %v2863
        %v3086 = vmul.f32 %v3076, %v2864
        %v3087 = vmul.f32 %v3076, %v2865
        %v3088 = vmul.f32 %v3076, %v2866
        %v3089 = vmul.f32 %v3076, %v2867
        %v3090 = vmul.f32 %v3076, %v2868
        %v3091 = vmul.f32 %v3076, %v2869
        %v3092 = vmul.f32 %v3076, %v2870
        %v3093 = vadd.f32 %v2804, %v3077
        %v3094 = vadd.f32 %v2805, %v3078
        %v3095 = vadd.f32 %v2806, %v3079
        %v3096 = vadd.f32 %v2807, %v3080
        %v3097 = vadd.f32 %v2808, %v3081
        %v3098 = vadd.f32 %v2809, %v3082
        %v3099 = vadd.f32 %v2810, %v3083
        %v3100 = vadd.f32 %v2811, %v3084
        %v3101 = vadd.f32 %v2812, %v3085
        %v3102 = vadd.f32 %v2813, %v3086
        %v3103 = vadd.f32 %v2814, %v3087
        %v3104 = vadd.f32 %v2815, %v3088
        %v3105 = vadd.f32 %v2816, %v3089
        %v3106 = vadd.f32 %v2817, %v3090
        %v3107 = vadd.f32 %v2818, %v3091
        %v3108 = vadd.f32 %v2819, %v3092
        %s3109 = sld [smem:[#allocation2 + $0x5a]]
        %v3110 = vstv %s3109
        %v3111 = vmul.f32 %v3110, %v2855
        %v3112 = vmul.f32 %v3110, %v2856
        %v3113 = vmul.f32 %v3110, %v2857
        %v3114 = vmul.f32 %v3110, %v2858
        %v3115 = vmul.f32 %v3110, %v2859
        %v3116 = vmul.f32 %v3110, %v2860
        %v3117 = vmul.f32 %v3110, %v2861
        %v3118 = vmul.f32 %v3110, %v2862
        %v3119 = vmul.f32 %v3110, %v2863
        %v3120 = vmul.f32 %v3110, %v2864
        %v3121 = vmul.f32 %v3110, %v2865
        %v3122 = vmul.f32 %v3110, %v2866
        %v3123 = vmul.f32 %v3110, %v2867
        %v3124 = vmul.f32 %v3110, %v2868
        %v3125 = vmul.f32 %v3110, %v2869
        %v3126 = vmul.f32 %v3110, %v2870
        %v3127 = vadd.f32 %v2838, %v3111
        %v3128 = vadd.f32 %v2839, %v3112
        %v3129 = vadd.f32 %v2840, %v3113
        %v3130 = vadd.f32 %v2841, %v3114
        %v3131 = vadd.f32 %v2842, %v3115
        %v3132 = vadd.f32 %v2843, %v3116
        %v3133 = vadd.f32 %v2844, %v3117
        %v3134 = vadd.f32 %v2845, %v3118
        %v3135 = vadd.f32 %v2846, %v3119
        %v3136 = vadd.f32 %v2847, %v3120
        %v3137 = vadd.f32 %v2848, %v3121
        %v3138 = vadd.f32 %v2849, %v3122
        %v3139 = vadd.f32 %v2850, %v3123
        %v3140 = vadd.f32 %v2851, %v3124
        %v3141 = vadd.f32 %v2852, %v3125
        %v3142 = vadd.f32 %v2853, %v3126
        %3143 = vmatprep.subr.mxu0 0.0
        %3144 = vmatpush1.msra.mxu0 %v2855
        %3145 = vmatprep.subr.mxu0 0.0
        %3146 = vmatpush1.msra.mxu0 %v2856
        %3147 = vmatprep.subr.mxu0 0.0
        %3148 = vmatpush1.msra.mxu0 %v2857
        %3149 = vmatprep.subr.mxu0 0.0
        %3150 = vmatpush1.msra.mxu0 %v2858
        %3151 = vmatprep.subr.mxu0 0.0
        %3152 = vmatpush1.msra.mxu0 %v2859
        %3153 = vmatprep.subr.mxu0 0.0
        %3154 = vmatpush1.msra.mxu0 %v2860
        %3155 = vmatprep.subr.mxu0 0.0
        %3156 = vmatpush1.msra.mxu0 %v2861
        %3157 = vmatprep.subr.mxu0 0.0
        %3158 = vmatpush1.msra.mxu0 %v2862
        %3159 = vmatprep.subr.mxu0 0.0
        %3160 = vmatpush1.msra.mxu0 %v2863
        %3161 = vmatprep.subr.mxu0 0.0
        %3162 = vmatpush1.msra.mxu0 %v2864
        %3163 = vmatprep.subr.mxu0 0.0
        %3164 = vmatpush1.msra.mxu0 %v2865
        %3165 = vmatprep.subr.mxu0 0.0
        %3166 = vmatpush1.msra.mxu0 %v2866
        %3167 = vmatprep.subr.mxu0 0.0
        %3168 = vmatpush1.msra.mxu0 %v2867
        %3169 = vmatprep.subr.mxu0 0.0
        %3170 = vmatpush1.msra.mxu0 %v2868
        %3171 = vmatprep.subr.mxu0 0.0
        %3172 = vmatpush1.msra.mxu0 %v2869
        %3173 = vmatprep.subr.mxu0 0.0
        %3174 = vmatpush1.msra.mxu0 %v2870
        %3175 = vmatprep.subr.mxu0 0.0
        %3176 = vmatpush1.msra.mxu0 0.0
        %3177 = vmatprep.subr.mxu0 0.0
        %3178 = vmatpush1.msra.mxu0 0.0
        %3179 = vmatprep.subr.mxu0 0.0
        %3180 = vmatpush1.msra.mxu0 0.0
        %3181 = vmatprep.subr.mxu0 0.0
        %3182 = vmatpush1.msra.mxu0 0.0
        %3183 = vmatprep.subr.mxu0 0.0
        %3184 = vmatpush1.msra.mxu0 0.0
        %3185 = vmatprep.subr.mxu0 0.0
        %3186 = vmatpush1.msra.mxu0 0.0
        %3187 = vmatprep.subr.mxu0 0.0
        %3188 = vmatpush1.msra.mxu0 0.0
        %3189 = vmatprep.subr.mxu0 0.0
        %3190 = vmatpush1.msra.mxu0 0.0
        %3191 = vmatprep.subr.mxu0 0.0
        %3192 = vmatpush1.msra.mxu0 0.0
        %3193 = vmatprep.subr.mxu0 0.0
        %3194 = vmatpush1.msra.mxu0 0.0
        %3195 = vmatprep.subr.mxu0 0.0
        %3196 = vmatpush1.msra.mxu0 0.0
        %3197 = vmatprep.subr.mxu0 0.0
        %3198 = vmatpush1.msra.mxu0 0.0
        %3199 = vmatprep.subr.mxu0 0.0
        %3200 = vmatpush1.msra.mxu0 0.0
        %3201 = vmatprep.subr.mxu0 0.0
        %3202 = vmatpush1.msra.mxu0 0.0
        %3203 = vmatprep.subr.mxu0 0.0
        %3204 = vmatpush1.msra.mxu0 0.0
        %3205 = vmatprep.subr.mxu0 0.0
        %3206 = vmatpush1.msra.mxu0 0.0
        %3207 = vmatprep.mubr.f32.mxu0 0.0
        %3208 = vmatmul.mubr.f32.gmra.mrb[0].mxu0 %v505
        %v3209 = vpop.f32.mrb[0].mxu0
        %v3210 = vadd.f32 0.0, %v3209
        %v3211 = vpop.f32.mrb[0].mxu0
        %3212 = vmatprep.mubr.f32.mxu0 0.0
        %3213 = vmatmul.mubr.f32.gmra.mrb[0].mxu0 %v506
        %v3214 = vpop.f32.mrb[0].mxu0
        %v3215 = vadd.f32 0.0, %v3214
        %v3216 = vpop.f32.mrb[0].mxu0
        %3217 = vmatprep.mubr.f32.mxu0 0.0
        %3218 = vmatmul.mubr.f32.gmra.mrb[0].mxu0 %v507
        %v3219 = vpop.f32.mrb[0].mxu0
        %v3220 = vadd.f32 0.0, %v3219
        %v3221 = vpop.f32.mrb[0].mxu0
        %3222 = vmatprep.mubr.f32.mxu0 0.0
        %3223 = vmatmul.mubr.f32.gmra.mrb[0].mxu0 %v508
        %v3224 = vpop.f32.mrb[0].mxu0
        %v3225 = vadd.f32 0.0, %v3224
        %v3226 = vpop.f32.mrb[0].mxu0
        %3227 = vmatprep.mubr.f32.mxu0 0.0
        %3228 = vmatmul.mubr.f32.gmra.mrb[0].mxu0 %v509
        %v3229 = vpop.f32.mrb[0].mxu0
        %v3230 = vadd.f32 0.0, %v3229
        %v3231 = vpop.f32.mrb[0].mxu0
        %3232 = vmatprep.mubr.f32.mxu0 0.0
        %3233 = vmatmul.mubr.f32.gmra.mrb[0].mxu0 %v510
        %v3234 = vpop.f32.mrb[0].mxu0
        %v3235 = vadd.f32 0.0, %v3234
        %v3236 = vpop.f32.mrb[0].mxu0
        %3237 = vmatprep.mubr.f32.mxu0 0.0
        %3238 = vmatmul.mubr.f32.gmra.mrb[0].mxu0 %v511
        %v3239 = vpop.f32.mrb[0].mxu0
        %v3240 = vadd.f32 0.0, %v3239
        %v3241 = vpop.f32.mrb[0].mxu0
        %3242 = vmatprep.mubr.f32.mxu0 0.0
        %3243 = vmatmul.mubr.f32.gmra.mrb[0].mxu0 %v512
        %v3244 = vpop.f32.mrb[0].mxu0
        %v3245 = vadd.f32 0.0, %v3244
        %v3246 = vpop.f32.mrb[0].mxu0
        %3247 = vmatprep.mubr.f32.mxu0 0.0
        %3248 = vmatmul.mubr.f32.gmra.mrb[0].mxu0 %v513
        %v3249 = vpop.f32.mrb[0].mxu0
        %v3250 = vadd.f32 0.0, %v3249
        %v3251 = vpop.f32.mrb[0].mxu0
        %3252 = vmatprep.mubr.f32.mxu0 0.0
        %3253 = vmatmul.mubr.f32.gmra.mrb[0].mxu0 %v514
        %v3254 = vpop.f32.mrb[0].mxu0
        %v3255 = vadd.f32 0.0, %v3254
        %v3256 = vpop.f32.mrb[0].mxu0
        %3257 = vmatprep.mubr.f32.mxu0 0.0
        %3258 = vmatmul.mubr.f32.gmra.mrb[0].mxu0 %v515
        %v3259 = vpop.f32.mrb[0].mxu0
        %v3260 = vadd.f32 0.0, %v3259
        %v3261 = vpop.f32.mrb[0].mxu0
        %3262 = vmatprep.mubr.f32.mxu0 0.0
        %3263 = vmatmul.mubr.f32.gmra.mrb[0].mxu0 %v516
        %v3264 = vpop.f32.mrb[0].mxu0
        %v3265 = vadd.f32 0.0, %v3264
        %v3266 = vpop.f32.mrb[0].mxu0
        %3267 = vmatprep.mubr.f32.mxu0 0.0
        %3268 = vmatmul.mubr.f32.gmra.mrb[0].mxu0 %v517
        %v3269 = vpop.f32.mrb[0].mxu0
        %v3270 = vadd.f32 0.0, %v3269
        %v3271 = vpop.f32.mrb[0].mxu0
        %3272 = vmatprep.mubr.f32.mxu0 0.0
        %3273 = vmatmul.mubr.f32.gmra.mrb[0].mxu0 %v518
        %v3274 = vpop.f32.mrb[0].mxu0
        %v3275 = vadd.f32 0.0, %v3274
        %v3276 = vpop.f32.mrb[0].mxu0
        %3277 = vmatprep.mubr.f32.mxu0 0.0
        %3278 = vmatmul.mubr.f32.gmra.mrb[0].mxu0 %v519
        %v3279 = vpop.f32.mrb[0].mxu0
        %v3280 = vadd.f32 0.0, %v3279
        %v3281 = vpop.f32.mrb[0].mxu0
        %3282 = vmatprep.mubr.f32.mxu0 0.0
        %3283 = vmatmul.mubr.f32.gmra.mrb[0].mxu0 %v520
        %v3284 = vpop.f32.mrb[0].mxu0
        %v3285 = vadd.f32 0.0, %v3284
        %v3286 = vpop.f32.mrb[0].mxu0
        %3287 = vdwg.mxu0
        %s3288 = sld [smem:[#allocation2 + $0x7]]
        %v3289 = vstv %s3288
        %v3290 = vmul.f32 %v3289, %v3210
        %v3291 = vmul.f32 %v3289, %v3215
        %v3292 = vmul.f32 %v3289, %v3220
        %v3293 = vmul.f32 %v3289, %v3225
        %v3294 = vmul.f32 %v3289, %v3230
        %v3295 = vmul.f32 %v3289, %v3235
        %v3296 = vmul.f32 %v3289, %v3240
        %v3297 = vmul.f32 %v3289, %v3245
        %v3298 = vmul.f32 %v3289, %v3250
        %v3299 = vmul.f32 %v3289, %v3255
        %v3300 = vmul.f32 %v3289, %v3260
        %v3301 = vmul.f32 %v3289, %v3265
        %v3302 = vmul.f32 %v3289, %v3270
        %v3303 = vmul.f32 %v3289, %v3275
        %v3304 = vmul.f32 %v3289, %v3280
        %v3305 = vmul.f32 %v3289, %v3285
        %v3306 = vadd.f32 %v2889, %v3290
        %v3307 = vadd.f32 %v2890, %v3291
        %v3308 = vadd.f32 %v2891, %v3292
        %v3309 = vadd.f32 %v2892, %v3293
        %v3310 = vadd.f32 %v2893, %v3294
        %v3311 = vadd.f32 %v2894, %v3295
        %v3312 = vadd.f32 %v2895, %v3296
        %v3313 = vadd.f32 %v2896, %v3297
        %v3314 = vadd.f32 %v2897, %v3298
        %v3315 = vadd.f32 %v2898, %v3299
        %v3316 = vadd.f32 %v2899, %v3300
        %v3317 = vadd.f32 %v2900, %v3301
        %v3318 = vadd.f32 %v2901, %v3302
        %v3319 = vadd.f32 %v2902, %v3303
        %v3320 = vadd.f32 %v2903, %v3304
        %v3321 = vadd.f32 %v2904, %v3305
        %s3322 = sld [smem:[#allocation2 + $0x13]]
        %v3323 = vstv %s3322
        %v3324 = vmul.f32 %v3323, %v3210
        %v3325 = vmul.f32 %v3323, %v3215
        %v3326 = vmul.f32 %v3323, %v3220
        %v3327 = vmul.f32 %v3323, %v3225
        %v3328 = vmul.f32 %v3323, %v3230
        %v3329 = vmul.f32 %v3323, %v3235
        %v3330 = vmul.f32 %v3323, %v3240
        %v3331 = vmul.f32 %v3323, %v3245
        %v3332 = vmul.f32 %v3323, %v3250
        %v3333 = vmul.f32 %v3323, %v3255
        %v3334 = vmul.f32 %v3323, %v3260
        %v3335 = vmul.f32 %v3323, %v3265
        %v3336 = vmul.f32 %v3323, %v3270
        %v3337 = vmul.f32 %v3323, %v3275
        %v3338 = vmul.f32 %v3323, %v3280
        %v3339 = vmul.f32 %v3323, %v3285
        %v3340 = vadd.f32 %v2923, %v3324
        %v3341 = vadd.f32 %v2924, %v3325
        %v3342 = vadd.f32 %v2925, %v3326
        %v3343 = vadd.f32 %v2926, %v3327
        %v3344 = vadd.f32 %v2927, %v3328
        %v3345 = vadd.f32 %v2928, %v3329
        %v3346 = vadd.f32 %v2929, %v3330
        %v3347 = vadd.f32 %v2930, %v3331
        %v3348 = vadd.f32 %v2931, %v3332
        %v3349 = vadd.f32 %v2932, %v3333
        %v3350 = vadd.f32 %v2933, %v3334
        %v3351 = vadd.f32 %v2934, %v3335
        %v3352 = vadd.f32 %v2935, %v3336
        %v3353 = vadd.f32 %v2936, %v3337
        %v3354 = vadd.f32 %v2937, %v3338
        %v3355 = vadd.f32 %v2938, %v3339
        %s3356 = sld [smem:[#allocation2 + $0x1f]]
        %v3357 = vstv %s3356
        %v3358 = vmul.f32 %v3357, %v3210
        %v3359 = vmul.f32 %v3357, %v3215
        %v3360 = vmul.f32 %v3357, %v3220
        %v3361 = vmul.f32 %v3357, %v3225
        %v3362 = vmul.f32 %v3357, %v3230
        %v3363 = vmul.f32 %v3357, %v3235
        %v3364 = vmul.f32 %v3357, %v3240
        %v3365 = vmul.f32 %v3357, %v3245
        %v3366 = vmul.f32 %v3357, %v3250
        %v3367 = vmul.f32 %v3357, %v3255
        %v3368 = vmul.f32 %v3357, %v3260
        %v3369 = vmul.f32 %v3357, %v3265
        %v3370 = vmul.f32 %v3357, %v3270
        %v3371 = vmul.f32 %v3357, %v3275
        %v3372 = vmul.f32 %v3357, %v3280
        %v3373 = vmul.f32 %v3357, %v3285
        %v3374 = vadd.f32 %v2957, %v3358
        %v3375 = vadd.f32 %v2958, %v3359
        %v3376 = vadd.f32 %v2959, %v3360
        %v3377 = vadd.f32 %v2960, %v3361
        %v3378 = vadd.f32 %v2961, %v3362
        %v3379 = vadd.f32 %v2962, %v3363
        %v3380 = vadd.f32 %v2963, %v3364
        %v3381 = vadd.f32 %v2964, %v3365
        %v3382 = vadd.f32 %v2965, %v3366
        %v3383 = vadd.f32 %v2966, %v3367
        %v3384 = vadd.f32 %v2967, %v3368
        %v3385 = vadd.f32 %v2968, %v3369
        %v3386 = vadd.f32 %v2969, %v3370
        %v3387 = vadd.f32 %v2970, %v3371
        %v3388 = vadd.f32 %v2971, %v3372
        %v3389 = vadd.f32 %v2972, %v3373
        %s3390 = sld [smem:[#allocation2 + $0x2b]]
        %v3391 = vstv %s3390
        %v3392 = vmul.f32 %v3391, %v3210
        %v3393 = vmul.f32 %v3391, %v3215
        %v3394 = vmul.f32 %v3391, %v3220
        %v3395 = vmul.f32 %v3391, %v3225
        %v3396 = vmul.f32 %v3391, %v3230
        %v3397 = vmul.f32 %v3391, %v3235
        %v3398 = vmul.f32 %v3391, %v3240
        %v3399 = vmul.f32 %v3391, %v3245
        %v3400 = vmul.f32 %v3391, %v3250
        %v3401 = vmul.f32 %v3391, %v3255
        %v3402 = vmul.f32 %v3391, %v3260
        %v3403 = vmul.f32 %v3391, %v3265
        %v3404 = vmul.f32 %v3391, %v3270
        %v3405 = vmul.f32 %v3391, %v3275
        %v3406 = vmul.f32 %v3391, %v3280
        %v3407 = vmul.f32 %v3391, %v3285
        %v3408 = vadd.f32 %v2991, %v3392
        %v3409 = vadd.f32 %v2992, %v3393
        %v3410 = vadd.f32 %v2993, %v3394
        %v3411 = vadd.f32 %v2994, %v3395
        %v3412 = vadd.f32 %v2995, %v3396
        %v3413 = vadd.f32 %v2996, %v3397
        %v3414 = vadd.f32 %v2997, %v3398
        %v3415 = vadd.f32 %v2998, %v3399
        %v3416 = vadd.f32 %v2999, %v3400
        %v3417 = vadd.f32 %v3000, %v3401
        %v3418 = vadd.f32 %v3001, %v3402
        %v3419 = vadd.f32 %v3002, %v3403
        %v3420 = vadd.f32 %v3003, %v3404
        %v3421 = vadd.f32 %v3004, %v3405
        %v3422 = vadd.f32 %v3005, %v3406
        %v3423 = vadd.f32 %v3006, %v3407
        %s3424 = sld [smem:[#allocation2 + $0x37]]
        %v3425 = vstv %s3424
        %v3426 = vmul.f32 %v3425, %v3210
        %v3427 = vmul.f32 %v3425, %v3215
        %v3428 = vmul.f32 %v3425, %v3220
        %v3429 = vmul.f32 %v3425, %v3225
        %v3430 = vmul.f32 %v3425, %v3230
        %v3431 = vmul.f32 %v3425, %v3235
        %v3432 = vmul.f32 %v3425, %v3240
        %v3433 = vmul.f32 %v3425, %v3245
        %v3434 = vmul.f32 %v3425, %v3250
        %v3435 = vmul.f32 %v3425, %v3255
        %v3436 = vmul.f32 %v3425, %v3260
        %v3437 = vmul.f32 %v3425, %v3265
        %v3438 = vmul.f32 %v3425, %v3270
        %v3439 = vmul.f32 %v3425, %v3275
        %v3440 = vmul.f32 %v3425, %v3280
        %v3441 = vmul.f32 %v3425, %v3285
        %v3442 = vadd.f32 %v3025, %v3426
        %v3443 = vadd.f32 %v3026, %v3427
        %v3444 = vadd.f32 %v3027, %v3428
        %v3445 = vadd.f32 %v3028, %v3429
        %v3446 = vadd.f32 %v3029, %v3430
        %v3447 = vadd.f32 %v3030, %v3431
        %v3448 = vadd.f32 %v3031, %v3432
        %v3449 = vadd.f32 %v3032, %v3433
        %v3450 = vadd.f32 %v3033, %v3434
        %v3451 = vadd.f32 %v3034, %v3435
        %v3452 = vadd.f32 %v3035, %v3436
        %v3453 = vadd.f32 %v3036, %v3437
        %v3454 = vadd.f32 %v3037, %v3438
        %v3455 = vadd.f32 %v3038, %v3439
        %v3456 = vadd.f32 %v3039, %v3440
        %v3457 = vadd.f32 %v3040, %v3441
        %s3458 = sld [smem:[#allocation2 + $0x43]]
        %v3459 = vstv %s3458
        %v3460 = vmul.f32 %v3459, %v3210
        %v3461 = vmul.f32 %v3459, %v3215
        %v3462 = vmul.f32 %v3459, %v3220
        %v3463 = vmul.f32 %v3459, %v3225
        %v3464 = vmul.f32 %v3459, %v3230
        %v3465 = vmul.f32 %v3459, %v3235
        %v3466 = vmul.f32 %v3459, %v3240
        %v3467 = vmul.f32 %v3459, %v3245
        %v3468 = vmul.f32 %v3459, %v3250
        %v3469 = vmul.f32 %v3459, %v3255
        %v3470 = vmul.f32 %v3459, %v3260
        %v3471 = vmul.f32 %v3459, %v3265
        %v3472 = vmul.f32 %v3459, %v3270
        %v3473 = vmul.f32 %v3459, %v3275
        %v3474 = vmul.f32 %v3459, %v3280
        %v3475 = vmul.f32 %v3459, %v3285
        %v3476 = vadd.f32 %v3059, %v3460
        %v3477 = vadd.f32 %v3060, %v3461
        %v3478 = vadd.f32 %v3061, %v3462
        %v3479 = vadd.f32 %v3062, %v3463
        %v3480 = vadd.f32 %v3063, %v3464
        %v3481 = vadd.f32 %v3064, %v3465
        %v3482 = vadd.f32 %v3065, %v3466
        %v3483 = vadd.f32 %v3066, %v3467
        %v3484 = vadd.f32 %v3067, %v3468
        %v3485 = vadd.f32 %v3068, %v3469
        %v3486 = vadd.f32 %v3069, %v3470
        %v3487 = vadd.f32 %v3070, %v3471
        %v3488 = vadd.f32 %v3071, %v3472
        %v3489 = vadd.f32 %v3072, %v3473
        %v3490 = vadd.f32 %v3073, %v3474
        %v3491 = vadd.f32 %v3074, %v3475
        %s3492 = sld [smem:[#allocation2 + $0x4f]]
        %v3493 = vstv %s3492
        %v3494 = vmul.f32 %v3493, %v3210
        %v3495 = vmul.f32 %v3493, %v3215
        %v3496 = vmul.f32 %v3493, %v3220
        %v3497 = vmul.f32 %v3493, %v3225
        %v3498 = vmul.f32 %v3493, %v3230
        %v3499 = vmul.f32 %v3493, %v3235
        %v3500 = vmul.f32 %v3493, %v3240
        %v3501 = vmul.f32 %v3493, %v3245
        %v3502 = vmul.f32 %v3493, %v3250
        %v3503 = vmul.f32 %v3493, %v3255
        %v3504 = vmul.f32 %v3493, %v3260
        %v3505 = vmul.f32 %v3493, %v3265
        %v3506 = vmul.f32 %v3493, %v3270
        %v3507 = vmul.f32 %v3493, %v3275
        %v3508 = vmul.f32 %v3493, %v3280
        %v3509 = vmul.f32 %v3493, %v3285
        %v3510 = vadd.f32 %v3093, %v3494
        %v3511 = vadd.f32 %v3094, %v3495
        %v3512 = vadd.f32 %v3095, %v3496
        %v3513 = vadd.f32 %v3096, %v3497
        %v3514 = vadd.f32 %v3097, %v3498
        %v3515 = vadd.f32 %v3098, %v3499
        %v3516 = vadd.f32 %v3099, %v3500
        %v3517 = vadd.f32 %v3100, %v3501
        %v3518 = vadd.f32 %v3101, %v3502
        %v3519 = vadd.f32 %v3102, %v3503
        %v3520 = vadd.f32 %v3103, %v3504
        %v3521 = vadd.f32 %v3104, %v3505
        %v3522 = vadd.f32 %v3105, %v3506
        %v3523 = vadd.f32 %v3106, %v3507
        %v3524 = vadd.f32 %v3107, %v3508
        %v3525 = vadd.f32 %v3108, %v3509
        %s3526 = sld [smem:[#allocation2 + $0x5b]]
        %v3527 = vstv %s3526
        %v3528 = vmul.f32 %v3527, %v3210
        %v3529 = vmul.f32 %v3527, %v3215
        %v3530 = vmul.f32 %v3527, %v3220
        %v3531 = vmul.f32 %v3527, %v3225
        %v3532 = vmul.f32 %v3527, %v3230
        %v3533 = vmul.f32 %v3527, %v3235
        %v3534 = vmul.f32 %v3527, %v3240
        %v3535 = vmul.f32 %v3527, %v3245
        %v3536 = vmul.f32 %v3527, %v3250
        %v3537 = vmul.f32 %v3527, %v3255
        %v3538 = vmul.f32 %v3527, %v3260
        %v3539 = vmul.f32 %v3527, %v3265
        %v3540 = vmul.f32 %v3527, %v3270
        %v3541 = vmul.f32 %v3527, %v3275
        %v3542 = vmul.f32 %v3527, %v3280
        %v3543 = vmul.f32 %v3527, %v3285
        %v3544 = vadd.f32 %v3127, %v3528
        %v3545 = vadd.f32 %v3128, %v3529
        %v3546 = vadd.f32 %v3129, %v3530
        %v3547 = vadd.f32 %v3130, %v3531
        %v3548 = vadd.f32 %v3131, %v3532
        %v3549 = vadd.f32 %v3132, %v3533
        %v3550 = vadd.f32 %v3133, %v3534
        %v3551 = vadd.f32 %v3134, %v3535
        %v3552 = vadd.f32 %v3135, %v3536
        %v3553 = vadd.f32 %v3136, %v3537
        %v3554 = vadd.f32 %v3137, %v3538
        %v3555 = vadd.f32 %v3138, %v3539
        %v3556 = vadd.f32 %v3139, %v3540
        %v3557 = vadd.f32 %v3140, %v3541
        %v3558 = vadd.f32 %v3141, %v3542
        %v3559 = vadd.f32 %v3142, %v3543
        %3560 = vmatprep.subr.mxu0 0.0
        %3561 = vmatpush1.msra.mxu0 %v3210
        %3562 = vmatprep.subr.mxu0 0.0
        %3563 = vmatpush1.msra.mxu0 %v3215
        %3564 = vmatprep.subr.mxu0 0.0
        %3565 = vmatpush1.msra.mxu0 %v3220
        %3566 = vmatprep.subr.mxu0 0.0
        %3567 = vmatpush1.msra.mxu0 %v3225
        %3568 = vmatprep.subr.mxu0 0.0
        %3569 = vmatpush1.msra.mxu0 %v3230
        %3570 = vmatprep.subr.mxu0 0.0
        %3571 = vmatpush1.msra.mxu0 %v3235
        %3572 = vmatprep.subr.mxu0 0.0
        %3573 = vmatpush1.msra.mxu0 %v3240
        %3574 = vmatprep.subr.mxu0 0.0
        %3575 = vmatpush1.msra.mxu0 %v3245
        %3576 = vmatprep.subr.mxu0 0.0
        %3577 = vmatpush1.msra.mxu0 %v3250
        %3578 = vmatprep.subr.mxu0 0.0
        %3579 = vmatpush1.msra.mxu0 %v3255
        %3580 = vmatprep.subr.mxu0 0.0
        %3581 = vmatpush1.msra.mxu0 %v3260
        %3582 = vmatprep.subr.mxu0 0.0
        %3583 = vmatpush1.msra.mxu0 %v3265
        %3584 = vmatprep.subr.mxu0 0.0
        %3585 = vmatpush1.msra.mxu0 %v3270
        %3586 = vmatprep.subr.mxu0 0.0
        %3587 = vmatpush1.msra.mxu0 %v3275
        %3588 = vmatprep.subr.mxu0 0.0
        %3589 = vmatpush1.msra.mxu0 %v3280
        %3590 = vmatprep.subr.mxu0 0.0
        %3591 = vmatpush1.msra.mxu0 %v3285
        %3592 = vmatprep.subr.mxu0 0.0
        %3593 = vmatpush1.msra.mxu0 0.0
        %3594 = vmatprep.subr.mxu0 0.0
        %3595 = vmatpush1.msra.mxu0 0.0
        %3596 = vmatprep.subr.mxu0 0.0
        %3597 = vmatpush1.msra.mxu0 0.0
        %3598 = vmatprep.subr.mxu0 0.0
        %3599 = vmatpush1.msra.mxu0 0.0
        %3600 = vmatprep.subr.mxu0 0.0
        %3601 = vmatpush1.msra.mxu0 0.0
        %3602 = vmatprep.subr.mxu0 0.0
        %3603 = vmatpush1.msra.mxu0 0.0
        %3604 = vmatprep.subr.mxu0 0.0
        %3605 = vmatpush1.msra.mxu0 0.0
        %3606 = vmatprep.subr.mxu0 0.0
        %3607 = vmatpush1.msra.mxu0 0.0
        %3608 = vmatprep.subr.mxu0 0.0
        %3609 = vmatpush1.msra.mxu0 0.0
        %3610 = vmatprep.subr.mxu0 0.0
        %3611 = vmatpush1.msra.mxu0 0.0
        %3612 = vmatprep.subr.mxu0 0.0
        %3613 = vmatpush1.msra.mxu0 0.0
        %3614 = vmatprep.subr.mxu0 0.0
        %3615 = vmatpush1.msra.mxu0 0.0
        %3616 = vmatprep.subr.mxu0 0.0
        %3617 = vmatpush1.msra.mxu0 0.0
        %3618 = vmatprep.subr.mxu0 0.0
        %3619 = vmatpush1.msra.mxu0 0.0
        %3620 = vmatprep.subr.mxu0 0.0
        %3621 = vmatpush1.msra.mxu0 0.0
        %3622 = vmatprep.subr.mxu0 0.0
        %3623 = vmatpush1.msra.mxu0 0.0
        %3624 = vmatprep.mubr.f32.mxu0 0.0
        %3625 = vmatmul.mubr.f32.gmra.mrb[0].mxu0 %v505
        %v3626 = vpop.f32.mrb[0].mxu0
        %v3627 = vadd.f32 0.0, %v3626
        %v3628 = vpop.f32.mrb[0].mxu0
        %3629 = vmatprep.mubr.f32.mxu0 0.0
        %3630 = vmatmul.mubr.f32.gmra.mrb[0].mxu0 %v506
        %v3631 = vpop.f32.mrb[0].mxu0
        %v3632 = vadd.f32 0.0, %v3631
        %v3633 = vpop.f32.mrb[0].mxu0
        %3634 = vmatprep.mubr.f32.mxu0 0.0
        %3635 = vmatmul.mubr.f32.gmra.mrb[0].mxu0 %v507
        %v3636 = vpop.f32.mrb[0].mxu0
        %v3637 = vadd.f32 0.0, %v3636
        %v3638 = vpop.f32.mrb[0].mxu0
        %3639 = vmatprep.mubr.f32.mxu0 0.0
        %3640 = vmatmul.mubr.f32.gmra.mrb[0].mxu0 %v508
        %v3641 = vpop.f32.mrb[0].mxu0
        %v3642 = vadd.f32 0.0, %v3641
        %v3643 = vpop.f32.mrb[0].mxu0
        %3644 = vmatprep.mubr.f32.mxu0 0.0
        %3645 = vmatmul.mubr.f32.gmra.mrb[0].mxu0 %v509
        %v3646 = vpop.f32.mrb[0].mxu0
        %v3647 = vadd.f32 0.0, %v3646
        %v3648 = vpop.f32.mrb[0].mxu0
        %3649 = vmatprep.mubr.f32.mxu0 0.0
        %3650 = vmatmul.mubr.f32.gmra.mrb[0].mxu0 %v510
        %v3651 = vpop.f32.mrb[0].mxu0
        %v3652 = vadd.f32 0.0, %v3651
        %v3653 = vpop.f32.mrb[0].mxu0
        %3654 = vmatprep.mubr.f32.mxu0 0.0
        %3655 = vmatmul.mubr.f32.gmra.mrb[0].mxu0 %v511
        %v3656 = vpop.f32.mrb[0].mxu0
        %v3657 = vadd.f32 0.0, %v3656
        %v3658 = vpop.f32.mrb[0].mxu0
        %3659 = vmatprep.mubr.f32.mxu0 0.0
        %3660 = vmatmul.mubr.f32.gmra.mrb[0].mxu0 %v512
        %v3661 = vpop.f32.mrb[0].mxu0
        %v3662 = vadd.f32 0.0, %v3661
        %v3663 = vpop.f32.mrb[0].mxu0
        %3664 = vmatprep.mubr.f32.mxu0 0.0
        %3665 = vmatmul.mubr.f32.gmra.mrb[0].mxu0 %v513
        %v3666 = vpop.f32.mrb[0].mxu0
        %v3667 = vadd.f32 0.0, %v3666
        %v3668 = vpop.f32.mrb[0].mxu0
        %3669 = vmatprep.mubr.f32.mxu0 0.0
        %3670 = vmatmul.mubr.f32.gmra.mrb[0].mxu0 %v514
        %v3671 = vpop.f32.mrb[0].mxu0
        %v3672 = vadd.f32 0.0, %v3671
        %v3673 = vpop.f32.mrb[0].mxu0
        %3674 = vmatprep.mubr.f32.mxu0 0.0
        %3675 = vmatmul.mubr.f32.gmra.mrb[0].mxu0 %v515
        %v3676 = vpop.f32.mrb[0].mxu0
        %v3677 = vadd.f32 0.0, %v3676
        %v3678 = vpop.f32.mrb[0].mxu0
        %3679 = vmatprep.mubr.f32.mxu0 0.0
        %3680 = vmatmul.mubr.f32.gmra.mrb[0].mxu0 %v516
        %v3681 = vpop.f32.mrb[0].mxu0
        %v3682 = vadd.f32 0.0, %v3681
        %v3683 = vpop.f32.mrb[0].mxu0
        %3684 = vmatprep.mubr.f32.mxu0 0.0
        %3685 = vmatmul.mubr.f32.gmra.mrb[0].mxu0 %v517
        %v3686 = vpop.f32.mrb[0].mxu0
        %v3687 = vadd.f32 0.0, %v3686
        %v3688 = vpop.f32.mrb[0].mxu0
        %3689 = vmatprep.mubr.f32.mxu0 0.0
        %3690 = vmatmul.mubr.f32.gmra.mrb[0].mxu0 %v518
        %v3691 = vpop.f32.mrb[0].mxu0
        %v3692 = vadd.f32 0.0, %v3691
        %v3693 = vpop.f32.mrb[0].mxu0
        %3694 = vmatprep.mubr.f32.mxu0 0.0
        %3695 = vmatmul.mubr.f32.gmra.mrb[0].mxu0 %v519
        %v3696 = vpop.f32.mrb[0].mxu0
        %v3697 = vadd.f32 0.0, %v3696
        %v3698 = vpop.f32.mrb[0].mxu0
        %3699 = vmatprep.mubr.f32.mxu0 0.0
        %3700 = vmatmul.mubr.f32.gmra.mrb[0].mxu0 %v520
        %v3701 = vpop.f32.mrb[0].mxu0
        %v3702 = vadd.f32 0.0, %v3701
        %v3703 = vpop.f32.mrb[0].mxu0
        %3704 = vdwg.mxu0
        %v3705 = vmul.f32 %v3627, 2.0
        %v3706 = vmul.f32 %v3632, 2.0
        %v3707 = vmul.f32 %v3637, 2.0
        %v3708 = vmul.f32 %v3642, 2.0
        %v3709 = vmul.f32 %v3647, 2.0
        %v3710 = vmul.f32 %v3652, 2.0
        %v3711 = vmul.f32 %v3657, 2.0
        %v3712 = vmul.f32 %v3662, 2.0
        %v3713 = vmul.f32 %v3667, 2.0
        %v3714 = vmul.f32 %v3672, 2.0
        %v3715 = vmul.f32 %v3677, 2.0
        %v3716 = vmul.f32 %v3682, 2.0
        %v3717 = vmul.f32 %v3687, 2.0
        %v3718 = vmul.f32 %v3692, 2.0
        %v3719 = vmul.f32 %v3697, 2.0
        %v3720 = vmul.f32 %v3702, 2.0
        %v3721 = vsub.f32 %v3705, %v2855
        %v3722 = vsub.f32 %v3706, %v2856
        %v3723 = vsub.f32 %v3707, %v2857
        %v3724 = vsub.f32 %v3708, %v2858
        %v3725 = vsub.f32 %v3709, %v2859
        %v3726 = vsub.f32 %v3710, %v2860
        %v3727 = vsub.f32 %v3711, %v2861
        %v3728 = vsub.f32 %v3712, %v2862
        %v3729 = vsub.f32 %v3713, %v2863
        %v3730 = vsub.f32 %v3714, %v2864
        %v3731 = vsub.f32 %v3715, %v2865
        %v3732 = vsub.f32 %v3716, %v2866
        %v3733 = vsub.f32 %v3717, %v2867
        %v3734 = vsub.f32 %v3718, %v2868
        %v3735 = vsub.f32 %v3719, %v2869
        %v3736 = vsub.f32 %v3720, %v2870
        %s3737 = sld [smem:[#allocation2 + $0x8]]
        %v3738 = vstv %s3737
        %v3739 = vmul.f32 %v3738, %v3721
        %v3740 = vmul.f32 %v3738, %v3722
        %v3741 = vmul.f32 %v3738, %v3723
        %v3742 = vmul.f32 %v3738, %v3724
        %v3743 = vmul.f32 %v3738, %v3725
        %v3744 = vmul.f32 %v3738, %v3726
        %v3745 = vmul.f32 %v3738, %v3727
        %v3746 = vmul.f32 %v3738, %v3728
        %v3747 = vmul.f32 %v3738, %v3729
        %v3748 = vmul.f32 %v3738, %v3730
        %v3749 = vmul.f32 %v3738, %v3731
        %v3750 = vmul.f32 %v3738, %v3732
        %v3751 = vmul.f32 %v3738, %v3733
        %v3752 = vmul.f32 %v3738, %v3734
        %v3753 = vmul.f32 %v3738, %v3735
        %v3754 = vmul.f32 %v3738, %v3736
        %v3755 = vadd.f32 %v3306, %v3739
        %v3756 = vadd.f32 %v3307, %v3740
        %v3757 = vadd.f32 %v3308, %v3741
        %v3758 = vadd.f32 %v3309, %v3742
        %v3759 = vadd.f32 %v3310, %v3743
        %v3760 = vadd.f32 %v3311, %v3744
        %v3761 = vadd.f32 %v3312, %v3745
        %v3762 = vadd.f32 %v3313, %v3746
        %v3763 = vadd.f32 %v3314, %v3747
        %v3764 = vadd.f32 %v3315, %v3748
        %v3765 = vadd.f32 %v3316, %v3749
        %v3766 = vadd.f32 %v3317, %v3750
        %v3767 = vadd.f32 %v3318, %v3751
        %v3768 = vadd.f32 %v3319, %v3752
        %v3769 = vadd.f32 %v3320, %v3753
        %v3770 = vadd.f32 %v3321, %v3754
        %s3771 = sld [smem:[#allocation2 + $0x14]]
        %v3772 = vstv %s3771
        %v3773 = vmul.f32 %v3772, %v3721
        %v3774 = vmul.f32 %v3772, %v3722
        %v3775 = vmul.f32 %v3772, %v3723
        %v3776 = vmul.f32 %v3772, %v3724
        %v3777 = vmul.f32 %v3772, %v3725
        %v3778 = vmul.f32 %v3772, %v3726
        %v3779 = vmul.f32 %v3772, %v3727
        %v3780 = vmul.f32 %v3772, %v3728
        %v3781 = vmul.f32 %v3772, %v3729
        %v3782 = vmul.f32 %v3772, %v3730
        %v3783 = vmul.f32 %v3772, %v3731
        %v3784 = vmul.f32 %v3772, %v3732
        %v3785 = vmul.f32 %v3772, %v3733
        %v3786 = vmul.f32 %v3772, %v3734
        %v3787 = vmul.f32 %v3772, %v3735
        %v3788 = vmul.f32 %v3772, %v3736
        %v3789 = vadd.f32 %v3340, %v3773
        %v3790 = vadd.f32 %v3341, %v3774
        %v3791 = vadd.f32 %v3342, %v3775
        %v3792 = vadd.f32 %v3343, %v3776
        %v3793 = vadd.f32 %v3344, %v3777
        %v3794 = vadd.f32 %v3345, %v3778
        %v3795 = vadd.f32 %v3346, %v3779
        %v3796 = vadd.f32 %v3347, %v3780
        %v3797 = vadd.f32 %v3348, %v3781
        %v3798 = vadd.f32 %v3349, %v3782
        %v3799 = vadd.f32 %v3350, %v3783
        %v3800 = vadd.f32 %v3351, %v3784
        %v3801 = vadd.f32 %v3352, %v3785
        %v3802 = vadd.f32 %v3353, %v3786
        %v3803 = vadd.f32 %v3354, %v3787
        %v3804 = vadd.f32 %v3355, %v3788
        %s3805 = sld [smem:[#allocation2 + $0x20]]
        %v3806 = vstv %s3805
        %v3807 = vmul.f32 %v3806, %v3721
        %v3808 = vmul.f32 %v3806, %v3722
        %v3809 = vmul.f32 %v3806, %v3723
        %v3810 = vmul.f32 %v3806, %v3724
        %v3811 = vmul.f32 %v3806, %v3725
        %v3812 = vmul.f32 %v3806, %v3726
        %v3813 = vmul.f32 %v3806, %v3727
        %v3814 = vmul.f32 %v3806, %v3728
        %v3815 = vmul.f32 %v3806, %v3729
        %v3816 = vmul.f32 %v3806, %v3730
        %v3817 = vmul.f32 %v3806, %v3731
        %v3818 = vmul.f32 %v3806, %v3732
        %v3819 = vmul.f32 %v3806, %v3733
        %v3820 = vmul.f32 %v3806, %v3734
        %v3821 = vmul.f32 %v3806, %v3735
        %v3822 = vmul.f32 %v3806, %v3736
        %v3823 = vadd.f32 %v3374, %v3807
        %v3824 = vadd.f32 %v3375, %v3808
        %v3825 = vadd.f32 %v3376, %v3809
        %v3826 = vadd.f32 %v3377, %v3810
        %v3827 = vadd.f32 %v3378, %v3811
        %v3828 = vadd.f32 %v3379, %v3812
        %v3829 = vadd.f32 %v3380, %v3813
        %v3830 = vadd.f32 %v3381, %v3814
        %v3831 = vadd.f32 %v3382, %v3815
        %v3832 = vadd.f32 %v3383, %v3816
        %v3833 = vadd.f32 %v3384, %v3817
        %v3834 = vadd.f32 %v3385, %v3818
        %v3835 = vadd.f32 %v3386, %v3819
        %v3836 = vadd.f32 %v3387, %v3820
        %v3837 = vadd.f32 %v3388, %v3821
        %v3838 = vadd.f32 %v3389, %v3822
        %s3839 = sld [smem:[#allocation2 + $0x2c]]
        %v3840 = vstv %s3839
        %v3841 = vmul.f32 %v3840, %v3721
        %v3842 = vmul.f32 %v3840, %v3722
        %v3843 = vmul.f32 %v3840, %v3723
        %v3844 = vmul.f32 %v3840, %v3724
        %v3845 = vmul.f32 %v3840, %v3725
        %v3846 = vmul.f32 %v3840, %v3726
        %v3847 = vmul.f32 %v3840, %v3727
        %v3848 = vmul.f32 %v3840, %v3728
        %v3849 = vmul.f32 %v3840, %v3729
        %v3850 = vmul.f32 %v3840, %v3730
        %v3851 = vmul.f32 %v3840, %v3731
        %v3852 = vmul.f32 %v3840, %v3732
        %v3853 = vmul.f32 %v3840, %v3733
        %v3854 = vmul.f32 %v3840, %v3734
        %v3855 = vmul.f32 %v3840, %v3735
        %v3856 = vmul.f32 %v3840, %v3736
        %v3857 = vadd.f32 %v3408, %v3841
        %v3858 = vadd.f32 %v3409, %v3842
        %v3859 = vadd.f32 %v3410, %v3843
        %v3860 = vadd.f32 %v3411, %v3844
        %v3861 = vadd.f32 %v3412, %v3845
        %v3862 = vadd.f32 %v3413, %v3846
        %v3863 = vadd.f32 %v3414, %v3847
        %v3864 = vadd.f32 %v3415, %v3848
        %v3865 = vadd.f32 %v3416, %v3849
        %v3866 = vadd.f32 %v3417, %v3850
        %v3867 = vadd.f32 %v3418, %v3851
        %v3868 = vadd.f32 %v3419, %v3852
        %v3869 = vadd.f32 %v3420, %v3853
        %v3870 = vadd.f32 %v3421, %v3854
        %v3871 = vadd.f32 %v3422, %v3855
        %v3872 = vadd.f32 %v3423, %v3856
        %s3873 = sld [smem:[#allocation2 + $0x38]]
        %v3874 = vstv %s3873
        %v3875 = vmul.f32 %v3874, %v3721
        %v3876 = vmul.f32 %v3874, %v3722
        %v3877 = vmul.f32 %v3874, %v3723
        %v3878 = vmul.f32 %v3874, %v3724
        %v3879 = vmul.f32 %v3874, %v3725
        %v3880 = vmul.f32 %v3874, %v3726
        %v3881 = vmul.f32 %v3874, %v3727
        %v3882 = vmul.f32 %v3874, %v3728
        %v3883 = vmul.f32 %v3874, %v3729
        %v3884 = vmul.f32 %v3874, %v3730
        %v3885 = vmul.f32 %v3874, %v3731
        %v3886 = vmul.f32 %v3874, %v3732
        %v3887 = vmul.f32 %v3874, %v3733
        %v3888 = vmul.f32 %v3874, %v3734
        %v3889 = vmul.f32 %v3874, %v3735
        %v3890 = vmul.f32 %v3874, %v3736
        %v3891 = vadd.f32 %v3442, %v3875
        %v3892 = vadd.f32 %v3443, %v3876
        %v3893 = vadd.f32 %v3444, %v3877
        %v3894 = vadd.f32 %v3445, %v3878
        %v3895 = vadd.f32 %v3446, %v3879
        %v3896 = vadd.f32 %v3447, %v3880
        %v3897 = vadd.f32 %v3448, %v3881
        %v3898 = vadd.f32 %v3449, %v3882
        %v3899 = vadd.f32 %v3450, %v3883
        %v3900 = vadd.f32 %v3451, %v3884
        %v3901 = vadd.f32 %v3452, %v3885
        %v3902 = vadd.f32 %v3453, %v3886
        %v3903 = vadd.f32 %v3454, %v3887
        %v3904 = vadd.f32 %v3455, %v3888
        %v3905 = vadd.f32 %v3456, %v3889
        %v3906 = vadd.f32 %v3457, %v3890
        %s3907 = sld [smem:[#allocation2 + $0x44]]
        %v3908 = vstv %s3907
        %v3909 = vmul.f32 %v3908, %v3721
        %v3910 = vmul.f32 %v3908, %v3722
        %v3911 = vmul.f32 %v3908, %v3723
        %v3912 = vmul.f32 %v3908, %v3724
        %v3913 = vmul.f32 %v3908, %v3725
        %v3914 = vmul.f32 %v3908, %v3726
        %v3915 = vmul.f32 %v3908, %v3727
        %v3916 = vmul.f32 %v3908, %v3728
        %v3917 = vmul.f32 %v3908, %v3729
        %v3918 = vmul.f32 %v3908, %v3730
        %v3919 = vmul.f32 %v3908, %v3731
        %v3920 = vmul.f32 %v3908, %v3732
        %v3921 = vmul.f32 %v3908, %v3733
        %v3922 = vmul.f32 %v3908, %v3734
        %v3923 = vmul.f32 %v3908, %v3735
        %v3924 = vmul.f32 %v3908, %v3736
        %v3925 = vadd.f32 %v3476, %v3909
        %v3926 = vadd.f32 %v3477, %v3910
        %v3927 = vadd.f32 %v3478, %v3911
        %v3928 = vadd.f32 %v3479, %v3912
        %v3929 = vadd.f32 %v3480, %v3913
        %v3930 = vadd.f32 %v3481, %v3914
        %v3931 = vadd.f32 %v3482, %v3915
        %v3932 = vadd.f32 %v3483, %v3916
        %v3933 = vadd.f32 %v3484, %v3917
        %v3934 = vadd.f32 %v3485, %v3918
        %v3935 = vadd.f32 %v3486, %v3919
        %v3936 = vadd.f32 %v3487, %v3920
        %v3937 = vadd.f32 %v3488, %v3921
        %v3938 = vadd.f32 %v3489, %v3922
        %v3939 = vadd.f32 %v3490, %v3923
        %v3940 = vadd.f32 %v3491, %v3924
        %s3941 = sld [smem:[#allocation2 + $0x50]]
        %v3942 = vstv %s3941
        %v3943 = vmul.f32 %v3942, %v3721
        %v3944 = vmul.f32 %v3942, %v3722
        %v3945 = vmul.f32 %v3942, %v3723
        %v3946 = vmul.f32 %v3942, %v3724
        %v3947 = vmul.f32 %v3942, %v3725
        %v3948 = vmul.f32 %v3942, %v3726
        %v3949 = vmul.f32 %v3942, %v3727
        %v3950 = vmul.f32 %v3942, %v3728
        %v3951 = vmul.f32 %v3942, %v3729
        %v3952 = vmul.f32 %v3942, %v3730
        %v3953 = vmul.f32 %v3942, %v3731
        %v3954 = vmul.f32 %v3942, %v3732
        %v3955 = vmul.f32 %v3942, %v3733
        %v3956 = vmul.f32 %v3942, %v3734
        %v3957 = vmul.f32 %v3942, %v3735
        %v3958 = vmul.f32 %v3942, %v3736
        %v3959 = vadd.f32 %v3510, %v3943
        %v3960 = vadd.f32 %v3511, %v3944
        %v3961 = vadd.f32 %v3512, %v3945
        %v3962 = vadd.f32 %v3513, %v3946
        %v3963 = vadd.f32 %v3514, %v3947
        %v3964 = vadd.f32 %v3515, %v3948
        %v3965 = vadd.f32 %v3516, %v3949
        %v3966 = vadd.f32 %v3517, %v3950
        %v3967 = vadd.f32 %v3518, %v3951
        %v3968 = vadd.f32 %v3519, %v3952
        %v3969 = vadd.f32 %v3520, %v3953
        %v3970 = vadd.f32 %v3521, %v3954
        %v3971 = vadd.f32 %v3522, %v3955
        %v3972 = vadd.f32 %v3523, %v3956
        %v3973 = vadd.f32 %v3524, %v3957
        %v3974 = vadd.f32 %v3525, %v3958
        %s3975 = sld [smem:[#allocation2 + $0x5c]]
        %v3976 = vstv %s3975
        %v3977 = vmul.f32 %v3976, %v3721
        %v3978 = vmul.f32 %v3976, %v3722
        %v3979 = vmul.f32 %v3976, %v3723
        %v3980 = vmul.f32 %v3976, %v3724
        %v3981 = vmul.f32 %v3976, %v3725
        %v3982 = vmul.f32 %v3976, %v3726
        %v3983 = vmul.f32 %v3976, %v3727
        %v3984 = vmul.f32 %v3976, %v3728
        %v3985 = vmul.f32 %v3976, %v3729
        %v3986 = vmul.f32 %v3976, %v3730
        %v3987 = vmul.f32 %v3976, %v3731
        %v3988 = vmul.f32 %v3976, %v3732
        %v3989 = vmul.f32 %v3976, %v3733
        %v3990 = vmul.f32 %v3976, %v3734
        %v3991 = vmul.f32 %v3976, %v3735
        %v3992 = vmul.f32 %v3976, %v3736
        %v3993 = vadd.f32 %v3544, %v3977
        %v3994 = vadd.f32 %v3545, %v3978
        %v3995 = vadd.f32 %v3546, %v3979
        %v3996 = vadd.f32 %v3547, %v3980
        %v3997 = vadd.f32 %v3548, %v3981
        %v3998 = vadd.f32 %v3549, %v3982
        %v3999 = vadd.f32 %v3550, %v3983
        %v4000 = vadd.f32 %v3551, %v3984
        %v4001 = vadd.f32 %v3552, %v3985
        %v4002 = vadd.f32 %v3553, %v3986
        %v4003 = vadd.f32 %v3554, %v3987
        %v4004 = vadd.f32 %v3555, %v3988
        %v4005 = vadd.f32 %v3556, %v3989
        %v4006 = vadd.f32 %v3557, %v3990
        %v4007 = vadd.f32 %v3558, %v3991
        %v4008 = vadd.f32 %v3559, %v3992
        %s4009 = scalar_lea.vmem %s482, 384 [#allocation6]
        %v4010 = vld [vmem:[%s4009] sm:$0xff]
        %v4011 = vld [vmem:[%s4009 + $0x8] sm:$0xff]
        %v4012 = vld [vmem:[%s4009 + $0x10] sm:$0xff]
        %v4013 = vld [vmem:[%s4009 + $0x18] sm:$0xff]
        %v4014 = vld [vmem:[%s4009 + $0x20] sm:$0xff]
        %v4015 = vld [vmem:[%s4009 + $0x28] sm:$0xff]
        %v4016 = vld [vmem:[%s4009 + $0x30] sm:$0xff]
        %v4017 = vld [vmem:[%s4009 + $0x38] sm:$0xff]
        %v4018 = vld [vmem:[%s4009 + $0x40] sm:$0xff]
        %v4019 = vld [vmem:[%s4009 + $0x48] sm:$0xff]
        %v4020 = vld [vmem:[%s4009 + $0x50] sm:$0xff]
        %v4021 = vld [vmem:[%s4009 + $0x58] sm:$0xff]
        %v4022 = vld [vmem:[%s4009 + $0x60] sm:$0xff]
        %v4023 = vld [vmem:[%s4009 + $0x68] sm:$0xff]
        %v4024 = vld [vmem:[%s4009 + $0x70] sm:$0xff]
        %v4025 = vld [vmem:[%s4009 + $0x78] sm:$0xff]
        %s4026 = sld [smem:[#allocation2 + $0x9]]
        %v4027 = vstv %s4026
        %v4028 = vmul.f32 %v4027, %v4010
        %v4029 = vmul.f32 %v4027, %v4011
        %v4030 = vmul.f32 %v4027, %v4012
        %v4031 = vmul.f32 %v4027, %v4013
        %v4032 = vmul.f32 %v4027, %v4014
        %v4033 = vmul.f32 %v4027, %v4015
        %v4034 = vmul.f32 %v4027, %v4016
        %v4035 = vmul.f32 %v4027, %v4017
        %v4036 = vmul.f32 %v4027, %v4018
        %v4037 = vmul.f32 %v4027, %v4019
        %v4038 = vmul.f32 %v4027, %v4020
        %v4039 = vmul.f32 %v4027, %v4021
        %v4040 = vmul.f32 %v4027, %v4022
        %v4041 = vmul.f32 %v4027, %v4023
        %v4042 = vmul.f32 %v4027, %v4024
        %v4043 = vmul.f32 %v4027, %v4025
        %v4044 = vadd.f32 %v3755, %v4028
        %v4045 = vadd.f32 %v3756, %v4029
        %v4046 = vadd.f32 %v3757, %v4030
        %v4047 = vadd.f32 %v3758, %v4031
        %v4048 = vadd.f32 %v3759, %v4032
        %v4049 = vadd.f32 %v3760, %v4033
        %v4050 = vadd.f32 %v3761, %v4034
        %v4051 = vadd.f32 %v3762, %v4035
        %v4052 = vadd.f32 %v3763, %v4036
        %v4053 = vadd.f32 %v3764, %v4037
        %v4054 = vadd.f32 %v3765, %v4038
        %v4055 = vadd.f32 %v3766, %v4039
        %v4056 = vadd.f32 %v3767, %v4040
        %v4057 = vadd.f32 %v3768, %v4041
        %v4058 = vadd.f32 %v3769, %v4042
        %v4059 = vadd.f32 %v3770, %v4043
        %s4060 = sld [smem:[#allocation2 + $0x15]]
        %v4061 = vstv %s4060
        %v4062 = vmul.f32 %v4061, %v4010
        %v4063 = vmul.f32 %v4061, %v4011
        %v4064 = vmul.f32 %v4061, %v4012
        %v4065 = vmul.f32 %v4061, %v4013
        %v4066 = vmul.f32 %v4061, %v4014
        %v4067 = vmul.f32 %v4061, %v4015
        %v4068 = vmul.f32 %v4061, %v4016
        %v4069 = vmul.f32 %v4061, %v4017
        %v4070 = vmul.f32 %v4061, %v4018
        %v4071 = vmul.f32 %v4061, %v4019
        %v4072 = vmul.f32 %v4061, %v4020
        %v4073 = vmul.f32 %v4061, %v4021
        %v4074 = vmul.f32 %v4061, %v4022
        %v4075 = vmul.f32 %v4061, %v4023
        %v4076 = vmul.f32 %v4061, %v4024
        %v4077 = vmul.f32 %v4061, %v4025
        %v4078 = vadd.f32 %v3789, %v4062
        %v4079 = vadd.f32 %v3790, %v4063
        %v4080 = vadd.f32 %v3791, %v4064
        %v4081 = vadd.f32 %v3792, %v4065
        %v4082 = vadd.f32 %v3793, %v4066
        %v4083 = vadd.f32 %v3794, %v4067
        %v4084 = vadd.f32 %v3795, %v4068
        %v4085 = vadd.f32 %v3796, %v4069
        %v4086 = vadd.f32 %v3797, %v4070
        %v4087 = vadd.f32 %v3798, %v4071
        %v4088 = vadd.f32 %v3799, %v4072
        %v4089 = vadd.f32 %v3800, %v4073
        %v4090 = vadd.f32 %v3801, %v4074
        %v4091 = vadd.f32 %v3802, %v4075
        %v4092 = vadd.f32 %v3803, %v4076
        %v4093 = vadd.f32 %v3804, %v4077
        %s4094 = sld [smem:[#allocation2 + $0x21]]
        %v4095 = vstv %s4094
        %v4096 = vmul.f32 %v4095, %v4010
        %v4097 = vmul.f32 %v4095, %v4011
        %v4098 = vmul.f32 %v4095, %v4012
        %v4099 = vmul.f32 %v4095, %v4013
        %v4100 = vmul.f32 %v4095, %v4014
        %v4101 = vmul.f32 %v4095, %v4015
        %v4102 = vmul.f32 %v4095, %v4016
        %v4103 = vmul.f32 %v4095, %v4017
        %v4104 = vmul.f32 %v4095, %v4018
        %v4105 = vmul.f32 %v4095, %v4019
        %v4106 = vmul.f32 %v4095, %v4020
        %v4107 = vmul.f32 %v4095, %v4021
        %v4108 = vmul.f32 %v4095, %v4022
        %v4109 = vmul.f32 %v4095, %v4023
        %v4110 = vmul.f32 %v4095, %v4024
        %v4111 = vmul.f32 %v4095, %v4025
        %v4112 = vadd.f32 %v3823, %v4096
        %v4113 = vadd.f32 %v3824, %v4097
        %v4114 = vadd.f32 %v3825, %v4098
        %v4115 = vadd.f32 %v3826, %v4099
        %v4116 = vadd.f32 %v3827, %v4100
        %v4117 = vadd.f32 %v3828, %v4101
        %v4118 = vadd.f32 %v3829, %v4102
        %v4119 = vadd.f32 %v3830, %v4103
        %v4120 = vadd.f32 %v3831, %v4104
        %v4121 = vadd.f32 %v3832, %v4105
        %v4122 = vadd.f32 %v3833, %v4106
        %v4123 = vadd.f32 %v3834, %v4107
        %v4124 = vadd.f32 %v3835, %v4108
        %v4125 = vadd.f32 %v3836, %v4109
        %v4126 = vadd.f32 %v3837, %v4110
        %v4127 = vadd.f32 %v3838, %v4111
        %s4128 = sld [smem:[#allocation2 + $0x2d]]
        %v4129 = vstv %s4128
        %v4130 = vmul.f32 %v4129, %v4010
        %v4131 = vmul.f32 %v4129, %v4011
        %v4132 = vmul.f32 %v4129, %v4012
        %v4133 = vmul.f32 %v4129, %v4013
        %v4134 = vmul.f32 %v4129, %v4014
        %v4135 = vmul.f32 %v4129, %v4015
        %v4136 = vmul.f32 %v4129, %v4016
        %v4137 = vmul.f32 %v4129, %v4017
        %v4138 = vmul.f32 %v4129, %v4018
        %v4139 = vmul.f32 %v4129, %v4019
        %v4140 = vmul.f32 %v4129, %v4020
        %v4141 = vmul.f32 %v4129, %v4021
        %v4142 = vmul.f32 %v4129, %v4022
        %v4143 = vmul.f32 %v4129, %v4023
        %v4144 = vmul.f32 %v4129, %v4024
        %v4145 = vmul.f32 %v4129, %v4025
        %v4146 = vadd.f32 %v3857, %v4130
        %v4147 = vadd.f32 %v3858, %v4131
        %v4148 = vadd.f32 %v3859, %v4132
        %v4149 = vadd.f32 %v3860, %v4133
        %v4150 = vadd.f32 %v3861, %v4134
        %v4151 = vadd.f32 %v3862, %v4135
        %v4152 = vadd.f32 %v3863, %v4136
        %v4153 = vadd.f32 %v3864, %v4137
        %v4154 = vadd.f32 %v3865, %v4138
        %v4155 = vadd.f32 %v3866, %v4139
        %v4156 = vadd.f32 %v3867, %v4140
        %v4157 = vadd.f32 %v3868, %v4141
        %v4158 = vadd.f32 %v3869, %v4142
        %v4159 = vadd.f32 %v3870, %v4143
        %v4160 = vadd.f32 %v3871, %v4144
        %v4161 = vadd.f32 %v3872, %v4145
        %s4162 = sld [smem:[#allocation2 + $0x39]]
        %v4163 = vstv %s4162
        %v4164 = vmul.f32 %v4163, %v4010
        %v4165 = vmul.f32 %v4163, %v4011
        %v4166 = vmul.f32 %v4163, %v4012
        %v4167 = vmul.f32 %v4163, %v4013
        %v4168 = vmul.f32 %v4163, %v4014
        %v4169 = vmul.f32 %v4163, %v4015
        %v4170 = vmul.f32 %v4163, %v4016
        %v4171 = vmul.f32 %v4163, %v4017
        %v4172 = vmul.f32 %v4163, %v4018
        %v4173 = vmul.f32 %v4163, %v4019
        %v4174 = vmul.f32 %v4163, %v4020
        %v4175 = vmul.f32 %v4163, %v4021
        %v4176 = vmul.f32 %v4163, %v4022
        %v4177 = vmul.f32 %v4163, %v4023
        %v4178 = vmul.f32 %v4163, %v4024
        %v4179 = vmul.f32 %v4163, %v4025
        %v4180 = vadd.f32 %v3891, %v4164
        %v4181 = vadd.f32 %v3892, %v4165
        %v4182 = vadd.f32 %v3893, %v4166
        %v4183 = vadd.f32 %v3894, %v4167
        %v4184 = vadd.f32 %v3895, %v4168
        %v4185 = vadd.f32 %v3896, %v4169
        %v4186 = vadd.f32 %v3897, %v4170
        %v4187 = vadd.f32 %v3898, %v4171
        %v4188 = vadd.f32 %v3899, %v4172
        %v4189 = vadd.f32 %v3900, %v4173
        %v4190 = vadd.f32 %v3901, %v4174
        %v4191 = vadd.f32 %v3902, %v4175
        %v4192 = vadd.f32 %v3903, %v4176
        %v4193 = vadd.f32 %v3904, %v4177
        %v4194 = vadd.f32 %v3905, %v4178
        %v4195 = vadd.f32 %v3906, %v4179
        %s4196 = sld [smem:[#allocation2 + $0x45]]
        %v4197 = vstv %s4196
        %v4198 = vmul.f32 %v4197, %v4010
        %v4199 = vmul.f32 %v4197, %v4011
        %v4200 = vmul.f32 %v4197, %v4012
        %v4201 = vmul.f32 %v4197, %v4013
        %v4202 = vmul.f32 %v4197, %v4014
        %v4203 = vmul.f32 %v4197, %v4015
        %v4204 = vmul.f32 %v4197, %v4016
        %v4205 = vmul.f32 %v4197, %v4017
        %v4206 = vmul.f32 %v4197, %v4018
        %v4207 = vmul.f32 %v4197, %v4019
        %v4208 = vmul.f32 %v4197, %v4020
        %v4209 = vmul.f32 %v4197, %v4021
        %v4210 = vmul.f32 %v4197, %v4022
        %v4211 = vmul.f32 %v4197, %v4023
        %v4212 = vmul.f32 %v4197, %v4024
        %v4213 = vmul.f32 %v4197, %v4025
        %v4214 = vadd.f32 %v3925, %v4198
        %v4215 = vadd.f32 %v3926, %v4199
        %v4216 = vadd.f32 %v3927, %v4200
        %v4217 = vadd.f32 %v3928, %v4201
        %v4218 = vadd.f32 %v3929, %v4202
        %v4219 = vadd.f32 %v3930, %v4203
        %v4220 = vadd.f32 %v3931, %v4204
        %v4221 = vadd.f32 %v3932, %v4205
        %v4222 = vadd.f32 %v3933, %v4206
        %v4223 = vadd.f32 %v3934, %v4207
        %v4224 = vadd.f32 %v3935, %v4208
        %v4225 = vadd.f32 %v3936, %v4209
        %v4226 = vadd.f32 %v3937, %v4210
        %v4227 = vadd.f32 %v3938, %v4211
        %v4228 = vadd.f32 %v3939, %v4212
        %v4229 = vadd.f32 %v3940, %v4213
        %s4230 = sld [smem:[#allocation2 + $0x51]]
        %v4231 = vstv %s4230
        %v4232 = vmul.f32 %v4231, %v4010
        %v4233 = vmul.f32 %v4231, %v4011
        %v4234 = vmul.f32 %v4231, %v4012
        %v4235 = vmul.f32 %v4231, %v4013
        %v4236 = vmul.f32 %v4231, %v4014
        %v4237 = vmul.f32 %v4231, %v4015
        %v4238 = vmul.f32 %v4231, %v4016
        %v4239 = vmul.f32 %v4231, %v4017
        %v4240 = vmul.f32 %v4231, %v4018
        %v4241 = vmul.f32 %v4231, %v4019
        %v4242 = vmul.f32 %v4231, %v4020
        %v4243 = vmul.f32 %v4231, %v4021
        %v4244 = vmul.f32 %v4231, %v4022
        %v4245 = vmul.f32 %v4231, %v4023
        %v4246 = vmul.f32 %v4231, %v4024
        %v4247 = vmul.f32 %v4231, %v4025
        %v4248 = vadd.f32 %v3959, %v4232
        %v4249 = vadd.f32 %v3960, %v4233
        %v4250 = vadd.f32 %v3961, %v4234
        %v4251 = vadd.f32 %v3962, %v4235
        %v4252 = vadd.f32 %v3963, %v4236
        %v4253 = vadd.f32 %v3964, %v4237
        %v4254 = vadd.f32 %v3965, %v4238
        %v4255 = vadd.f32 %v3966, %v4239
        %v4256 = vadd.f32 %v3967, %v4240
        %v4257 = vadd.f32 %v3968, %v4241
        %v4258 = vadd.f32 %v3969, %v4242
        %v4259 = vadd.f32 %v3970, %v4243
        %v4260 = vadd.f32 %v3971, %v4244
        %v4261 = vadd.f32 %v3972, %v4245
        %v4262 = vadd.f32 %v3973, %v4246
        %v4263 = vadd.f32 %v3974, %v4247
        %s4264 = sld [smem:[#allocation2 + $0x5d]]
        %v4265 = vstv %s4264
        %v4266 = vmul.f32 %v4265, %v4010
        %v4267 = vmul.f32 %v4265, %v4011
        %v4268 = vmul.f32 %v4265, %v4012
        %v4269 = vmul.f32 %v4265, %v4013
        %v4270 = vmul.f32 %v4265, %v4014
        %v4271 = vmul.f32 %v4265, %v4015
        %v4272 = vmul.f32 %v4265, %v4016
        %v4273 = vmul.f32 %v4265, %v4017
        %v4274 = vmul.f32 %v4265, %v4018
        %v4275 = vmul.f32 %v4265, %v4019
        %v4276 = vmul.f32 %v4265, %v4020
        %v4277 = vmul.f32 %v4265, %v4021
        %v4278 = vmul.f32 %v4265, %v4022
        %v4279 = vmul.f32 %v4265, %v4023
        %v4280 = vmul.f32 %v4265, %v4024
        %v4281 = vmul.f32 %v4265, %v4025
        %v4282 = vadd.f32 %v3993, %v4266
        %v4283 = vadd.f32 %v3994, %v4267
        %v4284 = vadd.f32 %v3995, %v4268
        %v4285 = vadd.f32 %v3996, %v4269
        %v4286 = vadd.f32 %v3997, %v4270
        %v4287 = vadd.f32 %v3998, %v4271
        %v4288 = vadd.f32 %v3999, %v4272
        %v4289 = vadd.f32 %v4000, %v4273
        %v4290 = vadd.f32 %v4001, %v4274
        %v4291 = vadd.f32 %v4002, %v4275
        %v4292 = vadd.f32 %v4003, %v4276
        %v4293 = vadd.f32 %v4004, %v4277
        %v4294 = vadd.f32 %v4005, %v4278
        %v4295 = vadd.f32 %v4006, %v4279
        %v4296 = vadd.f32 %v4007, %v4280
        %v4297 = vadd.f32 %v4008, %v4281
        %4298 = vmatprep.subr.mxu0 0.0
        %4299 = vmatpush1.msra.mxu0 %v4010
        %4300 = vmatprep.subr.mxu0 0.0
        %4301 = vmatpush1.msra.mxu0 %v4011
        %4302 = vmatprep.subr.mxu0 0.0
        %4303 = vmatpush1.msra.mxu0 %v4012
        %4304 = vmatprep.subr.mxu0 0.0
        %4305 = vmatpush1.msra.mxu0 %v4013
        %4306 = vmatprep.subr.mxu0 0.0
        %4307 = vmatpush1.msra.mxu0 %v4014
        %4308 = vmatprep.subr.mxu0 0.0
        %4309 = vmatpush1.msra.mxu0 %v4015
        %4310 = vmatprep.subr.mxu0 0.0
        %4311 = vmatpush1.msra.mxu0 %v4016
        %4312 = vmatprep.subr.mxu0 0.0
        %4313 = vmatpush1.msra.mxu0 %v4017
        %4314 = vmatprep.subr.mxu0 0.0
        %4315 = vmatpush1.msra.mxu0 %v4018
        %4316 = vmatprep.subr.mxu0 0.0
        %4317 = vmatpush1.msra.mxu0 %v4019
        %4318 = vmatprep.subr.mxu0 0.0
        %4319 = vmatpush1.msra.mxu0 %v4020
        %4320 = vmatprep.subr.mxu0 0.0
        %4321 = vmatpush1.msra.mxu0 %v4021
        %4322 = vmatprep.subr.mxu0 0.0
        %4323 = vmatpush1.msra.mxu0 %v4022
        %4324 = vmatprep.subr.mxu0 0.0
        %4325 = vmatpush1.msra.mxu0 %v4023
        %4326 = vmatprep.subr.mxu0 0.0
        %4327 = vmatpush1.msra.mxu0 %v4024
        %4328 = vmatprep.subr.mxu0 0.0
        %4329 = vmatpush1.msra.mxu0 %v4025
        %4330 = vmatprep.subr.mxu0 0.0
        %4331 = vmatpush1.msra.mxu0 0.0
        %4332 = vmatprep.subr.mxu0 0.0
        %4333 = vmatpush1.msra.mxu0 0.0
        %4334 = vmatprep.subr.mxu0 0.0
        %4335 = vmatpush1.msra.mxu0 0.0
        %4336 = vmatprep.subr.mxu0 0.0
        %4337 = vmatpush1.msra.mxu0 0.0
        %4338 = vmatprep.subr.mxu0 0.0
        %4339 = vmatpush1.msra.mxu0 0.0
        %4340 = vmatprep.subr.mxu0 0.0
        %4341 = vmatpush1.msra.mxu0 0.0
        %4342 = vmatprep.subr.mxu0 0.0
        %4343 = vmatpush1.msra.mxu0 0.0
        %4344 = vmatprep.subr.mxu0 0.0
        %4345 = vmatpush1.msra.mxu0 0.0
        %4346 = vmatprep.subr.mxu0 0.0
        %4347 = vmatpush1.msra.mxu0 0.0
        %4348 = vmatprep.subr.mxu0 0.0
        %4349 = vmatpush1.msra.mxu0 0.0
        %4350 = vmatprep.subr.mxu0 0.0
        %4351 = vmatpush1.msra.mxu0 0.0
        %4352 = vmatprep.subr.mxu0 0.0
        %4353 = vmatpush1.msra.mxu0 0.0
        %4354 = vmatprep.subr.mxu0 0.0
        %4355 = vmatpush1.msra.mxu0 0.0
        %4356 = vmatprep.subr.mxu0 0.0
        %4357 = vmatpush1.msra.mxu0 0.0
        %4358 = vmatprep.subr.mxu0 0.0
        %4359 = vmatpush1.msra.mxu0 0.0
        %4360 = vmatprep.subr.mxu0 0.0
        %4361 = vmatpush1.msra.mxu0 0.0
        %4362 = vmatprep.mubr.f32.mxu0 0.0
        %4363 = vmatmul.mubr.f32.gmra.mrb[0].mxu0 %v505
        %v4364 = vpop.f32.mrb[0].mxu0
        %v4365 = vadd.f32 0.0, %v4364
        %v4366 = vpop.f32.mrb[0].mxu0
        %4367 = vmatprep.mubr.f32.mxu0 0.0
        %4368 = vmatmul.mubr.f32.gmra.mrb[0].mxu0 %v506
        %v4369 = vpop.f32.mrb[0].mxu0
        %v4370 = vadd.f32 0.0, %v4369
        %v4371 = vpop.f32.mrb[0].mxu0
        %4372 = vmatprep.mubr.f32.mxu0 0.0
        %4373 = vmatmul.mubr.f32.gmra.mrb[0].mxu0 %v507
        %v4374 = vpop.f32.mrb[0].mxu0
        %v4375 = vadd.f32 0.0, %v4374
        %v4376 = vpop.f32.mrb[0].mxu0
        %4377 = vmatprep.mubr.f32.mxu0 0.0
        %4378 = vmatmul.mubr.f32.gmra.mrb[0].mxu0 %v508
        %v4379 = vpop.f32.mrb[0].mxu0
        %v4380 = vadd.f32 0.0, %v4379
        %v4381 = vpop.f32.mrb[0].mxu0
        %4382 = vmatprep.mubr.f32.mxu0 0.0
        %4383 = vmatmul.mubr.f32.gmra.mrb[0].mxu0 %v509
        %v4384 = vpop.f32.mrb[0].mxu0
        %v4385 = vadd.f32 0.0, %v4384
        %v4386 = vpop.f32.mrb[0].mxu0
        %4387 = vmatprep.mubr.f32.mxu0 0.0
        %4388 = vmatmul.mubr.f32.gmra.mrb[0].mxu0 %v510
        %v4389 = vpop.f32.mrb[0].mxu0
        %v4390 = vadd.f32 0.0, %v4389
        %v4391 = vpop.f32.mrb[0].mxu0
        %4392 = vmatprep.mubr.f32.mxu0 0.0
        %4393 = vmatmul.mubr.f32.gmra.mrb[0].mxu0 %v511
        %v4394 = vpop.f32.mrb[0].mxu0
        %v4395 = vadd.f32 0.0, %v4394
        %v4396 = vpop.f32.mrb[0].mxu0
        %4397 = vmatprep.mubr.f32.mxu0 0.0
        %4398 = vmatmul.mubr.f32.gmra.mrb[0].mxu0 %v512
        %v4399 = vpop.f32.mrb[0].mxu0
        %v4400 = vadd.f32 0.0, %v4399
        %v4401 = vpop.f32.mrb[0].mxu0
        %4402 = vmatprep.mubr.f32.mxu0 0.0
        %4403 = vmatmul.mubr.f32.gmra.mrb[0].mxu0 %v513
        %v4404 = vpop.f32.mrb[0].mxu0
        %v4405 = vadd.f32 0.0, %v4404
        %v4406 = vpop.f32.mrb[0].mxu0
        %4407 = vmatprep.mubr.f32.mxu0 0.0
        %4408 = vmatmul.mubr.f32.gmra.mrb[0].mxu0 %v514
        %v4409 = vpop.f32.mrb[0].mxu0
        %v4410 = vadd.f32 0.0, %v4409
        %v4411 = vpop.f32.mrb[0].mxu0
        %4412 = vmatprep.mubr.f32.mxu0 0.0
        %4413 = vmatmul.mubr.f32.gmra.mrb[0].mxu0 %v515
        %v4414 = vpop.f32.mrb[0].mxu0
        %v4415 = vadd.f32 0.0, %v4414
        %v4416 = vpop.f32.mrb[0].mxu0
        %4417 = vmatprep.mubr.f32.mxu0 0.0
        %4418 = vmatmul.mubr.f32.gmra.mrb[0].mxu0 %v516
        %v4419 = vpop.f32.mrb[0].mxu0
        %v4420 = vadd.f32 0.0, %v4419
        %v4421 = vpop.f32.mrb[0].mxu0
        %4422 = vmatprep.mubr.f32.mxu0 0.0
        %4423 = vmatmul.mubr.f32.gmra.mrb[0].mxu0 %v517
        %v4424 = vpop.f32.mrb[0].mxu0
        %v4425 = vadd.f32 0.0, %v4424
        %v4426 = vpop.f32.mrb[0].mxu0
        %4427 = vmatprep.mubr.f32.mxu0 0.0
        %4428 = vmatmul.mubr.f32.gmra.mrb[0].mxu0 %v518
        %v4429 = vpop.f32.mrb[0].mxu0
        %v4430 = vadd.f32 0.0, %v4429
        %v4431 = vpop.f32.mrb[0].mxu0
        %4432 = vmatprep.mubr.f32.mxu0 0.0
        %4433 = vmatmul.mubr.f32.gmra.mrb[0].mxu0 %v519
        %v4434 = vpop.f32.mrb[0].mxu0
        %v4435 = vadd.f32 0.0, %v4434
        %v4436 = vpop.f32.mrb[0].mxu0
        %4437 = vmatprep.mubr.f32.mxu0 0.0
        %4438 = vmatmul.mubr.f32.gmra.mrb[0].mxu0 %v520
        %v4439 = vpop.f32.mrb[0].mxu0
        %v4440 = vadd.f32 0.0, %v4439
        %v4441 = vpop.f32.mrb[0].mxu0
        %4442 = vdwg.mxu0
        %s4443 = sld [smem:[#allocation2 + $0xa]]
        %v4444 = vstv %s4443
        %v4445 = vmul.f32 %v4444, %v4365
        %v4446 = vmul.f32 %v4444, %v4370
        %v4447 = vmul.f32 %v4444, %v4375
        %v4448 = vmul.f32 %v4444, %v4380
        %v4449 = vmul.f32 %v4444, %v4385
        %v4450 = vmul.f32 %v4444, %v4390
        %v4451 = vmul.f32 %v4444, %v4395
        %v4452 = vmul.f32 %v4444, %v4400
        %v4453 = vmul.f32 %v4444, %v4405
        %v4454 = vmul.f32 %v4444, %v4410
        %v4455 = vmul.f32 %v4444, %v4415
        %v4456 = vmul.f32 %v4444, %v4420
        %v4457 = vmul.f32 %v4444, %v4425
        %v4458 = vmul.f32 %v4444, %v4430
        %v4459 = vmul.f32 %v4444, %v4435
        %v4460 = vmul.f32 %v4444, %v4440
        %v4461 = vadd.f32 %v4044, %v4445
        %v4462 = vadd.f32 %v4045, %v4446
        %v4463 = vadd.f32 %v4046, %v4447
        %v4464 = vadd.f32 %v4047, %v4448
        %v4465 = vadd.f32 %v4048, %v4449
        %v4466 = vadd.f32 %v4049, %v4450
        %v4467 = vadd.f32 %v4050, %v4451
        %v4468 = vadd.f32 %v4051, %v4452
        %v4469 = vadd.f32 %v4052, %v4453
        %v4470 = vadd.f32 %v4053, %v4454
        %v4471 = vadd.f32 %v4054, %v4455
        %v4472 = vadd.f32 %v4055, %v4456
        %v4473 = vadd.f32 %v4056, %v4457
        %v4474 = vadd.f32 %v4057, %v4458
        %v4475 = vadd.f32 %v4058, %v4459
        %v4476 = vadd.f32 %v4059, %v4460
        %s4477 = sld [smem:[#allocation2 + $0x16]]
        %v4478 = vstv %s4477
        %v4479 = vmul.f32 %v4478, %v4365
        %v4480 = vmul.f32 %v4478, %v4370
        %v4481 = vmul.f32 %v4478, %v4375
        %v4482 = vmul.f32 %v4478, %v4380
        %v4483 = vmul.f32 %v4478, %v4385
        %v4484 = vmul.f32 %v4478, %v4390
        %v4485 = vmul.f32 %v4478, %v4395
        %v4486 = vmul.f32 %v4478, %v4400
        %v4487 = vmul.f32 %v4478, %v4405
        %v4488 = vmul.f32 %v4478, %v4410
        %v4489 = vmul.f32 %v4478, %v4415
        %v4490 = vmul.f32 %v4478, %v4420
        %v4491 = vmul.f32 %v4478, %v4425
        %v4492 = vmul.f32 %v4478, %v4430
        %v4493 = vmul.f32 %v4478, %v4435
        %v4494 = vmul.f32 %v4478, %v4440
        %v4495 = vadd.f32 %v4078, %v4479
        %v4496 = vadd.f32 %v4079, %v4480
        %v4497 = vadd.f32 %v4080, %v4481
        %v4498 = vadd.f32 %v4081, %v4482
        %v4499 = vadd.f32 %v4082, %v4483
        %v4500 = vadd.f32 %v4083, %v4484
        %v4501 = vadd.f32 %v4084, %v4485
        %v4502 = vadd.f32 %v4085, %v4486
        %v4503 = vadd.f32 %v4086, %v4487
        %v4504 = vadd.f32 %v4087, %v4488
        %v4505 = vadd.f32 %v4088, %v4489
        %v4506 = vadd.f32 %v4089, %v4490
        %v4507 = vadd.f32 %v4090, %v4491
        %v4508 = vadd.f32 %v4091, %v4492
        %v4509 = vadd.f32 %v4092, %v4493
        %v4510 = vadd.f32 %v4093, %v4494
        %s4511 = sld [smem:[#allocation2 + $0x22]]
        %v4512 = vstv %s4511
        %v4513 = vmul.f32 %v4512, %v4365
        %v4514 = vmul.f32 %v4512, %v4370
        %v4515 = vmul.f32 %v4512, %v4375
        %v4516 = vmul.f32 %v4512, %v4380
        %v4517 = vmul.f32 %v4512, %v4385
        %v4518 = vmul.f32 %v4512, %v4390
        %v4519 = vmul.f32 %v4512, %v4395
        %v4520 = vmul.f32 %v4512, %v4400
        %v4521 = vmul.f32 %v4512, %v4405
        %v4522 = vmul.f32 %v4512, %v4410
        %v4523 = vmul.f32 %v4512, %v4415
        %v4524 = vmul.f32 %v4512, %v4420
        %v4525 = vmul.f32 %v4512, %v4425
        %v4526 = vmul.f32 %v4512, %v4430
        %v4527 = vmul.f32 %v4512, %v4435
        %v4528 = vmul.f32 %v4512, %v4440
        %v4529 = vadd.f32 %v4112, %v4513
        %v4530 = vadd.f32 %v4113, %v4514
        %v4531 = vadd.f32 %v4114, %v4515
        %v4532 = vadd.f32 %v4115, %v4516
        %v4533 = vadd.f32 %v4116, %v4517
        %v4534 = vadd.f32 %v4117, %v4518
        %v4535 = vadd.f32 %v4118, %v4519
        %v4536 = vadd.f32 %v4119, %v4520
        %v4537 = vadd.f32 %v4120, %v4521
        %v4538 = vadd.f32 %v4121, %v4522
        %v4539 = vadd.f32 %v4122, %v4523
        %v4540 = vadd.f32 %v4123, %v4524
        %v4541 = vadd.f32 %v4124, %v4525
        %v4542 = vadd.f32 %v4125, %v4526
        %v4543 = vadd.f32 %v4126, %v4527
        %v4544 = vadd.f32 %v4127, %v4528
        %s4545 = sld [smem:[#allocation2 + $0x2e]]
        %v4546 = vstv %s4545
        %v4547 = vmul.f32 %v4546, %v4365
        %v4548 = vmul.f32 %v4546, %v4370
        %v4549 = vmul.f32 %v4546, %v4375
        %v4550 = vmul.f32 %v4546, %v4380
        %v4551 = vmul.f32 %v4546, %v4385
        %v4552 = vmul.f32 %v4546, %v4390
        %v4553 = vmul.f32 %v4546, %v4395
        %v4554 = vmul.f32 %v4546, %v4400
        %v4555 = vmul.f32 %v4546, %v4405
        %v4556 = vmul.f32 %v4546, %v4410
        %v4557 = vmul.f32 %v4546, %v4415
        %v4558 = vmul.f32 %v4546, %v4420
        %v4559 = vmul.f32 %v4546, %v4425
        %v4560 = vmul.f32 %v4546, %v4430
        %v4561 = vmul.f32 %v4546, %v4435
        %v4562 = vmul.f32 %v4546, %v4440
        %v4563 = vadd.f32 %v4146, %v4547
        %v4564 = vadd.f32 %v4147, %v4548
        %v4565 = vadd.f32 %v4148, %v4549
        %v4566 = vadd.f32 %v4149, %v4550
        %v4567 = vadd.f32 %v4150, %v4551
        %v4568 = vadd.f32 %v4151, %v4552
        %v4569 = vadd.f32 %v4152, %v4553
        %v4570 = vadd.f32 %v4153, %v4554
        %v4571 = vadd.f32 %v4154, %v4555
        %v4572 = vadd.f32 %v4155, %v4556
        %v4573 = vadd.f32 %v4156, %v4557
        %v4574 = vadd.f32 %v4157, %v4558
        %v4575 = vadd.f32 %v4158, %v4559
        %v4576 = vadd.f32 %v4159, %v4560
        %v4577 = vadd.f32 %v4160, %v4561
        %v4578 = vadd.f32 %v4161, %v4562
        %s4579 = sld [smem:[#allocation2 + $0x3a]]
        %v4580 = vstv %s4579
        %v4581 = vmul.f32 %v4580, %v4365
        %v4582 = vmul.f32 %v4580, %v4370
        %v4583 = vmul.f32 %v4580, %v4375
        %v4584 = vmul.f32 %v4580, %v4380
        %v4585 = vmul.f32 %v4580, %v4385
        %v4586 = vmul.f32 %v4580, %v4390
        %v4587 = vmul.f32 %v4580, %v4395
        %v4588 = vmul.f32 %v4580, %v4400
        %v4589 = vmul.f32 %v4580, %v4405
        %v4590 = vmul.f32 %v4580, %v4410
        %v4591 = vmul.f32 %v4580, %v4415
        %v4592 = vmul.f32 %v4580, %v4420
        %v4593 = vmul.f32 %v4580, %v4425
        %v4594 = vmul.f32 %v4580, %v4430
        %v4595 = vmul.f32 %v4580, %v4435
        %v4596 = vmul.f32 %v4580, %v4440
        %v4597 = vadd.f32 %v4180, %v4581
        %v4598 = vadd.f32 %v4181, %v4582
        %v4599 = vadd.f32 %v4182, %v4583
        %v4600 = vadd.f32 %v4183, %v4584
        %v4601 = vadd.f32 %v4184, %v4585
        %v4602 = vadd.f32 %v4185, %v4586
        %v4603 = vadd.f32 %v4186, %v4587
        %v4604 = vadd.f32 %v4187, %v4588
        %v4605 = vadd.f32 %v4188, %v4589
        %v4606 = vadd.f32 %v4189, %v4590
        %v4607 = vadd.f32 %v4190, %v4591
        %v4608 = vadd.f32 %v4191, %v4592
        %v4609 = vadd.f32 %v4192, %v4593
        %v4610 = vadd.f32 %v4193, %v4594
        %v4611 = vadd.f32 %v4194, %v4595
        %v4612 = vadd.f32 %v4195, %v4596
        %s4613 = sld [smem:[#allocation2 + $0x46]]
        %v4614 = vstv %s4613
        %v4615 = vmul.f32 %v4614, %v4365
        %v4616 = vmul.f32 %v4614, %v4370
        %v4617 = vmul.f32 %v4614, %v4375
        %v4618 = vmul.f32 %v4614, %v4380
        %v4619 = vmul.f32 %v4614, %v4385
        %v4620 = vmul.f32 %v4614, %v4390
        %v4621 = vmul.f32 %v4614, %v4395
        %v4622 = vmul.f32 %v4614, %v4400
        %v4623 = vmul.f32 %v4614, %v4405
        %v4624 = vmul.f32 %v4614, %v4410
        %v4625 = vmul.f32 %v4614, %v4415
        %v4626 = vmul.f32 %v4614, %v4420
        %v4627 = vmul.f32 %v4614, %v4425
        %v4628 = vmul.f32 %v4614, %v4430
        %v4629 = vmul.f32 %v4614, %v4435
        %v4630 = vmul.f32 %v4614, %v4440
        %v4631 = vadd.f32 %v4214, %v4615
        %v4632 = vadd.f32 %v4215, %v4616
        %v4633 = vadd.f32 %v4216, %v4617
        %v4634 = vadd.f32 %v4217, %v4618
        %v4635 = vadd.f32 %v4218, %v4619
        %v4636 = vadd.f32 %v4219, %v4620
        %v4637 = vadd.f32 %v4220, %v4621
        %v4638 = vadd.f32 %v4221, %v4622
        %v4639 = vadd.f32 %v4222, %v4623
        %v4640 = vadd.f32 %v4223, %v4624
        %v4641 = vadd.f32 %v4224, %v4625
        %v4642 = vadd.f32 %v4225, %v4626
        %v4643 = vadd.f32 %v4226, %v4627
        %v4644 = vadd.f32 %v4227, %v4628
        %v4645 = vadd.f32 %v4228, %v4629
        %v4646 = vadd.f32 %v4229, %v4630
        %s4647 = sld [smem:[#allocation2 + $0x52]]
        %v4648 = vstv %s4647
        %v4649 = vmul.f32 %v4648, %v4365
        %v4650 = vmul.f32 %v4648, %v4370
        %v4651 = vmul.f32 %v4648, %v4375
        %v4652 = vmul.f32 %v4648, %v4380
        %v4653 = vmul.f32 %v4648, %v4385
        %v4654 = vmul.f32 %v4648, %v4390
        %v4655 = vmul.f32 %v4648, %v4395
        %v4656 = vmul.f32 %v4648, %v4400
        %v4657 = vmul.f32 %v4648, %v4405
        %v4658 = vmul.f32 %v4648, %v4410
        %v4659 = vmul.f32 %v4648, %v4415
        %v4660 = vmul.f32 %v4648, %v4420
        %v4661 = vmul.f32 %v4648, %v4425
        %v4662 = vmul.f32 %v4648, %v4430
        %v4663 = vmul.f32 %v4648, %v4435
        %v4664 = vmul.f32 %v4648, %v4440
        %v4665 = vadd.f32 %v4248, %v4649
        %v4666 = vadd.f32 %v4249, %v4650
        %v4667 = vadd.f32 %v4250, %v4651
        %v4668 = vadd.f32 %v4251, %v4652
        %v4669 = vadd.f32 %v4252, %v4653
        %v4670 = vadd.f32 %v4253, %v4654
        %v4671 = vadd.f32 %v4254, %v4655
        %v4672 = vadd.f32 %v4255, %v4656
        %v4673 = vadd.f32 %v4256, %v4657
        %v4674 = vadd.f32 %v4257, %v4658
        %v4675 = vadd.f32 %v4258, %v4659
        %v4676 = vadd.f32 %v4259, %v4660
        %v4677 = vadd.f32 %v4260, %v4661
        %v4678 = vadd.f32 %v4261, %v4662
        %v4679 = vadd.f32 %v4262, %v4663
        %v4680 = vadd.f32 %v4263, %v4664
        %s4681 = sld [smem:[#allocation2 + $0x5e]]
        %v4682 = vstv %s4681
        %v4683 = vmul.f32 %v4682, %v4365
        %v4684 = vmul.f32 %v4682, %v4370
        %v4685 = vmul.f32 %v4682, %v4375
        %v4686 = vmul.f32 %v4682, %v4380
        %v4687 = vmul.f32 %v4682, %v4385
        %v4688 = vmul.f32 %v4682, %v4390
        %v4689 = vmul.f32 %v4682, %v4395
        %v4690 = vmul.f32 %v4682, %v4400
        %v4691 = vmul.f32 %v4682, %v4405
        %v4692 = vmul.f32 %v4682, %v4410
        %v4693 = vmul.f32 %v4682, %v4415
        %v4694 = vmul.f32 %v4682, %v4420
        %v4695 = vmul.f32 %v4682, %v4425
        %v4696 = vmul.f32 %v4682, %v4430
        %v4697 = vmul.f32 %v4682, %v4435
        %v4698 = vmul.f32 %v4682, %v4440
        %v4699 = vadd.f32 %v4282, %v4683
        %v4700 = vadd.f32 %v4283, %v4684
        %v4701 = vadd.f32 %v4284, %v4685
        %v4702 = vadd.f32 %v4285, %v4686
        %v4703 = vadd.f32 %v4286, %v4687
        %v4704 = vadd.f32 %v4287, %v4688
        %v4705 = vadd.f32 %v4288, %v4689
        %v4706 = vadd.f32 %v4289, %v4690
        %v4707 = vadd.f32 %v4290, %v4691
        %v4708 = vadd.f32 %v4291, %v4692
        %v4709 = vadd.f32 %v4292, %v4693
        %v4710 = vadd.f32 %v4293, %v4694
        %v4711 = vadd.f32 %v4294, %v4695
        %v4712 = vadd.f32 %v4295, %v4696
        %v4713 = vadd.f32 %v4296, %v4697
        %v4714 = vadd.f32 %v4297, %v4698
        %4715 = vmatprep.subr.mxu0 0.0
        %4716 = vmatpush1.msra.mxu0 %v4365
        %4717 = vmatprep.subr.mxu0 0.0
        %4718 = vmatpush1.msra.mxu0 %v4370
        %4719 = vmatprep.subr.mxu0 0.0
        %4720 = vmatpush1.msra.mxu0 %v4375
        %4721 = vmatprep.subr.mxu0 0.0
        %4722 = vmatpush1.msra.mxu0 %v4380
        %4723 = vmatprep.subr.mxu0 0.0
        %4724 = vmatpush1.msra.mxu0 %v4385
        %4725 = vmatprep.subr.mxu0 0.0
        %4726 = vmatpush1.msra.mxu0 %v4390
        %4727 = vmatprep.subr.mxu0 0.0
        %4728 = vmatpush1.msra.mxu0 %v4395
        %4729 = vmatprep.subr.mxu0 0.0
        %4730 = vmatpush1.msra.mxu0 %v4400
        %4731 = vmatprep.subr.mxu0 0.0
        %4732 = vmatpush1.msra.mxu0 %v4405
        %4733 = vmatprep.subr.mxu0 0.0
        %4734 = vmatpush1.msra.mxu0 %v4410
        %4735 = vmatprep.subr.mxu0 0.0
        %4736 = vmatpush1.msra.mxu0 %v4415
        %4737 = vmatprep.subr.mxu0 0.0
        %4738 = vmatpush1.msra.mxu0 %v4420
        %4739 = vmatprep.subr.mxu0 0.0
        %4740 = vmatpush1.msra.mxu0 %v4425
        %4741 = vmatprep.subr.mxu0 0.0
        %4742 = vmatpush1.msra.mxu0 %v4430
        %4743 = vmatprep.subr.mxu0 0.0
        %4744 = vmatpush1.msra.mxu0 %v4435
        %4745 = vmatprep.subr.mxu0 0.0
        %4746 = vmatpush1.msra.mxu0 %v4440
        %4747 = vmatprep.subr.mxu0 0.0
        %4748 = vmatpush1.msra.mxu0 0.0
        %4749 = vmatprep.subr.mxu0 0.0
        %4750 = vmatpush1.msra.mxu0 0.0
        %4751 = vmatprep.subr.mxu0 0.0
        %4752 = vmatpush1.msra.mxu0 0.0
        %4753 = vmatprep.subr.mxu0 0.0
        %4754 = vmatpush1.msra.mxu0 0.0
        %4755 = vmatprep.subr.mxu0 0.0
        %4756 = vmatpush1.msra.mxu0 0.0
        %4757 = vmatprep.subr.mxu0 0.0
        %4758 = vmatpush1.msra.mxu0 0.0
        %4759 = vmatprep.subr.mxu0 0.0
        %4760 = vmatpush1.msra.mxu0 0.0
        %4761 = vmatprep.subr.mxu0 0.0
        %4762 = vmatpush1.msra.mxu0 0.0
        %4763 = vmatprep.subr.mxu0 0.0
        %4764 = vmatpush1.msra.mxu0 0.0
        %4765 = vmatprep.subr.mxu0 0.0
        %4766 = vmatpush1.msra.mxu0 0.0
        %4767 = vmatprep.subr.mxu0 0.0
        %4768 = vmatpush1.msra.mxu0 0.0
        %4769 = vmatprep.subr.mxu0 0.0
        %4770 = vmatpush1.msra.mxu0 0.0
        %4771 = vmatprep.subr.mxu0 0.0
        %4772 = vmatpush1.msra.mxu0 0.0
        %4773 = vmatprep.subr.mxu0 0.0
        %4774 = vmatpush1.msra.mxu0 0.0
        %4775 = vmatprep.subr.mxu0 0.0
        %4776 = vmatpush1.msra.mxu0 0.0
        %4777 = vmatprep.subr.mxu0 0.0
        %4778 = vmatpush1.msra.mxu0 0.0
        %4779 = vmatprep.mubr.f32.mxu0 0.0
        %4780 = vmatmul.mubr.f32.gmra.mrb[0].mxu0 %v505
        %v4781 = vpop.f32.mrb[0].mxu0
        %v4782 = vadd.f32 0.0, %v4781
        %v4783 = vpop.f32.mrb[0].mxu0
        %4784 = vmatprep.mubr.f32.mxu0 0.0
        %4785 = vmatmul.mubr.f32.gmra.mrb[0].mxu0 %v506
        %v4786 = vpop.f32.mrb[0].mxu0
        %v4787 = vadd.f32 0.0, %v4786
        %v4788 = vpop.f32.mrb[0].mxu0
        %4789 = vmatprep.mubr.f32.mxu0 0.0
        %4790 = vmatmul.mubr.f32.gmra.mrb[0].mxu0 %v507
        %v4791 = vpop.f32.mrb[0].mxu0
        %v4792 = vadd.f32 0.0, %v4791
        %v4793 = vpop.f32.mrb[0].mxu0
        %4794 = vmatprep.mubr.f32.mxu0 0.0
        %4795 = vmatmul.mubr.f32.gmra.mrb[0].mxu0 %v508
        %v4796 = vpop.f32.mrb[0].mxu0
        %v4797 = vadd.f32 0.0, %v4796
        %v4798 = vpop.f32.mrb[0].mxu0
        %4799 = vmatprep.mubr.f32.mxu0 0.0
        %4800 = vmatmul.mubr.f32.gmra.mrb[0].mxu0 %v509
        %v4801 = vpop.f32.mrb[0].mxu0
        %v4802 = vadd.f32 0.0, %v4801
        %v4803 = vpop.f32.mrb[0].mxu0
        %4804 = vmatprep.mubr.f32.mxu0 0.0
        %4805 = vmatmul.mubr.f32.gmra.mrb[0].mxu0 %v510
        %v4806 = vpop.f32.mrb[0].mxu0
        %v4807 = vadd.f32 0.0, %v4806
        %v4808 = vpop.f32.mrb[0].mxu0
        %4809 = vmatprep.mubr.f32.mxu0 0.0
        %4810 = vmatmul.mubr.f32.gmra.mrb[0].mxu0 %v511
        %v4811 = vpop.f32.mrb[0].mxu0
        %v4812 = vadd.f32 0.0, %v4811
        %v4813 = vpop.f32.mrb[0].mxu0
        %4814 = vmatprep.mubr.f32.mxu0 0.0
        %4815 = vmatmul.mubr.f32.gmra.mrb[0].mxu0 %v512
        %v4816 = vpop.f32.mrb[0].mxu0
        %v4817 = vadd.f32 0.0, %v4816
        %v4818 = vpop.f32.mrb[0].mxu0
        %4819 = vmatprep.mubr.f32.mxu0 0.0
        %4820 = vmatmul.mubr.f32.gmra.mrb[0].mxu0 %v513
        %v4821 = vpop.f32.mrb[0].mxu0
        %v4822 = vadd.f32 0.0, %v4821
        %v4823 = vpop.f32.mrb[0].mxu0
        %4824 = vmatprep.mubr.f32.mxu0 0.0
        %4825 = vmatmul.mubr.f32.gmra.mrb[0].mxu0 %v514
        %v4826 = vpop.f32.mrb[0].mxu0
        %v4827 = vadd.f32 0.0, %v4826
        %v4828 = vpop.f32.mrb[0].mxu0
        %4829 = vmatprep.mubr.f32.mxu0 0.0
        %4830 = vmatmul.mubr.f32.gmra.mrb[0].mxu0 %v515
        %v4831 = vpop.f32.mrb[0].mxu0
        %v4832 = vadd.f32 0.0, %v4831
        %v4833 = vpop.f32.mrb[0].mxu0
        %4834 = vmatprep.mubr.f32.mxu0 0.0
        %4835 = vmatmul.mubr.f32.gmra.mrb[0].mxu0 %v516
        %v4836 = vpop.f32.mrb[0].mxu0
        %v4837 = vadd.f32 0.0, %v4836
        %v4838 = vpop.f32.mrb[0].mxu0
        %4839 = vmatprep.mubr.f32.mxu0 0.0
        %4840 = vmatmul.mubr.f32.gmra.mrb[0].mxu0 %v517
        %v4841 = vpop.f32.mrb[0].mxu0
        %v4842 = vadd.f32 0.0, %v4841
        %v4843 = vpop.f32.mrb[0].mxu0
        %4844 = vmatprep.mubr.f32.mxu0 0.0
        %4845 = vmatmul.mubr.f32.gmra.mrb[0].mxu0 %v518
        %v4846 = vpop.f32.mrb[0].mxu0
        %v4847 = vadd.f32 0.0, %v4846
        %v4848 = vpop.f32.mrb[0].mxu0
        %4849 = vmatprep.mubr.f32.mxu0 0.0
        %4850 = vmatmul.mubr.f32.gmra.mrb[0].mxu0 %v519
        %v4851 = vpop.f32.mrb[0].mxu0
        %v4852 = vadd.f32 0.0, %v4851
        %v4853 = vpop.f32.mrb[0].mxu0
        %4854 = vmatprep.mubr.f32.mxu0 0.0
        %4855 = vmatmul.mubr.f32.gmra.mrb[0].mxu0 %v520
        %v4856 = vpop.f32.mrb[0].mxu0
        %v4857 = vadd.f32 0.0, %v4856
        %v4858 = vpop.f32.mrb[0].mxu0
        %4859 = vdwg.mxu0
        %v4860 = vmul.f32 %v4782, 2.0
        %v4861 = vmul.f32 %v4787, 2.0
        %v4862 = vmul.f32 %v4792, 2.0
        %v4863 = vmul.f32 %v4797, 2.0
        %v4864 = vmul.f32 %v4802, 2.0
        %v4865 = vmul.f32 %v4807, 2.0
        %v4866 = vmul.f32 %v4812, 2.0
        %v4867 = vmul.f32 %v4817, 2.0
        %v4868 = vmul.f32 %v4822, 2.0
        %v4869 = vmul.f32 %v4827, 2.0
        %v4870 = vmul.f32 %v4832, 2.0
        %v4871 = vmul.f32 %v4837, 2.0
        %v4872 = vmul.f32 %v4842, 2.0
        %v4873 = vmul.f32 %v4847, 2.0
        %v4874 = vmul.f32 %v4852, 2.0
        %v4875 = vmul.f32 %v4857, 2.0
        %v4876 = vsub.f32 %v4860, %v4010
        %v4877 = vsub.f32 %v4861, %v4011
        %v4878 = vsub.f32 %v4862, %v4012
        %v4879 = vsub.f32 %v4863, %v4013
        %v4880 = vsub.f32 %v4864, %v4014
        %v4881 = vsub.f32 %v4865, %v4015
        %v4882 = vsub.f32 %v4866, %v4016
        %v4883 = vsub.f32 %v4867, %v4017
        %v4884 = vsub.f32 %v4868, %v4018
        %v4885 = vsub.f32 %v4869, %v4019
        %v4886 = vsub.f32 %v4870, %v4020
        %v4887 = vsub.f32 %v4871, %v4021
        %v4888 = vsub.f32 %v4872, %v4022
        %v4889 = vsub.f32 %v4873, %v4023
        %v4890 = vsub.f32 %v4874, %v4024
        %v4891 = vsub.f32 %v4875, %v4025
        %s4892 = sld [smem:[#allocation2 + $0xb]]
        %v4893 = vstv %s4892
        %v4894 = vmul.f32 %v4893, %v4876
        %v4895 = vmul.f32 %v4893, %v4877
        %v4896 = vmul.f32 %v4893, %v4878
        %v4897 = vmul.f32 %v4893, %v4879
        %v4898 = vmul.f32 %v4893, %v4880
        %v4899 = vmul.f32 %v4893, %v4881
        %v4900 = vmul.f32 %v4893, %v4882
        %v4901 = vmul.f32 %v4893, %v4883
        %v4902 = vmul.f32 %v4893, %v4884
        %v4903 = vmul.f32 %v4893, %v4885
        %v4904 = vmul.f32 %v4893, %v4886
        %v4905 = vmul.f32 %v4893, %v4887
        %v4906 = vmul.f32 %v4893, %v4888
        %v4907 = vmul.f32 %v4893, %v4889
        %v4908 = vmul.f32 %v4893, %v4890
        %v4909 = vmul.f32 %v4893, %v4891
        %v4910 = vadd.f32 %v4461, %v4894
        %v4911 = vadd.f32 %v4462, %v4895
        %v4912 = vadd.f32 %v4463, %v4896
        %v4913 = vadd.f32 %v4464, %v4897
        %v4914 = vadd.f32 %v4465, %v4898
        %v4915 = vadd.f32 %v4466, %v4899
        %v4916 = vadd.f32 %v4467, %v4900
        %v4917 = vadd.f32 %v4468, %v4901
        %v4918 = vadd.f32 %v4469, %v4902
        %v4919 = vadd.f32 %v4470, %v4903
        %v4920 = vadd.f32 %v4471, %v4904
        %v4921 = vadd.f32 %v4472, %v4905
        %v4922 = vadd.f32 %v4473, %v4906
        %v4923 = vadd.f32 %v4474, %v4907
        %v4924 = vadd.f32 %v4475, %v4908
        %v4925 = vadd.f32 %v4476, %v4909
        %s4926 = sld [smem:[#allocation2 + $0x17]]
        %v4927 = vstv %s4926
        %v4928 = vmul.f32 %v4927, %v4876
        %v4929 = vmul.f32 %v4927, %v4877
        %v4930 = vmul.f32 %v4927, %v4878
        %v4931 = vmul.f32 %v4927, %v4879
        %v4932 = vmul.f32 %v4927, %v4880
        %v4933 = vmul.f32 %v4927, %v4881
        %v4934 = vmul.f32 %v4927, %v4882
        %v4935 = vmul.f32 %v4927, %v4883
        %v4936 = vmul.f32 %v4927, %v4884
        %v4937 = vmul.f32 %v4927, %v4885
        %v4938 = vmul.f32 %v4927, %v4886
        %v4939 = vmul.f32 %v4927, %v4887
        %v4940 = vmul.f32 %v4927, %v4888
        %v4941 = vmul.f32 %v4927, %v4889
        %v4942 = vmul.f32 %v4927, %v4890
        %v4943 = vmul.f32 %v4927, %v4891
        %v4944 = vadd.f32 %v4495, %v4928
        %v4945 = vadd.f32 %v4496, %v4929
        %v4946 = vadd.f32 %v4497, %v4930
        %v4947 = vadd.f32 %v4498, %v4931
        %v4948 = vadd.f32 %v4499, %v4932
        %v4949 = vadd.f32 %v4500, %v4933
        %v4950 = vadd.f32 %v4501, %v4934
        %v4951 = vadd.f32 %v4502, %v4935
        %v4952 = vadd.f32 %v4503, %v4936
        %v4953 = vadd.f32 %v4504, %v4937
        %v4954 = vadd.f32 %v4505, %v4938
        %v4955 = vadd.f32 %v4506, %v4939
        %v4956 = vadd.f32 %v4507, %v4940
        %v4957 = vadd.f32 %v4508, %v4941
        %v4958 = vadd.f32 %v4509, %v4942
        %v4959 = vadd.f32 %v4510, %v4943
        %s4960 = sld [smem:[#allocation2 + $0x23]]
        %v4961 = vstv %s4960
        %v4962 = vmul.f32 %v4961, %v4876
        %v4963 = vmul.f32 %v4961, %v4877
        %v4964 = vmul.f32 %v4961, %v4878
        %v4965 = vmul.f32 %v4961, %v4879
        %v4966 = vmul.f32 %v4961, %v4880
        %v4967 = vmul.f32 %v4961, %v4881
        %v4968 = vmul.f32 %v4961, %v4882
        %v4969 = vmul.f32 %v4961, %v4883
        %v4970 = vmul.f32 %v4961, %v4884
        %v4971 = vmul.f32 %v4961, %v4885
        %v4972 = vmul.f32 %v4961, %v4886
        %v4973 = vmul.f32 %v4961, %v4887
        %v4974 = vmul.f32 %v4961, %v4888
        %v4975 = vmul.f32 %v4961, %v4889
        %v4976 = vmul.f32 %v4961, %v4890
        %v4977 = vmul.f32 %v4961, %v4891
        %v4978 = vadd.f32 %v4529, %v4962
        %v4979 = vadd.f32 %v4530, %v4963
        %v4980 = vadd.f32 %v4531, %v4964
        %v4981 = vadd.f32 %v4532, %v4965
        %v4982 = vadd.f32 %v4533, %v4966
        %v4983 = vadd.f32 %v4534, %v4967
        %v4984 = vadd.f32 %v4535, %v4968
        %v4985 = vadd.f32 %v4536, %v4969
        %v4986 = vadd.f32 %v4537, %v4970
        %v4987 = vadd.f32 %v4538, %v4971
        %v4988 = vadd.f32 %v4539, %v4972
        %v4989 = vadd.f32 %v4540, %v4973
        %v4990 = vadd.f32 %v4541, %v4974
        %v4991 = vadd.f32 %v4542, %v4975
        %v4992 = vadd.f32 %v4543, %v4976
        %v4993 = vadd.f32 %v4544, %v4977
        %s4994 = sld [smem:[#allocation2 + $0x2f]]
        %v4995 = vstv %s4994
        %v4996 = vmul.f32 %v4995, %v4876
        %v4997 = vmul.f32 %v4995, %v4877
        %v4998 = vmul.f32 %v4995, %v4878
        %v4999 = vmul.f32 %v4995, %v4879
        %v5000 = vmul.f32 %v4995, %v4880
        %v5001 = vmul.f32 %v4995, %v4881
        %v5002 = vmul.f32 %v4995, %v4882
        %v5003 = vmul.f32 %v4995, %v4883
        %v5004 = vmul.f32 %v4995, %v4884
        %v5005 = vmul.f32 %v4995, %v4885
        %v5006 = vmul.f32 %v4995, %v4886
        %v5007 = vmul.f32 %v4995, %v4887
        %v5008 = vmul.f32 %v4995, %v4888
        %v5009 = vmul.f32 %v4995, %v4889
        %v5010 = vmul.f32 %v4995, %v4890
        %v5011 = vmul.f32 %v4995, %v4891
        %v5012 = vadd.f32 %v4563, %v4996
        %v5013 = vadd.f32 %v4564, %v4997
        %v5014 = vadd.f32 %v4565, %v4998
        %v5015 = vadd.f32 %v4566, %v4999
        %v5016 = vadd.f32 %v4567, %v5000
        %v5017 = vadd.f32 %v4568, %v5001
        %v5018 = vadd.f32 %v4569, %v5002
        %v5019 = vadd.f32 %v4570, %v5003
        %v5020 = vadd.f32 %v4571, %v5004
        %v5021 = vadd.f32 %v4572, %v5005
        %v5022 = vadd.f32 %v4573, %v5006
        %v5023 = vadd.f32 %v4574, %v5007
        %v5024 = vadd.f32 %v4575, %v5008
        %v5025 = vadd.f32 %v4576, %v5009
        %v5026 = vadd.f32 %v4577, %v5010
        %v5027 = vadd.f32 %v4578, %v5011
        %s5028 = sld [smem:[#allocation2 + $0x3b]]
        %v5029 = vstv %s5028
        %v5030 = vmul.f32 %v5029, %v4876
        %v5031 = vmul.f32 %v5029, %v4877
        %v5032 = vmul.f32 %v5029, %v4878
        %v5033 = vmul.f32 %v5029, %v4879
        %v5034 = vmul.f32 %v5029, %v4880
        %v5035 = vmul.f32 %v5029, %v4881
        %v5036 = vmul.f32 %v5029, %v4882
        %v5037 = vmul.f32 %v5029, %v4883
        %v5038 = vmul.f32 %v5029, %v4884
        %v5039 = vmul.f32 %v5029, %v4885
        %v5040 = vmul.f32 %v5029, %v4886
        %v5041 = vmul.f32 %v5029, %v4887
        %v5042 = vmul.f32 %v5029, %v4888
        %v5043 = vmul.f32 %v5029, %v4889
        %v5044 = vmul.f32 %v5029, %v4890
        %v5045 = vmul.f32 %v5029, %v4891
        %v5046 = vadd.f32 %v4597, %v5030
        %v5047 = vadd.f32 %v4598, %v5031
        %v5048 = vadd.f32 %v4599, %v5032
        %v5049 = vadd.f32 %v4600, %v5033
        %v5050 = vadd.f32 %v4601, %v5034
        %v5051 = vadd.f32 %v4602, %v5035
        %v5052 = vadd.f32 %v4603, %v5036
        %v5053 = vadd.f32 %v4604, %v5037
        %v5054 = vadd.f32 %v4605, %v5038
        %v5055 = vadd.f32 %v4606, %v5039
        %v5056 = vadd.f32 %v4607, %v5040
        %v5057 = vadd.f32 %v4608, %v5041
        %v5058 = vadd.f32 %v4609, %v5042
        %v5059 = vadd.f32 %v4610, %v5043
        %v5060 = vadd.f32 %v4611, %v5044
        %v5061 = vadd.f32 %v4612, %v5045
        %s5062 = sld [smem:[#allocation2 + $0x47]]
        %v5063 = vstv %s5062
        %v5064 = vmul.f32 %v5063, %v4876
        %v5065 = vmul.f32 %v5063, %v4877
        %v5066 = vmul.f32 %v5063, %v4878
        %v5067 = vmul.f32 %v5063, %v4879
        %v5068 = vmul.f32 %v5063, %v4880
        %v5069 = vmul.f32 %v5063, %v4881
        %v5070 = vmul.f32 %v5063, %v4882
        %v5071 = vmul.f32 %v5063, %v4883
        %v5072 = vmul.f32 %v5063, %v4884
        %v5073 = vmul.f32 %v5063, %v4885
        %v5074 = vmul.f32 %v5063, %v4886
        %v5075 = vmul.f32 %v5063, %v4887
        %v5076 = vmul.f32 %v5063, %v4888
        %v5077 = vmul.f32 %v5063, %v4889
        %v5078 = vmul.f32 %v5063, %v4890
        %v5079 = vmul.f32 %v5063, %v4891
        %v5080 = vadd.f32 %v4631, %v5064
        %v5081 = vadd.f32 %v4632, %v5065
        %v5082 = vadd.f32 %v4633, %v5066
        %v5083 = vadd.f32 %v4634, %v5067
        %v5084 = vadd.f32 %v4635, %v5068
        %v5085 = vadd.f32 %v4636, %v5069
        %v5086 = vadd.f32 %v4637, %v5070
        %v5087 = vadd.f32 %v4638, %v5071
        %v5088 = vadd.f32 %v4639, %v5072
        %v5089 = vadd.f32 %v4640, %v5073
        %v5090 = vadd.f32 %v4641, %v5074
        %v5091 = vadd.f32 %v4642, %v5075
        %v5092 = vadd.f32 %v4643, %v5076
        %v5093 = vadd.f32 %v4644, %v5077
        %v5094 = vadd.f32 %v4645, %v5078
        %v5095 = vadd.f32 %v4646, %v5079
        %s5096 = sld [smem:[#allocation2 + $0x53]]
        %v5097 = vstv %s5096
        %v5098 = vmul.f32 %v5097, %v4876
        %v5099 = vmul.f32 %v5097, %v4877
        %v5100 = vmul.f32 %v5097, %v4878
        %v5101 = vmul.f32 %v5097, %v4879
        %v5102 = vmul.f32 %v5097, %v4880
        %v5103 = vmul.f32 %v5097, %v4881
        %v5104 = vmul.f32 %v5097, %v4882
        %v5105 = vmul.f32 %v5097, %v4883
        %v5106 = vmul.f32 %v5097, %v4884
        %v5107 = vmul.f32 %v5097, %v4885
        %v5108 = vmul.f32 %v5097, %v4886
        %v5109 = vmul.f32 %v5097, %v4887
        %v5110 = vmul.f32 %v5097, %v4888
        %v5111 = vmul.f32 %v5097, %v4889
        %v5112 = vmul.f32 %v5097, %v4890
        %v5113 = vmul.f32 %v5097, %v4891
        %v5114 = vadd.f32 %v4665, %v5098
        %v5115 = vadd.f32 %v4666, %v5099
        %v5116 = vadd.f32 %v4667, %v5100
        %v5117 = vadd.f32 %v4668, %v5101
        %v5118 = vadd.f32 %v4669, %v5102
        %v5119 = vadd.f32 %v4670, %v5103
        %v5120 = vadd.f32 %v4671, %v5104
        %v5121 = vadd.f32 %v4672, %v5105
        %v5122 = vadd.f32 %v4673, %v5106
        %v5123 = vadd.f32 %v4674, %v5107
        %v5124 = vadd.f32 %v4675, %v5108
        %v5125 = vadd.f32 %v4676, %v5109
        %v5126 = vadd.f32 %v4677, %v5110
        %v5127 = vadd.f32 %v4678, %v5111
        %v5128 = vadd.f32 %v4679, %v5112
        %v5129 = vadd.f32 %v4680, %v5113
        %s5130 = sld [smem:[#allocation2 + $0x5f]]
        %v5131 = vstv %s5130
        %v5132 = vmul.f32 %v5131, %v4876
        %v5133 = vmul.f32 %v5131, %v4877
        %v5134 = vmul.f32 %v5131, %v4878
        %v5135 = vmul.f32 %v5131, %v4879
        %v5136 = vmul.f32 %v5131, %v4880
        %v5137 = vmul.f32 %v5131, %v4881
        %v5138 = vmul.f32 %v5131, %v4882
        %v5139 = vmul.f32 %v5131, %v4883
        %v5140 = vmul.f32 %v5131, %v4884
        %v5141 = vmul.f32 %v5131, %v4885
        %v5142 = vmul.f32 %v5131, %v4886
        %v5143 = vmul.f32 %v5131, %v4887
        %v5144 = vmul.f32 %v5131, %v4888
        %v5145 = vmul.f32 %v5131, %v4889
        %v5146 = vmul.f32 %v5131, %v4890
        %v5147 = vmul.f32 %v5131, %v4891
        %v5148 = vadd.f32 %v4699, %v5132
        %v5149 = vadd.f32 %v4700, %v5133
        %v5150 = vadd.f32 %v4701, %v5134
        %v5151 = vadd.f32 %v4702, %v5135
        %v5152 = vadd.f32 %v4703, %v5136
        %v5153 = vadd.f32 %v4704, %v5137
        %v5154 = vadd.f32 %v4705, %v5138
        %v5155 = vadd.f32 %v4706, %v5139
        %v5156 = vadd.f32 %v4707, %v5140
        %v5157 = vadd.f32 %v4708, %v5141
        %v5158 = vadd.f32 %v4709, %v5142
        %v5159 = vadd.f32 %v4710, %v5143
        %v5160 = vadd.f32 %v4711, %v5144
        %v5161 = vadd.f32 %v4712, %v5145
        %v5162 = vadd.f32 %v4713, %v5146
        %v5163 = vadd.f32 %v4714, %v5147
        %5164 = vst [vmem:[%s504] sm:$0xff] %v4910
        %5165 = vst [vmem:[%s504 + $0x8] sm:$0xff] %v4911
        %5166 = vst [vmem:[%s504 + $0x10] sm:$0xff] %v4912
        %5167 = vst [vmem:[%s504 + $0x18] sm:$0xff] %v4913
        %5168 = vst [vmem:[%s504 + $0x20] sm:$0xff] %v4914
        %5169 = vst [vmem:[%s504 + $0x28] sm:$0xff] %v4915
        %5170 = vst [vmem:[%s504 + $0x30] sm:$0xff] %v4916
        %5171 = vst [vmem:[%s504 + $0x38] sm:$0xff] %v4917
        %5172 = vst [vmem:[%s504 + $0x40] sm:$0xff] %v4918
        %5173 = vst [vmem:[%s504 + $0x48] sm:$0xff] %v4919
        %5174 = vst [vmem:[%s504 + $0x50] sm:$0xff] %v4920
        %5175 = vst [vmem:[%s504 + $0x58] sm:$0xff] %v4921
        %5176 = vst [vmem:[%s504 + $0x60] sm:$0xff] %v4922
        %5177 = vst [vmem:[%s504 + $0x68] sm:$0xff] %v4923
        %5178 = vst [vmem:[%s504 + $0x70] sm:$0xff] %v4924
        %5179 = vst [vmem:[%s504 + $0x78] sm:$0xff] %v4925
        %s5180 = scalar_lea.vmem %s504, 128 [#allocation7]
        %5181 = vst [vmem:[%s5180] sm:$0xff] %v4944
        %5182 = vst [vmem:[%s5180 + $0x8] sm:$0xff] %v4945
        %5183 = vst [vmem:[%s5180 + $0x10] sm:$0xff] %v4946
        %5184 = vst [vmem:[%s5180 + $0x18] sm:$0xff] %v4947
        %5185 = vst [vmem:[%s5180 + $0x20] sm:$0xff] %v4948
        %5186 = vst [vmem:[%s5180 + $0x28] sm:$0xff] %v4949
        %5187 = vst [vmem:[%s5180 + $0x30] sm:$0xff] %v4950
        %5188 = vst [vmem:[%s5180 + $0x38] sm:$0xff] %v4951
        %5189 = vst [vmem:[%s5180 + $0x40] sm:$0xff] %v4952
        %5190 = vst [vmem:[%s5180 + $0x48] sm:$0xff] %v4953
        %5191 = vst [vmem:[%s5180 + $0x50] sm:$0xff] %v4954
        %5192 = vst [vmem:[%s5180 + $0x58] sm:$0xff] %v4955
        %5193 = vst [vmem:[%s5180 + $0x60] sm:$0xff] %v4956
        %5194 = vst [vmem:[%s5180 + $0x68] sm:$0xff] %v4957
        %5195 = vst [vmem:[%s5180 + $0x70] sm:$0xff] %v4958
        %5196 = vst [vmem:[%s5180 + $0x78] sm:$0xff] %v4959
        %s5197 = scalar_lea.vmem %s504, 256 [#allocation7]
        %5198 = vst [vmem:[%s5197] sm:$0xff] %v4978
        %5199 = vst [vmem:[%s5197 + $0x8] sm:$0xff] %v4979
        %5200 = vst [vmem:[%s5197 + $0x10] sm:$0xff] %v4980
        %5201 = vst [vmem:[%s5197 + $0x18] sm:$0xff] %v4981
        %5202 = vst [vmem:[%s5197 + $0x20] sm:$0xff] %v4982
        %5203 = vst [vmem:[%s5197 + $0x28] sm:$0xff] %v4983
        %5204 = vst [vmem:[%s5197 + $0x30] sm:$0xff] %v4984
        %5205 = vst [vmem:[%s5197 + $0x38] sm:$0xff] %v4985
        %5206 = vst [vmem:[%s5197 + $0x40] sm:$0xff] %v4986
        %5207 = vst [vmem:[%s5197 + $0x48] sm:$0xff] %v4987
        %5208 = vst [vmem:[%s5197 + $0x50] sm:$0xff] %v4988
        %5209 = vst [vmem:[%s5197 + $0x58] sm:$0xff] %v4989
        %5210 = vst [vmem:[%s5197 + $0x60] sm:$0xff] %v4990
        %5211 = vst [vmem:[%s5197 + $0x68] sm:$0xff] %v4991
        %5212 = vst [vmem:[%s5197 + $0x70] sm:$0xff] %v4992
        %5213 = vst [vmem:[%s5197 + $0x78] sm:$0xff] %v4993
        %s5214 = scalar_lea.vmem %s504, 384 [#allocation7]
        %5215 = vst [vmem:[%s5214] sm:$0xff] %v5012
        %5216 = vst [vmem:[%s5214 + $0x8] sm:$0xff] %v5013
        %5217 = vst [vmem:[%s5214 + $0x10] sm:$0xff] %v5014
        %5218 = vst [vmem:[%s5214 + $0x18] sm:$0xff] %v5015
        %5219 = vst [vmem:[%s5214 + $0x20] sm:$0xff] %v5016
        %5220 = vst [vmem:[%s5214 + $0x28] sm:$0xff] %v5017
        %5221 = vst [vmem:[%s5214 + $0x30] sm:$0xff] %v5018
        %5222 = vst [vmem:[%s5214 + $0x38] sm:$0xff] %v5019
        %5223 = vst [vmem:[%s5214 + $0x40] sm:$0xff] %v5020
        %5224 = vst [vmem:[%s5214 + $0x48] sm:$0xff] %v5021
        %5225 = vst [vmem:[%s5214 + $0x50] sm:$0xff] %v5022
        %5226 = vst [vmem:[%s5214 + $0x58] sm:$0xff] %v5023
        %5227 = vst [vmem:[%s5214 + $0x60] sm:$0xff] %v5024
        %5228 = vst [vmem:[%s5214 + $0x68] sm:$0xff] %v5025
        %5229 = vst [vmem:[%s5214 + $0x70] sm:$0xff] %v5026
        %5230 = vst [vmem:[%s5214 + $0x78] sm:$0xff] %v5027
        %s5231 = scalar_lea.vmem %s504, 512 [#allocation7]
        %5232 = vst [vmem:[%s5231] sm:$0xff] %v5046
        %5233 = vst [vmem:[%s5231 + $0x8] sm:$0xff] %v5047
        %5234 = vst [vmem:[%s5231 + $0x10] sm:$0xff] %v5048
        %5235 = vst [vmem:[%s5231 + $0x18] sm:$0xff] %v5049
        %5236 = vst [vmem:[%s5231 + $0x20] sm:$0xff] %v5050
        %5237 = vst [vmem:[%s5231 + $0x28] sm:$0xff] %v5051
        %5238 = vst [vmem:[%s5231 + $0x30] sm:$0xff] %v5052
        %5239 = vst [vmem:[%s5231 + $0x38] sm:$0xff] %v5053
        %5240 = vst [vmem:[%s5231 + $0x40] sm:$0xff] %v5054
        %5241 = vst [vmem:[%s5231 + $0x48] sm:$0xff] %v5055
        %5242 = vst [vmem:[%s5231 + $0x50] sm:$0xff] %v5056
        %5243 = vst [vmem:[%s5231 + $0x58] sm:$0xff] %v5057
        %5244 = vst [vmem:[%s5231 + $0x60] sm:$0xff] %v5058
        %5245 = vst [vmem:[%s5231 + $0x68] sm:$0xff] %v5059
        %5246 = vst [vmem:[%s5231 + $0x70] sm:$0xff] %v5060
        %5247 = vst [vmem:[%s5231 + $0x78] sm:$0xff] %v5061
        %s5248 = scalar_lea.vmem %s504, 640 [#allocation7]
        %5249 = vst [vmem:[%s5248] sm:$0xff] %v5080
        %5250 = vst [vmem:[%s5248 + $0x8] sm:$0xff] %v5081
        %5251 = vst [vmem:[%s5248 + $0x10] sm:$0xff] %v5082
        %5252 = vst [vmem:[%s5248 + $0x18] sm:$0xff] %v5083
        %5253 = vst [vmem:[%s5248 + $0x20] sm:$0xff] %v5084
        %5254 = vst [vmem:[%s5248 + $0x28] sm:$0xff] %v5085
        %5255 = vst [vmem:[%s5248 + $0x30] sm:$0xff] %v5086
        %5256 = vst [vmem:[%s5248 + $0x38] sm:$0xff] %v5087
        %5257 = vst [vmem:[%s5248 + $0x40] sm:$0xff] %v5088
        %5258 = vst [vmem:[%s5248 + $0x48] sm:$0xff] %v5089
        %5259 = vst [vmem:[%s5248 + $0x50] sm:$0xff] %v5090
        %5260 = vst [vmem:[%s5248 + $0x58] sm:$0xff] %v5091
        %5261 = vst [vmem:[%s5248 + $0x60] sm:$0xff] %v5092
        %5262 = vst [vmem:[%s5248 + $0x68] sm:$0xff] %v5093
        %5263 = vst [vmem:[%s5248 + $0x70] sm:$0xff] %v5094
        %5264 = vst [vmem:[%s5248 + $0x78] sm:$0xff] %v5095
        %s5265 = scalar_lea.vmem %s504, 768 [#allocation7]
        %5266 = vst [vmem:[%s5265] sm:$0xff] %v5114
        %5267 = vst [vmem:[%s5265 + $0x8] sm:$0xff] %v5115
        %5268 = vst [vmem:[%s5265 + $0x10] sm:$0xff] %v5116
        %5269 = vst [vmem:[%s5265 + $0x18] sm:$0xff] %v5117
        %5270 = vst [vmem:[%s5265 + $0x20] sm:$0xff] %v5118
        %5271 = vst [vmem:[%s5265 + $0x28] sm:$0xff] %v5119
        %5272 = vst [vmem:[%s5265 + $0x30] sm:$0xff] %v5120
        %5273 = vst [vmem:[%s5265 + $0x38] sm:$0xff] %v5121
        %5274 = vst [vmem:[%s5265 + $0x40] sm:$0xff] %v5122
        %5275 = vst [vmem:[%s5265 + $0x48] sm:$0xff] %v5123
        %5276 = vst [vmem:[%s5265 + $0x50] sm:$0xff] %v5124
        %5277 = vst [vmem:[%s5265 + $0x58] sm:$0xff] %v5125
        %5278 = vst [vmem:[%s5265 + $0x60] sm:$0xff] %v5126
        %5279 = vst [vmem:[%s5265 + $0x68] sm:$0xff] %v5127
        %5280 = vst [vmem:[%s5265 + $0x70] sm:$0xff] %v5128
        %5281 = vst [vmem:[%s5265 + $0x78] sm:$0xff] %v5129
        %s5282 = scalar_lea.vmem %s504, 896 [#allocation7]
        %5283 = vst [vmem:[%s5282] sm:$0xff] %v5148
        %5284 = vst [vmem:[%s5282 + $0x8] sm:$0xff] %v5149
        %5285 = vst [vmem:[%s5282 + $0x10] sm:$0xff] %v5150
        %5286 = vst [vmem:[%s5282 + $0x18] sm:$0xff] %v5151
        %5287 = vst [vmem:[%s5282 + $0x20] sm:$0xff] %v5152
        %5288 = vst [vmem:[%s5282 + $0x28] sm:$0xff] %v5153
        %5289 = vst [vmem:[%s5282 + $0x30] sm:$0xff] %v5154
        %5290 = vst [vmem:[%s5282 + $0x38] sm:$0xff] %v5155
        %5291 = vst [vmem:[%s5282 + $0x40] sm:$0xff] %v5156
        %5292 = vst [vmem:[%s5282 + $0x48] sm:$0xff] %v5157
        %5293 = vst [vmem:[%s5282 + $0x50] sm:$0xff] %v5158
        %5294 = vst [vmem:[%s5282 + $0x58] sm:$0xff] %v5159
        %5295 = vst [vmem:[%s5282 + $0x60] sm:$0xff] %v5160
        %5296 = vst [vmem:[%s5282 + $0x68] sm:$0xff] %v5161
        %5297 = vst [vmem:[%s5282 + $0x70] sm:$0xff] %v5162
        %5298 = vst [vmem:[%s5282 + $0x78] sm:$0xff] %v5163
        %s5299 = sand.u32 %s114, 1
        %s5300 = sand.u32 %s114, 1
        %s5301 = smul.addr %s5300, 1024
        %s5302 = scalar_lea.vmem [#allocation7], %s5301
        // Predicated region
        $region83: #{sparse_chebyshev_gconv2d.1} parent=69 // pred_check
          %p5303 = pneg %p124
        $region84: #{sparse_chebyshev_gconv2d.1} parent=69 // pred_check_branch
          %5305 = sbr.rel (%p5303) target = $region86
        $region85: #{sparse_chebyshev_gconv2d.1} parent=69 // pred_region
          %s5306 = smul.addr %s17, 8
          %s5307 = scalar_lea.vmem %s4, %s5306
          // Predicated region
          $region87: #{sparse_chebyshev_gconv2d.1} parent=85 // pred_check
            _
          $region88: #{sparse_chebyshev_gconv2d.1} parent=85 // pred_check_branch
            %5309 = sbr.rel (0) target = $region90
          $region89: #{sparse_chebyshev_gconv2d.1} parent=85 // pred_region
            // Predicated region
            $region91: #{sparse_chebyshev_gconv2d.1} parent=89 // pred_check
              _
            $region92: #{sparse_chebyshev_gconv2d.1} parent=89 // pred_check_branch
              %5311 = sbr.rel (0) target = $region94
            $region93: #{sparse_chebyshev_gconv2d.1} parent=89 // pred_region
              // Predicated region
              $region106: #{sparse_chebyshev_gconv2d.1} parent=93 // pred_check
                _
              $region107: #{sparse_chebyshev_gconv2d.1} parent=93 // pred_check_branch
                %5580 = sbr.rel (0) target = $region109
              $region108: #{sparse_chebyshev_gconv2d.1} parent=93 // pred_region
                loop: start=0, step=1, limit=1
                $region110: #{sparse_chebyshev_gconv2d.1} parent=108 // loop_pre_header
                  _
                $region111: #{sparse_chebyshev_gconv2d.1} parent=108 // loop_header
                  %s5582 = sphi 0, %s5586
                  %p5583 = scmp.ge.s32.totalorder %s5582, 1
                  %s5587 = sphi %s5302, %s5302
                  %s5588 = sphi %s5307, %s5307
                $region112: #{sparse_chebyshev_gconv2d.1} parent=108 // loop_header_branch
                  %5585 = sbr.rel (%p5583) target = $region116
                $region113: #{sparse_chebyshev_gconv2d.1} parent=108 // loop_body
                  %v5589 = vld [vmem:[%s5587] sm:$0xff]
                  %5590 = vst [vmem:[%s5588] sm:$0xff] %v5589
                  %v5591 = vld [vmem:[%s5587 + $0x8] sm:$0xff]
                  %5592 = vst [vmem:[%s5588 + $0x10] sm:$0xff] %v5591
                  %v5593 = vld [vmem:[%s5587 + $0x10] sm:$0xff]
                  %5594 = vst [vmem:[%s5588 + $0x20] sm:$0xff] %v5593
                  %v5595 = vld [vmem:[%s5587 + $0x18] sm:$0xff]
                  %5596 = vst [vmem:[%s5588 + $0x30] sm:$0xff] %v5595
                  %v5597 = vld [vmem:[%s5587 + $0x20] sm:$0xff]
                  %5598 = vst [vmem:[%s5588 + $0x40] sm:$0xff] %v5597
                  %v5599 = vld [vmem:[%s5587 + $0x28] sm:$0xff]
                  %5600 = vst [vmem:[%s5588 + $0x50] sm:$0xff] %v5599
                  %v5601 = vld [vmem:[%s5587 + $0x30] sm:$0xff]
                  %5602 = vst [vmem:[%s5588 + $0x60] sm:$0xff] %v5601
                  %v5603 = vld [vmem:[%s5587 + $0x38] sm:$0xff]
                  %5604 = vst [vmem:[%s5588 + $0x70] sm:$0xff] %v5603
                  %v5605 = vld [vmem:[%s5587 + $0x40] sm:$0xff]
                  %5606 = vst [vmem:[%s5588 + $0x80] sm:$0xff] %v5605
                  %v5607 = vld [vmem:[%s5587 + $0x48] sm:$0xff]
                  %5608 = vst [vmem:[%s5588 + $0x90] sm:$0xff] %v5607
                  %v5609 = vld [vmem:[%s5587 + $0x50] sm:$0xff]
                  %5610 = vst [vmem:[%s5588 + $0xa0] sm:$0xff] %v5609
                  %v5611 = vld [vmem:[%s5587 + $0x58] sm:$0xff]
                  %5612 = vst [vmem:[%s5588 + $0xb0] sm:$0xff] %v5611
                  %v5613 = vld [vmem:[%s5587 + $0x60] sm:$0xff]
                  %5614 = vst [vmem:[%s5588 + $0xc0] sm:$0xff] %v5613
                  %v5615 = vld [vmem:[%s5587 + $0x68] sm:$0xff]
                  %5616 = vst [vmem:[%s5588 + $0xd0] sm:$0xff] %v5615
                  %v5617 = vld [vmem:[%s5587 + $0x70] sm:$0xff]
                  %5618 = vst [vmem:[%s5588 + $0xe0] sm:$0xff] %v5617
                  %v5619 = vld [vmem:[%s5587 + $0x78] sm:$0xff]
                  %5620 = vst [vmem:[%s5588 + $0xf0] sm:$0xff] %v5619
                  %v5621 = vld [vmem:[%s5587 + $0x80] sm:$0xff]
                  %5622 = vst [vmem:[%s5588 + $0x100] sm:$0xff] %v5621
                  %v5623 = vld [vmem:[%s5587 + $0x88] sm:$0xff]
                  %5624 = vst [vmem:[%s5588 + $0x110] sm:$0xff] %v5623
                  %v5625 = vld [vmem:[%s5587 + $0x90] sm:$0xff]
                  %5626 = vst [vmem:[%s5588 + $0x120] sm:$0xff] %v5625
                  %v5627 = vld [vmem:[%s5587 + $0x98] sm:$0xff]
                  %5628 = vst [vmem:[%s5588 + $0x130] sm:$0xff] %v5627
                  %v5629 = vld [vmem:[%s5587 + $0xa0] sm:$0xff]
                  %5630 = vst [vmem:[%s5588 + $0x140] sm:$0xff] %v5629
                  %v5631 = vld [vmem:[%s5587 + $0xa8] sm:$0xff]
                  %5632 = vst [vmem:[%s5588 + $0x150] sm:$0xff] %v5631
                  %v5633 = vld [vmem:[%s5587 + $0xb0] sm:$0xff]
                  %5634 = vst [vmem:[%s5588 + $0x160] sm:$0xff] %v5633
                  %v5635 = vld [vmem:[%s5587 + $0xb8] sm:$0xff]
                  %5636 = vst [vmem:[%s5588 + $0x170] sm:$0xff] %v5635
                  %v5637 = vld [vmem:[%s5587 + $0xc0] sm:$0xff]
                  %5638 = vst [vmem:[%s5588 + $0x180] sm:$0xff] %v5637
                  %v5639 = vld [vmem:[%s5587 + $0xc8] sm:$0xff]
                  %5640 = vst [vmem:[%s5588 + $0x190] sm:$0xff] %v5639
                  %v5641 = vld [vmem:[%s5587 + $0xd0] sm:$0xff]
                  %5642 = vst [vmem:[%s5588 + $0x1a0] sm:$0xff] %v5641
                  %v5643 = vld [vmem:[%s5587 + $0xd8] sm:$0xff]
                  %5644 = vst [vmem:[%s5588 + $0x1b0] sm:$0xff] %v5643
                  %v5645 = vld [vmem:[%s5587 + $0xe0] sm:$0xff]
                  %5646 = vst [vmem:[%s5588 + $0x1c0] sm:$0xff] %v5645
                  %v5647 = vld [vmem:[%s5587 + $0xe8] sm:$0xff]
                  %5648 = vst [vmem:[%s5588 + $0x1d0] sm:$0xff] %v5647
                  %v5649 = vld [vmem:[%s5587 + $0xf0] sm:$0xff]
                  %5650 = vst [vmem:[%s5588 + $0x1e0] sm:$0xff] %v5649
                  %v5651 = vld [vmem:[%s5587 + $0xf8] sm:$0xff]
                  %5652 = vst [vmem:[%s5588 + $0x1f0] sm:$0xff] %v5651
                  %v5653 = vld [vmem:[%s5587 + $0x100] sm:$0xff]
                  %5654 = vst [vmem:[%s5588 + $0x200] sm:$0xff] %v5653
                  %v5655 = vld [vmem:[%s5587 + $0x108] sm:$0xff]
                  %5656 = vst [vmem:[%s5588 + $0x210] sm:$0xff] %v5655
                  %v5657 = vld [vmem:[%s5587 + $0x110] sm:$0xff]
                  %5658 = vst [vmem:[%s5588 + $0x220] sm:$0xff] %v5657
                  %v5659 = vld [vmem:[%s5587 + $0x118] sm:$0xff]
                  %5660 = vst [vmem:[%s5588 + $0x230] sm:$0xff] %v5659
                  %v5661 = vld [vmem:[%s5587 + $0x120] sm:$0xff]
                  %5662 = vst [vmem:[%s5588 + $0x240] sm:$0xff] %v5661
                  %v5663 = vld [vmem:[%s5587 + $0x128] sm:$0xff]
                  %5664 = vst [vmem:[%s5588 + $0x250] sm:$0xff] %v5663
                  %v5665 = vld [vmem:[%s5587 + $0x130] sm:$0xff]
                  %5666 = vst [vmem:[%s5588 + $0x260] sm:$0xff] %v5665
                  %v5667 = vld [vmem:[%s5587 + $0x138] sm:$0xff]
                  %5668 = vst [vmem:[%s5588 + $0x270] sm:$0xff] %v5667
                  %v5669 = vld [vmem:[%s5587 + $0x140] sm:$0xff]
                  %5670 = vst [vmem:[%s5588 + $0x280] sm:$0xff] %v5669
                  %v5671 = vld [vmem:[%s5587 + $0x148] sm:$0xff]
                  %5672 = vst [vmem:[%s5588 + $0x290] sm:$0xff] %v5671
                  %v5673 = vld [vmem:[%s5587 + $0x150] sm:$0xff]
                  %5674 = vst [vmem:[%s5588 + $0x2a0] sm:$0xff] %v5673
                  %v5675 = vld [vmem:[%s5587 + $0x158] sm:$0xff]
                  %5676 = vst [vmem:[%s5588 + $0x2b0] sm:$0xff] %v5675
                  %v5677 = vld [vmem:[%s5587 + $0x160] sm:$0xff]
                  %5678 = vst [vmem:[%s5588 + $0x2c0] sm:$0xff] %v5677
                  %v5679 = vld [vmem:[%s5587 + $0x168] sm:$0xff]
                  %5680 = vst [vmem:[%s5588 + $0x2d0] sm:$0xff] %v5679
                  %v5681 = vld [vmem:[%s5587 + $0x170] sm:$0xff]
                  %5682 = vst [vmem:[%s5588 + $0x2e0] sm:$0xff] %v5681
                  %v5683 = vld [vmem:[%s5587 + $0x178] sm:$0xff]
                  %5684 = vst [vmem:[%s5588 + $0x2f0] sm:$0xff] %v5683
                  %v5685 = vld [vmem:[%s5587 + $0x180] sm:$0xff]
                  %5686 = vst [vmem:[%s5588 + $0x300] sm:$0xff] %v5685
                  %v5687 = vld [vmem:[%s5587 + $0x188] sm:$0xff]
                  %5688 = vst [vmem:[%s5588 + $0x310] sm:$0xff] %v5687
                  %v5689 = vld [vmem:[%s5587 + $0x190] sm:$0xff]
                  %5690 = vst [vmem:[%s5588 + $0x320] sm:$0xff] %v5689
                  %v5691 = vld [vmem:[%s5587 + $0x198] sm:$0xff]
                  %5692 = vst [vmem:[%s5588 + $0x330] sm:$0xff] %v5691
                  %v5693 = vld [vmem:[%s5587 + $0x1a0] sm:$0xff]
                  %5694 = vst [vmem:[%s5588 + $0x340] sm:$0xff] %v5693
                  %v5695 = vld [vmem:[%s5587 + $0x1a8] sm:$0xff]
                  %5696 = vst [vmem:[%s5588 + $0x350] sm:$0xff] %v5695
                  %v5697 = vld [vmem:[%s5587 + $0x1b0] sm:$0xff]
                  %5698 = vst [vmem:[%s5588 + $0x360] sm:$0xff] %v5697
                  %v5699 = vld [vmem:[%s5587 + $0x1b8] sm:$0xff]
                  %5700 = vst [vmem:[%s5588 + $0x370] sm:$0xff] %v5699
                  %v5701 = vld [vmem:[%s5587 + $0x1c0] sm:$0xff]
                  %5702 = vst [vmem:[%s5588 + $0x380] sm:$0xff] %v5701
                  %v5703 = vld [vmem:[%s5587 + $0x1c8] sm:$0xff]
                  %5704 = vst [vmem:[%s5588 + $0x390] sm:$0xff] %v5703
                  %v5705 = vld [vmem:[%s5587 + $0x1d0] sm:$0xff]
                  %5706 = vst [vmem:[%s5588 + $0x3a0] sm:$0xff] %v5705
                  %v5707 = vld [vmem:[%s5587 + $0x1d8] sm:$0xff]
                  %5708 = vst [vmem:[%s5588 + $0x3b0] sm:$0xff] %v5707
                  %v5709 = vld [vmem:[%s5587 + $0x1e0] sm:$0xff]
                  %5710 = vst [vmem:[%s5588 + $0x3c0] sm:$0xff] %v5709
                  %v5711 = vld [vmem:[%s5587 + $0x1e8] sm:$0xff]
                  %5712 = vst [vmem:[%s5588 + $0x3d0] sm:$0xff] %v5711
                  %v5713 = vld [vmem:[%s5587 + $0x1f0] sm:$0xff]
                  %5714 = vst [vmem:[%s5588 + $0x3e0] sm:$0xff] %v5713
                  %v5715 = vld [vmem:[%s5587 + $0x1f8] sm:$0xff]
                  %5716 = vst [vmem:[%s5588 + $0x3f0] sm:$0xff] %v5715
                  %v5717 = vld [vmem:[%s5587 + $0x200] sm:$0xff]
                  %5718 = vst [vmem:[%s5588 + $0x400] sm:$0xff] %v5717
                  %v5719 = vld [vmem:[%s5587 + $0x208] sm:$0xff]
                  %5720 = vst [vmem:[%s5588 + $0x410] sm:$0xff] %v5719
                  %v5721 = vld [vmem:[%s5587 + $0x210] sm:$0xff]
                  %5722 = vst [vmem:[%s5588 + $0x420] sm:$0xff] %v5721
                  %v5723 = vld [vmem:[%s5587 + $0x218] sm:$0xff]
                  %5724 = vst [vmem:[%s5588 + $0x430] sm:$0xff] %v5723
                  %v5725 = vld [vmem:[%s5587 + $0x220] sm:$0xff]
                  %5726 = vst [vmem:[%s5588 + $0x440] sm:$0xff] %v5725
                  %v5727 = vld [vmem:[%s5587 + $0x228] sm:$0xff]
                  %5728 = vst [vmem:[%s5588 + $0x450] sm:$0xff] %v5727
                  %v5729 = vld [vmem:[%s5587 + $0x230] sm:$0xff]
                  %5730 = vst [vmem:[%s5588 + $0x460] sm:$0xff] %v5729
                  %v5731 = vld [vmem:[%s5587 + $0x238] sm:$0xff]
                  %5732 = vst [vmem:[%s5588 + $0x470] sm:$0xff] %v5731
                  %v5733 = vld [vmem:[%s5587 + $0x240] sm:$0xff]
                  %5734 = vst [vmem:[%s5588 + $0x480] sm:$0xff] %v5733
                  %v5735 = vld [vmem:[%s5587 + $0x248] sm:$0xff]
                  %5736 = vst [vmem:[%s5588 + $0x490] sm:$0xff] %v5735
                  %v5737 = vld [vmem:[%s5587 + $0x250] sm:$0xff]
                  %5738 = vst [vmem:[%s5588 + $0x4a0] sm:$0xff] %v5737
                  %v5739 = vld [vmem:[%s5587 + $0x258] sm:$0xff]
                  %5740 = vst [vmem:[%s5588 + $0x4b0] sm:$0xff] %v5739
                  %v5741 = vld [vmem:[%s5587 + $0x260] sm:$0xff]
                  %5742 = vst [vmem:[%s5588 + $0x4c0] sm:$0xff] %v5741
                  %v5743 = vld [vmem:[%s5587 + $0x268] sm:$0xff]
                  %5744 = vst [vmem:[%s5588 + $0x4d0] sm:$0xff] %v5743
                  %v5745 = vld [vmem:[%s5587 + $0x270] sm:$0xff]
                  %5746 = vst [vmem:[%s5588 + $0x4e0] sm:$0xff] %v5745
                  %v5747 = vld [vmem:[%s5587 + $0x278] sm:$0xff]
                  %5748 = vst [vmem:[%s5588 + $0x4f0] sm:$0xff] %v5747
                  %v5749 = vld [vmem:[%s5587 + $0x280] sm:$0xff]
                  %5750 = vst [vmem:[%s5588 + $0x500] sm:$0xff] %v5749
                  %v5751 = vld [vmem:[%s5587 + $0x288] sm:$0xff]
                  %5752 = vst [vmem:[%s5588 + $0x510] sm:$0xff] %v5751
                  %v5753 = vld [vmem:[%s5587 + $0x290] sm:$0xff]
                  %5754 = vst [vmem:[%s5588 + $0x520] sm:$0xff] %v5753
                  %v5755 = vld [vmem:[%s5587 + $0x298] sm:$0xff]
                  %5756 = vst [vmem:[%s5588 + $0x530] sm:$0xff] %v5755
                  %v5757 = vld [vmem:[%s5587 + $0x2a0] sm:$0xff]
                  %5758 = vst [vmem:[%s5588 + $0x540] sm:$0xff] %v5757
                  %v5759 = vld [vmem:[%s5587 + $0x2a8] sm:$0xff]
                  %5760 = vst [vmem:[%s5588 + $0x550] sm:$0xff] %v5759
                  %v5761 = vld [vmem:[%s5587 + $0x2b0] sm:$0xff]
                  %5762 = vst [vmem:[%s5588 + $0x560] sm:$0xff] %v5761
                  %v5763 = vld [vmem:[%s5587 + $0x2b8] sm:$0xff]
                  %5764 = vst [vmem:[%s5588 + $0x570] sm:$0xff] %v5763
                  %v5765 = vld [vmem:[%s5587 + $0x2c0] sm:$0xff]
                  %5766 = vst [vmem:[%s5588 + $0x580] sm:$0xff] %v5765
                  %v5767 = vld [vmem:[%s5587 + $0x2c8] sm:$0xff]
                  %5768 = vst [vmem:[%s5588 + $0x590] sm:$0xff] %v5767
                  %v5769 = vld [vmem:[%s5587 + $0x2d0] sm:$0xff]
                  %5770 = vst [vmem:[%s5588 + $0x5a0] sm:$0xff] %v5769
                  %v5771 = vld [vmem:[%s5587 + $0x2d8] sm:$0xff]
                  %5772 = vst [vmem:[%s5588 + $0x5b0] sm:$0xff] %v5771
                  %v5773 = vld [vmem:[%s5587 + $0x2e0] sm:$0xff]
                  %5774 = vst [vmem:[%s5588 + $0x5c0] sm:$0xff] %v5773
                  %v5775 = vld [vmem:[%s5587 + $0x2e8] sm:$0xff]
                  %5776 = vst [vmem:[%s5588 + $0x5d0] sm:$0xff] %v5775
                  %v5777 = vld [vmem:[%s5587 + $0x2f0] sm:$0xff]
                  %5778 = vst [vmem:[%s5588 + $0x5e0] sm:$0xff] %v5777
                  %v5779 = vld [vmem:[%s5587 + $0x2f8] sm:$0xff]
                  %5780 = vst [vmem:[%s5588 + $0x5f0] sm:$0xff] %v5779
                  %v5781 = vld [vmem:[%s5587 + $0x300] sm:$0xff]
                  %5782 = vst [vmem:[%s5588 + $0x600] sm:$0xff] %v5781
                  %v5783 = vld [vmem:[%s5587 + $0x308] sm:$0xff]
                  %5784 = vst [vmem:[%s5588 + $0x610] sm:$0xff] %v5783
                  %v5785 = vld [vmem:[%s5587 + $0x310] sm:$0xff]
                  %5786 = vst [vmem:[%s5588 + $0x620] sm:$0xff] %v5785
                  %v5787 = vld [vmem:[%s5587 + $0x318] sm:$0xff]
                  %5788 = vst [vmem:[%s5588 + $0x630] sm:$0xff] %v5787
                  %v5789 = vld [vmem:[%s5587 + $0x320] sm:$0xff]
                  %5790 = vst [vmem:[%s5588 + $0x640] sm:$0xff] %v5789
                  %v5791 = vld [vmem:[%s5587 + $0x328] sm:$0xff]
                  %5792 = vst [vmem:[%s5588 + $0x650] sm:$0xff] %v5791
                  %v5793 = vld [vmem:[%s5587 + $0x330] sm:$0xff]
                  %5794 = vst [vmem:[%s5588 + $0x660] sm:$0xff] %v5793
                  %v5795 = vld [vmem:[%s5587 + $0x338] sm:$0xff]
                  %5796 = vst [vmem:[%s5588 + $0x670] sm:$0xff] %v5795
                  %v5797 = vld [vmem:[%s5587 + $0x340] sm:$0xff]
                  %5798 = vst [vmem:[%s5588 + $0x680] sm:$0xff] %v5797
                  %v5799 = vld [vmem:[%s5587 + $0x348] sm:$0xff]
                  %5800 = vst [vmem:[%s5588 + $0x690] sm:$0xff] %v5799
                  %v5801 = vld [vmem:[%s5587 + $0x350] sm:$0xff]
                  %5802 = vst [vmem:[%s5588 + $0x6a0] sm:$0xff] %v5801
                  %v5803 = vld [vmem:[%s5587 + $0x358] sm:$0xff]
                  %5804 = vst [vmem:[%s5588 + $0x6b0] sm:$0xff] %v5803
                  %v5805 = vld [vmem:[%s5587 + $0x360] sm:$0xff]
                  %5806 = vst [vmem:[%s5588 + $0x6c0] sm:$0xff] %v5805
                  %v5807 = vld [vmem:[%s5587 + $0x368] sm:$0xff]
                  %5808 = vst [vmem:[%s5588 + $0x6d0] sm:$0xff] %v5807
                  %v5809 = vld [vmem:[%s5587 + $0x370] sm:$0xff]
                  %5810 = vst [vmem:[%s5588 + $0x6e0] sm:$0xff] %v5809
                  %v5811 = vld [vmem:[%s5587 + $0x378] sm:$0xff]
                  %5812 = vst [vmem:[%s5588 + $0x6f0] sm:$0xff] %v5811
                  %v5813 = vld [vmem:[%s5587 + $0x380] sm:$0xff]
                  %5814 = vst [vmem:[%s5588 + $0x700] sm:$0xff] %v5813
                  %v5815 = vld [vmem:[%s5587 + $0x388] sm:$0xff]
                  %5816 = vst [vmem:[%s5588 + $0x710] sm:$0xff] %v5815
                  %v5817 = vld [vmem:[%s5587 + $0x390] sm:$0xff]
                  %5818 = vst [vmem:[%s5588 + $0x720] sm:$0xff] %v5817
                  %v5819 = vld [vmem:[%s5587 + $0x398] sm:$0xff]
                  %5820 = vst [vmem:[%s5588 + $0x730] sm:$0xff] %v5819
                  %v5821 = vld [vmem:[%s5587 + $0x3a0] sm:$0xff]
                  %5822 = vst [vmem:[%s5588 + $0x740] sm:$0xff] %v5821
                  %v5823 = vld [vmem:[%s5587 + $0x3a8] sm:$0xff]
                  %5824 = vst [vmem:[%s5588 + $0x750] sm:$0xff] %v5823
                  %v5825 = vld [vmem:[%s5587 + $0x3b0] sm:$0xff]
                  %5826 = vst [vmem:[%s5588 + $0x760] sm:$0xff] %v5825
                  %v5827 = vld [vmem:[%s5587 + $0x3b8] sm:$0xff]
                  %5828 = vst [vmem:[%s5588 + $0x770] sm:$0xff] %v5827
                  %v5829 = vld [vmem:[%s5587 + $0x3c0] sm:$0xff]
                  %5830 = vst [vmem:[%s5588 + $0x780] sm:$0xff] %v5829
                  %v5831 = vld [vmem:[%s5587 + $0x3c8] sm:$0xff]
                  %5832 = vst [vmem:[%s5588 + $0x790] sm:$0xff] %v5831
                  %v5833 = vld [vmem:[%s5587 + $0x3d0] sm:$0xff]
                  %5834 = vst [vmem:[%s5588 + $0x7a0] sm:$0xff] %v5833
                  %v5835 = vld [vmem:[%s5587 + $0x3d8] sm:$0xff]
                  %5836 = vst [vmem:[%s5588 + $0x7b0] sm:$0xff] %v5835
                  %v5837 = vld [vmem:[%s5587 + $0x3e0] sm:$0xff]
                  %5838 = vst [vmem:[%s5588 + $0x7c0] sm:$0xff] %v5837
                  %v5839 = vld [vmem:[%s5587 + $0x3e8] sm:$0xff]
                  %5840 = vst [vmem:[%s5588 + $0x7d0] sm:$0xff] %v5839
                  %v5841 = vld [vmem:[%s5587 + $0x3f0] sm:$0xff]
                  %5842 = vst [vmem:[%s5588 + $0x7e0] sm:$0xff] %v5841
                  %v5843 = vld [vmem:[%s5587 + $0x3f8] sm:$0xff]
                  %5844 = vst [vmem:[%s5588 + $0x7f0] sm:$0xff] %v5843
                $region114: #{sparse_chebyshev_gconv2d.1} parent=108 // loop_footer
                  %s5586 = sadd.s32 1, %s5582
                $region115: #{sparse_chebyshev_gconv2d.1} parent=108 // loop_footer_branch
                  %5581 = sbr.rel target = $region111
                $region116: #{sparse_chebyshev_gconv2d.1} parent=108 // loop_exit
                  _
              $region109: #{sparse_chebyshev_gconv2d.1} parent=93 // pred_fallthru
                _
              // Predicated region
              $region117: #{sparse_chebyshev_gconv2d.1} parent=93 // pred_check
                _
              $region118: #{sparse_chebyshev_gconv2d.1} parent=93 // pred_check_branch
                %5846 = sbr.rel target = $region120
              $region119: #{sparse_chebyshev_gconv2d.1} parent=93 // pred_region
                _
              $region120: #{sparse_chebyshev_gconv2d.1} parent=93 // pred_fallthru
                _
            $region94: #{sparse_chebyshev_gconv2d.1} parent=89 // pred_fallthru
              _
            // Predicated region
            $region95: #{sparse_chebyshev_gconv2d.1} parent=89 // pred_check
              _
            $region96: #{sparse_chebyshev_gconv2d.1} parent=89 // pred_check_branch
              %5313 = sbr.rel target = $region98
            $region97: #{sparse_chebyshev_gconv2d.1} parent=89 // pred_region
              loop: start=0, step=1, limit=1
              $region99: #{sparse_chebyshev_gconv2d.1} parent=97 // loop_pre_header
                _
              $region100: #{sparse_chebyshev_gconv2d.1} parent=97 // loop_header
                %s5316 = sphi 0, %s5320
                %p5317 = scmp.ge.s32.totalorder %s5316, 1
                %s5321 = sphi %s5302, %s5302
                %s5322 = sphi %s5307, %s5307
              $region101: #{sparse_chebyshev_gconv2d.1} parent=97 // loop_header_branch
                %5319 = sbr.rel (%p5317) target = $region105
              $region102: #{sparse_chebyshev_gconv2d.1} parent=97 // loop_body
                %v5323 = vld [vmem:[%s5321] sm:$0xff]
                %5324 = vst [vmem:[%s5322] sm:$0xff] %v5323
                %v5325 = vld [vmem:[%s5321 + $0x8] sm:$0xff]
                %5326 = vst [vmem:[%s5322 + $0x10] sm:$0xff] %v5325
                %v5327 = vld [vmem:[%s5321 + $0x10] sm:$0xff]
                %5328 = vst [vmem:[%s5322 + $0x20] sm:$0xff] %v5327
                %v5329 = vld [vmem:[%s5321 + $0x18] sm:$0xff]
                %5330 = vst [vmem:[%s5322 + $0x30] sm:$0xff] %v5329
                %v5331 = vld [vmem:[%s5321 + $0x20] sm:$0xff]
                %5332 = vst [vmem:[%s5322 + $0x40] sm:$0xff] %v5331
                %v5333 = vld [vmem:[%s5321 + $0x28] sm:$0xff]
                %5334 = vst [vmem:[%s5322 + $0x50] sm:$0xff] %v5333
                %v5335 = vld [vmem:[%s5321 + $0x30] sm:$0xff]
                %5336 = vst [vmem:[%s5322 + $0x60] sm:$0xff] %v5335
                %v5337 = vld [vmem:[%s5321 + $0x38] sm:$0xff]
                %5338 = vst [vmem:[%s5322 + $0x70] sm:$0xff] %v5337
                %v5339 = vld [vmem:[%s5321 + $0x40] sm:$0xff]
                %5340 = vst [vmem:[%s5322 + $0x80] sm:$0xff] %v5339
                %v5341 = vld [vmem:[%s5321 + $0x48] sm:$0xff]
                %5342 = vst [vmem:[%s5322 + $0x90] sm:$0xff] %v5341
                %v5343 = vld [vmem:[%s5321 + $0x50] sm:$0xff]
                %5344 = vst [vmem:[%s5322 + $0xa0] sm:$0xff] %v5343
                %v5345 = vld [vmem:[%s5321 + $0x58] sm:$0xff]
                %5346 = vst [vmem:[%s5322 + $0xb0] sm:$0xff] %v5345
                %v5347 = vld [vmem:[%s5321 + $0x60] sm:$0xff]
                %5348 = vst [vmem:[%s5322 + $0xc0] sm:$0xff] %v5347
                %v5349 = vld [vmem:[%s5321 + $0x68] sm:$0xff]
                %5350 = vst [vmem:[%s5322 + $0xd0] sm:$0xff] %v5349
                %v5351 = vld [vmem:[%s5321 + $0x70] sm:$0xff]
                %5352 = vst [vmem:[%s5322 + $0xe0] sm:$0xff] %v5351
                %v5353 = vld [vmem:[%s5321 + $0x78] sm:$0xff]
                %5354 = vst [vmem:[%s5322 + $0xf0] sm:$0xff] %v5353
                %v5355 = vld [vmem:[%s5321 + $0x80] sm:$0xff]
                %5356 = vst [vmem:[%s5322 + $0x100] sm:$0xff] %v5355
                %v5357 = vld [vmem:[%s5321 + $0x88] sm:$0xff]
                %5358 = vst [vmem:[%s5322 + $0x110] sm:$0xff] %v5357
                %v5359 = vld [vmem:[%s5321 + $0x90] sm:$0xff]
                %5360 = vst [vmem:[%s5322 + $0x120] sm:$0xff] %v5359
                %v5361 = vld [vmem:[%s5321 + $0x98] sm:$0xff]
                %5362 = vst [vmem:[%s5322 + $0x130] sm:$0xff] %v5361
                %v5363 = vld [vmem:[%s5321 + $0xa0] sm:$0xff]
                %5364 = vst [vmem:[%s5322 + $0x140] sm:$0xff] %v5363
                %v5365 = vld [vmem:[%s5321 + $0xa8] sm:$0xff]
                %5366 = vst [vmem:[%s5322 + $0x150] sm:$0xff] %v5365
                %v5367 = vld [vmem:[%s5321 + $0xb0] sm:$0xff]
                %5368 = vst [vmem:[%s5322 + $0x160] sm:$0xff] %v5367
                %v5369 = vld [vmem:[%s5321 + $0xb8] sm:$0xff]
                %5370 = vst [vmem:[%s5322 + $0x170] sm:$0xff] %v5369
                %v5371 = vld [vmem:[%s5321 + $0xc0] sm:$0xff]
                %5372 = vst [vmem:[%s5322 + $0x180] sm:$0xff] %v5371
                %v5373 = vld [vmem:[%s5321 + $0xc8] sm:$0xff]
                %5374 = vst [vmem:[%s5322 + $0x190] sm:$0xff] %v5373
                %v5375 = vld [vmem:[%s5321 + $0xd0] sm:$0xff]
                %5376 = vst [vmem:[%s5322 + $0x1a0] sm:$0xff] %v5375
                %v5377 = vld [vmem:[%s5321 + $0xd8] sm:$0xff]
                %5378 = vst [vmem:[%s5322 + $0x1b0] sm:$0xff] %v5377
                %v5379 = vld [vmem:[%s5321 + $0xe0] sm:$0xff]
                %5380 = vst [vmem:[%s5322 + $0x1c0] sm:$0xff] %v5379
                %v5381 = vld [vmem:[%s5321 + $0xe8] sm:$0xff]
                %5382 = vst [vmem:[%s5322 + $0x1d0] sm:$0xff] %v5381
                %v5383 = vld [vmem:[%s5321 + $0xf0] sm:$0xff]
                %5384 = vst [vmem:[%s5322 + $0x1e0] sm:$0xff] %v5383
                %v5385 = vld [vmem:[%s5321 + $0xf8] sm:$0xff]
                %5386 = vst [vmem:[%s5322 + $0x1f0] sm:$0xff] %v5385
                %v5387 = vld [vmem:[%s5321 + $0x100] sm:$0xff]
                %5388 = vst [vmem:[%s5322 + $0x200] sm:$0xff] %v5387
                %v5389 = vld [vmem:[%s5321 + $0x108] sm:$0xff]
                %5390 = vst [vmem:[%s5322 + $0x210] sm:$0xff] %v5389
                %v5391 = vld [vmem:[%s5321 + $0x110] sm:$0xff]
                %5392 = vst [vmem:[%s5322 + $0x220] sm:$0xff] %v5391
                %v5393 = vld [vmem:[%s5321 + $0x118] sm:$0xff]
                %5394 = vst [vmem:[%s5322 + $0x230] sm:$0xff] %v5393
                %v5395 = vld [vmem:[%s5321 + $0x120] sm:$0xff]
                %5396 = vst [vmem:[%s5322 + $0x240] sm:$0xff] %v5395
                %v5397 = vld [vmem:[%s5321 + $0x128] sm:$0xff]
                %5398 = vst [vmem:[%s5322 + $0x250] sm:$0xff] %v5397
                %v5399 = vld [vmem:[%s5321 + $0x130] sm:$0xff]
                %5400 = vst [vmem:[%s5322 + $0x260] sm:$0xff] %v5399
                %v5401 = vld [vmem:[%s5321 + $0x138] sm:$0xff]
                %5402 = vst [vmem:[%s5322 + $0x270] sm:$0xff] %v5401
                %v5403 = vld [vmem:[%s5321 + $0x140] sm:$0xff]
                %5404 = vst [vmem:[%s5322 + $0x280] sm:$0xff] %v5403
                %v5405 = vld [vmem:[%s5321 + $0x148] sm:$0xff]
                %5406 = vst [vmem:[%s5322 + $0x290] sm:$0xff] %v5405
                %v5407 = vld [vmem:[%s5321 + $0x150] sm:$0xff]
                %5408 = vst [vmem:[%s5322 + $0x2a0] sm:$0xff] %v5407
                %v5409 = vld [vmem:[%s5321 + $0x158] sm:$0xff]
                %5410 = vst [vmem:[%s5322 + $0x2b0] sm:$0xff] %v5409
                %v5411 = vld [vmem:[%s5321 + $0x160] sm:$0xff]
                %5412 = vst [vmem:[%s5322 + $0x2c0] sm:$0xff] %v5411
                %v5413 = vld [vmem:[%s5321 + $0x168] sm:$0xff]
                %5414 = vst [vmem:[%s5322 + $0x2d0] sm:$0xff] %v5413
                %v5415 = vld [vmem:[%s5321 + $0x170] sm:$0xff]
                %5416 = vst [vmem:[%s5322 + $0x2e0] sm:$0xff] %v5415
                %v5417 = vld [vmem:[%s5321 + $0x178] sm:$0xff]
                %5418 = vst [vmem:[%s5322 + $0x2f0] sm:$0xff] %v5417
                %v5419 = vld [vmem:[%s5321 + $0x180] sm:$0xff]
                %5420 = vst [vmem:[%s5322 + $0x300] sm:$0xff] %v5419
                %v5421 = vld [vmem:[%s5321 + $0x188] sm:$0xff]
                %5422 = vst [vmem:[%s5322 + $0x310] sm:$0xff] %v5421
                %v5423 = vld [vmem:[%s5321 + $0x190] sm:$0xff]
                %5424 = vst [vmem:[%s5322 + $0x320] sm:$0xff] %v5423
                %v5425 = vld [vmem:[%s5321 + $0x198] sm:$0xff]
                %5426 = vst [vmem:[%s5322 + $0x330] sm:$0xff] %v5425
                %v5427 = vld [vmem:[%s5321 + $0x1a0] sm:$0xff]
                %5428 = vst [vmem:[%s5322 + $0x340] sm:$0xff] %v5427
                %v5429 = vld [vmem:[%s5321 + $0x1a8] sm:$0xff]
                %5430 = vst [vmem:[%s5322 + $0x350] sm:$0xff] %v5429
                %v5431 = vld [vmem:[%s5321 + $0x1b0] sm:$0xff]
                %5432 = vst [vmem:[%s5322 + $0x360] sm:$0xff] %v5431
                %v5433 = vld [vmem:[%s5321 + $0x1b8] sm:$0xff]
                %5434 = vst [vmem:[%s5322 + $0x370] sm:$0xff] %v5433
                %v5435 = vld [vmem:[%s5321 + $0x1c0] sm:$0xff]
                %5436 = vst [vmem:[%s5322 + $0x380] sm:$0xff] %v5435
                %v5437 = vld [vmem:[%s5321 + $0x1c8] sm:$0xff]
                %5438 = vst [vmem:[%s5322 + $0x390] sm:$0xff] %v5437
                %v5439 = vld [vmem:[%s5321 + $0x1d0] sm:$0xff]
                %5440 = vst [vmem:[%s5322 + $0x3a0] sm:$0xff] %v5439
                %v5441 = vld [vmem:[%s5321 + $0x1d8] sm:$0xff]
                %5442 = vst [vmem:[%s5322 + $0x3b0] sm:$0xff] %v5441
                %v5443 = vld [vmem:[%s5321 + $0x1e0] sm:$0xff]
                %5444 = vst [vmem:[%s5322 + $0x3c0] sm:$0xff] %v5443
                %v5445 = vld [vmem:[%s5321 + $0x1e8] sm:$0xff]
                %5446 = vst [vmem:[%s5322 + $0x3d0] sm:$0xff] %v5445
                %v5447 = vld [vmem:[%s5321 + $0x1f0] sm:$0xff]
                %5448 = vst [vmem:[%s5322 + $0x3e0] sm:$0xff] %v5447
                %v5449 = vld [vmem:[%s5321 + $0x1f8] sm:$0xff]
                %5450 = vst [vmem:[%s5322 + $0x3f0] sm:$0xff] %v5449
                %v5451 = vld [vmem:[%s5321 + $0x200] sm:$0xff]
                %5452 = vst [vmem:[%s5322 + $0x400] sm:$0xff] %v5451
                %v5453 = vld [vmem:[%s5321 + $0x208] sm:$0xff]
                %5454 = vst [vmem:[%s5322 + $0x410] sm:$0xff] %v5453
                %v5455 = vld [vmem:[%s5321 + $0x210] sm:$0xff]
                %5456 = vst [vmem:[%s5322 + $0x420] sm:$0xff] %v5455
                %v5457 = vld [vmem:[%s5321 + $0x218] sm:$0xff]
                %5458 = vst [vmem:[%s5322 + $0x430] sm:$0xff] %v5457
                %v5459 = vld [vmem:[%s5321 + $0x220] sm:$0xff]
                %5460 = vst [vmem:[%s5322 + $0x440] sm:$0xff] %v5459
                %v5461 = vld [vmem:[%s5321 + $0x228] sm:$0xff]
                %5462 = vst [vmem:[%s5322 + $0x450] sm:$0xff] %v5461
                %v5463 = vld [vmem:[%s5321 + $0x230] sm:$0xff]
                %5464 = vst [vmem:[%s5322 + $0x460] sm:$0xff] %v5463
                %v5465 = vld [vmem:[%s5321 + $0x238] sm:$0xff]
                %5466 = vst [vmem:[%s5322 + $0x470] sm:$0xff] %v5465
                %v5467 = vld [vmem:[%s5321 + $0x240] sm:$0xff]
                %5468 = vst [vmem:[%s5322 + $0x480] sm:$0xff] %v5467
                %v5469 = vld [vmem:[%s5321 + $0x248] sm:$0xff]
                %5470 = vst [vmem:[%s5322 + $0x490] sm:$0xff] %v5469
                %v5471 = vld [vmem:[%s5321 + $0x250] sm:$0xff]
                %5472 = vst [vmem:[%s5322 + $0x4a0] sm:$0xff] %v5471
                %v5473 = vld [vmem:[%s5321 + $0x258] sm:$0xff]
                %5474 = vst [vmem:[%s5322 + $0x4b0] sm:$0xff] %v5473
                %v5475 = vld [vmem:[%s5321 + $0x260] sm:$0xff]
                %5476 = vst [vmem:[%s5322 + $0x4c0] sm:$0xff] %v5475
                %v5477 = vld [vmem:[%s5321 + $0x268] sm:$0xff]
                %5478 = vst [vmem:[%s5322 + $0x4d0] sm:$0xff] %v5477
                %v5479 = vld [vmem:[%s5321 + $0x270] sm:$0xff]
                %5480 = vst [vmem:[%s5322 + $0x4e0] sm:$0xff] %v5479
                %v5481 = vld [vmem:[%s5321 + $0x278] sm:$0xff]
                %5482 = vst [vmem:[%s5322 + $0x4f0] sm:$0xff] %v5481
                %v5483 = vld [vmem:[%s5321 + $0x280] sm:$0xff]
                %5484 = vst [vmem:[%s5322 + $0x500] sm:$0xff] %v5483
                %v5485 = vld [vmem:[%s5321 + $0x288] sm:$0xff]
                %5486 = vst [vmem:[%s5322 + $0x510] sm:$0xff] %v5485
                %v5487 = vld [vmem:[%s5321 + $0x290] sm:$0xff]
                %5488 = vst [vmem:[%s5322 + $0x520] sm:$0xff] %v5487
                %v5489 = vld [vmem:[%s5321 + $0x298] sm:$0xff]
                %5490 = vst [vmem:[%s5322 + $0x530] sm:$0xff] %v5489
                %v5491 = vld [vmem:[%s5321 + $0x2a0] sm:$0xff]
                %5492 = vst [vmem:[%s5322 + $0x540] sm:$0xff] %v5491
                %v5493 = vld [vmem:[%s5321 + $0x2a8] sm:$0xff]
                %5494 = vst [vmem:[%s5322 + $0x550] sm:$0xff] %v5493
                %v5495 = vld [vmem:[%s5321 + $0x2b0] sm:$0xff]
                %5496 = vst [vmem:[%s5322 + $0x560] sm:$0xff] %v5495
                %v5497 = vld [vmem:[%s5321 + $0x2b8] sm:$0xff]
                %5498 = vst [vmem:[%s5322 + $0x570] sm:$0xff] %v5497
                %v5499 = vld [vmem:[%s5321 + $0x2c0] sm:$0xff]
                %5500 = vst [vmem:[%s5322 + $0x580] sm:$0xff] %v5499
                %v5501 = vld [vmem:[%s5321 + $0x2c8] sm:$0xff]
                %5502 = vst [vmem:[%s5322 + $0x590] sm:$0xff] %v5501
                %v5503 = vld [vmem:[%s5321 + $0x2d0] sm:$0xff]
                %5504 = vst [vmem:[%s5322 + $0x5a0] sm:$0xff] %v5503
                %v5505 = vld [vmem:[%s5321 + $0x2d8] sm:$0xff]
                %5506 = vst [vmem:[%s5322 + $0x5b0] sm:$0xff] %v5505
                %v5507 = vld [vmem:[%s5321 + $0x2e0] sm:$0xff]
                %5508 = vst [vmem:[%s5322 + $0x5c0] sm:$0xff] %v5507
                %v5509 = vld [vmem:[%s5321 + $0x2e8] sm:$0xff]
                %5510 = vst [vmem:[%s5322 + $0x5d0] sm:$0xff] %v5509
                %v5511 = vld [vmem:[%s5321 + $0x2f0] sm:$0xff]
                %5512 = vst [vmem:[%s5322 + $0x5e0] sm:$0xff] %v5511
                %v5513 = vld [vmem:[%s5321 + $0x2f8] sm:$0xff]
                %5514 = vst [vmem:[%s5322 + $0x5f0] sm:$0xff] %v5513
                %v5515 = vld [vmem:[%s5321 + $0x300] sm:$0xff]
                %5516 = vst [vmem:[%s5322 + $0x600] sm:$0xff] %v5515
                %v5517 = vld [vmem:[%s5321 + $0x308] sm:$0xff]
                %5518 = vst [vmem:[%s5322 + $0x610] sm:$0xff] %v5517
                %v5519 = vld [vmem:[%s5321 + $0x310] sm:$0xff]
                %5520 = vst [vmem:[%s5322 + $0x620] sm:$0xff] %v5519
                %v5521 = vld [vmem:[%s5321 + $0x318] sm:$0xff]
                %5522 = vst [vmem:[%s5322 + $0x630] sm:$0xff] %v5521
                %v5523 = vld [vmem:[%s5321 + $0x320] sm:$0xff]
                %5524 = vst [vmem:[%s5322 + $0x640] sm:$0xff] %v5523
                %v5525 = vld [vmem:[%s5321 + $0x328] sm:$0xff]
                %5526 = vst [vmem:[%s5322 + $0x650] sm:$0xff] %v5525
                %v5527 = vld [vmem:[%s5321 + $0x330] sm:$0xff]
                %5528 = vst [vmem:[%s5322 + $0x660] sm:$0xff] %v5527
                %v5529 = vld [vmem:[%s5321 + $0x338] sm:$0xff]
                %5530 = vst [vmem:[%s5322 + $0x670] sm:$0xff] %v5529
                %v5531 = vld [vmem:[%s5321 + $0x340] sm:$0xff]
                %5532 = vst [vmem:[%s5322 + $0x680] sm:$0xff] %v5531
                %v5533 = vld [vmem:[%s5321 + $0x348] sm:$0xff]
                %5534 = vst [vmem:[%s5322 + $0x690] sm:$0xff] %v5533
                %v5535 = vld [vmem:[%s5321 + $0x350] sm:$0xff]
                %5536 = vst [vmem:[%s5322 + $0x6a0] sm:$0xff] %v5535
                %v5537 = vld [vmem:[%s5321 + $0x358] sm:$0xff]
                %5538 = vst [vmem:[%s5322 + $0x6b0] sm:$0xff] %v5537
                %v5539 = vld [vmem:[%s5321 + $0x360] sm:$0xff]
                %5540 = vst [vmem:[%s5322 + $0x6c0] sm:$0xff] %v5539
                %v5541 = vld [vmem:[%s5321 + $0x368] sm:$0xff]
                %5542 = vst [vmem:[%s5322 + $0x6d0] sm:$0xff] %v5541
                %v5543 = vld [vmem:[%s5321 + $0x370] sm:$0xff]
                %5544 = vst [vmem:[%s5322 + $0x6e0] sm:$0xff] %v5543
                %v5545 = vld [vmem:[%s5321 + $0x378] sm:$0xff]
                %5546 = vst [vmem:[%s5322 + $0x6f0] sm:$0xff] %v5545
                %v5547 = vld [vmem:[%s5321 + $0x380] sm:$0xff]
                %5548 = vst [vmem:[%s5322 + $0x700] sm:$0xff] %v5547
                %v5549 = vld [vmem:[%s5321 + $0x388] sm:$0xff]
                %5550 = vst [vmem:[%s5322 + $0x710] sm:$0xff] %v5549
                %v5551 = vld [vmem:[%s5321 + $0x390] sm:$0xff]
                %5552 = vst [vmem:[%s5322 + $0x720] sm:$0xff] %v5551
                %v5553 = vld [vmem:[%s5321 + $0x398] sm:$0xff]
                %5554 = vst [vmem:[%s5322 + $0x730] sm:$0xff] %v5553
                %v5555 = vld [vmem:[%s5321 + $0x3a0] sm:$0xff]
                %5556 = vst [vmem:[%s5322 + $0x740] sm:$0xff] %v5555
                %v5557 = vld [vmem:[%s5321 + $0x3a8] sm:$0xff]
                %5558 = vst [vmem:[%s5322 + $0x750] sm:$0xff] %v5557
                %v5559 = vld [vmem:[%s5321 + $0x3b0] sm:$0xff]
                %5560 = vst [vmem:[%s5322 + $0x760] sm:$0xff] %v5559
                %v5561 = vld [vmem:[%s5321 + $0x3b8] sm:$0xff]
                %5562 = vst [vmem:[%s5322 + $0x770] sm:$0xff] %v5561
                %v5563 = vld [vmem:[%s5321 + $0x3c0] sm:$0xff]
                %5564 = vst [vmem:[%s5322 + $0x780] sm:$0xff] %v5563
                %v5565 = vld [vmem:[%s5321 + $0x3c8] sm:$0xff]
                %5566 = vst [vmem:[%s5322 + $0x790] sm:$0xff] %v5565
                %v5567 = vld [vmem:[%s5321 + $0x3d0] sm:$0xff]
                %5568 = vst [vmem:[%s5322 + $0x7a0] sm:$0xff] %v5567
                %v5569 = vld [vmem:[%s5321 + $0x3d8] sm:$0xff]
                %5570 = vst [vmem:[%s5322 + $0x7b0] sm:$0xff] %v5569
                %v5571 = vld [vmem:[%s5321 + $0x3e0] sm:$0xff]
                %5572 = vst [vmem:[%s5322 + $0x7c0] sm:$0xff] %v5571
                %v5573 = vld [vmem:[%s5321 + $0x3e8] sm:$0xff]
                %5574 = vst [vmem:[%s5322 + $0x7d0] sm:$0xff] %v5573
                %v5575 = vld [vmem:[%s5321 + $0x3f0] sm:$0xff]
                %5576 = vst [vmem:[%s5322 + $0x7e0] sm:$0xff] %v5575
                %v5577 = vld [vmem:[%s5321 + $0x3f8] sm:$0xff]
                %5578 = vst [vmem:[%s5322 + $0x7f0] sm:$0xff] %v5577
              $region103: #{sparse_chebyshev_gconv2d.1} parent=97 // loop_footer
                %s5320 = sadd.s32 1, %s5316
              $region104: #{sparse_chebyshev_gconv2d.1} parent=97 // loop_footer_branch
                %5315 = sbr.rel target = $region100
              $region105: #{sparse_chebyshev_gconv2d.1} parent=97 // loop_exit
                _
            $region98: #{sparse_chebyshev_gconv2d.1} parent=89 // pred_fallthru
              _
          $region90: #{sparse_chebyshev_gconv2d.1} parent=85 // pred_fallthru
            _
          %5847 = vnop
        $region86: #{sparse_chebyshev_gconv2d.1} parent=69 // pred_fallthru
          _
      $region70: #{sparse_chebyshev_gconv2d.1} parent=5 // pred_fallthru
        _
      %p5848 = scmp.le.s32.totalorder 2, %s12
      // Predicated region
      $region121: #{sparse_chebyshev_gconv2d.1} parent=5 // pred_check
        %p5849 = pneg %p5848
      $region122: #{sparse_chebyshev_gconv2d.1} parent=5 // pred_check_branch
        %5851 = sbr.rel (%p5849) target = $region124
      $region123: #{sparse_chebyshev_gconv2d.1} parent=5 // pred_region
        %s5852 = ssub.s32 %s12, 2
        // Predicated region
        $region125: #{sparse_chebyshev_gconv2d.1} parent=123 // pred_check
          %p5853 = pneg %p130
        $region126: #{sparse_chebyshev_gconv2d.1} parent=123 // pred_check_branch
          %5855 = sbr.rel (%p5853) target = $region128
        $region127: #{sparse_chebyshev_gconv2d.1} parent=123 // pred_region
          %s5856 = sand.u32 %s115, 1
          %s5857 = sand.u32 %s115, 1
          %s5858 = smul.addr %s5857, 1024
          %s5859 = scalar_lea.vmem [#allocation7], %s5858
        $region128: #{sparse_chebyshev_gconv2d.1} parent=123 // pred_fallthru
          _
      $region124: #{sparse_chebyshev_gconv2d.1} parent=5 // pred_fallthru
        _
    $region6: #{sparse_chebyshev_gconv2d.1} parent=1 // loop_footer
      %s16 = sadd.s32 1, %s12
    $region7: #{sparse_chebyshev_gconv2d.1} parent=1 // loop_footer_branch
      %11 = sbr.rel target = $region3
    $region8: #{sparse_chebyshev_gconv2d.1} parent=1 // loop_exit
      _
    %5860 = vsyncpa [#allocation3], 1
    %s5861 = scalar_lea.sflag [#allocation3], 1
    %5862 = vsyncpa %s5861, 1
    %5863 = vsyncpa [#allocation5], 1

</llo_original>
